<compile_context>
chip_gen: v6e
topology: v6e:2x2x1
jax: 0.10.0
libtpu: 0.0.40
codegen_flags: <defaults>
</compile_context>

<pallas_src>
import math
import functools

import jax
import jax.numpy as jnp
from jax.experimental import pallas as pl
from jax.experimental.pallas import tpu as pltpu

# ----------------------------- hyper-parameters ------------------------------
IMG = 16            # args.img_size[0]
PATCH = 4           # args.private_kernel_size
CHANNELS = 3        # DeepViT default channels
NUM_CLASSES = 10    # args.num_classes
DIM = 32            # args.hidden_dim
DEPTH = 2           # args.num_layers
HEADS = 4           # args.num_heads
DIM_HEAD = 64       # DeepViT default dim_head (not dim // heads)
MLP_DIM = DIM * 2   # args.hidden_dim * 2
INNER = HEADS * DIM_HEAD
NUM_PATCHES = (IMG // PATCH) ** 2
SEQ = NUM_PATCHES + 1          # +1 cls token  (= 17)
SEQ_PAD = 24                   # token axis padded to a sublane multiple of 8
PATCH_DIM = CHANNELS * PATCH * PATCH
LN_EPS = 1e-5                  # torch.nn.LayerNorm default
ATTN_SCALE = DIM_HEAD ** -0.5
# dropout = 0.0 -> nn.Dropout is identity, so no RNG in the kernel.

# ---- layout of the coalesced f32 parameter slab (VEC_ROWS x VEC_W, one DMA) ---
VEC_W = MLP_DIM                     # 64 lanes (width of the widest bias)
ROW_BASE = 0                        # rows 0..SEQ_PAD-1 : cls/pos/patch-bias base
ROW_LN1_G = SEQ_PAD                 # 24, 25
ROW_LN1_B = ROW_LN1_G + DEPTH       # 26, 27
ROW_LN2_G = ROW_LN1_B + DEPTH       # 28, 29
ROW_LN2_B = ROW_LN2_G + DEPTH       # 30, 31
ROW_BO = ROW_LN2_B + DEPTH          # 32, 33  attention out-proj bias
ROW_B1 = ROW_BO + DEPTH             # 34, 35  MLP bias 1 (width MLP_DIM)
ROW_B2 = ROW_B1 + DEPTH             # 36, 37  MLP bias 2
ROW_HLN_G = ROW_B2 + DEPTH          # 38      head LayerNorm gamma
ROW_HLN_B = ROW_HLN_G + 1           # 39      head LayerNorm beta
ROW_HB = ROW_HLN_B + 1              # 40      classifier bias (width NUM_CLASSES)
VEC_ROWS = 48                       # padded to a sublane multiple of 8

# flat SMEM re-attention scalars: W (DEPTH*H*H) | gamma (DEPTH*H) | beta (DEPTH*H)
RG_OFF = DEPTH * HEADS * HEADS      # 32
RB_OFF = RG_OFF + DEPTH * HEADS     # 40

# per-head slot width in the attention-output assembly scratch.  128 lanes per
# head keeps every per-head store 128-lane aligned (plain masked store, no lane
# shift); the fused Wo has zero rows in the pad positions so the matmul is exact.
OUT_SLOT = 128
ASSEM_W = HEADS * OUT_SLOT          # 512


# ------------------------------ in-kernel helpers ----------------------------
def _erf(x):
    # Abramowitz & Stegun 7.1.26 rational approximation (|err| < 1.5e-7).
    t = 1.0 / (1.0 + 0.3275911 * jnp.abs(x))
    poly = (((((1.061405429 * t - 1.453152027) * t) + 1.421413741) * t
             - 0.284496736) * t + 0.254829592) * t
    y = 1.0 - poly * jnp.exp(-x * x)
    return jnp.where(x >= 0, y, -y)


def _gelu(x):
    return 0.5 * x * (1.0 + _erf(x * (1.0 / math.sqrt(2.0))))


def _layernorm(x, gamma, beta):
    mu = jnp.mean(x, axis=-1, keepdims=True)
    var = jnp.mean((x - mu) ** 2, axis=-1, keepdims=True)
    return (x - mu) * jax.lax.rsqrt(var + LN_EPS) * gamma + beta


# ----------------------- single fused forward-pass kernel --------------------
def _fwd_kernel(patches_ref, patch_w_ref, wqkv_ref, wo_ref, w1_ref, w2_ref,
                head_w_ref, vecs_ref, rs_ref, o_ref, attn_buf):
    f32 = jnp.float32
    bf16 = jnp.bfloat16
    B = patches_ref.shape[0] // SEQ_PAD

    def vrow(r, w=DIM):                     # (1, w) view of the f32 param slab
        return vecs_ref[r:r + 1, 0:w]

    # Zero the assembly scratch once; the 64 pad lanes of each 128-lane head
    # slot stay zero for every layer (matching Wo pad rows are zero as well).
    attn_buf[...] = jnp.zeros_like(attn_buf)

    # Patch embedding + cls/pos/bias baseline.  Row 0 of each image block of
    # `patches` is zero (cls slot) and pad rows are zero, so after adding the
    # base buffer: row 0 = cls + pos[0], rows 1..16 = patch_emb + pos + bias,
    # pad rows = 0.
    x = jnp.dot(patches_ref[...], patch_w_ref[...],
                preferred_element_type=f32)                       # (B*SP, D)
    base = vecs_ref[0:SEQ_PAD, 0:DIM]
    x = x + jnp.concatenate([base] * B, axis=0)

    # Key-validity masks (hoisted once, reused by every layer / head / batch).
    col = jax.lax.broadcasted_iota(jnp.int32, (1, SEQ_PAD), 1)
    key_valid = col < SEQ                                         # (1, SP)
    key_maskf = key_valid.astype(f32)                             # (1, SP)

    for l in range(DEPTH):
        # -------- Residual(PreNorm(Re-Attention)) --------
        h = _layernorm(x, vrow(ROW_LN1_G + l), vrow(ROW_LN1_B + l))
        # One lane-dense fused QKV matmul for the whole (B*SP, D) slab.
        qkv = jnp.dot(h.astype(bf16), wqkv_ref[l],
                      preferred_element_type=f32)                 # (B*SP, 3*INNER)

        for b in range(B):                                        # static, B=2
            r0 = b * SEQ_PAD
            attn_list, v_list = [], []
            for s in range(HEADS):
                c = s * DIM_HEAD
                q = qkv[r0:r0 + SEQ_PAD, c:c + DIM_HEAD]
                k = qkv[r0:r0 + SEQ_PAD, INNER + c:INNER + c + DIM_HEAD]
                v = qkv[r0:r0 + SEQ_PAD, 2 * INNER + c:2 * INNER + c + DIM_HEAD]
                dots = jax.lax.dot_general(
                    q.astype(bf16), k.astype(bf16), (((1,), (1,)), ((), ())),
                    preferred_element_type=f32) * ATTN_SCALE      # (SP, SP) f32
                dots = jnp.where(key_valid, dots, -1e30)          # mask pad keys
                dots = dots - jnp.max(dots, axis=-1, keepdims=True)
                e = jnp.exp(dots)
                attn_list.append(e / jnp.sum(e, axis=-1, keepdims=True))
                v_list.append(v)

            # re-attention mix: attn'[g] = sum_s attn[s] * W_re[s, g]
            mixed = []
            for g in range(HEADS):
                acc = attn_list[0] * rs_ref[l * HEADS * HEADS + g]
                for s in range(1, HEADS):
                    acc = acc + attn_list[s] * rs_ref[l * HEADS * HEADS + s * HEADS + g]
                mixed.append(acc)

            # reattn_norm: LayerNorm across the head axis, per (i, j) position
            mean = mixed[0]
            for g in range(1, HEADS):
                mean = mean + mixed[g]
            mean = mean * (1.0 / HEADS)
            var = (mixed[0] - mean) ** 2
            for g in range(1, HEADS):
                var = var + (mixed[g] - mean) ** 2
            var = var * (1.0 / HEADS)
            inv = jax.lax.rsqrt(var + LN_EPS)

            for g in range(HEADS):
                a_n = ((mixed[g] - mean) * inv * rs_ref[RG_OFF + l * HEADS + g]
                       + rs_ref[RB_OFF + l * HEADS + g]) * key_maskf  # zero pad cols
                og = jnp.dot(a_n.astype(bf16), v_list[g].astype(bf16),
                             preferred_element_type=f32)              # (SP, DH)
                attn_buf[r0:r0 + SEQ_PAD,
                         g * OUT_SLOT:g * OUT_SLOT + DIM_HEAD] = og

        # Fused output projection over all heads and both images at once.
        x = x + (jnp.dot(attn_buf[...].astype(bf16), wo_ref[l],
                         preferred_element_type=f32) + vrow(ROW_BO + l))

        # -------- Residual(PreNorm(FeedForward)) --------
        h2 = _layernorm(x, vrow(ROW_LN2_G + l), vrow(ROW_LN2_B + l))
        f = jnp.dot(h2.astype(bf16), w1_ref[l],
                    preferred_element_type=f32) + vrow(ROW_B1 + l, MLP_DIM)
        f = _gelu(f)
        f = jnp.dot(f.astype(bf16), w2_ref[l],
                    preferred_element_type=f32) + vrow(ROW_B2 + l)
        x = x + f

    # -------- cls pool + LayerNorm + classifier head --------
    cls = jnp.concatenate([x[b * SEQ_PAD:b * SEQ_PAD + 1] for b in range(B)],
                          axis=0)                                     # (B, D)
    hcls = _layernorm(cls, vrow(ROW_HLN_G), vrow(ROW_HLN_B))
    o_ref[...] = (jnp.dot(hcls, head_w_ref[...], preferred_element_type=f32)
                  + vrow(ROW_HB, NUM_CLASSES))


# --------------------------------- wrapper ------------------------------------
def reference_transformer_forward(packed, x):
    B = x.shape[0]

    # einops 'b c (h p1) (w p2) -> b (h w) (p1 p2 c)'  (plain-XLA layout glue),
    # then pad to the SEQ_PAD token grid: slot 0 = cls token, tail = zeros.
    hp = IMG // PATCH
    p = x.reshape(B, CHANNELS, hp, PATCH, hp, PATCH)
    p = jnp.transpose(p, (0, 2, 4, 3, 5, 1)).reshape(B, NUM_PATCHES, PATCH_DIM)
    p = jnp.pad(p, ((0, 0), (1, SEQ_PAD - NUM_PATCHES - 1), (0, 0)))
    patches = p.reshape(B * SEQ_PAD, PATCH_DIM)

    def _full(shape):
        return pl.BlockSpec(shape, lambda: (0,) * len(shape))

    smem = pl.BlockSpec(memory_space=pltpu.MemorySpace.SMEM)

    # TODO(synk): on v7x expose grid=(B,) with dimension_semantics=("parallel",)
    # to use both TensorCores; the gridless single-program form is kept here
    # since it is the right shape for single-TC v5e/v6e.
    logits = pl.pallas_call(
        _fwd_kernel,
        out_shape=jax.ShapeDtypeStruct((B, NUM_CLASSES), jnp.float32),
        in_specs=[
            _full((B * SEQ_PAD, PATCH_DIM)),               # patches (f32)
            _full((PATCH_DIM, DIM)),                       # patch-embed W (f32)
            _full((DEPTH, DIM, 3 * INNER)),                # fused Wqkv (bf16)
            _full((DEPTH, ASSEM_W, DIM)),                  # fused slot-padded Wo (bf16)
            _full((DEPTH, DIM, MLP_DIM)),                  # MLP W1 (bf16)
            _full((DEPTH, MLP_DIM, DIM)),                  # MLP W2 (bf16)
            _full((DIM, NUM_CLASSES)),                     # head W (f32)
            _full((VEC_ROWS, VEC_W)),                      # coalesced f32 vectors
            smem,                                          # re-attention scalars
        ],
        out_specs=pl.BlockSpec((B, NUM_CLASSES), lambda: (0, 0)),
        scratch_shapes=[pltpu.VMEM((B * SEQ_PAD, ASSEM_W), jnp.float32)],
    )(patches, packed['patch_w'], packed['wqkv'], packed['wo'],
      packed['w1'], packed['w2'], packed['head_w'],
      packed['vecs'], packed['reattn'])
    return {'logit': logits}


# ------------------- one-time parameter packing (outside jit) ------------------
def pack_params(params):
    layers = params['layers']
    bf16 = jnp.bfloat16
    stack = lambda k: jnp.stack([lp[k] for lp in layers], axis=0)

    # Baseline token buffer (single image): row 0 = cls + pos[0];
    # rows 1..SEQ-1 = pos[1:] + patch-embed bias; pad rows = 0.
    base = jnp.zeros((SEQ_PAD, DIM), jnp.float32)
    base = base.at[0].set(params['cls_token'][0, 0] + params['pos_emb'][0, 0])
    base = base.at[1:SEQ].set(params['pos_emb'][0, 1:SEQ] + params['patch_b'][0])

    # One coalesced f32 slab for the base buffer and every small vector (1 DMA).
    vecs = jnp.zeros((VEC_ROWS, VEC_W), jnp.float32)
    vecs = vecs.at[0:SEQ_PAD, 0:DIM].set(base)
    vecs = vecs.at[ROW_LN1_G:ROW_LN1_G + DEPTH, 0:DIM].set(stack('ln1_g')[:, 0])
    vecs = vecs.at[ROW_LN1_B:ROW_LN1_B + DEPTH, 0:DIM].set(stack('ln1_b')[:, 0])
    vecs = vecs.at[ROW_LN2_G:ROW_LN2_G + DEPTH, 0:DIM].set(stack('ln2_g')[:, 0])
    vecs = vecs.at[ROW_LN2_B:ROW_LN2_B + DEPTH, 0:DIM].set(stack('ln2_b')[:, 0])
    vecs = vecs.at[ROW_BO:ROW_BO + DEPTH, 0:DIM].set(stack('bo')[:, 0])
    vecs = vecs.at[ROW_B1:ROW_B1 + DEPTH, 0:MLP_DIM].set(stack('b1')[:, 0])
    vecs = vecs.at[ROW_B2:ROW_B2 + DEPTH, 0:DIM].set(stack('b2')[:, 0])
    vecs = vecs.at[ROW_HLN_G, 0:DIM].set(params['head_ln_g'][0])
    vecs = vecs.at[ROW_HLN_B, 0:DIM].set(params['head_ln_b'][0])
    vecs = vecs.at[ROW_HB, 0:NUM_CLASSES].set(params['head_b'][0])

    # Fused QKV weights, bf16, one lane-dense (DIM, 3*INNER) matrix per layer.
    wqkv = stack('wqkv').astype(bf16)                      # (DEPTH, 32, 768)

    # Fused output projection, rows re-homed to 128-lane head slots (pad rows 0)
    # so per-head results can be stored lane-aligned into the assembly scratch.
    wo_list = []
    for lp in layers:
        wo_pad = jnp.zeros((ASSEM_W, DIM), jnp.float32)
        for g in range(HEADS):
            wo_pad = wo_pad.at[g * OUT_SLOT:g * OUT_SLOT + DIM_HEAD].set(
                lp['wo'][g * DIM_HEAD:(g + 1) * DIM_HEAD])
        wo_list.append(wo_pad)
    wo = jnp.stack(wo_list, axis=0).astype(bf16)           # (DEPTH, 512, 32)

    reattn = jnp.concatenate([
        stack('reattn_w').reshape(-1),     # index l*H*H + s*H + g  == W_l[s, g]
        stack('reattn_g').reshape(-1),     # offset RG_OFF
        stack('reattn_b').reshape(-1),     # offset RB_OFF
    ]).astype(jnp.float32)                 # flat f32[48] -> single SMEM array

    return {
        'patch_w': params['patch_w'],      # kept f32 (single tiny matmul)
        'wqkv': wqkv,
        'wo': wo,
        'w1': stack('w1').astype(bf16),
        'w2': stack('w2').astype(bf16),
        'head_w': params['head_w'],        # kept f32 (single tiny matmul)
        'vecs': vecs,
        'reattn': reattn,
    }


# ------------------------- deterministic parameter init ------------------------
def init_params(key):
    ks = iter(jax.random.split(key, 64))

    def lin(k, fan_in, shape):     # torch.nn.Linear default U(-1/sqrt(fan_in), ..)
        bound = 1.0 / math.sqrt(fan_in)
        return jax.random.uniform(k, shape, jnp.float32, -bound, bound)

    params = {
        'patch_w': lin(next(ks), PATCH_DIM, (PATCH_DIM, DIM)),
        'patch_b': lin(next(ks), PATCH_DIM, (1, DIM)),
        'pos_emb': jax.random.normal(next(ks), (1, SEQ, DIM), jnp.float32),
        'cls_token': jax.random.normal(next(ks), (1, 1, DIM), jnp.float32),
        'head_ln_g': jnp.ones((1, DIM), jnp.float32),
        'head_ln_b': jnp.zeros((1, DIM), jnp.float32),
        'head_w': lin(next(ks), DIM, (DIM, NUM_CLASSES)),
        'head_b': lin(next(ks), DIM, (1, NUM_CLASSES)),
        'layers': [],
    }
    for _ in range(DEPTH):
        params['layers'].append({
            'ln1_g': jnp.ones((1, DIM), jnp.float32),
            'ln1_b': jnp.zeros((1, DIM), jnp.float32),
            'wqkv': lin(next(ks), DIM, (DIM, 3 * INNER)),
            'wo': lin(next(ks), INNER, (INNER, DIM)),
            'bo': lin(next(ks), INNER, (1, DIM)),
            'reattn_w': jax.random.normal(next(ks), (HEADS, HEADS), jnp.float32),
            'reattn_g': jnp.ones((HEADS,), jnp.float32),
            'reattn_b': jnp.zeros((HEADS,), jnp.float32),
            'ln2_g': jnp.ones((1, DIM), jnp.float32),
            'ln2_b': jnp.zeros((1, DIM), jnp.float32),
            'w1': lin(next(ks), DIM, (DIM, MLP_DIM)),
            'b1': lin(next(ks), DIM, (1, MLP_DIM)),
            'w2': lin(next(ks), MLP_DIM, (MLP_DIM, DIM)),
            'b2': lin(next(ks), MLP_DIM, (1, DIM)),
        })
    return params


# ----------------------------------- main --------------------------------------
if __name__ == "__main__":
    key = jax.random.PRNGKey(0)
    pkey, xkey = jax.random.split(key)
    params = init_params(pkey)
    # NCHW input, exactly like the PyTorch module expects.
    x = jax.random.normal(xkey, (2, CHANNELS, IMG, IMG), dtype=jnp.float32)

    packed = pack_params(params)
    fwd = jax.jit(functools.partial(reference_transformer_forward, packed))
    out = fwd(x)
    logits = jax.block_until_ready(out['logit'])
    assert logits.shape == (2, NUM_CLASSES) and logits.dtype == jnp.float32
    assert bool(jnp.all(jnp.isfinite(logits)))
    print("KERNEL_OK")
</pallas_src>

<mosaic_0001>
module attributes {stable_mosaic.version = 11 : i64} {
  func.func @_fwd_kernel(%arg0: memref<48x48xf32, #tpu.memory_space<vmem>>, %arg1: memref<48x32xf32, #tpu.memory_space<vmem>>, %arg2: memref<2x32x768xbf16, #tpu.memory_space<vmem>>, %arg3: memref<2x512x32xbf16, #tpu.memory_space<vmem>>, %arg4: memref<2x32x64xbf16, #tpu.memory_space<vmem>>, %arg5: memref<2x64x32xbf16, #tpu.memory_space<vmem>>, %arg6: memref<32x10xf32, #tpu.memory_space<vmem>>, %arg7: memref<48x64xf32, #tpu.memory_space<vmem>>, %arg8: memref<48xf32, #tpu.memory_space<smem>>, %arg9: memref<2x10xf32, #tpu.memory_space<vmem>>, %arg10: memref<48x512xf32, #tpu.memory_space<vmem>>) attributes {dimension_semantics = [], scalar_prefetch = 0 : i64, scratch_operands = 1 : i64, tpu.core_type = #tpu.core_type<tc>} {
    %cst = arith.constant 0.000000e+00 : f32
    %0 = vector.broadcast %cst : f32 to vector<48x512xf32>
    %c0 = arith.constant 0 : index
    %c0_0 = arith.constant 0 : index
    %1 = vector.load %arg10[%c0, %c0_0] : memref<48x512xf32, #tpu.memory_space<vmem>>, vector<48x512xf32>
    tpu.vector_store %arg10[%c0, %c0_0], %0 {strides = array<i32>} : memref<48x512xf32, #tpu.memory_space<vmem>>, vector<48x512xf32>,
    %c0_1 = arith.constant 0 : index
    %c0_2 = arith.constant 0 : index
    %2 = vector.load %arg0[%c0_1, %c0_2] : memref<48x48xf32, #tpu.memory_space<vmem>>, vector<48x48xf32>
    %c0_3 = arith.constant 0 : index
    %c0_4 = arith.constant 0 : index
    %3 = vector.load %arg1[%c0_3, %c0_4] : memref<48x32xf32, #tpu.memory_space<vmem>>, vector<48x32xf32>
    %cst_5 = arith.constant dense<0.000000e+00> : vector<48x32xf32>
    %4 = tpu.matmul %2, %3, %cst_5 {dimension_numbers = #tpu.dot_dimension_numbers<[1], [0], [0], [1], [0, 0, 1, 1], [], []>} : vector<48x48xf32>, vector<48x32xf32>, vector<48x32xf32> -> vector<48x32xf32>
    %c0_6 = arith.constant 0 : index
    %c0_7 = arith.constant 0 : index
    %5 = vector.load %arg7[%c0_6, %c0_7] : memref<48x64xf32, #tpu.memory_space<vmem>>, vector<24x32xf32>
    %6 = tpu.concatenate %5, %5 in 0 : vector<24x32xf32>, vector<24x32xf32> -> vector<48x32xf32>
    %7 = arith.addf %4, %6 : vector<48x32xf32>
    %8 = tpu.iota {dimensions = array<i32: 1>} : vector<1x24xi32>
    %c17_i32 = arith.constant 17 : i32
    %9 = vector.broadcast %c17_i32 : i32 to vector<1x24xi32>
    %10 = arith.cmpi slt, %8, %9 : vector<1x24xi32>
    %11 = arith.extui %10 : vector<1x24xi1> to vector<1x24xi32>
    %12 = arith.sitofp %11 : vector<1x24xi32> to vector<1x24xf32>
    %c24 = arith.constant 24 : index
    %c0_8 = arith.constant 0 : index
    %13 = vector.load %arg7[%c24, %c0_8] : memref<48x64xf32, #tpu.memory_space<vmem>>, vector<1x32xf32>
    %c26 = arith.constant 26 : index
    %c0_9 = arith.constant 0 : index
    %14 = vector.load %arg7[%c26, %c0_9] : memref<48x64xf32, #tpu.memory_space<vmem>>, vector<1x32xf32>
    %cst_10 = arith.constant dense<0.000000e+00> : vector<48xf32>
    %15 = vector.multi_reduction <add>, %7, %cst_10 [1] : vector<48x32xf32> to vector<48xf32>
    %16 = vector.shape_cast %15 : vector<48xf32> to vector<48x1xf32>
    %cst_11 = arith.constant 3.200000e+01 : f32
    %17 = vector.broadcast %cst_11 : f32 to vector<48x1xf32>
    %18 = arith.divf %16, %17 : vector<48x1xf32>
    %19 = vector.broadcast %18 : vector<48x1xf32> to vector<48x32xf32>
    %20 = arith.subf %7, %19 : vector<48x32xf32>
    %21 = arith.mulf %20, %20 : vector<48x32xf32>
    %cst_12 = arith.constant dense<0.000000e+00> : vector<48xf32>
    %22 = vector.multi_reduction <add>, %21, %cst_12 [1] : vector<48x32xf32> to vector<48xf32>
    %23 = vector.shape_cast %22 : vector<48xf32> to vector<48x1xf32>
    %cst_13 = arith.constant 3.200000e+01 : f32
    %24 = vector.broadcast %cst_13 : f32 to vector<48x1xf32>
    %25 = arith.divf %23, %24 : vector<48x1xf32>
    %26 = vector.broadcast %18 : vector<48x1xf32> to vector<48x32xf32>
    %27 = arith.subf %7, %26 : vector<48x32xf32>
    %cst_14 = arith.constant 9.99999974E-6 : f32
    %28 = vector.broadcast %cst_14 : f32 to vector<48x1xf32>
    %29 = arith.addf %25, %28 : vector<48x1xf32>
    %30 = math.rsqrt %29 : vector<48x1xf32>
    %31 = vector.broadcast %30 : vector<48x1xf32> to vector<48x32xf32>
    %32 = arith.mulf %27, %31 : vector<48x32xf32>
    %33 = vector.broadcast %13 : vector<1x32xf32> to vector<48x32xf32>
    %34 = arith.mulf %32, %33 : vector<48x32xf32>
    %35 = vector.broadcast %14 : vector<1x32xf32> to vector<48x32xf32>
    %36 = arith.addf %34, %35 : vector<48x32xf32>
    %37 = arith.truncf %36 : vector<48x32xf32> to vector<48x32xbf16>
    %c0_15 = arith.constant 0 : index
    %c0_16 = arith.constant 0 : index
    %c0_17 = arith.constant 0 : index
    %38 = vector.load %arg2[%c0_15, %c0_16, %c0_17] : memref<2x32x768xbf16, #tpu.memory_space<vmem>>, vector<1x32x768xbf16>
    %39 = vector.shape_cast %38 : vector<1x32x768xbf16> to vector<32x768xbf16>
    %cst_18 = arith.constant dense<0.000000e+00> : vector<48x768xf32>
    %40 = tpu.matmul %37, %39, %cst_18 {dimension_numbers = #tpu.dot_dimension_numbers<[1], [0], [0], [1], [0, 0, 1, 1], [], []>} : vector<48x32xbf16>, vector<32x768xbf16>, vector<48x768xf32> -> vector<48x768xf32>
    %41 = vector.extract_strided_slice %40 {offsets = [0, 0], sizes = [24, 64], strides = [1, 1]} : vector<48x768xf32> to vector<24x64xf32>
    %42 = vector.extract_strided_slice %40 {offsets = [0, 256], sizes = [24, 64], strides = [1, 1]} : vector<48x768xf32> to vector<24x64xf32>
    %43 = vector.extract_strided_slice %40 {offsets = [0, 512], sizes = [24, 64], strides = [1, 1]} : vector<48x768xf32> to vector<24x64xf32>
    %44 = arith.truncf %41 : vector<24x64xf32> to vector<24x64xbf16>
    %45 = arith.truncf %42 : vector<24x64xf32> to vector<24x64xbf16>
    %cst_19 = arith.constant dense<0.000000e+00> : vector<24x24xf32>
    %46 = tpu.matmul %44, %45, %cst_19 {dimension_numbers = #tpu.dot_dimension_numbers<[1], [1], [0], [0], [0, 0, 1, 0], [], []>} : vector<24x64xbf16>, vector<24x64xbf16>, vector<24x24xf32> -> vector<24x24xf32>
    %cst_20 = arith.constant 1.250000e-01 : f32
    %47 = vector.broadcast %cst_20 : f32 to vector<24x24xf32>
    %48 = arith.mulf %46, %47 : vector<24x24xf32>
    %cst_21 = arith.constant -1.000000e+30 : f32
    %49 = vector.shape_cast %10 : vector<1x24xi1> to vector<1x24xi1>
    %50 = vector.broadcast %49 : vector<1x24xi1> to vector<24x24xi1>
    %51 = vector.broadcast %cst_21 : f32 to vector<24x24xf32>
    %52 = arith.select %50, %48, %51 : vector<24x24xi1>, vector<24x24xf32>
    %cst_22 = arith.constant dense<0xFF800000> : vector<24xf32>
    %53 = vector.multi_reduction <maximumf>, %52, %cst_22 [1] : vector<24x24xf32> to vector<24xf32>
    %54 = vector.shape_cast %53 : vector<24xf32> to vector<24x1xf32>
    %55 = vector.broadcast %54 : vector<24x1xf32> to vector<24x24xf32>
    %56 = arith.subf %52, %55 : vector<24x24xf32>
    %57 = math.exp %56 : vector<24x24xf32>
    %cst_23 = arith.constant dense<0.000000e+00> : vector<24xf32>
    %58 = vector.multi_reduction <add>, %57, %cst_23 [1] : vector<24x24xf32> to vector<24xf32>
    %59 = vector.shape_cast %58 : vector<24xf32> to vector<24x1xf32>
    %60 = vector.broadcast %59 : vector<24x1xf32> to vector<24x24xf32>
    %61 = arith.divf %57, %60 : vector<24x24xf32>
    %62 = vector.extract_strided_slice %40 {offsets = [0, 64], sizes = [24, 64], strides = [1, 1]} : vector<48x768xf32> to vector<24x64xf32>
    %63 = vector.extract_strided_slice %40 {offsets = [0, 320], sizes = [24, 64], strides = [1, 1]} : vector<48x768xf32> to vector<24x64xf32>
    %64 = vector.extract_strided_slice %40 {offsets = [0, 576], sizes = [24, 64], strides = [1, 1]} : vector<48x768xf32> to vector<24x64xf32>
    %65 = arith.truncf %62 : vector<24x64xf32> to vector<24x64xbf16>
    %66 = arith.truncf %63 : vector<24x64xf32> to vector<24x64xbf16>
    %cst_24 = arith.constant dense<0.000000e+00> : vector<24x24xf32>
    %67 = tpu.matmul %65, %66, %cst_24 {dimension_numbers = #tpu.dot_dimension_numbers<[1], [1], [0], [0], [0, 0, 1, 0], [], []>} : vector<24x64xbf16>, vector<24x64xbf16>, vector<24x24xf32> -> vector<24x24xf32>
    %cst_25 = arith.constant 1.250000e-01 : f32
    %68 = vector.broadcast %cst_25 : f32 to vector<24x24xf32>
    %69 = arith.mulf %67, %68 : vector<24x24xf32>
    %cst_26 = arith.constant -1.000000e+30 : f32
    %70 = vector.shape_cast %10 : vector<1x24xi1> to vector<1x24xi1>
    %71 = vector.broadcast %70 : vector<1x24xi1> to vector<24x24xi1>
    %72 = vector.broadcast %cst_26 : f32 to vector<24x24xf32>
    %73 = arith.select %71, %69, %72 : vector<24x24xi1>, vector<24x24xf32>
    %cst_27 = arith.constant dense<0xFF800000> : vector<24xf32>
    %74 = vector.multi_reduction <maximumf>, %73, %cst_27 [1] : vector<24x24xf32> to vector<24xf32>
    %75 = vector.shape_cast %74 : vector<24xf32> to vector<24x1xf32>
    %76 = vector.broadcast %75 : vector<24x1xf32> to vector<24x24xf32>
    %77 = arith.subf %73, %76 : vector<24x24xf32>
    %78 = math.exp %77 : vector<24x24xf32>
    %cst_28 = arith.constant dense<0.000000e+00> : vector<24xf32>
    %79 = vector.multi_reduction <add>, %78, %cst_28 [1] : vector<24x24xf32> to vector<24xf32>
    %80 = vector.shape_cast %79 : vector<24xf32> to vector<24x1xf32>
    %81 = vector.broadcast %80 : vector<24x1xf32> to vector<24x24xf32>
    %82 = arith.divf %78, %81 : vector<24x24xf32>
    %83 = vector.extract_strided_slice %40 {offsets = [0, 128], sizes = [24, 64], strides = [1, 1]} : vector<48x768xf32> to vector<24x64xf32>
    %84 = vector.extract_strided_slice %40 {offsets = [0, 384], sizes = [24, 64], strides = [1, 1]} : vector<48x768xf32> to vector<24x64xf32>
    %85 = vector.extract_strided_slice %40 {offsets = [0, 640], sizes = [24, 64], strides = [1, 1]} : vector<48x768xf32> to vector<24x64xf32>
    %86 = arith.truncf %83 : vector<24x64xf32> to vector<24x64xbf16>
    %87 = arith.truncf %84 : vector<24x64xf32> to vector<24x64xbf16>
    %cst_29 = arith.constant dense<0.000000e+00> : vector<24x24xf32>
    %88 = tpu.matmul %86, %87, %cst_29 {dimension_numbers = #tpu.dot_dimension_numbers<[1], [1], [0], [0], [0, 0, 1, 0], [], []>} : vector<24x64xbf16>, vector<24x64xbf16>, vector<24x24xf32> -> vector<24x24xf32>
    %cst_30 = arith.constant 1.250000e-01 : f32
    %89 = vector.broadcast %cst_30 : f32 to vector<24x24xf32>
    %90 = arith.mulf %88, %89 : vector<24x24xf32>
    %cst_31 = arith.constant -1.000000e+30 : f32
    %91 = vector.shape_cast %10 : vector<1x24xi1> to vector<1x24xi1>
    %92 = vector.broadcast %91 : vector<1x24xi1> to vector<24x24xi1>
    %93 = vector.broadcast %cst_31 : f32 to vector<24x24xf32>
    %94 = arith.select %92, %90, %93 : vector<24x24xi1>, vector<24x24xf32>
    %cst_32 = arith.constant dense<0xFF800000> : vector<24xf32>
    %95 = vector.multi_reduction <maximumf>, %94, %cst_32 [1] : vector<24x24xf32> to vector<24xf32>
    %96 = vector.shape_cast %95 : vector<24xf32> to vector<24x1xf32>
    %97 = vector.broadcast %96 : vector<24x1xf32> to vector<24x24xf32>
    %98 = arith.subf %94, %97 : vector<24x24xf32>
    %99 = math.exp %98 : vector<24x24xf32>
    %cst_33 = arith.constant dense<0.000000e+00> : vector<24xf32>
    %100 = vector.multi_reduction <add>, %99, %cst_33 [1] : vector<24x24xf32> to vector<24xf32>
    %101 = vector.shape_cast %100 : vector<24xf32> to vector<24x1xf32>
    %102 = vector.broadcast %101 : vector<24x1xf32> to vector<24x24xf32>
    %103 = arith.divf %99, %102 : vector<24x24xf32>
    %104 = vector.extract_strided_slice %40 {offsets = [0, 192], sizes = [24, 64], strides = [1, 1]} : vector<48x768xf32> to vector<24x64xf32>
    %105 = vector.extract_strided_slice %40 {offsets = [0, 448], sizes = [24, 64], strides = [1, 1]} : vector<48x768xf32> to vector<24x64xf32>
    %106 = vector.extract_strided_slice %40 {offsets = [0, 704], sizes = [24, 64], strides = [1, 1]} : vector<48x768xf32> to vector<24x64xf32>
    %107 = arith.truncf %104 : vector<24x64xf32> to vector<24x64xbf16>
    %108 = arith.truncf %105 : vector<24x64xf32> to vector<24x64xbf16>
    %cst_34 = arith.constant dense<0.000000e+00> : vector<24x24xf32>
    %109 = tpu.matmul %107, %108, %cst_34 {dimension_numbers = #tpu.dot_dimension_numbers<[1], [1], [0], [0], [0, 0, 1, 0], [], []>} : vector<24x64xbf16>, vector<24x64xbf16>, vector<24x24xf32> -> vector<24x24xf32>
    %cst_35 = arith.constant 1.250000e-01 : f32
    %110 = vector.broadcast %cst_35 : f32 to vector<24x24xf32>
    %111 = arith.mulf %109, %110 : vector<24x24xf32>
    %cst_36 = arith.constant -1.000000e+30 : f32
    %112 = vector.shape_cast %10 : vector<1x24xi1> to vector<1x24xi1>
    %113 = vector.broadcast %112 : vector<1x24xi1> to vector<24x24xi1>
    %114 = vector.broadcast %cst_36 : f32 to vector<24x24xf32>
    %115 = arith.select %113, %111, %114 : vector<24x24xi1>, vector<24x24xf32>
    %cst_37 = arith.constant dense<0xFF800000> : vector<24xf32>
    %116 = vector.multi_reduction <maximumf>, %115, %cst_37 [1] : vector<24x24xf32> to vector<24xf32>
    %117 = vector.shape_cast %116 : vector<24xf32> to vector<24x1xf32>
    %118 = vector.broadcast %117 : vector<24x1xf32> to vector<24x24xf32>
    %119 = arith.subf %115, %118 : vector<24x24xf32>
    %120 = math.exp %119 : vector<24x24xf32>
    %cst_38 = arith.constant dense<0.000000e+00> : vector<24xf32>
    %121 = vector.multi_reduction <add>, %120, %cst_38 [1] : vector<24x24xf32> to vector<24xf32>
    %122 = vector.shape_cast %121 : vector<24xf32> to vector<24x1xf32>
    %123 = vector.broadcast %122 : vector<24x1xf32> to vector<24x24xf32>
    %124 = arith.divf %120, %123 : vector<24x24xf32>
    %c0_39 = arith.constant 0 : index
    %125 = memref.load %arg8[%c0_39] : memref<48xf32, #tpu.memory_space<smem>>
    %126 = vector.broadcast %125 : f32 to vector<24x24xf32>
    %127 = arith.mulf %61, %126 : vector<24x24xf32>
    %c4 = arith.constant 4 : index
    %128 = memref.load %arg8[%c4] : memref<48xf32, #tpu.memory_space<smem>>
    %129 = vector.broadcast %128 : f32 to vector<24x24xf32>
    %130 = arith.mulf %82, %129 : vector<24x24xf32>
    %131 = arith.addf %127, %130 : vector<24x24xf32>
    %c8 = arith.constant 8 : index
    %132 = memref.load %arg8[%c8] : memref<48xf32, #tpu.memory_space<smem>>
    %133 = vector.broadcast %132 : f32 to vector<24x24xf32>
    %134 = arith.mulf %103, %133 : vector<24x24xf32>
    %135 = arith.addf %131, %134 : vector<24x24xf32>
    %c12 = arith.constant 12 : index
    %136 = memref.load %arg8[%c12] : memref<48xf32, #tpu.memory_space<smem>>
    %137 = vector.broadcast %136 : f32 to vector<24x24xf32>
    %138 = arith.mulf %124, %137 : vector<24x24xf32>
    %139 = arith.addf %135, %138 : vector<24x24xf32>
    %c1 = arith.constant 1 : index
    %140 = memref.load %arg8[%c1] : memref<48xf32, #tpu.memory_space<smem>>
    %141 = vector.broadcast %140 : f32 to vector<24x24xf32>
    %142 = arith.mulf %61, %141 : vector<24x24xf32>
    %c5 = arith.constant 5 : index
    %143 = memref.load %arg8[%c5] : memref<48xf32, #tpu.memory_space<smem>>
    %144 = vector.broadcast %143 : f32 to vector<24x24xf32>
    %145 = arith.mulf %82, %144 : vector<24x24xf32>
    %146 = arith.addf %142, %145 : vector<24x24xf32>
    %c9 = arith.constant 9 : index
    %147 = memref.load %arg8[%c9] : memref<48xf32, #tpu.memory_space<smem>>
    %148 = vector.broadcast %147 : f32 to vector<24x24xf32>
    %149 = arith.mulf %103, %148 : vector<24x24xf32>
    %150 = arith.addf %146, %149 : vector<24x24xf32>
    %c13 = arith.constant 13 : index
    %151 = memref.load %arg8[%c13] : memref<48xf32, #tpu.memory_space<smem>>
    %152 = vector.broadcast %151 : f32 to vector<24x24xf32>
    %153 = arith.mulf %124, %152 : vector<24x24xf32>
    %154 = arith.addf %150, %153 : vector<24x24xf32>
    %c2 = arith.constant 2 : index
    %155 = memref.load %arg8[%c2] : memref<48xf32, #tpu.memory_space<smem>>
    %156 = vector.broadcast %155 : f32 to vector<24x24xf32>
    %157 = arith.mulf %61, %156 : vector<24x24xf32>
    %c6 = arith.constant 6 : index
    %158 = memref.load %arg8[%c6] : memref<48xf32, #tpu.memory_space<smem>>
    %159 = vector.broadcast %158 : f32 to vector<24x24xf32>
    %160 = arith.mulf %82, %159 : vector<24x24xf32>
    %161 = arith.addf %157, %160 : vector<24x24xf32>
    %c10 = arith.constant 10 : index
    %162 = memref.load %arg8[%c10] : memref<48xf32, #tpu.memory_space<smem>>
    %163 = vector.broadcast %162 : f32 to vector<24x24xf32>
    %164 = arith.mulf %103, %163 : vector<24x24xf32>
    %165 = arith.addf %161, %164 : vector<24x24xf32>
    %c14 = arith.constant 14 : index
    %166 = memref.load %arg8[%c14] : memref<48xf32, #tpu.memory_space<smem>>
    %167 = vector.broadcast %166 : f32 to vector<24x24xf32>
    %168 = arith.mulf %124, %167 : vector<24x24xf32>
    %169 = arith.addf %165, %168 : vector<24x24xf32>
    %c3 = arith.constant 3 : index
    %170 = memref.load %arg8[%c3] : memref<48xf32, #tpu.memory_space<smem>>
    %171 = vector.broadcast %170 : f32 to vector<24x24xf32>
    %172 = arith.mulf %61, %171 : vector<24x24xf32>
    %c7 = arith.constant 7 : index
    %173 = memref.load %arg8[%c7] : memref<48xf32, #tpu.memory_space<smem>>
    %174 = vector.broadcast %173 : f32 to vector<24x24xf32>
    %175 = arith.mulf %82, %174 : vector<24x24xf32>
    %176 = arith.addf %172, %175 : vector<24x24xf32>
    %c11 = arith.constant 11 : index
    %177 = memref.load %arg8[%c11] : memref<48xf32, #tpu.memory_space<smem>>
    %178 = vector.broadcast %177 : f32 to vector<24x24xf32>
    %179 = arith.mulf %103, %178 : vector<24x24xf32>
    %180 = arith.addf %176, %179 : vector<24x24xf32>
    %c15 = arith.constant 15 : index
    %181 = memref.load %arg8[%c15] : memref<48xf32, #tpu.memory_space<smem>>
    %182 = vector.broadcast %181 : f32 to vector<24x24xf32>
    %183 = arith.mulf %124, %182 : vector<24x24xf32>
    %184 = arith.addf %180, %183 : vector<24x24xf32>
    %185 = arith.addf %139, %154 : vector<24x24xf32>
    %186 = arith.addf %185, %169 : vector<24x24xf32>
    %187 = arith.addf %186, %184 : vector<24x24xf32>
    %cst_40 = arith.constant 2.500000e-01 : f32
    %188 = vector.broadcast %cst_40 : f32 to vector<24x24xf32>
    %189 = arith.mulf %187, %188 : vector<24x24xf32>
    %190 = arith.subf %139, %189 : vector<24x24xf32>
    %191 = arith.mulf %190, %190 : vector<24x24xf32>
    %192 = arith.subf %154, %189 : vector<24x24xf32>
    %193 = arith.mulf %192, %192 : vector<24x24xf32>
    %194 = arith.addf %191, %193 : vector<24x24xf32>
    %195 = arith.subf %169, %189 : vector<24x24xf32>
    %196 = arith.mulf %195, %195 : vector<24x24xf32>
    %197 = arith.addf %194, %196 : vector<24x24xf32>
    %198 = arith.subf %184, %189 : vector<24x24xf32>
    %199 = arith.mulf %198, %198 : vector<24x24xf32>
    %200 = arith.addf %197, %199 : vector<24x24xf32>
    %cst_41 = arith.constant 2.500000e-01 : f32
    %201 = vector.broadcast %cst_41 : f32 to vector<24x24xf32>
    %202 = arith.mulf %200, %201 : vector<24x24xf32>
    %cst_42 = arith.constant 9.99999974E-6 : f32
    %203 = vector.broadcast %cst_42 : f32 to vector<24x24xf32>
    %204 = arith.addf %202, %203 : vector<24x24xf32>
    %205 = math.rsqrt %204 : vector<24x24xf32>
    %206 = arith.subf %139, %189 : vector<24x24xf32>
    %207 = arith.mulf %206, %205 : vector<24x24xf32>
    %c32 = arith.constant 32 : index
    %208 = memref.load %arg8[%c32] : memref<48xf32, #tpu.memory_space<smem>>
    %209 = vector.broadcast %208 : f32 to vector<24x24xf32>
    %210 = arith.mulf %207, %209 : vector<24x24xf32>
    %c40 = arith.constant 40 : index
    %211 = memref.load %arg8[%c40] : memref<48xf32, #tpu.memory_space<smem>>
    %212 = vector.broadcast %211 : f32 to vector<24x24xf32>
    %213 = arith.addf %210, %212 : vector<24x24xf32>
    %214 = vector.broadcast %12 : vector<1x24xf32> to vector<24x24xf32>
    %215 = arith.mulf %213, %214 : vector<24x24xf32>
    %216 = arith.truncf %215 : vector<24x24xf32> to vector<24x24xbf16>
    %217 = arith.truncf %43 : vector<24x64xf32> to vector<24x64xbf16>
    %cst_43 = arith.constant dense<0.000000e+00> : vector<24x64xf32>
    %218 = tpu.matmul %216, %217, %cst_43 {dimension_numbers = #tpu.dot_dimension_numbers<[1], [0], [0], [1], [0, 0, 1, 1], [], []>} : vector<24x24xbf16>, vector<24x64xbf16>, vector<24x64xf32> -> vector<24x64xf32>
    %c0_44 = arith.constant 0 : index
    %c0_45 = arith.constant 0 : index
    %219 = vector.load %arg10[%c0_44, %c0_45] : memref<48x512xf32, #tpu.memory_space<vmem>>, vector<24x64xf32>
    tpu.vector_store %arg10[%c0_44, %c0_45], %218 {strides = array<i32>} : memref<48x512xf32, #tpu.memory_space<vmem>>, vector<24x64xf32>,
    %220 = arith.subf %154, %189 : vector<24x24xf32>
    %221 = arith.mulf %220, %205 : vector<24x24xf32>
    %c33 = arith.constant 33 : index
    %222 = memref.load %arg8[%c33] : memref<48xf32, #tpu.memory_space<smem>>
    %223 = vector.broadcast %222 : f32 to vector<24x24xf32>
    %224 = arith.mulf %221, %223 : vector<24x24xf32>
    %c41 = arith.constant 41 : index
    %225 = memref.load %arg8[%c41] : memref<48xf32, #tpu.memory_space<smem>>
    %226 = vector.broadcast %225 : f32 to vector<24x24xf32>
    %227 = arith.addf %224, %226 : vector<24x24xf32>
    %228 = vector.broadcast %12 : vector<1x24xf32> to vector<24x24xf32>
    %229 = arith.mulf %227, %228 : vector<24x24xf32>
    %230 = arith.truncf %229 : vector<24x24xf32> to vector<24x24xbf16>
    %231 = arith.truncf %64 : vector<24x64xf32> to vector<24x64xbf16>
    %cst_46 = arith.constant dense<0.000000e+00> : vector<24x64xf32>
    %232 = tpu.matmul %230, %231, %cst_46 {dimension_numbers = #tpu.dot_dimension_numbers<[1], [0], [0], [1], [0, 0, 1, 1], [], []>} : vector<24x24xbf16>, vector<24x64xbf16>, vector<24x64xf32> -> vector<24x64xf32>
    %c0_47 = arith.constant 0 : index
    %c128 = arith.constant 128 : index
    %233 = vector.load %arg10[%c0_47, %c128] : memref<48x512xf32, #tpu.memory_space<vmem>>, vector<24x64xf32>
    tpu.vector_store %arg10[%c0_47, %c128], %232 {strides = array<i32>} : memref<48x512xf32, #tpu.memory_space<vmem>>, vector<24x64xf32>,
    %234 = arith.subf %169, %189 : vector<24x24xf32>
    %235 = arith.mulf %234, %205 : vector<24x24xf32>
    %c34 = arith.constant 34 : index
    %236 = memref.load %arg8[%c34] : memref<48xf32, #tpu.memory_space<smem>>
    %237 = vector.broadcast %236 : f32 to vector<24x24xf32>
    %238 = arith.mulf %235, %237 : vector<24x24xf32>
    %c42 = arith.constant 42 : index
    %239 = memref.load %arg8[%c42] : memref<48xf32, #tpu.memory_space<smem>>
    %240 = vector.broadcast %239 : f32 to vector<24x24xf32>
    %241 = arith.addf %238, %240 : vector<24x24xf32>
    %242 = vector.broadcast %12 : vector<1x24xf32> to vector<24x24xf32>
    %243 = arith.mulf %241, %242 : vector<24x24xf32>
    %244 = arith.truncf %243 : vector<24x24xf32> to vector<24x24xbf16>
    %245 = arith.truncf %85 : vector<24x64xf32> to vector<24x64xbf16>
    %cst_48 = arith.constant dense<0.000000e+00> : vector<24x64xf32>
    %246 = tpu.matmul %244, %245, %cst_48 {dimension_numbers = #tpu.dot_dimension_numbers<[1], [0], [0], [1], [0, 0, 1, 1], [], []>} : vector<24x24xbf16>, vector<24x64xbf16>, vector<24x64xf32> -> vector<24x64xf32>
    %c0_49 = arith.constant 0 : index
    %c256 = arith.constant 256 : index
    %247 = vector.load %arg10[%c0_49, %c256] : memref<48x512xf32, #tpu.memory_space<vmem>>, vector<24x64xf32>
    tpu.vector_store %arg10[%c0_49, %c256], %246 {strides = array<i32>} : memref<48x512xf32, #tpu.memory_space<vmem>>, vector<24x64xf32>,
    %248 = arith.subf %184, %189 : vector<24x24xf32>
    %249 = arith.mulf %248, %205 : vector<24x24xf32>
    %c35 = arith.constant 35 : index
    %250 = memref.load %arg8[%c35] : memref<48xf32, #tpu.memory_space<smem>>
    %251 = vector.broadcast %250 : f32 to vector<24x24xf32>
    %252 = arith.mulf %249, %251 : vector<24x24xf32>
    %c43 = arith.constant 43 : index
    %253 = memref.load %arg8[%c43] : memref<48xf32, #tpu.memory_space<smem>>
    %254 = vector.broadcast %253 : f32 to vector<24x24xf32>
    %255 = arith.addf %252, %254 : vector<24x24xf32>
    %256 = vector.broadcast %12 : vector<1x24xf32> to vector<24x24xf32>
    %257 = arith.mulf %255, %256 : vector<24x24xf32>
    %258 = arith.truncf %257 : vector<24x24xf32> to vector<24x24xbf16>
    %259 = arith.truncf %106 : vector<24x64xf32> to vector<24x64xbf16>
    %cst_50 = arith.constant dense<0.000000e+00> : vector<24x64xf32>
    %260 = tpu.matmul %258, %259, %cst_50 {dimension_numbers = #tpu.dot_dimension_numbers<[1], [0], [0], [1], [0, 0, 1, 1], [], []>} : vector<24x24xbf16>, vector<24x64xbf16>, vector<24x64xf32> -> vector<24x64xf32>
    %c0_51 = arith.constant 0 : index
    %c384 = arith.constant 384 : index
    %261 = vector.load %arg10[%c0_51, %c384] : memref<48x512xf32, #tpu.memory_space<vmem>>, vector<24x64xf32>
    tpu.vector_store %arg10[%c0_51, %c384], %260 {strides = array<i32>} : memref<48x512xf32, #tpu.memory_space<vmem>>, vector<24x64xf32>,
    %262 = vector.extract_strided_slice %40 {offsets = [24, 0], sizes = [24, 64], strides = [1, 1]} : vector<48x768xf32> to vector<24x64xf32>
    %263 = vector.extract_strided_slice %40 {offsets = [24, 256], sizes = [24, 64], strides = [1, 1]} : vector<48x768xf32> to vector<24x64xf32>
    %264 = vector.extract_strided_slice %40 {offsets = [24, 512], sizes = [24, 64], strides = [1, 1]} : vector<48x768xf32> to vector<24x64xf32>
    %265 = arith.truncf %262 : vector<24x64xf32> to vector<24x64xbf16>
    %266 = arith.truncf %263 : vector<24x64xf32> to vector<24x64xbf16>
    %cst_52 = arith.constant dense<0.000000e+00> : vector<24x24xf32>
    %267 = tpu.matmul %265, %266, %cst_52 {dimension_numbers = #tpu.dot_dimension_numbers<[1], [1], [0], [0], [0, 0, 1, 0], [], []>} : vector<24x64xbf16>, vector<24x64xbf16>, vector<24x24xf32> -> vector<24x24xf32>
    %cst_53 = arith.constant 1.250000e-01 : f32
    %268 = vector.broadcast %cst_53 : f32 to vector<24x24xf32>
    %269 = arith.mulf %267, %268 : vector<24x24xf32>
    %cst_54 = arith.constant -1.000000e+30 : f32
    %270 = vector.shape_cast %10 : vector<1x24xi1> to vector<1x24xi1>
    %271 = vector.broadcast %270 : vector<1x24xi1> to vector<24x24xi1>
    %272 = vector.broadcast %cst_54 : f32 to vector<24x24xf32>
    %273 = arith.select %271, %269, %272 : vector<24x24xi1>, vector<24x24xf32>
    %cst_55 = arith.constant dense<0xFF800000> : vector<24xf32>
    %274 = vector.multi_reduction <maximumf>, %273, %cst_55 [1] : vector<24x24xf32> to vector<24xf32>
    %275 = vector.shape_cast %274 : vector<24xf32> to vector<24x1xf32>
    %276 = vector.broadcast %275 : vector<24x1xf32> to vector<24x24xf32>
    %277 = arith.subf %273, %276 : vector<24x24xf32>
    %278 = math.exp %277 : vector<24x24xf32>
    %cst_56 = arith.constant dense<0.000000e+00> : vector<24xf32>
    %279 = vector.multi_reduction <add>, %278, %cst_56 [1] : vector<24x24xf32> to vector<24xf32>
    %280 = vector.shape_cast %279 : vector<24xf32> to vector<24x1xf32>
    %281 = vector.broadcast %280 : vector<24x1xf32> to vector<24x24xf32>
    %282 = arith.divf %278, %281 : vector<24x24xf32>
    %283 = vector.extract_strided_slice %40 {offsets = [24, 64], sizes = [24, 64], strides = [1, 1]} : vector<48x768xf32> to vector<24x64xf32>
    %284 = vector.extract_strided_slice %40 {offsets = [24, 320], sizes = [24, 64], strides = [1, 1]} : vector<48x768xf32> to vector<24x64xf32>
    %285 = vector.extract_strided_slice %40 {offsets = [24, 576], sizes = [24, 64], strides = [1, 1]} : vector<48x768xf32> to vector<24x64xf32>
    %286 = arith.truncf %283 : vector<24x64xf32> to vector<24x64xbf16>
    %287 = arith.truncf %284 : vector<24x64xf32> to vector<24x64xbf16>
    %cst_57 = arith.constant dense<0.000000e+00> : vector<24x24xf32>
    %288 = tpu.matmul %286, %287, %cst_57 {dimension_numbers = #tpu.dot_dimension_numbers<[1], [1], [0], [0], [0, 0, 1, 0], [], []>} : vector<24x64xbf16>, vector<24x64xbf16>, vector<24x24xf32> -> vector<24x24xf32>
    %cst_58 = arith.constant 1.250000e-01 : f32
    %289 = vector.broadcast %cst_58 : f32 to vector<24x24xf32>
    %290 = arith.mulf %288, %289 : vector<24x24xf32>
    %cst_59 = arith.constant -1.000000e+30 : f32
    %291 = vector.shape_cast %10 : vector<1x24xi1> to vector<1x24xi1>
    %292 = vector.broadcast %291 : vector<1x24xi1> to vector<24x24xi1>
    %293 = vector.broadcast %cst_59 : f32 to vector<24x24xf32>
    %294 = arith.select %292, %290, %293 : vector<24x24xi1>, vector<24x24xf32>
    %cst_60 = arith.constant dense<0xFF800000> : vector<24xf32>
    %295 = vector.multi_reduction <maximumf>, %294, %cst_60 [1] : vector<24x24xf32> to vector<24xf32>
    %296 = vector.shape_cast %295 : vector<24xf32> to vector<24x1xf32>
    %297 = vector.broadcast %296 : vector<24x1xf32> to vector<24x24xf32>
    %298 = arith.subf %294, %297 : vector<24x24xf32>
    %299 = math.exp %298 : vector<24x24xf32>
    %cst_61 = arith.constant dense<0.000000e+00> : vector<24xf32>
    %300 = vector.multi_reduction <add>, %299, %cst_61 [1] : vector<24x24xf32> to vector<24xf32>
    %301 = vector.shape_cast %300 : vector<24xf32> to vector<24x1xf32>
    %302 = vector.broadcast %301 : vector<24x1xf32> to vector<24x24xf32>
    %303 = arith.divf %299, %302 : vector<24x24xf32>
    %304 = vector.extract_strided_slice %40 {offsets = [24, 128], sizes = [24, 64], strides = [1, 1]} : vector<48x768xf32> to vector<24x64xf32>
    %305 = vector.extract_strided_slice %40 {offsets = [24, 384], sizes = [24, 64], strides = [1, 1]} : vector<48x768xf32> to vector<24x64xf32>
    %306 = vector.extract_strided_slice %40 {offsets = [24, 640], sizes = [24, 64], strides = [1, 1]} : vector<48x768xf32> to vector<24x64xf32>
    %307 = arith.truncf %304 : vector<24x64xf32> to vector<24x64xbf16>
    %308 = arith.truncf %305 : vector<24x64xf32> to vector<24x64xbf16>
    %cst_62 = arith.constant dense<0.000000e+00> : vector<24x24xf32>
    %309 = tpu.matmul %307, %308, %cst_62 {dimension_numbers = #tpu.dot_dimension_numbers<[1], [1], [0], [0], [0, 0, 1, 0], [], []>} : vector<24x64xbf16>, vector<24x64xbf16>, vector<24x24xf32> -> vector<24x24xf32>
    %cst_63 = arith.constant 1.250000e-01 : f32
    %310 = vector.broadcast %cst_63 : f32 to vector<24x24xf32>
    %311 = arith.mulf %309, %310 : vector<24x24xf32>
    %cst_64 = arith.constant -1.000000e+30 : f32
    %312 = vector.shape_cast %10 : vector<1x24xi1> to vector<1x24xi1>
    %313 = vector.broadcast %312 : vector<1x24xi1> to vector<24x24xi1>
    %314 = vector.broadcast %cst_64 : f32 to vector<24x24xf32>
    %315 = arith.select %313, %311, %314 : vector<24x24xi1>, vector<24x24xf32>
    %cst_65 = arith.constant dense<0xFF800000> : vector<24xf32>
    %316 = vector.multi_reduction <maximumf>, %315, %cst_65 [1] : vector<24x24xf32> to vector<24xf32>
    %317 = vector.shape_cast %316 : vector<24xf32> to vector<24x1xf32>
    %318 = vector.broadcast %317 : vector<24x1xf32> to vector<24x24xf32>
    %319 = arith.subf %315, %318 : vector<24x24xf32>
    %320 = math.exp %319 : vector<24x24xf32>
    %cst_66 = arith.constant dense<0.000000e+00> : vector<24xf32>
    %321 = vector.multi_reduction <add>, %320, %cst_66 [1] : vector<24x24xf32> to vector<24xf32>
    %322 = vector.shape_cast %321 : vector<24xf32> to vector<24x1xf32>
    %323 = vector.broadcast %322 : vector<24x1xf32> to vector<24x24xf32>
    %324 = arith.divf %320, %323 : vector<24x24xf32>
    %325 = vector.extract_strided_slice %40 {offsets = [24, 192], sizes = [24, 64], strides = [1, 1]} : vector<48x768xf32> to vector<24x64xf32>
    %326 = vector.extract_strided_slice %40 {offsets = [24, 448], sizes = [24, 64], strides = [1, 1]} : vector<48x768xf32> to vector<24x64xf32>
    %327 = vector.extract_strided_slice %40 {offsets = [24, 704], sizes = [24, 64], strides = [1, 1]} : vector<48x768xf32> to vector<24x64xf32>
    %328 = arith.truncf %325 : vector<24x64xf32> to vector<24x64xbf16>
    %329 = arith.truncf %326 : vector<24x64xf32> to vector<24x64xbf16>
    %cst_67 = arith.constant dense<0.000000e+00> : vector<24x24xf32>
    %330 = tpu.matmul %328, %329, %cst_67 {dimension_numbers = #tpu.dot_dimension_numbers<[1], [1], [0], [0], [0, 0, 1, 0], [], []>} : vector<24x64xbf16>, vector<24x64xbf16>, vector<24x24xf32> -> vector<24x24xf32>
    %cst_68 = arith.constant 1.250000e-01 : f32
    %331 = vector.broadcast %cst_68 : f32 to vector<24x24xf32>
    %332 = arith.mulf %330, %331 : vector<24x24xf32>
    %cst_69 = arith.constant -1.000000e+30 : f32
    %333 = vector.shape_cast %10 : vector<1x24xi1> to vector<1x24xi1>
    %334 = vector.broadcast %333 : vector<1x24xi1> to vector<24x24xi1>
    %335 = vector.broadcast %cst_69 : f32 to vector<24x24xf32>
    %336 = arith.select %334, %332, %335 : vector<24x24xi1>, vector<24x24xf32>
    %cst_70 = arith.constant dense<0xFF800000> : vector<24xf32>
    %337 = vector.multi_reduction <maximumf>, %336, %cst_70 [1] : vector<24x24xf32> to vector<24xf32>
    %338 = vector.shape_cast %337 : vector<24xf32> to vector<24x1xf32>
    %339 = vector.broadcast %338 : vector<24x1xf32> to vector<24x24xf32>
    %340 = arith.subf %336, %339 : vector<24x24xf32>
    %341 = math.exp %340 : vector<24x24xf32>
    %cst_71 = arith.constant dense<0.000000e+00> : vector<24xf32>
    %342 = vector.multi_reduction <add>, %341, %cst_71 [1] : vector<24x24xf32> to vector<24xf32>
    %343 = vector.shape_cast %342 : vector<24xf32> to vector<24x1xf32>
    %344 = vector.broadcast %343 : vector<24x1xf32> to vector<24x24xf32>
    %345 = arith.divf %341, %344 : vector<24x24xf32>
    %c0_72 = arith.constant 0 : index
    %346 = memref.load %arg8[%c0_72] : memref<48xf32, #tpu.memory_space<smem>>
    %347 = vector.broadcast %346 : f32 to vector<24x24xf32>
    %348 = arith.mulf %282, %347 : vector<24x24xf32>
    %c4_73 = arith.constant 4 : index
    %349 = memref.load %arg8[%c4_73] : memref<48xf32, #tpu.memory_space<smem>>
    %350 = vector.broadcast %349 : f32 to vector<24x24xf32>
    %351 = arith.mulf %303, %350 : vector<24x24xf32>
    %352 = arith.addf %348, %351 : vector<24x24xf32>
    %c8_74 = arith.constant 8 : index
    %353 = memref.load %arg8[%c8_74] : memref<48xf32, #tpu.memory_space<smem>>
    %354 = vector.broadcast %353 : f32 to vector<24x24xf32>
    %355 = arith.mulf %324, %354 : vector<24x24xf32>
    %356 = arith.addf %352, %355 : vector<24x24xf32>
    %c12_75 = arith.constant 12 : index
    %357 = memref.load %arg8[%c12_75] : memref<48xf32, #tpu.memory_space<smem>>
    %358 = vector.broadcast %357 : f32 to vector<24x24xf32>
    %359 = arith.mulf %345, %358 : vector<24x24xf32>
    %360 = arith.addf %356, %359 : vector<24x24xf32>
    %c1_76 = arith.constant 1 : index
    %361 = memref.load %arg8[%c1_76] : memref<48xf32, #tpu.memory_space<smem>>
    %362 = vector.broadcast %361 : f32 to vector<24x24xf32>
    %363 = arith.mulf %282, %362 : vector<24x24xf32>
    %c5_77 = arith.constant 5 : index
    %364 = memref.load %arg8[%c5_77] : memref<48xf32, #tpu.memory_space<smem>>
    %365 = vector.broadcast %364 : f32 to vector<24x24xf32>
    %366 = arith.mulf %303, %365 : vector<24x24xf32>
    %367 = arith.addf %363, %366 : vector<24x24xf32>
    %c9_78 = arith.constant 9 : index
    %368 = memref.load %arg8[%c9_78] : memref<48xf32, #tpu.memory_space<smem>>
    %369 = vector.broadcast %368 : f32 to vector<24x24xf32>
    %370 = arith.mulf %324, %369 : vector<24x24xf32>
    %371 = arith.addf %367, %370 : vector<24x24xf32>
    %c13_79 = arith.constant 13 : index
    %372 = memref.load %arg8[%c13_79] : memref<48xf32, #tpu.memory_space<smem>>
    %373 = vector.broadcast %372 : f32 to vector<24x24xf32>
    %374 = arith.mulf %345, %373 : vector<24x24xf32>
    %375 = arith.addf %371, %374 : vector<24x24xf32>
    %c2_80 = arith.constant 2 : index
    %376 = memref.load %arg8[%c2_80] : memref<48xf32, #tpu.memory_space<smem>>
    %377 = vector.broadcast %376 : f32 to vector<24x24xf32>
    %378 = arith.mulf %282, %377 : vector<24x24xf32>
    %c6_81 = arith.constant 6 : index
    %379 = memref.load %arg8[%c6_81] : memref<48xf32, #tpu.memory_space<smem>>
    %380 = vector.broadcast %379 : f32 to vector<24x24xf32>
    %381 = arith.mulf %303, %380 : vector<24x24xf32>
    %382 = arith.addf %378, %381 : vector<24x24xf32>
    %c10_82 = arith.constant 10 : index
    %383 = memref.load %arg8[%c10_82] : memref<48xf32, #tpu.memory_space<smem>>
    %384 = vector.broadcast %383 : f32 to vector<24x24xf32>
    %385 = arith.mulf %324, %384 : vector<24x24xf32>
    %386 = arith.addf %382, %385 : vector<24x24xf32>
    %c14_83 = arith.constant 14 : index
    %387 = memref.load %arg8[%c14_83] : memref<48xf32, #tpu.memory_space<smem>>
    %388 = vector.broadcast %387 : f32 to vector<24x24xf32>
    %389 = arith.mulf %345, %388 : vector<24x24xf32>
    %390 = arith.addf %386, %389 : vector<24x24xf32>
    %c3_84 = arith.constant 3 : index
    %391 = memref.load %arg8[%c3_84] : memref<48xf32, #tpu.memory_space<smem>>
    %392 = vector.broadcast %391 : f32 to vector<24x24xf32>
    %393 = arith.mulf %282, %392 : vector<24x24xf32>
    %c7_85 = arith.constant 7 : index
    %394 = memref.load %arg8[%c7_85] : memref<48xf32, #tpu.memory_space<smem>>
    %395 = vector.broadcast %394 : f32 to vector<24x24xf32>
    %396 = arith.mulf %303, %395 : vector<24x24xf32>
    %397 = arith.addf %393, %396 : vector<24x24xf32>
    %c11_86 = arith.constant 11 : index
    %398 = memref.load %arg8[%c11_86] : memref<48xf32, #tpu.memory_space<smem>>
    %399 = vector.broadcast %398 : f32 to vector<24x24xf32>
    %400 = arith.mulf %324, %399 : vector<24x24xf32>
    %401 = arith.addf %397, %400 : vector<24x24xf32>
    %c15_87 = arith.constant 15 : index
    %402 = memref.load %arg8[%c15_87] : memref<48xf32, #tpu.memory_space<smem>>
    %403 = vector.broadcast %402 : f32 to vector<24x24xf32>
    %404 = arith.mulf %345, %403 : vector<24x24xf32>
    %405 = arith.addf %401, %404 : vector<24x24xf32>
    %406 = arith.addf %360, %375 : vector<24x24xf32>
    %407 = arith.addf %406, %390 : vector<24x24xf32>
    %408 = arith.addf %407, %405 : vector<24x24xf32>
    %cst_88 = arith.constant 2.500000e-01 : f32
    %409 = vector.broadcast %cst_88 : f32 to vector<24x24xf32>
    %410 = arith.mulf %408, %409 : vector<24x24xf32>
    %411 = arith.subf %360, %410 : vector<24x24xf32>
    %412 = arith.mulf %411, %411 : vector<24x24xf32>
    %413 = arith.subf %375, %410 : vector<24x24xf32>
    %414 = arith.mulf %413, %413 : vector<24x24xf32>
    %415 = arith.addf %412, %414 : vector<24x24xf32>
    %416 = arith.subf %390, %410 : vector<24x24xf32>
    %417 = arith.mulf %416, %416 : vector<24x24xf32>
    %418 = arith.addf %415, %417 : vector<24x24xf32>
    %419 = arith.subf %405, %410 : vector<24x24xf32>
    %420 = arith.mulf %419, %419 : vector<24x24xf32>
    %421 = arith.addf %418, %420 : vector<24x24xf32>
    %cst_89 = arith.constant 2.500000e-01 : f32
    %422 = vector.broadcast %cst_89 : f32 to vector<24x24xf32>
    %423 = arith.mulf %421, %422 : vector<24x24xf32>
    %cst_90 = arith.constant 9.99999974E-6 : f32
    %424 = vector.broadcast %cst_90 : f32 to vector<24x24xf32>
    %425 = arith.addf %423, %424 : vector<24x24xf32>
    %426 = math.rsqrt %425 : vector<24x24xf32>
    %427 = arith.subf %360, %410 : vector<24x24xf32>
    %428 = arith.mulf %427, %426 : vector<24x24xf32>
    %c32_91 = arith.constant 32 : index
    %429 = memref.load %arg8[%c32_91] : memref<48xf32, #tpu.memory_space<smem>>
    %430 = vector.broadcast %429 : f32 to vector<24x24xf32>
    %431 = arith.mulf %428, %430 : vector<24x24xf32>
    %c40_92 = arith.constant 40 : index
    %432 = memref.load %arg8[%c40_92] : memref<48xf32, #tpu.memory_space<smem>>
    %433 = vector.broadcast %432 : f32 to vector<24x24xf32>
    %434 = arith.addf %431, %433 : vector<24x24xf32>
    %435 = vector.broadcast %12 : vector<1x24xf32> to vector<24x24xf32>
    %436 = arith.mulf %434, %435 : vector<24x24xf32>
    %437 = arith.truncf %436 : vector<24x24xf32> to vector<24x24xbf16>
    %438 = arith.truncf %264 : vector<24x64xf32> to vector<24x64xbf16>
    %cst_93 = arith.constant dense<0.000000e+00> : vector<24x64xf32>
    %439 = tpu.matmul %437, %438, %cst_93 {dimension_numbers = #tpu.dot_dimension_numbers<[1], [0], [0], [1], [0, 0, 1, 1], [], []>} : vector<24x24xbf16>, vector<24x64xbf16>, vector<24x64xf32> -> vector<24x64xf32>
    %c24_94 = arith.constant 24 : index
    %c0_95 = arith.constant 0 : index
    %440 = vector.load %arg10[%c24_94, %c0_95] : memref<48x512xf32, #tpu.memory_space<vmem>>, vector<24x64xf32>
    tpu.vector_store %arg10[%c24_94, %c0_95], %439 {strides = array<i32>} : memref<48x512xf32, #tpu.memory_space<vmem>>, vector<24x64xf32>,
    %441 = arith.subf %375, %410 : vector<24x24xf32>
    %442 = arith.mulf %441, %426 : vector<24x24xf32>
    %c33_96 = arith.constant 33 : index
    %443 = memref.load %arg8[%c33_96] : memref<48xf32, #tpu.memory_space<smem>>
    %444 = vector.broadcast %443 : f32 to vector<24x24xf32>
    %445 = arith.mulf %442, %444 : vector<24x24xf32>
    %c41_97 = arith.constant 41 : index
    %446 = memref.load %arg8[%c41_97] : memref<48xf32, #tpu.memory_space<smem>>
    %447 = vector.broadcast %446 : f32 to vector<24x24xf32>
    %448 = arith.addf %445, %447 : vector<24x24xf32>
    %449 = vector.broadcast %12 : vector<1x24xf32> to vector<24x24xf32>
    %450 = arith.mulf %448, %449 : vector<24x24xf32>
    %451 = arith.truncf %450 : vector<24x24xf32> to vector<24x24xbf16>
    %452 = arith.truncf %285 : vector<24x64xf32> to vector<24x64xbf16>
    %cst_98 = arith.constant dense<0.000000e+00> : vector<24x64xf32>
    %453 = tpu.matmul %451, %452, %cst_98 {dimension_numbers = #tpu.dot_dimension_numbers<[1], [0], [0], [1], [0, 0, 1, 1], [], []>} : vector<24x24xbf16>, vector<24x64xbf16>, vector<24x64xf32> -> vector<24x64xf32>
    %c24_99 = arith.constant 24 : index
    %c128_100 = arith.constant 128 : index
    %454 = vector.load %arg10[%c24_99, %c128_100] : memref<48x512xf32, #tpu.memory_space<vmem>>, vector<24x64xf32>
    tpu.vector_store %arg10[%c24_99, %c128_100], %453 {strides = array<i32>} : memref<48x512xf32, #tpu.memory_space<vmem>>, vector<24x64xf32>,
    %455 = arith.subf %390, %410 : vector<24x24xf32>
    %456 = arith.mulf %455, %426 : vector<24x24xf32>
    %c34_101 = arith.constant 34 : index
    %457 = memref.load %arg8[%c34_101] : memref<48xf32, #tpu.memory_space<smem>>
    %458 = vector.broadcast %457 : f32 to vector<24x24xf32>
    %459 = arith.mulf %456, %458 : vector<24x24xf32>
    %c42_102 = arith.constant 42 : index
    %460 = memref.load %arg8[%c42_102] : memref<48xf32, #tpu.memory_space<smem>>
    %461 = vector.broadcast %460 : f32 to vector<24x24xf32>
    %462 = arith.addf %459, %461 : vector<24x24xf32>
    %463 = vector.broadcast %12 : vector<1x24xf32> to vector<24x24xf32>
    %464 = arith.mulf %462, %463 : vector<24x24xf32>
    %465 = arith.truncf %464 : vector<24x24xf32> to vector<24x24xbf16>
    %466 = arith.truncf %306 : vector<24x64xf32> to vector<24x64xbf16>
    %cst_103 = arith.constant dense<0.000000e+00> : vector<24x64xf32>
    %467 = tpu.matmul %465, %466, %cst_103 {dimension_numbers = #tpu.dot_dimension_numbers<[1], [0], [0], [1], [0, 0, 1, 1], [], []>} : vector<24x24xbf16>, vector<24x64xbf16>, vector<24x64xf32> -> vector<24x64xf32>
    %c24_104 = arith.constant 24 : index
    %c256_105 = arith.constant 256 : index
    %468 = vector.load %arg10[%c24_104, %c256_105] : memref<48x512xf32, #tpu.memory_space<vmem>>, vector<24x64xf32>
    tpu.vector_store %arg10[%c24_104, %c256_105], %467 {strides = array<i32>} : memref<48x512xf32, #tpu.memory_space<vmem>>, vector<24x64xf32>,
    %469 = arith.subf %405, %410 : vector<24x24xf32>
    %470 = arith.mulf %469, %426 : vector<24x24xf32>
    %c35_106 = arith.constant 35 : index
    %471 = memref.load %arg8[%c35_106] : memref<48xf32, #tpu.memory_space<smem>>
    %472 = vector.broadcast %471 : f32 to vector<24x24xf32>
    %473 = arith.mulf %470, %472 : vector<24x24xf32>
    %c43_107 = arith.constant 43 : index
    %474 = memref.load %arg8[%c43_107] : memref<48xf32, #tpu.memory_space<smem>>
    %475 = vector.broadcast %474 : f32 to vector<24x24xf32>
    %476 = arith.addf %473, %475 : vector<24x24xf32>
    %477 = vector.broadcast %12 : vector<1x24xf32> to vector<24x24xf32>
    %478 = arith.mulf %476, %477 : vector<24x24xf32>
    %479 = arith.truncf %478 : vector<24x24xf32> to vector<24x24xbf16>
    %480 = arith.truncf %327 : vector<24x64xf32> to vector<24x64xbf16>
    %cst_108 = arith.constant dense<0.000000e+00> : vector<24x64xf32>
    %481 = tpu.matmul %479, %480, %cst_108 {dimension_numbers = #tpu.dot_dimension_numbers<[1], [0], [0], [1], [0, 0, 1, 1], [], []>} : vector<24x24xbf16>, vector<24x64xbf16>, vector<24x64xf32> -> vector<24x64xf32>
    %c24_109 = arith.constant 24 : index
    %c384_110 = arith.constant 384 : index
    %482 = vector.load %arg10[%c24_109, %c384_110] : memref<48x512xf32, #tpu.memory_space<vmem>>, vector<24x64xf32>
    tpu.vector_store %arg10[%c24_109, %c384_110], %481 {strides = array<i32>} : memref<48x512xf32, #tpu.memory_space<vmem>>, vector<24x64xf32>,
    %c0_111 = arith.constant 0 : index
    %c0_112 = arith.constant 0 : index
    %483 = vector.load %arg10[%c0_111, %c0_112] : memref<48x512xf32, #tpu.memory_space<vmem>>, vector<48x512xf32>
    %484 = arith.truncf %483 : vector<48x512xf32> to vector<48x512xbf16>
    %c0_113 = arith.constant 0 : index
    %c0_114 = arith.constant 0 : index
    %c0_115 = arith.constant 0 : index
    %485 = vector.load %arg3[%c0_113, %c0_114, %c0_115] : memref<2x512x32xbf16, #tpu.memory_space<vmem>>, vector<1x512x32xbf16>
    %486 = vector.shape_cast %485 : vector<1x512x32xbf16> to vector<512x32xbf16>
    %cst_116 = arith.constant dense<0.000000e+00> : vector<48x32xf32>
    %487 = tpu.matmul %484, %486, %cst_116 {dimension_numbers = #tpu.dot_dimension_numbers<[1], [0], [0], [1], [0, 0, 1, 1], [], []>} : vector<48x512xbf16>, vector<512x32xbf16>, vector<48x32xf32> -> vector<48x32xf32>
    %c32_117 = arith.constant 32 : index
    %c0_118 = arith.constant 0 : index
    %488 = vector.load %arg7[%c32_117, %c0_118] : memref<48x64xf32, #tpu.memory_space<vmem>>, vector<1x32xf32>
    %489 = vector.broadcast %488 : vector<1x32xf32> to vector<48x32xf32>
    %490 = arith.addf %487, %489 : vector<48x32xf32>
    %491 = arith.addf %7, %490 : vector<48x32xf32>
    %c28 = arith.constant 28 : index
    %c0_119 = arith.constant 0 : index
    %492 = vector.load %arg7[%c28, %c0_119] : memref<48x64xf32, #tpu.memory_space<vmem>>, vector<1x32xf32>
    %c30 = arith.constant 30 : index
    %c0_120 = arith.constant 0 : index
    %493 = vector.load %arg7[%c30, %c0_120] : memref<48x64xf32, #tpu.memory_space<vmem>>, vector<1x32xf32>
    %cst_121 = arith.constant dense<0.000000e+00> : vector<48xf32>
    %494 = vector.multi_reduction <add>, %491, %cst_121 [1] : vector<48x32xf32> to vector<48xf32>
    %495 = vector.shape_cast %494 : vector<48xf32> to vector<48x1xf32>
    %cst_122 = arith.constant 3.200000e+01 : f32
    %496 = vector.broadcast %cst_122 : f32 to vector<48x1xf32>
    %497 = arith.divf %495, %496 : vector<48x1xf32>
    %498 = vector.broadcast %497 : vector<48x1xf32> to vector<48x32xf32>
    %499 = arith.subf %491, %498 : vector<48x32xf32>
    %500 = arith.mulf %499, %499 : vector<48x32xf32>
    %cst_123 = arith.constant dense<0.000000e+00> : vector<48xf32>
    %501 = vector.multi_reduction <add>, %500, %cst_123 [1] : vector<48x32xf32> to vector<48xf32>
    %502 = vector.shape_cast %501 : vector<48xf32> to vector<48x1xf32>
    %cst_124 = arith.constant 3.200000e+01 : f32
    %503 = vector.broadcast %cst_124 : f32 to vector<48x1xf32>
    %504 = arith.divf %502, %503 : vector<48x1xf32>
    %505 = vector.broadcast %497 : vector<48x1xf32> to vector<48x32xf32>
    %506 = arith.subf %491, %505 : vector<48x32xf32>
    %cst_125 = arith.constant 9.99999974E-6 : f32
    %507 = vector.broadcast %cst_125 : f32 to vector<48x1xf32>
    %508 = arith.addf %504, %507 : vector<48x1xf32>
    %509 = math.rsqrt %508 : vector<48x1xf32>
    %510 = vector.broadcast %509 : vector<48x1xf32> to vector<48x32xf32>
    %511 = arith.mulf %506, %510 : vector<48x32xf32>
    %512 = vector.broadcast %492 : vector<1x32xf32> to vector<48x32xf32>
    %513 = arith.mulf %511, %512 : vector<48x32xf32>
    %514 = vector.broadcast %493 : vector<1x32xf32> to vector<48x32xf32>
    %515 = arith.addf %513, %514 : vector<48x32xf32>
    %516 = arith.truncf %515 : vector<48x32xf32> to vector<48x32xbf16>
    %c0_126 = arith.constant 0 : index
    %c0_127 = arith.constant 0 : index
    %c0_128 = arith.constant 0 : index
    %517 = vector.load %arg4[%c0_126, %c0_127, %c0_128] : memref<2x32x64xbf16, #tpu.memory_space<vmem>>, vector<1x32x64xbf16>
    %518 = vector.shape_cast %517 : vector<1x32x64xbf16> to vector<32x64xbf16>
    %cst_129 = arith.constant dense<0.000000e+00> : vector<48x64xf32>
    %519 = tpu.matmul %516, %518, %cst_129 {dimension_numbers = #tpu.dot_dimension_numbers<[1], [0], [0], [1], [0, 0, 1, 1], [], []>} : vector<48x32xbf16>, vector<32x64xbf16>, vector<48x64xf32> -> vector<48x64xf32>
    %c34_130 = arith.constant 34 : index
    %c0_131 = arith.constant 0 : index
    %520 = vector.load %arg7[%c34_130, %c0_131] : memref<48x64xf32, #tpu.memory_space<vmem>>, vector<1x64xf32>
    %521 = vector.broadcast %520 : vector<1x64xf32> to vector<48x64xf32>
    %522 = arith.addf %519, %521 : vector<48x64xf32>
    %cst_132 = arith.constant 5.000000e-01 : f32
    %523 = vector.broadcast %cst_132 : f32 to vector<48x64xf32>
    %524 = arith.mulf %523, %522 : vector<48x64xf32>
    %cst_133 = arith.constant 0.707106769 : f32
    %525 = vector.broadcast %cst_133 : f32 to vector<48x64xf32>
    %526 = arith.mulf %522, %525 : vector<48x64xf32>
    %527 = math.absf %526 : vector<48x64xf32>
    %cst_134 = arith.constant 0.327591091 : f32
    %528 = vector.broadcast %cst_134 : f32 to vector<48x64xf32>
    %529 = arith.mulf %528, %527 : vector<48x64xf32>
    %cst_135 = arith.constant 1.000000e+00 : f32
    %530 = vector.broadcast %cst_135 : f32 to vector<48x64xf32>
    %531 = arith.addf %530, %529 : vector<48x64xf32>
    %cst_136 = arith.constant 1.000000e+00 : f32
    %532 = vector.broadcast %cst_136 : f32 to vector<48x64xf32>
    %533 = arith.divf %532, %531 : vector<48x64xf32>
    %cst_137 = arith.constant 1.06140542 : f32
    %534 = vector.broadcast %cst_137 : f32 to vector<48x64xf32>
    %535 = arith.mulf %534, %533 : vector<48x64xf32>
    %cst_138 = arith.constant 1.45315206 : f32
    %536 = vector.broadcast %cst_138 : f32 to vector<48x64xf32>
    %537 = arith.subf %535, %536 : vector<48x64xf32>
    %538 = arith.mulf %537, %533 : vector<48x64xf32>
    %cst_139 = arith.constant 1.42141378 : f32
    %539 = vector.broadcast %cst_139 : f32 to vector<48x64xf32>
    %540 = arith.addf %538, %539 : vector<48x64xf32>
    %541 = arith.mulf %540, %533 : vector<48x64xf32>
    %cst_140 = arith.constant 0.284496725 : f32
    %542 = vector.broadcast %cst_140 : f32 to vector<48x64xf32>
    %543 = arith.subf %541, %542 : vector<48x64xf32>
    %544 = arith.mulf %543, %533 : vector<48x64xf32>
    %cst_141 = arith.constant 0.254829586 : f32
    %545 = vector.broadcast %cst_141 : f32 to vector<48x64xf32>
    %546 = arith.addf %544, %545 : vector<48x64xf32>
    %547 = arith.mulf %546, %533 : vector<48x64xf32>
    %cst_142 = arith.constant 0.000000e+00 : f32
    %548 = vector.broadcast %cst_142 : f32 to vector<48x64xf32>
    %549 = arith.subf %548, %526 : vector<48x64xf32>
    %550 = arith.mulf %549, %526 : vector<48x64xf32>
    %551 = math.exp %550 : vector<48x64xf32>
    %552 = arith.mulf %547, %551 : vector<48x64xf32>
    %cst_143 = arith.constant 1.000000e+00 : f32
    %553 = vector.broadcast %cst_143 : f32 to vector<48x64xf32>
    %554 = arith.subf %553, %552 : vector<48x64xf32>
    %cst_144 = arith.constant 0.000000e+00 : f32
    %555 = vector.broadcast %cst_144 : f32 to vector<48x64xf32>
    %556 = arith.cmpf oge, %526, %555 : vector<48x64xf32>
    %cst_145 = arith.constant 0.000000e+00 : f32
    %557 = vector.broadcast %cst_145 : f32 to vector<48x64xf32>
    %558 = arith.subf %557, %554 : vector<48x64xf32>
    %559 = arith.select %556, %554, %558 : vector<48x64xi1>, vector<48x64xf32>
    %cst_146 = arith.constant 1.000000e+00 : f32
    %560 = vector.broadcast %cst_146 : f32 to vector<48x64xf32>
    %561 = arith.addf %560, %559 : vector<48x64xf32>
    %562 = arith.mulf %524, %561 : vector<48x64xf32>
    %563 = arith.truncf %562 : vector<48x64xf32> to vector<48x64xbf16>
    %c0_147 = arith.constant 0 : index
    %c0_148 = arith.constant 0 : index
    %c0_149 = arith.constant 0 : index
    %564 = vector.load %arg5[%c0_147, %c0_148, %c0_149] : memref<2x64x32xbf16, #tpu.memory_space<vmem>>, vector<1x64x32xbf16>
    %565 = vector.shape_cast %564 : vector<1x64x32xbf16> to vector<64x32xbf16>
    %cst_150 = arith.constant dense<0.000000e+00> : vector<48x32xf32>
    %566 = tpu.matmul %563, %565, %cst_150 {dimension_numbers = #tpu.dot_dimension_numbers<[1], [0], [0], [1], [0, 0, 1, 1], [], []>} : vector<48x64xbf16>, vector<64x32xbf16>, vector<48x32xf32> -> vector<48x32xf32>
    %c36 = arith.constant 36 : index
    %c0_151 = arith.constant 0 : index
    %567 = vector.load %arg7[%c36, %c0_151] : memref<48x64xf32, #tpu.memory_space<vmem>>, vector<1x32xf32>
    %568 = vector.broadcast %567 : vector<1x32xf32> to vector<48x32xf32>
    %569 = arith.addf %566, %568 : vector<48x32xf32>
    %570 = arith.addf %491, %569 : vector<48x32xf32>
    %c25 = arith.constant 25 : index
    %c0_152 = arith.constant 0 : index
    %571 = vector.load %arg7[%c25, %c0_152] : memref<48x64xf32, #tpu.memory_space<vmem>>, vector<1x32xf32>
    %c27 = arith.constant 27 : index
    %c0_153 = arith.constant 0 : index
    %572 = vector.load %arg7[%c27, %c0_153] : memref<48x64xf32, #tpu.memory_space<vmem>>, vector<1x32xf32>
    %cst_154 = arith.constant dense<0.000000e+00> : vector<48xf32>
    %573 = vector.multi_reduction <add>, %570, %cst_154 [1] : vector<48x32xf32> to vector<48xf32>
    %574 = vector.shape_cast %573 : vector<48xf32> to vector<48x1xf32>
    %cst_155 = arith.constant 3.200000e+01 : f32
    %575 = vector.broadcast %cst_155 : f32 to vector<48x1xf32>
    %576 = arith.divf %574, %575 : vector<48x1xf32>
    %577 = vector.broadcast %576 : vector<48x1xf32> to vector<48x32xf32>
    %578 = arith.subf %570, %577 : vector<48x32xf32>
    %579 = arith.mulf %578, %578 : vector<48x32xf32>
    %cst_156 = arith.constant dense<0.000000e+00> : vector<48xf32>
    %580 = vector.multi_reduction <add>, %579, %cst_156 [1] : vector<48x32xf32> to vector<48xf32>
    %581 = vector.shape_cast %580 : vector<48xf32> to vector<48x1xf32>
    %cst_157 = arith.constant 3.200000e+01 : f32
    %582 = vector.broadcast %cst_157 : f32 to vector<48x1xf32>
    %583 = arith.divf %581, %582 : vector<48x1xf32>
    %584 = vector.broadcast %576 : vector<48x1xf32> to vector<48x32xf32>
    %585 = arith.subf %570, %584 : vector<48x32xf32>
    %cst_158 = arith.constant 9.99999974E-6 : f32
    %586 = vector.broadcast %cst_158 : f32 to vector<48x1xf32>
    %587 = arith.addf %583, %586 : vector<48x1xf32>
    %588 = math.rsqrt %587 : vector<48x1xf32>
    %589 = vector.broadcast %588 : vector<48x1xf32> to vector<48x32xf32>
    %590 = arith.mulf %585, %589 : vector<48x32xf32>
    %591 = vector.broadcast %571 : vector<1x32xf32> to vector<48x32xf32>
    %592 = arith.mulf %590, %591 : vector<48x32xf32>
    %593 = vector.broadcast %572 : vector<1x32xf32> to vector<48x32xf32>
    %594 = arith.addf %592, %593 : vector<48x32xf32>
    %595 = arith.truncf %594 : vector<48x32xf32> to vector<48x32xbf16>
    %c1_159 = arith.constant 1 : index
    %c0_160 = arith.constant 0 : index
    %c0_161 = arith.constant 0 : index
    %596 = vector.load %arg2[%c1_159, %c0_160, %c0_161] : memref<2x32x768xbf16, #tpu.memory_space<vmem>>, vector<1x32x768xbf16>
    %597 = vector.shape_cast %596 : vector<1x32x768xbf16> to vector<32x768xbf16>
    %cst_162 = arith.constant dense<0.000000e+00> : vector<48x768xf32>
    %598 = tpu.matmul %595, %597, %cst_162 {dimension_numbers = #tpu.dot_dimension_numbers<[1], [0], [0], [1], [0, 0, 1, 1], [], []>} : vector<48x32xbf16>, vector<32x768xbf16>, vector<48x768xf32> -> vector<48x768xf32>
    %599 = vector.extract_strided_slice %598 {offsets = [0, 0], sizes = [24, 64], strides = [1, 1]} : vector<48x768xf32> to vector<24x64xf32>
    %600 = vector.extract_strided_slice %598 {offsets = [0, 256], sizes = [24, 64], strides = [1, 1]} : vector<48x768xf32> to vector<24x64xf32>
    %601 = vector.extract_strided_slice %598 {offsets = [0, 512], sizes = [24, 64], strides = [1, 1]} : vector<48x768xf32> to vector<24x64xf32>
    %602 = arith.truncf %599 : vector<24x64xf32> to vector<24x64xbf16>
    %603 = arith.truncf %600 : vector<24x64xf32> to vector<24x64xbf16>
    %cst_163 = arith.constant dense<0.000000e+00> : vector<24x24xf32>
    %604 = tpu.matmul %602, %603, %cst_163 {dimension_numbers = #tpu.dot_dimension_numbers<[1], [1], [0], [0], [0, 0, 1, 0], [], []>} : vector<24x64xbf16>, vector<24x64xbf16>, vector<24x24xf32> -> vector<24x24xf32>
    %cst_164 = arith.constant 1.250000e-01 : f32
    %605 = vector.broadcast %cst_164 : f32 to vector<24x24xf32>
    %606 = arith.mulf %604, %605 : vector<24x24xf32>
    %cst_165 = arith.constant -1.000000e+30 : f32
    %607 = vector.shape_cast %10 : vector<1x24xi1> to vector<1x24xi1>
    %608 = vector.broadcast %607 : vector<1x24xi1> to vector<24x24xi1>
    %609 = vector.broadcast %cst_165 : f32 to vector<24x24xf32>
    %610 = arith.select %608, %606, %609 : vector<24x24xi1>, vector<24x24xf32>
    %cst_166 = arith.constant dense<0xFF800000> : vector<24xf32>
    %611 = vector.multi_reduction <maximumf>, %610, %cst_166 [1] : vector<24x24xf32> to vector<24xf32>
    %612 = vector.shape_cast %611 : vector<24xf32> to vector<24x1xf32>
    %613 = vector.broadcast %612 : vector<24x1xf32> to vector<24x24xf32>
    %614 = arith.subf %610, %613 : vector<24x24xf32>
    %615 = math.exp %614 : vector<24x24xf32>
    %cst_167 = arith.constant dense<0.000000e+00> : vector<24xf32>
    %616 = vector.multi_reduction <add>, %615, %cst_167 [1] : vector<24x24xf32> to vector<24xf32>
    %617 = vector.shape_cast %616 : vector<24xf32> to vector<24x1xf32>
    %618 = vector.broadcast %617 : vector<24x1xf32> to vector<24x24xf32>
    %619 = arith.divf %615, %618 : vector<24x24xf32>
    %620 = vector.extract_strided_slice %598 {offsets = [0, 64], sizes = [24, 64], strides = [1, 1]} : vector<48x768xf32> to vector<24x64xf32>
    %621 = vector.extract_strided_slice %598 {offsets = [0, 320], sizes = [24, 64], strides = [1, 1]} : vector<48x768xf32> to vector<24x64xf32>
    %622 = vector.extract_strided_slice %598 {offsets = [0, 576], sizes = [24, 64], strides = [1, 1]} : vector<48x768xf32> to vector<24x64xf32>
    %623 = arith.truncf %620 : vector<24x64xf32> to vector<24x64xbf16>
    %624 = arith.truncf %621 : vector<24x64xf32> to vector<24x64xbf16>
    %cst_168 = arith.constant dense<0.000000e+00> : vector<24x24xf32>
    %625 = tpu.matmul %623, %624, %cst_168 {dimension_numbers = #tpu.dot_dimension_numbers<[1], [1], [0], [0], [0, 0, 1, 0], [], []>} : vector<24x64xbf16>, vector<24x64xbf16>, vector<24x24xf32> -> vector<24x24xf32>
    %cst_169 = arith.constant 1.250000e-01 : f32
    %626 = vector.broadcast %cst_169 : f32 to vector<24x24xf32>
    %627 = arith.mulf %625, %626 : vector<24x24xf32>
    %cst_170 = arith.constant -1.000000e+30 : f32
    %628 = vector.shape_cast %10 : vector<1x24xi1> to vector<1x24xi1>
    %629 = vector.broadcast %628 : vector<1x24xi1> to vector<24x24xi1>
    %630 = vector.broadcast %cst_170 : f32 to vector<24x24xf32>
    %631 = arith.select %629, %627, %630 : vector<24x24xi1>, vector<24x24xf32>
    %cst_171 = arith.constant dense<0xFF800000> : vector<24xf32>
    %632 = vector.multi_reduction <maximumf>, %631, %cst_171 [1] : vector<24x24xf32> to vector<24xf32>
    %633 = vector.shape_cast %632 : vector<24xf32> to vector<24x1xf32>
    %634 = vector.broadcast %633 : vector<24x1xf32> to vector<24x24xf32>
    %635 = arith.subf %631, %634 : vector<24x24xf32>
    %636 = math.exp %635 : vector<24x24xf32>
    %cst_172 = arith.constant dense<0.000000e+00> : vector<24xf32>
    %637 = vector.multi_reduction <add>, %636, %cst_172 [1] : vector<24x24xf32> to vector<24xf32>
    %638 = vector.shape_cast %637 : vector<24xf32> to vector<24x1xf32>
    %639 = vector.broadcast %638 : vector<24x1xf32> to vector<24x24xf32>
    %640 = arith.divf %636, %639 : vector<24x24xf32>
    %641 = vector.extract_strided_slice %598 {offsets = [0, 128], sizes = [24, 64], strides = [1, 1]} : vector<48x768xf32> to vector<24x64xf32>
    %642 = vector.extract_strided_slice %598 {offsets = [0, 384], sizes = [24, 64], strides = [1, 1]} : vector<48x768xf32> to vector<24x64xf32>
    %643 = vector.extract_strided_slice %598 {offsets = [0, 640], sizes = [24, 64], strides = [1, 1]} : vector<48x768xf32> to vector<24x64xf32>
    %644 = arith.truncf %641 : vector<24x64xf32> to vector<24x64xbf16>
    %645 = arith.truncf %642 : vector<24x64xf32> to vector<24x64xbf16>
    %cst_173 = arith.constant dense<0.000000e+00> : vector<24x24xf32>
    %646 = tpu.matmul %644, %645, %cst_173 {dimension_numbers = #tpu.dot_dimension_numbers<[1], [1], [0], [0], [0, 0, 1, 0], [], []>} : vector<24x64xbf16>, vector<24x64xbf16>, vector<24x24xf32> -> vector<24x24xf32>
    %cst_174 = arith.constant 1.250000e-01 : f32
    %647 = vector.broadcast %cst_174 : f32 to vector<24x24xf32>
    %648 = arith.mulf %646, %647 : vector<24x24xf32>
    %cst_175 = arith.constant -1.000000e+30 : f32
    %649 = vector.shape_cast %10 : vector<1x24xi1> to vector<1x24xi1>
    %650 = vector.broadcast %649 : vector<1x24xi1> to vector<24x24xi1>
    %651 = vector.broadcast %cst_175 : f32 to vector<24x24xf32>
    %652 = arith.select %650, %648, %651 : vector<24x24xi1>, vector<24x24xf32>
    %cst_176 = arith.constant dense<0xFF800000> : vector<24xf32>
    %653 = vector.multi_reduction <maximumf>, %652, %cst_176 [1] : vector<24x24xf32> to vector<24xf32>
    %654 = vector.shape_cast %653 : vector<24xf32> to vector<24x1xf32>
    %655 = vector.broadcast %654 : vector<24x1xf32> to vector<24x24xf32>
    %656 = arith.subf %652, %655 : vector<24x24xf32>
    %657 = math.exp %656 : vector<24x24xf32>
    %cst_177 = arith.constant dense<0.000000e+00> : vector<24xf32>
    %658 = vector.multi_reduction <add>, %657, %cst_177 [1] : vector<24x24xf32> to vector<24xf32>
    %659 = vector.shape_cast %658 : vector<24xf32> to vector<24x1xf32>
    %660 = vector.broadcast %659 : vector<24x1xf32> to vector<24x24xf32>
    %661 = arith.divf %657, %660 : vector<24x24xf32>
    %662 = vector.extract_strided_slice %598 {offsets = [0, 192], sizes = [24, 64], strides = [1, 1]} : vector<48x768xf32> to vector<24x64xf32>
    %663 = vector.extract_strided_slice %598 {offsets = [0, 448], sizes = [24, 64], strides = [1, 1]} : vector<48x768xf32> to vector<24x64xf32>
    %664 = vector.extract_strided_slice %598 {offsets = [0, 704], sizes = [24, 64], strides = [1, 1]} : vector<48x768xf32> to vector<24x64xf32>
    %665 = arith.truncf %662 : vector<24x64xf32> to vector<24x64xbf16>
    %666 = arith.truncf %663 : vector<24x64xf32> to vector<24x64xbf16>
    %cst_178 = arith.constant dense<0.000000e+00> : vector<24x24xf32>
    %667 = tpu.matmul %665, %666, %cst_178 {dimension_numbers = #tpu.dot_dimension_numbers<[1], [1], [0], [0], [0, 0, 1, 0], [], []>} : vector<24x64xbf16>, vector<24x64xbf16>, vector<24x24xf32> -> vector<24x24xf32>
    %cst_179 = arith.constant 1.250000e-01 : f32
    %668 = vector.broadcast %cst_179 : f32 to vector<24x24xf32>
    %669 = arith.mulf %667, %668 : vector<24x24xf32>
    %cst_180 = arith.constant -1.000000e+30 : f32
    %670 = vector.shape_cast %10 : vector<1x24xi1> to vector<1x24xi1>
    %671 = vector.broadcast %670 : vector<1x24xi1> to vector<24x24xi1>
    %672 = vector.broadcast %cst_180 : f32 to vector<24x24xf32>
    %673 = arith.select %671, %669, %672 : vector<24x24xi1>, vector<24x24xf32>
    %cst_181 = arith.constant dense<0xFF800000> : vector<24xf32>
    %674 = vector.multi_reduction <maximumf>, %673, %cst_181 [1] : vector<24x24xf32> to vector<24xf32>
    %675 = vector.shape_cast %674 : vector<24xf32> to vector<24x1xf32>
    %676 = vector.broadcast %675 : vector<24x1xf32> to vector<24x24xf32>
    %677 = arith.subf %673, %676 : vector<24x24xf32>
    %678 = math.exp %677 : vector<24x24xf32>
    %cst_182 = arith.constant dense<0.000000e+00> : vector<24xf32>
    %679 = vector.multi_reduction <add>, %678, %cst_182 [1] : vector<24x24xf32> to vector<24xf32>
    %680 = vector.shape_cast %679 : vector<24xf32> to vector<24x1xf32>
    %681 = vector.broadcast %680 : vector<24x1xf32> to vector<24x24xf32>
    %682 = arith.divf %678, %681 : vector<24x24xf32>
    %c16 = arith.constant 16 : index
    %683 = memref.load %arg8[%c16] : memref<48xf32, #tpu.memory_space<smem>>
    %684 = vector.broadcast %683 : f32 to vector<24x24xf32>
    %685 = arith.mulf %619, %684 : vector<24x24xf32>
    %c20 = arith.constant 20 : index
    %686 = memref.load %arg8[%c20] : memref<48xf32, #tpu.memory_space<smem>>
    %687 = vector.broadcast %686 : f32 to vector<24x24xf32>
    %688 = arith.mulf %640, %687 : vector<24x24xf32>
    %689 = arith.addf %685, %688 : vector<24x24xf32>
    %c24_183 = arith.constant 24 : index
    %690 = memref.load %arg8[%c24_183] : memref<48xf32, #tpu.memory_space<smem>>
    %691 = vector.broadcast %690 : f32 to vector<24x24xf32>
    %692 = arith.mulf %661, %691 : vector<24x24xf32>
    %693 = arith.addf %689, %692 : vector<24x24xf32>
    %c28_184 = arith.constant 28 : index
    %694 = memref.load %arg8[%c28_184] : memref<48xf32, #tpu.memory_space<smem>>
    %695 = vector.broadcast %694 : f32 to vector<24x24xf32>
    %696 = arith.mulf %682, %695 : vector<24x24xf32>
    %697 = arith.addf %693, %696 : vector<24x24xf32>
    %c17 = arith.constant 17 : index
    %698 = memref.load %arg8[%c17] : memref<48xf32, #tpu.memory_space<smem>>
    %699 = vector.broadcast %698 : f32 to vector<24x24xf32>
    %700 = arith.mulf %619, %699 : vector<24x24xf32>
    %c21 = arith.constant 21 : index
    %701 = memref.load %arg8[%c21] : memref<48xf32, #tpu.memory_space<smem>>
    %702 = vector.broadcast %701 : f32 to vector<24x24xf32>
    %703 = arith.mulf %640, %702 : vector<24x24xf32>
    %704 = arith.addf %700, %703 : vector<24x24xf32>
    %c25_185 = arith.constant 25 : index
    %705 = memref.load %arg8[%c25_185] : memref<48xf32, #tpu.memory_space<smem>>
    %706 = vector.broadcast %705 : f32 to vector<24x24xf32>
    %707 = arith.mulf %661, %706 : vector<24x24xf32>
    %708 = arith.addf %704, %707 : vector<24x24xf32>
    %c29 = arith.constant 29 : index
    %709 = memref.load %arg8[%c29] : memref<48xf32, #tpu.memory_space<smem>>
    %710 = vector.broadcast %709 : f32 to vector<24x24xf32>
    %711 = arith.mulf %682, %710 : vector<24x24xf32>
    %712 = arith.addf %708, %711 : vector<24x24xf32>
    %c18 = arith.constant 18 : index
    %713 = memref.load %arg8[%c18] : memref<48xf32, #tpu.memory_space<smem>>
    %714 = vector.broadcast %713 : f32 to vector<24x24xf32>
    %715 = arith.mulf %619, %714 : vector<24x24xf32>
    %c22 = arith.constant 22 : index
    %716 = memref.load %arg8[%c22] : memref<48xf32, #tpu.memory_space<smem>>
    %717 = vector.broadcast %716 : f32 to vector<24x24xf32>
    %718 = arith.mulf %640, %717 : vector<24x24xf32>
    %719 = arith.addf %715, %718 : vector<24x24xf32>
    %c26_186 = arith.constant 26 : index
    %720 = memref.load %arg8[%c26_186] : memref<48xf32, #tpu.memory_space<smem>>
    %721 = vector.broadcast %720 : f32 to vector<24x24xf32>
    %722 = arith.mulf %661, %721 : vector<24x24xf32>
    %723 = arith.addf %719, %722 : vector<24x24xf32>
    %c30_187 = arith.constant 30 : index
    %724 = memref.load %arg8[%c30_187] : memref<48xf32, #tpu.memory_space<smem>>
    %725 = vector.broadcast %724 : f32 to vector<24x24xf32>
    %726 = arith.mulf %682, %725 : vector<24x24xf32>
    %727 = arith.addf %723, %726 : vector<24x24xf32>
    %c19 = arith.constant 19 : index
    %728 = memref.load %arg8[%c19] : memref<48xf32, #tpu.memory_space<smem>>
    %729 = vector.broadcast %728 : f32 to vector<24x24xf32>
    %730 = arith.mulf %619, %729 : vector<24x24xf32>
    %c23 = arith.constant 23 : index
    %731 = memref.load %arg8[%c23] : memref<48xf32, #tpu.memory_space<smem>>
    %732 = vector.broadcast %731 : f32 to vector<24x24xf32>
    %733 = arith.mulf %640, %732 : vector<24x24xf32>
    %734 = arith.addf %730, %733 : vector<24x24xf32>
    %c27_188 = arith.constant 27 : index
    %735 = memref.load %arg8[%c27_188] : memref<48xf32, #tpu.memory_space<smem>>
    %736 = vector.broadcast %735 : f32 to vector<24x24xf32>
    %737 = arith.mulf %661, %736 : vector<24x24xf32>
    %738 = arith.addf %734, %737 : vector<24x24xf32>
    %c31 = arith.constant 31 : index
    %739 = memref.load %arg8[%c31] : memref<48xf32, #tpu.memory_space<smem>>
    %740 = vector.broadcast %739 : f32 to vector<24x24xf32>
    %741 = arith.mulf %682, %740 : vector<24x24xf32>
    %742 = arith.addf %738, %741 : vector<24x24xf32>
    %743 = arith.addf %697, %712 : vector<24x24xf32>
    %744 = arith.addf %743, %727 : vector<24x24xf32>
    %745 = arith.addf %744, %742 : vector<24x24xf32>
    %cst_189 = arith.constant 2.500000e-01 : f32
    %746 = vector.broadcast %cst_189 : f32 to vector<24x24xf32>
    %747 = arith.mulf %745, %746 : vector<24x24xf32>
    %748 = arith.subf %697, %747 : vector<24x24xf32>
    %749 = arith.mulf %748, %748 : vector<24x24xf32>
    %750 = arith.subf %712, %747 : vector<24x24xf32>
    %751 = arith.mulf %750, %750 : vector<24x24xf32>
    %752 = arith.addf %749, %751 : vector<24x24xf32>
    %753 = arith.subf %727, %747 : vector<24x24xf32>
    %754 = arith.mulf %753, %753 : vector<24x24xf32>
    %755 = arith.addf %752, %754 : vector<24x24xf32>
    %756 = arith.subf %742, %747 : vector<24x24xf32>
    %757 = arith.mulf %756, %756 : vector<24x24xf32>
    %758 = arith.addf %755, %757 : vector<24x24xf32>
    %cst_190 = arith.constant 2.500000e-01 : f32
    %759 = vector.broadcast %cst_190 : f32 to vector<24x24xf32>
    %760 = arith.mulf %758, %759 : vector<24x24xf32>
    %cst_191 = arith.constant 9.99999974E-6 : f32
    %761 = vector.broadcast %cst_191 : f32 to vector<24x24xf32>
    %762 = arith.addf %760, %761 : vector<24x24xf32>
    %763 = math.rsqrt %762 : vector<24x24xf32>
    %764 = arith.subf %697, %747 : vector<24x24xf32>
    %765 = arith.mulf %764, %763 : vector<24x24xf32>
    %c36_192 = arith.constant 36 : index
    %766 = memref.load %arg8[%c36_192] : memref<48xf32, #tpu.memory_space<smem>>
    %767 = vector.broadcast %766 : f32 to vector<24x24xf32>
    %768 = arith.mulf %765, %767 : vector<24x24xf32>
    %c44 = arith.constant 44 : index
    %769 = memref.load %arg8[%c44] : memref<48xf32, #tpu.memory_space<smem>>
    %770 = vector.broadcast %769 : f32 to vector<24x24xf32>
    %771 = arith.addf %768, %770 : vector<24x24xf32>
    %772 = vector.broadcast %12 : vector<1x24xf32> to vector<24x24xf32>
    %773 = arith.mulf %771, %772 : vector<24x24xf32>
    %774 = arith.truncf %773 : vector<24x24xf32> to vector<24x24xbf16>
    %775 = arith.truncf %601 : vector<24x64xf32> to vector<24x64xbf16>
    %cst_193 = arith.constant dense<0.000000e+00> : vector<24x64xf32>
    %776 = tpu.matmul %774, %775, %cst_193 {dimension_numbers = #tpu.dot_dimension_numbers<[1], [0], [0], [1], [0, 0, 1, 1], [], []>} : vector<24x24xbf16>, vector<24x64xbf16>, vector<24x64xf32> -> vector<24x64xf32>
    %c0_194 = arith.constant 0 : index
    %c0_195 = arith.constant 0 : index
    %777 = vector.load %arg10[%c0_194, %c0_195] : memref<48x512xf32, #tpu.memory_space<vmem>>, vector<24x64xf32>
    tpu.vector_store %arg10[%c0_194, %c0_195], %776 {strides = array<i32>} : memref<48x512xf32, #tpu.memory_space<vmem>>, vector<24x64xf32>,
    %778 = arith.subf %712, %747 : vector<24x24xf32>
    %779 = arith.mulf %778, %763 : vector<24x24xf32>
    %c37 = arith.constant 37 : index
    %780 = memref.load %arg8[%c37] : memref<48xf32, #tpu.memory_space<smem>>
    %781 = vector.broadcast %780 : f32 to vector<24x24xf32>
    %782 = arith.mulf %779, %781 : vector<24x24xf32>
    %c45 = arith.constant 45 : index
    %783 = memref.load %arg8[%c45] : memref<48xf32, #tpu.memory_space<smem>>
    %784 = vector.broadcast %783 : f32 to vector<24x24xf32>
    %785 = arith.addf %782, %784 : vector<24x24xf32>
    %786 = vector.broadcast %12 : vector<1x24xf32> to vector<24x24xf32>
    %787 = arith.mulf %785, %786 : vector<24x24xf32>
    %788 = arith.truncf %787 : vector<24x24xf32> to vector<24x24xbf16>
    %789 = arith.truncf %622 : vector<24x64xf32> to vector<24x64xbf16>
    %cst_196 = arith.constant dense<0.000000e+00> : vector<24x64xf32>
    %790 = tpu.matmul %788, %789, %cst_196 {dimension_numbers = #tpu.dot_dimension_numbers<[1], [0], [0], [1], [0, 0, 1, 1], [], []>} : vector<24x24xbf16>, vector<24x64xbf16>, vector<24x64xf32> -> vector<24x64xf32>
    %c0_197 = arith.constant 0 : index
    %c128_198 = arith.constant 128 : index
    %791 = vector.load %arg10[%c0_197, %c128_198] : memref<48x512xf32, #tpu.memory_space<vmem>>, vector<24x64xf32>
    tpu.vector_store %arg10[%c0_197, %c128_198], %790 {strides = array<i32>} : memref<48x512xf32, #tpu.memory_space<vmem>>, vector<24x64xf32>,
    %792 = arith.subf %727, %747 : vector<24x24xf32>
    %793 = arith.mulf %792, %763 : vector<24x24xf32>
    %c38 = arith.constant 38 : index
    %794 = memref.load %arg8[%c38] : memref<48xf32, #tpu.memory_space<smem>>
    %795 = vector.broadcast %794 : f32 to vector<24x24xf32>
    %796 = arith.mulf %793, %795 : vector<24x24xf32>
    %c46 = arith.constant 46 : index
    %797 = memref.load %arg8[%c46] : memref<48xf32, #tpu.memory_space<smem>>
    %798 = vector.broadcast %797 : f32 to vector<24x24xf32>
    %799 = arith.addf %796, %798 : vector<24x24xf32>
    %800 = vector.broadcast %12 : vector<1x24xf32> to vector<24x24xf32>
    %801 = arith.mulf %799, %800 : vector<24x24xf32>
    %802 = arith.truncf %801 : vector<24x24xf32> to vector<24x24xbf16>
    %803 = arith.truncf %643 : vector<24x64xf32> to vector<24x64xbf16>
    %cst_199 = arith.constant dense<0.000000e+00> : vector<24x64xf32>
    %804 = tpu.matmul %802, %803, %cst_199 {dimension_numbers = #tpu.dot_dimension_numbers<[1], [0], [0], [1], [0, 0, 1, 1], [], []>} : vector<24x24xbf16>, vector<24x64xbf16>, vector<24x64xf32> -> vector<24x64xf32>
    %c0_200 = arith.constant 0 : index
    %c256_201 = arith.constant 256 : index
    %805 = vector.load %arg10[%c0_200, %c256_201] : memref<48x512xf32, #tpu.memory_space<vmem>>, vector<24x64xf32>
    tpu.vector_store %arg10[%c0_200, %c256_201], %804 {strides = array<i32>} : memref<48x512xf32, #tpu.memory_space<vmem>>, vector<24x64xf32>,
    %806 = arith.subf %742, %747 : vector<24x24xf32>
    %807 = arith.mulf %806, %763 : vector<24x24xf32>
    %c39 = arith.constant 39 : index
    %808 = memref.load %arg8[%c39] : memref<48xf32, #tpu.memory_space<smem>>
    %809 = vector.broadcast %808 : f32 to vector<24x24xf32>
    %810 = arith.mulf %807, %809 : vector<24x24xf32>
    %c47 = arith.constant 47 : index
    %811 = memref.load %arg8[%c47] : memref<48xf32, #tpu.memory_space<smem>>
    %812 = vector.broadcast %811 : f32 to vector<24x24xf32>
    %813 = arith.addf %810, %812 : vector<24x24xf32>
    %814 = vector.broadcast %12 : vector<1x24xf32> to vector<24x24xf32>
    %815 = arith.mulf %813, %814 : vector<24x24xf32>
    %816 = arith.truncf %815 : vector<24x24xf32> to vector<24x24xbf16>
    %817 = arith.truncf %664 : vector<24x64xf32> to vector<24x64xbf16>
    %cst_202 = arith.constant dense<0.000000e+00> : vector<24x64xf32>
    %818 = tpu.matmul %816, %817, %cst_202 {dimension_numbers = #tpu.dot_dimension_numbers<[1], [0], [0], [1], [0, 0, 1, 1], [], []>} : vector<24x24xbf16>, vector<24x64xbf16>, vector<24x64xf32> -> vector<24x64xf32>
    %c0_203 = arith.constant 0 : index
    %c384_204 = arith.constant 384 : index
    %819 = vector.load %arg10[%c0_203, %c384_204] : memref<48x512xf32, #tpu.memory_space<vmem>>, vector<24x64xf32>
    tpu.vector_store %arg10[%c0_203, %c384_204], %818 {strides = array<i32>} : memref<48x512xf32, #tpu.memory_space<vmem>>, vector<24x64xf32>,
    %820 = vector.extract_strided_slice %598 {offsets = [24, 0], sizes = [24, 64], strides = [1, 1]} : vector<48x768xf32> to vector<24x64xf32>
    %821 = vector.extract_strided_slice %598 {offsets = [24, 256], sizes = [24, 64], strides = [1, 1]} : vector<48x768xf32> to vector<24x64xf32>
    %822 = vector.extract_strided_slice %598 {offsets = [24, 512], sizes = [24, 64], strides = [1, 1]} : vector<48x768xf32> to vector<24x64xf32>
    %823 = arith.truncf %820 : vector<24x64xf32> to vector<24x64xbf16>
    %824 = arith.truncf %821 : vector<24x64xf32> to vector<24x64xbf16>
    %cst_205 = arith.constant dense<0.000000e+00> : vector<24x24xf32>
    %825 = tpu.matmul %823, %824, %cst_205 {dimension_numbers = #tpu.dot_dimension_numbers<[1], [1], [0], [0], [0, 0, 1, 0], [], []>} : vector<24x64xbf16>, vector<24x64xbf16>, vector<24x24xf32> -> vector<24x24xf32>
    %cst_206 = arith.constant 1.250000e-01 : f32
    %826 = vector.broadcast %cst_206 : f32 to vector<24x24xf32>
    %827 = arith.mulf %825, %826 : vector<24x24xf32>
    %cst_207 = arith.constant -1.000000e+30 : f32
    %828 = vector.shape_cast %10 : vector<1x24xi1> to vector<1x24xi1>
    %829 = vector.broadcast %828 : vector<1x24xi1> to vector<24x24xi1>
    %830 = vector.broadcast %cst_207 : f32 to vector<24x24xf32>
    %831 = arith.select %829, %827, %830 : vector<24x24xi1>, vector<24x24xf32>
    %cst_208 = arith.constant dense<0xFF800000> : vector<24xf32>
    %832 = vector.multi_reduction <maximumf>, %831, %cst_208 [1] : vector<24x24xf32> to vector<24xf32>
    %833 = vector.shape_cast %832 : vector<24xf32> to vector<24x1xf32>
    %834 = vector.broadcast %833 : vector<24x1xf32> to vector<24x24xf32>
    %835 = arith.subf %831, %834 : vector<24x24xf32>
    %836 = math.exp %835 : vector<24x24xf32>
    %cst_209 = arith.constant dense<0.000000e+00> : vector<24xf32>
    %837 = vector.multi_reduction <add>, %836, %cst_209 [1] : vector<24x24xf32> to vector<24xf32>
    %838 = vector.shape_cast %837 : vector<24xf32> to vector<24x1xf32>
    %839 = vector.broadcast %838 : vector<24x1xf32> to vector<24x24xf32>
    %840 = arith.divf %836, %839 : vector<24x24xf32>
    %841 = vector.extract_strided_slice %598 {offsets = [24, 64], sizes = [24, 64], strides = [1, 1]} : vector<48x768xf32> to vector<24x64xf32>
    %842 = vector.extract_strided_slice %598 {offsets = [24, 320], sizes = [24, 64], strides = [1, 1]} : vector<48x768xf32> to vector<24x64xf32>
    %843 = vector.extract_strided_slice %598 {offsets = [24, 576], sizes = [24, 64], strides = [1, 1]} : vector<48x768xf32> to vector<24x64xf32>
    %844 = arith.truncf %841 : vector<24x64xf32> to vector<24x64xbf16>
    %845 = arith.truncf %842 : vector<24x64xf32> to vector<24x64xbf16>
    %cst_210 = arith.constant dense<0.000000e+00> : vector<24x24xf32>
    %846 = tpu.matmul %844, %845, %cst_210 {dimension_numbers = #tpu.dot_dimension_numbers<[1], [1], [0], [0], [0, 0, 1, 0], [], []>} : vector<24x64xbf16>, vector<24x64xbf16>, vector<24x24xf32> -> vector<24x24xf32>
    %cst_211 = arith.constant 1.250000e-01 : f32
    %847 = vector.broadcast %cst_211 : f32 to vector<24x24xf32>
    %848 = arith.mulf %846, %847 : vector<24x24xf32>
    %cst_212 = arith.constant -1.000000e+30 : f32
    %849 = vector.shape_cast %10 : vector<1x24xi1> to vector<1x24xi1>
    %850 = vector.broadcast %849 : vector<1x24xi1> to vector<24x24xi1>
    %851 = vector.broadcast %cst_212 : f32 to vector<24x24xf32>
    %852 = arith.select %850, %848, %851 : vector<24x24xi1>, vector<24x24xf32>
    %cst_213 = arith.constant dense<0xFF800000> : vector<24xf32>
    %853 = vector.multi_reduction <maximumf>, %852, %cst_213 [1] : vector<24x24xf32> to vector<24xf32>
    %854 = vector.shape_cast %853 : vector<24xf32> to vector<24x1xf32>
    %855 = vector.broadcast %854 : vector<24x1xf32> to vector<24x24xf32>
    %856 = arith.subf %852, %855 : vector<24x24xf32>
    %857 = math.exp %856 : vector<24x24xf32>
    %cst_214 = arith.constant dense<0.000000e+00> : vector<24xf32>
    %858 = vector.multi_reduction <add>, %857, %cst_214 [1] : vector<24x24xf32> to vector<24xf32>
    %859 = vector.shape_cast %858 : vector<24xf32> to vector<24x1xf32>
    %860 = vector.broadcast %859 : vector<24x1xf32> to vector<24x24xf32>
    %861 = arith.divf %857, %860 : vector<24x24xf32>
    %862 = vector.extract_strided_slice %598 {offsets = [24, 128], sizes = [24, 64], strides = [1, 1]} : vector<48x768xf32> to vector<24x64xf32>
    %863 = vector.extract_strided_slice %598 {offsets = [24, 384], sizes = [24, 64], strides = [1, 1]} : vector<48x768xf32> to vector<24x64xf32>
    %864 = vector.extract_strided_slice %598 {offsets = [24, 640], sizes = [24, 64], strides = [1, 1]} : vector<48x768xf32> to vector<24x64xf32>
    %865 = arith.truncf %862 : vector<24x64xf32> to vector<24x64xbf16>
    %866 = arith.truncf %863 : vector<24x64xf32> to vector<24x64xbf16>
    %cst_215 = arith.constant dense<0.000000e+00> : vector<24x24xf32>
    %867 = tpu.matmul %865, %866, %cst_215 {dimension_numbers = #tpu.dot_dimension_numbers<[1], [1], [0], [0], [0, 0, 1, 0], [], []>} : vector<24x64xbf16>, vector<24x64xbf16>, vector<24x24xf32> -> vector<24x24xf32>
    %cst_216 = arith.constant 1.250000e-01 : f32
    %868 = vector.broadcast %cst_216 : f32 to vector<24x24xf32>
    %869 = arith.mulf %867, %868 : vector<24x24xf32>
    %cst_217 = arith.constant -1.000000e+30 : f32
    %870 = vector.shape_cast %10 : vector<1x24xi1> to vector<1x24xi1>
    %871 = vector.broadcast %870 : vector<1x24xi1> to vector<24x24xi1>
    %872 = vector.broadcast %cst_217 : f32 to vector<24x24xf32>
    %873 = arith.select %871, %869, %872 : vector<24x24xi1>, vector<24x24xf32>
    %cst_218 = arith.constant dense<0xFF800000> : vector<24xf32>
    %874 = vector.multi_reduction <maximumf>, %873, %cst_218 [1] : vector<24x24xf32> to vector<24xf32>
    %875 = vector.shape_cast %874 : vector<24xf32> to vector<24x1xf32>
    %876 = vector.broadcast %875 : vector<24x1xf32> to vector<24x24xf32>
    %877 = arith.subf %873, %876 : vector<24x24xf32>
    %878 = math.exp %877 : vector<24x24xf32>
    %cst_219 = arith.constant dense<0.000000e+00> : vector<24xf32>
    %879 = vector.multi_reduction <add>, %878, %cst_219 [1] : vector<24x24xf32> to vector<24xf32>
    %880 = vector.shape_cast %879 : vector<24xf32> to vector<24x1xf32>
    %881 = vector.broadcast %880 : vector<24x1xf32> to vector<24x24xf32>
    %882 = arith.divf %878, %881 : vector<24x24xf32>
    %883 = vector.extract_strided_slice %598 {offsets = [24, 192], sizes = [24, 64], strides = [1, 1]} : vector<48x768xf32> to vector<24x64xf32>
    %884 = vector.extract_strided_slice %598 {offsets = [24, 448], sizes = [24, 64], strides = [1, 1]} : vector<48x768xf32> to vector<24x64xf32>
    %885 = vector.extract_strided_slice %598 {offsets = [24, 704], sizes = [24, 64], strides = [1, 1]} : vector<48x768xf32> to vector<24x64xf32>
    %886 = arith.truncf %883 : vector<24x64xf32> to vector<24x64xbf16>
    %887 = arith.truncf %884 : vector<24x64xf32> to vector<24x64xbf16>
    %cst_220 = arith.constant dense<0.000000e+00> : vector<24x24xf32>
    %888 = tpu.matmul %886, %887, %cst_220 {dimension_numbers = #tpu.dot_dimension_numbers<[1], [1], [0], [0], [0, 0, 1, 0], [], []>} : vector<24x64xbf16>, vector<24x64xbf16>, vector<24x24xf32> -> vector<24x24xf32>
    %cst_221 = arith.constant 1.250000e-01 : f32
    %889 = vector.broadcast %cst_221 : f32 to vector<24x24xf32>
    %890 = arith.mulf %888, %889 : vector<24x24xf32>
    %cst_222 = arith.constant -1.000000e+30 : f32
    %891 = vector.shape_cast %10 : vector<1x24xi1> to vector<1x24xi1>
    %892 = vector.broadcast %891 : vector<1x24xi1> to vector<24x24xi1>
    %893 = vector.broadcast %cst_222 : f32 to vector<24x24xf32>
    %894 = arith.select %892, %890, %893 : vector<24x24xi1>, vector<24x24xf32>
    %cst_223 = arith.constant dense<0xFF800000> : vector<24xf32>
    %895 = vector.multi_reduction <maximumf>, %894, %cst_223 [1] : vector<24x24xf32> to vector<24xf32>
    %896 = vector.shape_cast %895 : vector<24xf32> to vector<24x1xf32>
    %897 = vector.broadcast %896 : vector<24x1xf32> to vector<24x24xf32>
    %898 = arith.subf %894, %897 : vector<24x24xf32>
    %899 = math.exp %898 : vector<24x24xf32>
    %cst_224 = arith.constant dense<0.000000e+00> : vector<24xf32>
    %900 = vector.multi_reduction <add>, %899, %cst_224 [1] : vector<24x24xf32> to vector<24xf32>
    %901 = vector.shape_cast %900 : vector<24xf32> to vector<24x1xf32>
    %902 = vector.broadcast %901 : vector<24x1xf32> to vector<24x24xf32>
    %903 = arith.divf %899, %902 : vector<24x24xf32>
    %c16_225 = arith.constant 16 : index
    %904 = memref.load %arg8[%c16_225] : memref<48xf32, #tpu.memory_space<smem>>
    %905 = vector.broadcast %904 : f32 to vector<24x24xf32>
    %906 = arith.mulf %840, %905 : vector<24x24xf32>
    %c20_226 = arith.constant 20 : index
    %907 = memref.load %arg8[%c20_226] : memref<48xf32, #tpu.memory_space<smem>>
    %908 = vector.broadcast %907 : f32 to vector<24x24xf32>
    %909 = arith.mulf %861, %908 : vector<24x24xf32>
    %910 = arith.addf %906, %909 : vector<24x24xf32>
    %c24_227 = arith.constant 24 : index
    %911 = memref.load %arg8[%c24_227] : memref<48xf32, #tpu.memory_space<smem>>
    %912 = vector.broadcast %911 : f32 to vector<24x24xf32>
    %913 = arith.mulf %882, %912 : vector<24x24xf32>
    %914 = arith.addf %910, %913 : vector<24x24xf32>
    %c28_228 = arith.constant 28 : index
    %915 = memref.load %arg8[%c28_228] : memref<48xf32, #tpu.memory_space<smem>>
    %916 = vector.broadcast %915 : f32 to vector<24x24xf32>
    %917 = arith.mulf %903, %916 : vector<24x24xf32>
    %918 = arith.addf %914, %917 : vector<24x24xf32>
    %c17_229 = arith.constant 17 : index
    %919 = memref.load %arg8[%c17_229] : memref<48xf32, #tpu.memory_space<smem>>
    %920 = vector.broadcast %919 : f32 to vector<24x24xf32>
    %921 = arith.mulf %840, %920 : vector<24x24xf32>
    %c21_230 = arith.constant 21 : index
    %922 = memref.load %arg8[%c21_230] : memref<48xf32, #tpu.memory_space<smem>>
    %923 = vector.broadcast %922 : f32 to vector<24x24xf32>
    %924 = arith.mulf %861, %923 : vector<24x24xf32>
    %925 = arith.addf %921, %924 : vector<24x24xf32>
    %c25_231 = arith.constant 25 : index
    %926 = memref.load %arg8[%c25_231] : memref<48xf32, #tpu.memory_space<smem>>
    %927 = vector.broadcast %926 : f32 to vector<24x24xf32>
    %928 = arith.mulf %882, %927 : vector<24x24xf32>
    %929 = arith.addf %925, %928 : vector<24x24xf32>
    %c29_232 = arith.constant 29 : index
    %930 = memref.load %arg8[%c29_232] : memref<48xf32, #tpu.memory_space<smem>>
    %931 = vector.broadcast %930 : f32 to vector<24x24xf32>
    %932 = arith.mulf %903, %931 : vector<24x24xf32>
    %933 = arith.addf %929, %932 : vector<24x24xf32>
    %c18_233 = arith.constant 18 : index
    %934 = memref.load %arg8[%c18_233] : memref<48xf32, #tpu.memory_space<smem>>
    %935 = vector.broadcast %934 : f32 to vector<24x24xf32>
    %936 = arith.mulf %840, %935 : vector<24x24xf32>
    %c22_234 = arith.constant 22 : index
    %937 = memref.load %arg8[%c22_234] : memref<48xf32, #tpu.memory_space<smem>>
    %938 = vector.broadcast %937 : f32 to vector<24x24xf32>
    %939 = arith.mulf %861, %938 : vector<24x24xf32>
    %940 = arith.addf %936, %939 : vector<24x24xf32>
    %c26_235 = arith.constant 26 : index
    %941 = memref.load %arg8[%c26_235] : memref<48xf32, #tpu.memory_space<smem>>
    %942 = vector.broadcast %941 : f32 to vector<24x24xf32>
    %943 = arith.mulf %882, %942 : vector<24x24xf32>
    %944 = arith.addf %940, %943 : vector<24x24xf32>
    %c30_236 = arith.constant 30 : index
    %945 = memref.load %arg8[%c30_236] : memref<48xf32, #tpu.memory_space<smem>>
    %946 = vector.broadcast %945 : f32 to vector<24x24xf32>
    %947 = arith.mulf %903, %946 : vector<24x24xf32>
    %948 = arith.addf %944, %947 : vector<24x24xf32>
    %c19_237 = arith.constant 19 : index
    %949 = memref.load %arg8[%c19_237] : memref<48xf32, #tpu.memory_space<smem>>
    %950 = vector.broadcast %949 : f32 to vector<24x24xf32>
    %951 = arith.mulf %840, %950 : vector<24x24xf32>
    %c23_238 = arith.constant 23 : index
    %952 = memref.load %arg8[%c23_238] : memref<48xf32, #tpu.memory_space<smem>>
    %953 = vector.broadcast %952 : f32 to vector<24x24xf32>
    %954 = arith.mulf %861, %953 : vector<24x24xf32>
    %955 = arith.addf %951, %954 : vector<24x24xf32>
    %c27_239 = arith.constant 27 : index
    %956 = memref.load %arg8[%c27_239] : memref<48xf32, #tpu.memory_space<smem>>
    %957 = vector.broadcast %956 : f32 to vector<24x24xf32>
    %958 = arith.mulf %882, %957 : vector<24x24xf32>
    %959 = arith.addf %955, %958 : vector<24x24xf32>
    %c31_240 = arith.constant 31 : index
    %960 = memref.load %arg8[%c31_240] : memref<48xf32, #tpu.memory_space<smem>>
    %961 = vector.broadcast %960 : f32 to vector<24x24xf32>
    %962 = arith.mulf %903, %961 : vector<24x24xf32>
    %963 = arith.addf %959, %962 : vector<24x24xf32>
    %964 = arith.addf %918, %933 : vector<24x24xf32>
    %965 = arith.addf %964, %948 : vector<24x24xf32>
    %966 = arith.addf %965, %963 : vector<24x24xf32>
    %cst_241 = arith.constant 2.500000e-01 : f32
    %967 = vector.broadcast %cst_241 : f32 to vector<24x24xf32>
    %968 = arith.mulf %966, %967 : vector<24x24xf32>
    %969 = arith.subf %918, %968 : vector<24x24xf32>
    %970 = arith.mulf %969, %969 : vector<24x24xf32>
    %971 = arith.subf %933, %968 : vector<24x24xf32>
    %972 = arith.mulf %971, %971 : vector<24x24xf32>
    %973 = arith.addf %970, %972 : vector<24x24xf32>
    %974 = arith.subf %948, %968 : vector<24x24xf32>
    %975 = arith.mulf %974, %974 : vector<24x24xf32>
    %976 = arith.addf %973, %975 : vector<24x24xf32>
    %977 = arith.subf %963, %968 : vector<24x24xf32>
    %978 = arith.mulf %977, %977 : vector<24x24xf32>
    %979 = arith.addf %976, %978 : vector<24x24xf32>
    %cst_242 = arith.constant 2.500000e-01 : f32
    %980 = vector.broadcast %cst_242 : f32 to vector<24x24xf32>
    %981 = arith.mulf %979, %980 : vector<24x24xf32>
    %cst_243 = arith.constant 9.99999974E-6 : f32
    %982 = vector.broadcast %cst_243 : f32 to vector<24x24xf32>
    %983 = arith.addf %981, %982 : vector<24x24xf32>
    %984 = math.rsqrt %983 : vector<24x24xf32>
    %985 = arith.subf %918, %968 : vector<24x24xf32>
    %986 = arith.mulf %985, %984 : vector<24x24xf32>
    %c36_244 = arith.constant 36 : index
    %987 = memref.load %arg8[%c36_244] : memref<48xf32, #tpu.memory_space<smem>>
    %988 = vector.broadcast %987 : f32 to vector<24x24xf32>
    %989 = arith.mulf %986, %988 : vector<24x24xf32>
    %c44_245 = arith.constant 44 : index
    %990 = memref.load %arg8[%c44_245] : memref<48xf32, #tpu.memory_space<smem>>
    %991 = vector.broadcast %990 : f32 to vector<24x24xf32>
    %992 = arith.addf %989, %991 : vector<24x24xf32>
    %993 = vector.broadcast %12 : vector<1x24xf32> to vector<24x24xf32>
    %994 = arith.mulf %992, %993 : vector<24x24xf32>
    %995 = arith.truncf %994 : vector<24x24xf32> to vector<24x24xbf16>
    %996 = arith.truncf %822 : vector<24x64xf32> to vector<24x64xbf16>
    %cst_246 = arith.constant dense<0.000000e+00> : vector<24x64xf32>
    %997 = tpu.matmul %995, %996, %cst_246 {dimension_numbers = #tpu.dot_dimension_numbers<[1], [0], [0], [1], [0, 0, 1, 1], [], []>} : vector<24x24xbf16>, vector<24x64xbf16>, vector<24x64xf32> -> vector<24x64xf32>
    %c24_247 = arith.constant 24 : index
    %c0_248 = arith.constant 0 : index
    %998 = vector.load %arg10[%c24_247, %c0_248] : memref<48x512xf32, #tpu.memory_space<vmem>>, vector<24x64xf32>
    tpu.vector_store %arg10[%c24_247, %c0_248], %997 {strides = array<i32>} : memref<48x512xf32, #tpu.memory_space<vmem>>, vector<24x64xf32>,
    %999 = arith.subf %933, %968 : vector<24x24xf32>
    %1000 = arith.mulf %999, %984 : vector<24x24xf32>
    %c37_249 = arith.constant 37 : index
    %1001 = memref.load %arg8[%c37_249] : memref<48xf32, #tpu.memory_space<smem>>
    %1002 = vector.broadcast %1001 : f32 to vector<24x24xf32>
    %1003 = arith.mulf %1000, %1002 : vector<24x24xf32>
    %c45_250 = arith.constant 45 : index
    %1004 = memref.load %arg8[%c45_250] : memref<48xf32, #tpu.memory_space<smem>>
    %1005 = vector.broadcast %1004 : f32 to vector<24x24xf32>
    %1006 = arith.addf %1003, %1005 : vector<24x24xf32>
    %1007 = vector.broadcast %12 : vector<1x24xf32> to vector<24x24xf32>
    %1008 = arith.mulf %1006, %1007 : vector<24x24xf32>
    %1009 = arith.truncf %1008 : vector<24x24xf32> to vector<24x24xbf16>
    %1010 = arith.truncf %843 : vector<24x64xf32> to vector<24x64xbf16>
    %cst_251 = arith.constant dense<0.000000e+00> : vector<24x64xf32>
    %1011 = tpu.matmul %1009, %1010, %cst_251 {dimension_numbers = #tpu.dot_dimension_numbers<[1], [0], [0], [1], [0, 0, 1, 1], [], []>} : vector<24x24xbf16>, vector<24x64xbf16>, vector<24x64xf32> -> vector<24x64xf32>
    %c24_252 = arith.constant 24 : index
    %c128_253 = arith.constant 128 : index
    %1012 = vector.load %arg10[%c24_252, %c128_253] : memref<48x512xf32, #tpu.memory_space<vmem>>, vector<24x64xf32>
    tpu.vector_store %arg10[%c24_252, %c128_253], %1011 {strides = array<i32>} : memref<48x512xf32, #tpu.memory_space<vmem>>, vector<24x64xf32>,
    %1013 = arith.subf %948, %968 : vector<24x24xf32>
    %1014 = arith.mulf %1013, %984 : vector<24x24xf32>
    %c38_254 = arith.constant 38 : index
    %1015 = memref.load %arg8[%c38_254] : memref<48xf32, #tpu.memory_space<smem>>
    %1016 = vector.broadcast %1015 : f32 to vector<24x24xf32>
    %1017 = arith.mulf %1014, %1016 : vector<24x24xf32>
    %c46_255 = arith.constant 46 : index
    %1018 = memref.load %arg8[%c46_255] : memref<48xf32, #tpu.memory_space<smem>>
    %1019 = vector.broadcast %1018 : f32 to vector<24x24xf32>
    %1020 = arith.addf %1017, %1019 : vector<24x24xf32>
    %1021 = vector.broadcast %12 : vector<1x24xf32> to vector<24x24xf32>
    %1022 = arith.mulf %1020, %1021 : vector<24x24xf32>
    %1023 = arith.truncf %1022 : vector<24x24xf32> to vector<24x24xbf16>
    %1024 = arith.truncf %864 : vector<24x64xf32> to vector<24x64xbf16>
    %cst_256 = arith.constant dense<0.000000e+00> : vector<24x64xf32>
    %1025 = tpu.matmul %1023, %1024, %cst_256 {dimension_numbers = #tpu.dot_dimension_numbers<[1], [0], [0], [1], [0, 0, 1, 1], [], []>} : vector<24x24xbf16>, vector<24x64xbf16>, vector<24x64xf32> -> vector<24x64xf32>
    %c24_257 = arith.constant 24 : index
    %c256_258 = arith.constant 256 : index
    %1026 = vector.load %arg10[%c24_257, %c256_258] : memref<48x512xf32, #tpu.memory_space<vmem>>, vector<24x64xf32>
    tpu.vector_store %arg10[%c24_257, %c256_258], %1025 {strides = array<i32>} : memref<48x512xf32, #tpu.memory_space<vmem>>, vector<24x64xf32>,
    %1027 = arith.subf %963, %968 : vector<24x24xf32>
    %1028 = arith.mulf %1027, %984 : vector<24x24xf32>
    %c39_259 = arith.constant 39 : index
    %1029 = memref.load %arg8[%c39_259] : memref<48xf32, #tpu.memory_space<smem>>
    %1030 = vector.broadcast %1029 : f32 to vector<24x24xf32>
    %1031 = arith.mulf %1028, %1030 : vector<24x24xf32>
    %c47_260 = arith.constant 47 : index
    %1032 = memref.load %arg8[%c47_260] : memref<48xf32, #tpu.memory_space<smem>>
    %1033 = vector.broadcast %1032 : f32 to vector<24x24xf32>
    %1034 = arith.addf %1031, %1033 : vector<24x24xf32>
    %1035 = vector.broadcast %12 : vector<1x24xf32> to vector<24x24xf32>
    %1036 = arith.mulf %1034, %1035 : vector<24x24xf32>
    %1037 = arith.truncf %1036 : vector<24x24xf32> to vector<24x24xbf16>
    %1038 = arith.truncf %885 : vector<24x64xf32> to vector<24x64xbf16>
    %cst_261 = arith.constant dense<0.000000e+00> : vector<24x64xf32>
    %1039 = tpu.matmul %1037, %1038, %cst_261 {dimension_numbers = #tpu.dot_dimension_numbers<[1], [0], [0], [1], [0, 0, 1, 1], [], []>} : vector<24x24xbf16>, vector<24x64xbf16>, vector<24x64xf32> -> vector<24x64xf32>
    %c24_262 = arith.constant 24 : index
    %c384_263 = arith.constant 384 : index
    %1040 = vector.load %arg10[%c24_262, %c384_263] : memref<48x512xf32, #tpu.memory_space<vmem>>, vector<24x64xf32>
    tpu.vector_store %arg10[%c24_262, %c384_263], %1039 {strides = array<i32>} : memref<48x512xf32, #tpu.memory_space<vmem>>, vector<24x64xf32>,
    %c0_264 = arith.constant 0 : index
    %c0_265 = arith.constant 0 : index
    %1041 = vector.load %arg10[%c0_264, %c0_265] : memref<48x512xf32, #tpu.memory_space<vmem>>, vector<48x512xf32>
    %1042 = arith.truncf %1041 : vector<48x512xf32> to vector<48x512xbf16>
    %c1_266 = arith.constant 1 : index
    %c0_267 = arith.constant 0 : index
    %c0_268 = arith.constant 0 : index
    %1043 = vector.load %arg3[%c1_266, %c0_267, %c0_268] : memref<2x512x32xbf16, #tpu.memory_space<vmem>>, vector<1x512x32xbf16>
    %1044 = vector.shape_cast %1043 : vector<1x512x32xbf16> to vector<512x32xbf16>
    %cst_269 = arith.constant dense<0.000000e+00> : vector<48x32xf32>
    %1045 = tpu.matmul %1042, %1044, %cst_269 {dimension_numbers = #tpu.dot_dimension_numbers<[1], [0], [0], [1], [0, 0, 1, 1], [], []>} : vector<48x512xbf16>, vector<512x32xbf16>, vector<48x32xf32> -> vector<48x32xf32>
    %c33_270 = arith.constant 33 : index
    %c0_271 = arith.constant 0 : index
    %1046 = vector.load %arg7[%c33_270, %c0_271] : memref<48x64xf32, #tpu.memory_space<vmem>>, vector<1x32xf32>
    %1047 = vector.broadcast %1046 : vector<1x32xf32> to vector<48x32xf32>
    %1048 = arith.addf %1045, %1047 : vector<48x32xf32>
    %1049 = arith.addf %570, %1048 : vector<48x32xf32>
    %c29_272 = arith.constant 29 : index
    %c0_273 = arith.constant 0 : index
    %1050 = vector.load %arg7[%c29_272, %c0_273] : memref<48x64xf32, #tpu.memory_space<vmem>>, vector<1x32xf32>
    %c31_274 = arith.constant 31 : index
    %c0_275 = arith.constant 0 : index
    %1051 = vector.load %arg7[%c31_274, %c0_275] : memref<48x64xf32, #tpu.memory_space<vmem>>, vector<1x32xf32>
    %cst_276 = arith.constant dense<0.000000e+00> : vector<48xf32>
    %1052 = vector.multi_reduction <add>, %1049, %cst_276 [1] : vector<48x32xf32> to vector<48xf32>
    %1053 = vector.shape_cast %1052 : vector<48xf32> to vector<48x1xf32>
    %cst_277 = arith.constant 3.200000e+01 : f32
    %1054 = vector.broadcast %cst_277 : f32 to vector<48x1xf32>
    %1055 = arith.divf %1053, %1054 : vector<48x1xf32>
    %1056 = vector.broadcast %1055 : vector<48x1xf32> to vector<48x32xf32>
    %1057 = arith.subf %1049, %1056 : vector<48x32xf32>
    %1058 = arith.mulf %1057, %1057 : vector<48x32xf32>
    %cst_278 = arith.constant dense<0.000000e+00> : vector<48xf32>
    %1059 = vector.multi_reduction <add>, %1058, %cst_278 [1] : vector<48x32xf32> to vector<48xf32>
    %1060 = vector.shape_cast %1059 : vector<48xf32> to vector<48x1xf32>
    %cst_279 = arith.constant 3.200000e+01 : f32
    %1061 = vector.broadcast %cst_279 : f32 to vector<48x1xf32>
    %1062 = arith.divf %1060, %1061 : vector<48x1xf32>
    %1063 = vector.broadcast %1055 : vector<48x1xf32> to vector<48x32xf32>
    %1064 = arith.subf %1049, %1063 : vector<48x32xf32>
    %cst_280 = arith.constant 9.99999974E-6 : f32
    %1065 = vector.broadcast %cst_280 : f32 to vector<48x1xf32>
    %1066 = arith.addf %1062, %1065 : vector<48x1xf32>
    %1067 = math.rsqrt %1066 : vector<48x1xf32>
    %1068 = vector.broadcast %1067 : vector<48x1xf32> to vector<48x32xf32>
    %1069 = arith.mulf %1064, %1068 : vector<48x32xf32>
    %1070 = vector.broadcast %1050 : vector<1x32xf32> to vector<48x32xf32>
    %1071 = arith.mulf %1069, %1070 : vector<48x32xf32>
    %1072 = vector.broadcast %1051 : vector<1x32xf32> to vector<48x32xf32>
    %1073 = arith.addf %1071, %1072 : vector<48x32xf32>
    %1074 = arith.truncf %1073 : vector<48x32xf32> to vector<48x32xbf16>
    %c1_281 = arith.constant 1 : index
    %c0_282 = arith.constant 0 : index
    %c0_283 = arith.constant 0 : index
    %1075 = vector.load %arg4[%c1_281, %c0_282, %c0_283] : memref<2x32x64xbf16, #tpu.memory_space<vmem>>, vector<1x32x64xbf16>
    %1076 = vector.shape_cast %1075 : vector<1x32x64xbf16> to vector<32x64xbf16>
    %cst_284 = arith.constant dense<0.000000e+00> : vector<48x64xf32>
    %1077 = tpu.matmul %1074, %1076, %cst_284 {dimension_numbers = #tpu.dot_dimension_numbers<[1], [0], [0], [1], [0, 0, 1, 1], [], []>} : vector<48x32xbf16>, vector<32x64xbf16>, vector<48x64xf32> -> vector<48x64xf32>
    %c35_285 = arith.constant 35 : index
    %c0_286 = arith.constant 0 : index
    %1078 = vector.load %arg7[%c35_285, %c0_286] : memref<48x64xf32, #tpu.memory_space<vmem>>, vector<1x64xf32>
    %1079 = vector.broadcast %1078 : vector<1x64xf32> to vector<48x64xf32>
    %1080 = arith.addf %1077, %1079 : vector<48x64xf32>
    %cst_287 = arith.constant 5.000000e-01 : f32
    %1081 = vector.broadcast %cst_287 : f32 to vector<48x64xf32>
    %1082 = arith.mulf %1081, %1080 : vector<48x64xf32>
    %cst_288 = arith.constant 0.707106769 : f32
    %1083 = vector.broadcast %cst_288 : f32 to vector<48x64xf32>
    %1084 = arith.mulf %1080, %1083 : vector<48x64xf32>
    %1085 = math.absf %1084 : vector<48x64xf32>
    %cst_289 = arith.constant 0.327591091 : f32
    %1086 = vector.broadcast %cst_289 : f32 to vector<48x64xf32>
    %1087 = arith.mulf %1086, %1085 : vector<48x64xf32>
    %cst_290 = arith.constant 1.000000e+00 : f32
    %1088 = vector.broadcast %cst_290 : f32 to vector<48x64xf32>
    %1089 = arith.addf %1088, %1087 : vector<48x64xf32>
    %cst_291 = arith.constant 1.000000e+00 : f32
    %1090 = vector.broadcast %cst_291 : f32 to vector<48x64xf32>
    %1091 = arith.divf %1090, %1089 : vector<48x64xf32>
    %cst_292 = arith.constant 1.06140542 : f32
    %1092 = vector.broadcast %cst_292 : f32 to vector<48x64xf32>
    %1093 = arith.mulf %1092, %1091 : vector<48x64xf32>
    %cst_293 = arith.constant 1.45315206 : f32
    %1094 = vector.broadcast %cst_293 : f32 to vector<48x64xf32>
    %1095 = arith.subf %1093, %1094 : vector<48x64xf32>
    %1096 = arith.mulf %1095, %1091 : vector<48x64xf32>
    %cst_294 = arith.constant 1.42141378 : f32
    %1097 = vector.broadcast %cst_294 : f32 to vector<48x64xf32>
    %1098 = arith.addf %1096, %1097 : vector<48x64xf32>
    %1099 = arith.mulf %1098, %1091 : vector<48x64xf32>
    %cst_295 = arith.constant 0.284496725 : f32
    %1100 = vector.broadcast %cst_295 : f32 to vector<48x64xf32>
    %1101 = arith.subf %1099, %1100 : vector<48x64xf32>
    %1102 = arith.mulf %1101, %1091 : vector<48x64xf32>
    %cst_296 = arith.constant 0.254829586 : f32
    %1103 = vector.broadcast %cst_296 : f32 to vector<48x64xf32>
    %1104 = arith.addf %1102, %1103 : vector<48x64xf32>
    %1105 = arith.mulf %1104, %1091 : vector<48x64xf32>
    %cst_297 = arith.constant 0.000000e+00 : f32
    %1106 = vector.broadcast %cst_297 : f32 to vector<48x64xf32>
    %1107 = arith.subf %1106, %1084 : vector<48x64xf32>
    %1108 = arith.mulf %1107, %1084 : vector<48x64xf32>
    %1109 = math.exp %1108 : vector<48x64xf32>
    %1110 = arith.mulf %1105, %1109 : vector<48x64xf32>
    %cst_298 = arith.constant 1.000000e+00 : f32
    %1111 = vector.broadcast %cst_298 : f32 to vector<48x64xf32>
    %1112 = arith.subf %1111, %1110 : vector<48x64xf32>
    %cst_299 = arith.constant 0.000000e+00 : f32
    %1113 = vector.broadcast %cst_299 : f32 to vector<48x64xf32>
    %1114 = arith.cmpf oge, %1084, %1113 : vector<48x64xf32>
    %cst_300 = arith.constant 0.000000e+00 : f32
    %1115 = vector.broadcast %cst_300 : f32 to vector<48x64xf32>
    %1116 = arith.subf %1115, %1112 : vector<48x64xf32>
    %1117 = arith.select %1114, %1112, %1116 : vector<48x64xi1>, vector<48x64xf32>
    %cst_301 = arith.constant 1.000000e+00 : f32
    %1118 = vector.broadcast %cst_301 : f32 to vector<48x64xf32>
    %1119 = arith.addf %1118, %1117 : vector<48x64xf32>
    %1120 = arith.mulf %1082, %1119 : vector<48x64xf32>
    %1121 = arith.truncf %1120 : vector<48x64xf32> to vector<48x64xbf16>
    %c1_302 = arith.constant 1 : index
    %c0_303 = arith.constant 0 : index
    %c0_304 = arith.constant 0 : index
    %1122 = vector.load %arg5[%c1_302, %c0_303, %c0_304] : memref<2x64x32xbf16, #tpu.memory_space<vmem>>, vector<1x64x32xbf16>
    %1123 = vector.shape_cast %1122 : vector<1x64x32xbf16> to vector<64x32xbf16>
    %cst_305 = arith.constant dense<0.000000e+00> : vector<48x32xf32>
    %1124 = tpu.matmul %1121, %1123, %cst_305 {dimension_numbers = #tpu.dot_dimension_numbers<[1], [0], [0], [1], [0, 0, 1, 1], [], []>} : vector<48x64xbf16>, vector<64x32xbf16>, vector<48x32xf32> -> vector<48x32xf32>
    %c37_306 = arith.constant 37 : index
    %c0_307 = arith.constant 0 : index
    %1125 = vector.load %arg7[%c37_306, %c0_307] : memref<48x64xf32, #tpu.memory_space<vmem>>, vector<1x32xf32>
    %1126 = vector.broadcast %1125 : vector<1x32xf32> to vector<48x32xf32>
    %1127 = arith.addf %1124, %1126 : vector<48x32xf32>
    %1128 = arith.addf %1049, %1127 : vector<48x32xf32>
    %1129 = vector.extract_strided_slice %1128 {offsets = [0, 0], sizes = [1, 32], strides = [1, 1]} : vector<48x32xf32> to vector<1x32xf32>
    %1130 = vector.extract_strided_slice %1128 {offsets = [24, 0], sizes = [1, 32], strides = [1, 1]} : vector<48x32xf32> to vector<1x32xf32>
    %1131 = tpu.concatenate %1129, %1130 in 0 : vector<1x32xf32>, vector<1x32xf32> -> vector<2x32xf32>
    %c38_308 = arith.constant 38 : index
    %c0_309 = arith.constant 0 : index
    %1132 = vector.load %arg7[%c38_308, %c0_309] : memref<48x64xf32, #tpu.memory_space<vmem>>, vector<1x32xf32>
    %c39_310 = arith.constant 39 : index
    %c0_311 = arith.constant 0 : index
    %1133 = vector.load %arg7[%c39_310, %c0_311] : memref<48x64xf32, #tpu.memory_space<vmem>>, vector<1x32xf32>
    %cst_312 = arith.constant dense<0.000000e+00> : vector<2xf32>
    %1134 = vector.multi_reduction <add>, %1131, %cst_312 [1] : vector<2x32xf32> to vector<2xf32>
    %1135 = vector.shape_cast %1134 : vector<2xf32> to vector<2x1xf32>
    %cst_313 = arith.constant 3.200000e+01 : f32
    %1136 = vector.broadcast %cst_313 : f32 to vector<2x1xf32>
    %1137 = arith.divf %1135, %1136 : vector<2x1xf32>
    %1138 = vector.broadcast %1137 : vector<2x1xf32> to vector<2x32xf32>
    %1139 = arith.subf %1131, %1138 : vector<2x32xf32>
    %1140 = arith.mulf %1139, %1139 : vector<2x32xf32>
    %cst_314 = arith.constant dense<0.000000e+00> : vector<2xf32>
    %1141 = vector.multi_reduction <add>, %1140, %cst_314 [1] : vector<2x32xf32> to vector<2xf32>
    %1142 = vector.shape_cast %1141 : vector<2xf32> to vector<2x1xf32>
    %cst_315 = arith.constant 3.200000e+01 : f32
    %1143 = vector.broadcast %cst_315 : f32 to vector<2x1xf32>
    %1144 = arith.divf %1142, %1143 : vector<2x1xf32>
    %1145 = vector.broadcast %1137 : vector<2x1xf32> to vector<2x32xf32>
    %1146 = arith.subf %1131, %1145 : vector<2x32xf32>
    %cst_316 = arith.constant 9.99999974E-6 : f32
    %1147 = vector.broadcast %cst_316 : f32 to vector<2x1xf32>
    %1148 = arith.addf %1144, %1147 : vector<2x1xf32>
    %1149 = math.rsqrt %1148 : vector<2x1xf32>
    %1150 = vector.broadcast %1149 : vector<2x1xf32> to vector<2x32xf32>
    %1151 = arith.mulf %1146, %1150 : vector<2x32xf32>
    %1152 = vector.broadcast %1132 : vector<1x32xf32> to vector<2x32xf32>
    %1153 = arith.mulf %1151, %1152 : vector<2x32xf32>
    %1154 = vector.broadcast %1133 : vector<1x32xf32> to vector<2x32xf32>
    %1155 = arith.addf %1153, %1154 : vector<2x32xf32>
    %c0_317 = arith.constant 0 : index
    %c0_318 = arith.constant 0 : index
    %1156 = vector.load %arg6[%c0_317, %c0_318] : memref<32x10xf32, #tpu.memory_space<vmem>>, vector<32x10xf32>
    %cst_319 = arith.constant dense<0.000000e+00> : vector<2x10xf32>
    %1157 = tpu.matmul %1155, %1156, %cst_319 {dimension_numbers = #tpu.dot_dimension_numbers<[1], [0], [0], [1], [0, 0, 1, 1], [], []>} : vector<2x32xf32>, vector<32x10xf32>, vector<2x10xf32> -> vector<2x10xf32>
    %c40_320 = arith.constant 40 : index
    %c0_321 = arith.constant 0 : index
    %1158 = vector.load %arg7[%c40_320, %c0_321] : memref<48x64xf32, #tpu.memory_space<vmem>>, vector<1x10xf32>
    %1159 = vector.broadcast %1158 : vector<1x10xf32> to vector<2x10xf32>
    %1160 = arith.addf %1157, %1159 : vector<2x10xf32>
    %c0_322 = arith.constant 0 : index
    %c0_323 = arith.constant 0 : index
    %1161 = vector.load %arg9[%c0_322, %c0_323] : memref<2x10xf32, #tpu.memory_space<vmem>>, vector<2x10xf32>
    tpu.vector_store %arg9[%c0_322, %c0_323], %1160 {strides = array<i32>} : memref<2x10xf32, #tpu.memory_space<vmem>>, vector<2x10xf32>,
    return
  }
}

</mosaic_0001>

<llo_original>
// kernel: reference_transformer_forward.1
$region0: #{reference_transformer_forward.1}
  #allocation0 [shape = 'u32[]', space=smem, size = 0x4, offset = 0x4, fixed_abs, tag = 'smem constant byte address 0x4 - core index']
  #allocation1 [shape = 'u32[144,128]{1,0:T(1,128)}', space=vmem, size = 0x12000, scoped, tag = 'internal scratch']
  #allocation2 [shape = 'f32[48,512]{1,0:T(8,128)}', space=vmem, size = 0x18000, scoped, tag = 'scratch operand']
  %s0 = inlined_call_operand.vmem [shape: f32[48,48], index: 0, kind: input, shape index: {}]
  %s1 = inlined_call_operand.vmem [shape: f32[48,32], index: 1, kind: input, shape index: {}]
  %s2 = inlined_call_operand.vmem [shape: bf16[2,32,768], index: 2, kind: input, shape index: {}]
  %s3 = inlined_call_operand.vmem [shape: bf16[2,512,32], index: 3, kind: input, shape index: {}]
  %s4 = inlined_call_operand.vmem [shape: bf16[2,32,64], index: 4, kind: input, shape index: {}]
  %s5 = inlined_call_operand.vmem [shape: bf16[2,64,32], index: 5, kind: input, shape index: {}]
  %s6 = inlined_call_operand.vmem [shape: f32[32,10], index: 6, kind: input, shape index: {}]
  %s7 = inlined_call_operand.vmem [shape: f32[48,64], index: 7, kind: input, shape index: {}]
  %s8 = inlined_call_operand.vmem [shape: f32[48], index: 8, kind: input, shape index: {}]
  %s9 = inlined_call_operand.hbm [shape: f32[2,10], index: 9, kind: output, shape index: {}]
  %s10 = sld [smem:[#allocation0]]
  $region50: #{reference_transformer_forward.1} parent=0
    _
  %s12 = ssub.s32 1, %s10
  %s13 = scalar_select 0, %s12, %s10
  $region1: #{reference_transformer_forward.1} parent=0
    #allocation3 [shape = 'u8[512]{0}', space=smem, size = 0x200, scoped, tag = 'input window, operand 8, single buffered']
    #allocation4 [shape = 's32[1]{0}', space=sflag, size = 0x4, scoped, tag = 'scoped memory for reference_transformer_forward.1']
    #allocation5 [shape = 's32[1]{0}', space=sflag, size = 0x4, scoped, tag = 'scoped memory for reference_transformer_forward.1']
    #allocation6 [shape = 'u8[1024]{0}', space=vmem, size = 0x400, scoped, tag = 'output window, operand 0, single buffered']
    %14 = vsyncpa [#allocation5], 0
    %15 = vsyncpa [#allocation4], 0
    // Predicated region
    $region2: #{reference_transformer_forward.1} parent=1 // pred_check
      _
    $region3: #{reference_transformer_forward.1} parent=1 // pred_check_branch
      %17 = sbr.rel (0) target = $region5
    $region4: #{reference_transformer_forward.1} parent=1 // pred_region
      _
    $region5: #{reference_transformer_forward.1} parent=1 // pred_fallthru
      _
    // Predicated region
    $region6: #{reference_transformer_forward.1} parent=1 // pred_check
      _
    $region7: #{reference_transformer_forward.1} parent=1 // pred_check_branch
      %19 = sbr.rel (0) target = $region9
    $region8: #{reference_transformer_forward.1} parent=1 // pred_region
      _
    $region9: #{reference_transformer_forward.1} parent=1 // pred_fallthru
      _
    // Predicated region
    $region10: #{reference_transformer_forward.1} parent=1 // pred_check
      _
    $region11: #{reference_transformer_forward.1} parent=1 // pred_check_branch
      %21 = sbr.rel (0) target = $region13
    $region12: #{reference_transformer_forward.1} parent=1 // pred_region
      _
    $region13: #{reference_transformer_forward.1} parent=1 // pred_fallthru
      _
    // Predicated region
    $region14: #{reference_transformer_forward.1} parent=1 // pred_check
      _
    $region15: #{reference_transformer_forward.1} parent=1 // pred_check_branch
      %23 = sbr.rel (0) target = $region17
    $region16: #{reference_transformer_forward.1} parent=1 // pred_region
      _
    $region17: #{reference_transformer_forward.1} parent=1 // pred_fallthru
      _
    // Predicated region
    $region18: #{reference_transformer_forward.1} parent=1 // pred_check
      _
    $region19: #{reference_transformer_forward.1} parent=1 // pred_check_branch
      %25 = sbr.rel (0) target = $region21
    $region20: #{reference_transformer_forward.1} parent=1 // pred_region
      _
    $region21: #{reference_transformer_forward.1} parent=1 // pred_fallthru
      _
    // Predicated region
    $region22: #{reference_transformer_forward.1} parent=1 // pred_check
      _
    $region23: #{reference_transformer_forward.1} parent=1 // pred_check_branch
      %27 = sbr.rel (0) target = $region25
    $region24: #{reference_transformer_forward.1} parent=1 // pred_region
      _
    $region25: #{reference_transformer_forward.1} parent=1 // pred_fallthru
      _
    // Predicated region
    $region26: #{reference_transformer_forward.1} parent=1 // pred_check
      _
    $region27: #{reference_transformer_forward.1} parent=1 // pred_check_branch
      %29 = sbr.rel (0) target = $region29
    $region28: #{reference_transformer_forward.1} parent=1 // pred_region
      _
    $region29: #{reference_transformer_forward.1} parent=1 // pred_fallthru
      _
    // Predicated region
    $region30: #{reference_transformer_forward.1} parent=1 // pred_check
      _
    $region31: #{reference_transformer_forward.1} parent=1 // pred_check_branch
      %31 = sbr.rel (0) target = $region33
    $region32: #{reference_transformer_forward.1} parent=1 // pred_region
      _
    $region33: #{reference_transformer_forward.1} parent=1 // pred_fallthru
      _
    // Predicated region
    $region34: #{reference_transformer_forward.1} parent=1 // pred_check
      _
    $region35: #{reference_transformer_forward.1} parent=1 // pred_check_branch
      %33 = sbr.rel (0) target = $region37
    $region36: #{reference_transformer_forward.1} parent=1 // pred_region
      %s35 = ssub.s32 16, 16
      %36 = vsyncadd [#allocation5], %s35
      %s38 = sshll.u32 %s8, 4
      %s39 = int_to_ptr.vmem [resolvable:$true] %s38
      %41 = dma.vmem_to_smem %s39, 16, [#allocation3], [#allocation5]
    $region37: #{reference_transformer_forward.1} parent=1 // pred_fallthru
      _
    // Predicated region
    $region38: #{reference_transformer_forward.1} parent=1 // pred_check
      _
    $region39: #{reference_transformer_forward.1} parent=1 // pred_check_branch
      %43 = sbr.rel (0) target = $region41
    $region40: #{reference_transformer_forward.1} parent=1 // pred_region
      %44 = dma.done [#allocation5], 16
    $region41: #{reference_transformer_forward.1} parent=1 // pred_fallthru
      _
    %45 = sfence
    %47 = vst [vmem:[#allocation2] sm:$0xff] 0.0
    %48 = vst [vmem:[#allocation2 + $0x8] sm:$0xff] 0.0
    %49 = vst [vmem:[#allocation2 + $0x10] sm:$0xff] 0.0
    %50 = vst [vmem:[#allocation2 + $0x18] sm:$0xff] 0.0
    %51 = vst [vmem:[#allocation2 + $0x20] sm:$0xff] 0.0
    %52 = vst [vmem:[#allocation2 + $0x28] sm:$0xff] 0.0
    %53 = vst [vmem:[#allocation2 + $0x30] sm:$0xff] 0.0
    %54 = vst [vmem:[#allocation2 + $0x38] sm:$0xff] 0.0
    %55 = vst [vmem:[#allocation2 + $0x40] sm:$0xff] 0.0
    %56 = vst [vmem:[#allocation2 + $0x48] sm:$0xff] 0.0
    %57 = vst [vmem:[#allocation2 + $0x50] sm:$0xff] 0.0
    %58 = vst [vmem:[#allocation2 + $0x58] sm:$0xff] 0.0
    %59 = vst [vmem:[#allocation2 + $0x60] sm:$0xff] 0.0
    %60 = vst [vmem:[#allocation2 + $0x68] sm:$0xff] 0.0
    %61 = vst [vmem:[#allocation2 + $0x70] sm:$0xff] 0.0
    %62 = vst [vmem:[#allocation2 + $0x78] sm:$0xff] 0.0
    %63 = vst [vmem:[#allocation2 + $0x80] sm:$0xff] 0.0
    %64 = vst [vmem:[#allocation2 + $0x88] sm:$0xff] 0.0
    %65 = vst [vmem:[#allocation2 + $0x90] sm:$0xff] 0.0
    %66 = vst [vmem:[#allocation2 + $0x98] sm:$0xff] 0.0
    %67 = vst [vmem:[#allocation2 + $0xa0] sm:$0xff] 0.0
    %68 = vst [vmem:[#allocation2 + $0xa8] sm:$0xff] 0.0
    %69 = vst [vmem:[#allocation2 + $0xb0] sm:$0xff] 0.0
    %70 = vst [vmem:[#allocation2 + $0xb8] sm:$0xff] 0.0
    %v71 = vld [vmem:[%s0] sm:$0xff]
    %v72 = vld [vmem:[%s0 + $0x8] sm:$0xff]
    %v73 = vld [vmem:[%s0 + $0x10] sm:$0xff]
    %v74 = vld [vmem:[%s0 + $0x18] sm:$0xff]
    %v75 = vld [vmem:[%s0 + $0x20] sm:$0xff]
    %v76 = vld [vmem:[%s0 + $0x28] sm:$0xff]
    %v77 = vld [vmem:[%s1] sm:$0xff]
    %v78 = vld [vmem:[%s1 + $0x8] sm:$0xff]
    %v79 = vld [vmem:[%s1 + $0x10] sm:$0xff]
    %v80 = vld [vmem:[%s1 + $0x18] sm:$0xff]
    %v81 = vld [vmem:[%s1 + $0x20] sm:$0xff]
    %v82 = vld [vmem:[%s1 + $0x28] sm:$0xff]
    %v83 = vld [vmem:[%s7] sm:$0xff]
    %v84 = vld [vmem:[%s7 + $0x8] sm:$0xff]
    %v85 = vld [vmem:[%s7 + $0x10] sm:$0xff]
    %vm86 = vcmask 392192
    %v88 = vsel %vm86, %v71, 0
    %v91 = vsel %vm86, %v72, 0
    %v94 = vsel %vm86, %v73, 0
    %v97 = vsel %vm86, %v74, 0
    %v100 = vsel %vm86, %v75, 0
    %v103 = vsel %vm86, %v76, 0
    %105 = vmatprep.subr.mxu0 0.0
    %106 = vmatpush1.msra.mxu0 0.0
    %107 = vmatprep.subr.mxu0 0.0
    %108 = vmatpush1.msra.mxu0 0.0
    %109 = vmatprep.subr.mxu0 0.0
    %110 = vmatpush1.msra.mxu0 0.0
    %111 = vmatprep.subr.mxu0 0.0
    %112 = vmatpush1.msra.mxu0 0.0
    %113 = vmatprep.subr.mxu0 0.0
    %114 = vmatpush1.msra.mxu0 0.0
    %115 = vmatprep.subr.mxu0 0.0
    %116 = vmatpush1.msra.mxu0 0.0
    %117 = vmatprep.subr.mxu0 0.0
    %118 = vmatpush1.msra.mxu0 0.0
    %119 = vmatprep.subr.mxu0 0.0
    %120 = vmatpush1.msra.mxu0 0.0
    %121 = vmatprep.subr.mxu0 0.0
    %122 = vmatpush1.msra.mxu0 0.0
    %123 = vmatprep.subr.mxu0 0.0
    %124 = vmatpush1.msra.mxu0 0.0
    %125 = vmatprep.subr.mxu0 0.0
    %126 = vmatpush1.msra.mxu0 %v82
    %127 = vmatprep.subr.mxu0 0.0
    %128 = vmatpush1.msra.mxu0 %v81
    %129 = vmatprep.subr.mxu0 0.0
    %130 = vmatpush1.msra.mxu0 %v80
    %131 = vmatprep.subr.mxu0 0.0
    %132 = vmatpush1.msra.mxu0 %v79
    %133 = vmatprep.subr.mxu0 0.0
    %134 = vmatpush1.msra.mxu0 %v78
    %135 = vmatprep.subr.mxu0 0.0
    %136 = vmatpush1.msra.mxu0 %v77
    %137 = vmatprep.subr.mxu0 0.0
    %138 = vmatpush2.msra.mxu0 0.0
    %139 = vmatprep.subr.mxu0 0.0
    %140 = vmatpush2.msra.mxu0 0.0
    %141 = vmatprep.subr.mxu0 0.0
    %142 = vmatpush2.msra.mxu0 0.0
    %143 = vmatprep.subr.mxu0 0.0
    %144 = vmatpush2.msra.mxu0 0.0
    %145 = vmatprep.subr.mxu0 0.0
    %146 = vmatpush2.msra.mxu0 0.0
    %147 = vmatprep.subr.mxu0 0.0
    %148 = vmatpush2.msra.mxu0 0.0
    %149 = vmatprep.subr.mxu0 0.0
    %150 = vmatpush2.msra.mxu0 0.0
    %151 = vmatprep.subr.mxu0 0.0
    %152 = vmatpush2.msra.mxu0 0.0
    %153 = vmatprep.subr.mxu0 0.0
    %154 = vmatpush2.msra.mxu0 0.0
    %155 = vmatprep.subr.mxu0 0.0
    %156 = vmatpush2.msra.mxu0 0.0
    %157 = vmatprep.subr.mxu0 0.0
    %158 = vmatpush2.msra.mxu0 0.0
    %159 = vmatprep.subr.mxu0 0.0
    %160 = vmatpush2.msra.mxu0 0.0
    %161 = vmatprep.subr.mxu0 0.0
    %162 = vmatpush2.msra.mxu0 0.0
    %163 = vmatprep.subr.mxu0 0.0
    %164 = vmatpush2.msra.mxu0 0.0
    %165 = vmatprep.subr.mxu0 0.0
    %166 = vmatpush2.msra.mxu0 0.0
    %167 = vmatprep.subr.mxu0 0.0
    %168 = vmatpush2.msra.mxu0 0.0
    %169 = vmatprep.mubr.f32.mxu0 0.0
    %170 = vmatmul.mubr.f32.gmra.mxu0 %v88
    %v171 = vpop.f32.mrf.mxu0
    %v172 = vadd.f32 %v83, %v171
    %v173 = vpop.f32.mrf.mxu0
    %174 = vmatprep.mubr.f32.mxu0 0.0
    %175 = vmatmul.mubr.f32.gmra.mxu0 %v91
    %v176 = vpop.f32.mrf.mxu0
    %v177 = vadd.f32 %v84, %v176
    %v178 = vpop.f32.mrf.mxu0
    %179 = vmatprep.mubr.f32.mxu0 0.0
    %180 = vmatmul.mubr.f32.gmra.mxu0 %v94
    %v181 = vpop.f32.mrf.mxu0
    %v182 = vadd.f32 %v85, %v181
    %v183 = vpop.f32.mrf.mxu0
    %184 = vmatprep.mubr.f32.mxu0 0.0
    %185 = vmatmul.mubr.f32.gmra.mxu0 %v97
    %v186 = vpop.f32.mrf.mxu0
    %v187 = vadd.f32 %v83, %v186
    %v188 = vpop.f32.mrf.mxu0
    %189 = vmatprep.mubr.f32.mxu0 0.0
    %190 = vmatmul.mubr.f32.gmra.mxu0 %v100
    %v191 = vpop.f32.mrf.mxu0
    %v192 = vadd.f32 %v84, %v191
    %v193 = vpop.f32.mrf.mxu0
    %194 = vmatprep.mubr.f32.mxu0 0.0
    %195 = vmatmul.mubr.f32.gmra.mxu0 %v103
    %v196 = vpop.f32.mrf.mxu0
    %v197 = vadd.f32 %v85, %v196
    %v198 = vpop.f32.mrf.mxu0
    %199 = vdwg.mxu0
    %v200 = vlaneseq
    %v201 = vand.u32 %v200, 127
    %vm202 = vcmp.lt.s32.totalorder %v201, 17
    %v203 = vsel %vm202, 1, 0
    %v204 = vcvt.s32.f32 %v203
    %v205 = vld [vmem:[%s7 + $0x18] sm:$0x1]
    %v206 = vld [vmem:[%s7 + $0x1a] sm:$0x1]
    %vm207 = vcmask 261120
    %v208 = vsel %vm207, %v172, 0.0
    %209 = vadd.xlane.f32.xlu0 %v208
    %v210 = vpop.xlane.xlu0 %209
    %v211 = vsel %vm207, %v177, 0.0
    %212 = vadd.xlane.f32.xlu0 %v211
    %v213 = vpop.xlane.xlu0 %212
    %v214 = vsel %vm207, %v182, 0.0
    %215 = vadd.xlane.f32.xlu0 %v214
    %v216 = vpop.xlane.xlu0 %215
    %v217 = vsel %vm207, %v187, 0.0
    %218 = vadd.xlane.f32.xlu0 %v217
    %v219 = vpop.xlane.xlu0 %218
    %v220 = vsel %vm207, %v192, 0.0
    %221 = vadd.xlane.f32.xlu0 %v220
    %v222 = vpop.xlane.xlu0 %221
    %v223 = vsel %vm207, %v197, 0.0
    %224 = vadd.xlane.f32.xlu0 %v223
    %v225 = vpop.xlane.xlu0 %224
    %v226 = vrcp.pop 32.0
    %v227 = vmul.f32 %v210, %v226
    %v228 = vmul.f32 %v213, %v226
    %v229 = vmul.f32 %v216, %v226
    %v230 = vmul.f32 %v219, %v226
    %v231 = vmul.f32 %v222, %v226
    %v232 = vmul.f32 %v225, %v226
    %v233 = vsub.f32 %v172, %v227
    %v234 = vsub.f32 %v177, %v228
    %v235 = vsub.f32 %v182, %v229
    %v236 = vsub.f32 %v187, %v230
    %v237 = vsub.f32 %v192, %v231
    %v238 = vsub.f32 %v197, %v232
    %v239 = vmul.f32 %v233, %v233
    %v240 = vmul.f32 %v234, %v234
    %v241 = vmul.f32 %v235, %v235
    %v242 = vmul.f32 %v236, %v236
    %v243 = vmul.f32 %v237, %v237
    %v244 = vmul.f32 %v238, %v238
    %v245 = vsel %vm207, %v239, 0.0
    %246 = vadd.xlane.f32.xlu0 %v245
    %v247 = vpop.xlane.xlu0 %246
    %v248 = vsel %vm207, %v240, 0.0
    %249 = vadd.xlane.f32.xlu0 %v248
    %v250 = vpop.xlane.xlu0 %249
    %v251 = vsel %vm207, %v241, 0.0
    %252 = vadd.xlane.f32.xlu0 %v251
    %v253 = vpop.xlane.xlu0 %252
    %v254 = vsel %vm207, %v242, 0.0
    %255 = vadd.xlane.f32.xlu0 %v254
    %v256 = vpop.xlane.xlu0 %255
    %v257 = vsel %vm207, %v243, 0.0
    %258 = vadd.xlane.f32.xlu0 %v257
    %v259 = vpop.xlane.xlu0 %258
    %v260 = vsel %vm207, %v244, 0.0
    %261 = vadd.xlane.f32.xlu0 %v260
    %v262 = vpop.xlane.xlu0 %261
    %v263 = vmul.f32 %v247, %v226
    %v264 = vmul.f32 %v250, %v226
    %v265 = vmul.f32 %v253, %v226
    %v266 = vmul.f32 %v256, %v226
    %v267 = vmul.f32 %v259, %v226
    %v268 = vmul.f32 %v262, %v226
    %v269 = vadd.f32 %v263, 1e-05
    %v270 = vadd.f32 %v264, 1e-05
    %v271 = vadd.f32 %v265, 1e-05
    %v272 = vadd.f32 %v266, 1e-05
    %v273 = vadd.f32 %v267, 1e-05
    %v274 = vadd.f32 %v268, 1e-05
    %v275 = vrsqrt.pop %v269
    %v276 = vrsqrt.pop %v270
    %v277 = vrsqrt.pop %v271
    %v278 = vrsqrt.pop %v272
    %v279 = vrsqrt.pop %v273
    %v280 = vrsqrt.pop %v274
    %v281 = vmul.f32 %v233, %v275
    %v282 = vmul.f32 %v234, %v276
    %v283 = vmul.f32 %v235, %v277
    %v284 = vmul.f32 %v236, %v278
    %v285 = vmul.f32 %v237, %v279
    %v286 = vmul.f32 %v238, %v280
    %v287 = vlaneseq
    %v288 = vshrl.u32 %v287, 7
    %v289 = vsub.s32 0, %v288
    %v290 = vrot.slane %v205, %v289
    %v291 = vmul.f32 %v281, %v290
    %v292 = vmul.f32 %v282, %v290
    %v293 = vmul.f32 %v283, %v290
    %v294 = vmul.f32 %v284, %v290
    %v295 = vmul.f32 %v285, %v290
    %v296 = vmul.f32 %v286, %v290
    %v297 = vlaneseq
    %v298 = vshrl.u32 %v297, 7
    %v299 = vsub.s32 0, %v298
    %v300 = vrot.slane %v206, %v299
    %v301 = vadd.f32 %v291, %v300
    %v302 = vadd.f32 %v292, %v300
    %v303 = vadd.f32 %v293, %v300
    %v304 = vadd.f32 %v294, %v300
    %v305 = vadd.f32 %v295, %v300
    %v306 = vadd.f32 %v296, %v300
    %v307 = vpack.c.bf16 %v302, %v301
    %v308 = vpack.c.bf16 %v304, %v303
    %v309 = vpack.c.bf16 %v306, %v305
    %v310 = vld [vmem:[%s2] sm:$0xff]
    %v311 = vld [vmem:[%s2 + $0x8] sm:$0xff]
    %v312 = vld [vmem:[%s2 + $0x10] sm:$0xff]
    %v313 = vld [vmem:[%s2 + $0x18] sm:$0xff]
    %v314 = vld [vmem:[%s2 + $0x20] sm:$0xff]
    %v315 = vld [vmem:[%s2 + $0x28] sm:$0xff]
    %v316 = vld [vmem:[%s2 + $0x30] sm:$0xff]
    %v317 = vld [vmem:[%s2 + $0x38] sm:$0xff]
    %v318 = vld [vmem:[%s2 + $0x40] sm:$0xff]
    %v319 = vld [vmem:[%s2 + $0x48] sm:$0xff]
    %v320 = vld [vmem:[%s2 + $0x50] sm:$0xff]
    %v321 = vld [vmem:[%s2 + $0x58] sm:$0xff]
    %v334 = vunpack.c.l.b16 %v310
    %v335 = vunpack.c.h.b16 %v310
    %v336 = vunpack.c.l.b16 %v311
    %v337 = vunpack.c.h.b16 %v311
    %v338 = vunpack.c.l.b16 %v312
    %v339 = vunpack.c.h.b16 %v312
    %v340 = vunpack.c.l.b16 %v313
    %v341 = vunpack.c.h.b16 %v313
    %v342 = vunpack.c.l.b16 %v314
    %v343 = vunpack.c.h.b16 %v314
    %v344 = vunpack.c.l.b16 %v315
    %v345 = vunpack.c.h.b16 %v315
    %v346 = vunpack.c.l.b16 %v316
    %v347 = vunpack.c.h.b16 %v316
    %v348 = vunpack.c.l.b16 %v317
    %v349 = vunpack.c.h.b16 %v317
    %v350 = vunpack.c.l.b16 %v318
    %v351 = vunpack.c.h.b16 %v318
    %v352 = vunpack.c.l.b16 %v319
    %v353 = vunpack.c.h.b16 %v319
    %v354 = vunpack.c.l.b16 %v320
    %v355 = vunpack.c.h.b16 %v320
    %v356 = vunpack.c.l.b16 %v321
    %v357 = vunpack.c.h.b16 %v321
    %v358 = vpack.c.b16 %v340, %v334
    %v359 = vpack.c.b16 %v341, %v335
    %v360 = vpack.c.b16 %v342, %v336
    %v361 = vpack.c.b16 %v343, %v337
    %v362 = vpack.c.b16 %v344, %v338
    %v363 = vpack.c.b16 %v345, %v339
    %v364 = vpack.c.b16 %v352, %v346
    %v365 = vpack.c.b16 %v353, %v347
    %v366 = vpack.c.b16 %v354, %v348
    %v367 = vpack.c.b16 %v355, %v349
    %v368 = vpack.c.b16 %v356, %v350
    %v369 = vpack.c.b16 %v357, %v351
    %v383 = vsel %vm207, %v307, 0
    %v386 = vsel %vm207, %v308, 0
    %v389 = vsel %vm207, %v309, 0
    %391 = vmatprep.subr.bf16.mxu0 0
    %392 = vmatpush1.bf16.msra.mxu0 0
    %393 = vmatprep.subr.bf16.mxu0 0
    %394 = vmatpush1.bf16.msra.mxu0 0
    %395 = vmatprep.subr.bf16.mxu0 0
    %396 = vmatpush1.bf16.msra.mxu0 0
    %397 = vmatprep.subr.bf16.mxu0 0
    %398 = vmatpush1.bf16.msra.mxu0 0
    %399 = vmatprep.subr.bf16.mxu0 0
    %400 = vmatpush1.bf16.msra.mxu0 0
    %401 = vmatprep.subr.bf16.mxu0 0
    %402 = vmatpush1.bf16.msra.mxu0 0
    %403 = vmatprep.subr.bf16.mxu0 %v365
    %404 = vmatpush1.bf16.msra.mxu0 %v364
    %405 = vmatprep.subr.bf16.mxu0 %v359
    %406 = vmatpush1.bf16.msra.mxu0 %v358
    %407 = vmatprep.subr.bf16.mxu0 0
    %408 = vmatpush2.bf16.msra.mxu0 0
    %409 = vmatprep.subr.bf16.mxu0 0
    %410 = vmatpush2.bf16.msra.mxu0 0
    %411 = vmatprep.subr.bf16.mxu0 0
    %412 = vmatpush2.bf16.msra.mxu0 0
    %413 = vmatprep.subr.bf16.mxu0 0
    %414 = vmatpush2.bf16.msra.mxu0 0
    %415 = vmatprep.subr.bf16.mxu0 0
    %416 = vmatpush2.bf16.msra.mxu0 0
    %417 = vmatprep.subr.bf16.mxu0 0
    %418 = vmatpush2.bf16.msra.mxu0 0
    %419 = vmatprep.subr.bf16.mxu0 0
    %420 = vmatpush2.bf16.msra.mxu0 0
    %421 = vmatprep.subr.bf16.mxu0 0
    %422 = vmatpush2.bf16.msra.mxu0 0
    %423 = vmatprep.mubr.bf16.mxu0 0
    %424 = vmatmul.mubr.bf16.gmra.mxu0 %v383
    %v425 = vpop.f32.mrf.mxu0
    %v426 = vadd.f32 0.0, %v425
    %v427 = vpop.f32.mrf.mxu0
    %v428 = vadd.f32 0.0, %v427
    %v429 = vpop.f32.mrf.mxu0
    %v430 = vadd.f32 0.0, %v429
    %v431 = vpop.f32.mrf.mxu0
    %v432 = vadd.f32 0.0, %v431
    %433 = vmatprep.mubr.bf16.mxu0 0
    %434 = vmatmul.mubr.bf16.gmra.mxu0 %v386
    %v435 = vpop.f32.mrf.mxu0
    %v436 = vadd.f32 0.0, %v435
    %v437 = vpop.f32.mrf.mxu0
    %v438 = vadd.f32 0.0, %v437
    %v439 = vpop.f32.mrf.mxu0
    %v440 = vadd.f32 0.0, %v439
    %v441 = vpop.f32.mrf.mxu0
    %v442 = vadd.f32 0.0, %v441
    %443 = vmatprep.mubr.bf16.mxu0 0
    %444 = vmatmul.mubr.bf16.gmra.mxu0 %v389
    %v445 = vpop.f32.mrf.mxu0
    %v446 = vadd.f32 0.0, %v445
    %v447 = vpop.f32.mrf.mxu0
    %v448 = vadd.f32 0.0, %v447
    %v449 = vpop.f32.mrf.mxu0
    %v450 = vadd.f32 0.0, %v449
    %v451 = vpop.f32.mrf.mxu0
    %v452 = vadd.f32 0.0, %v451
    %453 = vdwg.mxu0
    %454 = vmatprep.subr.bf16.mxu0 0
    %455 = vmatpush1.bf16.msra.mxu0 0
    %456 = vmatprep.subr.bf16.mxu0 0
    %457 = vmatpush1.bf16.msra.mxu0 0
    %458 = vmatprep.subr.bf16.mxu0 0
    %459 = vmatpush1.bf16.msra.mxu0 0
    %460 = vmatprep.subr.bf16.mxu0 0
    %461 = vmatpush1.bf16.msra.mxu0 0
    %462 = vmatprep.subr.bf16.mxu0 0
    %463 = vmatpush1.bf16.msra.mxu0 0
    %464 = vmatprep.subr.bf16.mxu0 0
    %465 = vmatpush1.bf16.msra.mxu0 0
    %466 = vmatprep.subr.bf16.mxu0 %v367
    %467 = vmatpush1.bf16.msra.mxu0 %v366
    %468 = vmatprep.subr.bf16.mxu0 %v361
    %469 = vmatpush1.bf16.msra.mxu0 %v360
    %470 = vmatprep.subr.bf16.mxu0 0
    %471 = vmatpush2.bf16.msra.mxu0 0
    %472 = vmatprep.subr.bf16.mxu0 0
    %473 = vmatpush2.bf16.msra.mxu0 0
    %474 = vmatprep.subr.bf16.mxu0 0
    %475 = vmatpush2.bf16.msra.mxu0 0
    %476 = vmatprep.subr.bf16.mxu0 0
    %477 = vmatpush2.bf16.msra.mxu0 0
    %478 = vmatprep.subr.bf16.mxu0 0
    %479 = vmatpush2.bf16.msra.mxu0 0
    %480 = vmatprep.subr.bf16.mxu0 0
    %481 = vmatpush2.bf16.msra.mxu0 0
    %482 = vmatprep.subr.bf16.mxu0 0
    %483 = vmatpush2.bf16.msra.mxu0 0
    %484 = vmatprep.subr.bf16.mxu0 0
    %485 = vmatpush2.bf16.msra.mxu0 0
    %486 = vmatprep.mubr.bf16.mxu0 0
    %487 = vmatmul.mubr.bf16.gmra.mxu0 %v383
    %v488 = vpop.f32.mrf.mxu0
    %v489 = vadd.f32 0.0, %v488
    %v490 = vpop.f32.mrf.mxu0
    %v491 = vadd.f32 0.0, %v490
    %v492 = vpop.f32.mrf.mxu0
    %v493 = vadd.f32 0.0, %v492
    %v494 = vpop.f32.mrf.mxu0
    %v495 = vadd.f32 0.0, %v494
    %496 = vmatprep.mubr.bf16.mxu0 0
    %497 = vmatmul.mubr.bf16.gmra.mxu0 %v386
    %v498 = vpop.f32.mrf.mxu0
    %v499 = vadd.f32 0.0, %v498
    %v500 = vpop.f32.mrf.mxu0
    %v501 = vadd.f32 0.0, %v500
    %v502 = vpop.f32.mrf.mxu0
    %v503 = vadd.f32 0.0, %v502
    %v504 = vpop.f32.mrf.mxu0
    %v505 = vadd.f32 0.0, %v504
    %506 = vmatprep.mubr.bf16.mxu0 0
    %507 = vmatmul.mubr.bf16.gmra.mxu0 %v389
    %v508 = vpop.f32.mrf.mxu0
    %v509 = vadd.f32 0.0, %v508
    %v510 = vpop.f32.mrf.mxu0
    %v511 = vadd.f32 0.0, %v510
    %v512 = vpop.f32.mrf.mxu0
    %v513 = vadd.f32 0.0, %v512
    %v514 = vpop.f32.mrf.mxu0
    %v515 = vadd.f32 0.0, %v514
    %516 = vdwg.mxu0
    %517 = vmatprep.subr.bf16.mxu0 0
    %518 = vmatpush1.bf16.msra.mxu0 0
    %519 = vmatprep.subr.bf16.mxu0 0
    %520 = vmatpush1.bf16.msra.mxu0 0
    %521 = vmatprep.subr.bf16.mxu0 0
    %522 = vmatpush1.bf16.msra.mxu0 0
    %523 = vmatprep.subr.bf16.mxu0 0
    %524 = vmatpush1.bf16.msra.mxu0 0
    %525 = vmatprep.subr.bf16.mxu0 0
    %526 = vmatpush1.bf16.msra.mxu0 0
    %527 = vmatprep.subr.bf16.mxu0 0
    %528 = vmatpush1.bf16.msra.mxu0 0
    %529 = vmatprep.subr.bf16.mxu0 %v369
    %530 = vmatpush1.bf16.msra.mxu0 %v368
    %531 = vmatprep.subr.bf16.mxu0 %v363
    %532 = vmatpush1.bf16.msra.mxu0 %v362
    %533 = vmatprep.subr.bf16.mxu0 0
    %534 = vmatpush2.bf16.msra.mxu0 0
    %535 = vmatprep.subr.bf16.mxu0 0
    %536 = vmatpush2.bf16.msra.mxu0 0
    %537 = vmatprep.subr.bf16.mxu0 0
    %538 = vmatpush2.bf16.msra.mxu0 0
    %539 = vmatprep.subr.bf16.mxu0 0
    %540 = vmatpush2.bf16.msra.mxu0 0
    %541 = vmatprep.subr.bf16.mxu0 0
    %542 = vmatpush2.bf16.msra.mxu0 0
    %543 = vmatprep.subr.bf16.mxu0 0
    %544 = vmatpush2.bf16.msra.mxu0 0
    %545 = vmatprep.subr.bf16.mxu0 0
    %546 = vmatpush2.bf16.msra.mxu0 0
    %547 = vmatprep.subr.bf16.mxu0 0
    %548 = vmatpush2.bf16.msra.mxu0 0
    %549 = vmatprep.mubr.bf16.mxu0 0
    %550 = vmatmul.mubr.bf16.gmra.mxu0 %v383
    %v551 = vpop.f32.mrf.mxu0
    %v552 = vadd.f32 0.0, %v551
    %v553 = vpop.f32.mrf.mxu0
    %v554 = vadd.f32 0.0, %v553
    %v555 = vpop.f32.mrf.mxu0
    %v556 = vadd.f32 0.0, %v555
    %v557 = vpop.f32.mrf.mxu0
    %v558 = vadd.f32 0.0, %v557
    %559 = vmatprep.mubr.bf16.mxu0 0
    %560 = vmatmul.mubr.bf16.gmra.mxu0 %v386
    %v561 = vpop.f32.mrf.mxu0
    %v562 = vadd.f32 0.0, %v561
    %v563 = vpop.f32.mrf.mxu0
    %v564 = vadd.f32 0.0, %v563
    %v565 = vpop.f32.mrf.mxu0
    %v566 = vadd.f32 0.0, %v565
    %v567 = vpop.f32.mrf.mxu0
    %v568 = vadd.f32 0.0, %v567
    %569 = vmatprep.mubr.bf16.mxu0 0
    %570 = vmatmul.mubr.bf16.gmra.mxu0 %v389
    %v571 = vpop.f32.mrf.mxu0
    %v572 = vadd.f32 0.0, %v571
    %v573 = vpop.f32.mrf.mxu0
    %v574 = vadd.f32 0.0, %v573
    %v575 = vpop.f32.mrf.mxu0
    %v576 = vadd.f32 0.0, %v575
    %v577 = vpop.f32.mrf.mxu0
    %v578 = vadd.f32 0.0, %v577
    %579 = vdwg.mxu0
    %v580 = vpack.c.bf16 %v430, %v426
    %v581 = vpack.c.bf16 %v436, %v436
    %v582 = vpack.c.bf16 %v493, %v489
    %v583 = vpack.c.bf16 %v499, %v499
    %vm584 = vcmask 523264
    %v586 = vsel %vm584, %v580, 0
    %v589 = vsel %vm584, %v581, 0
    %v592 = vsel %vm584, %v582, 0
    %v595 = vsel %vm584, %v583, 0
    %597 = vmatprep.subr.bf16.mxu0 0
    %598 = vmatpush1.bf16.xpose.msra.mxu0 0
    %599 = vmatprep.subr.bf16.mxu0 0
    %600 = vmatpush1.bf16.xpose.msra.mxu0 0
    %601 = vmatprep.subr.bf16.mxu0 0
    %602 = vmatpush1.bf16.xpose.msra.mxu0 0
    %603 = vmatprep.subr.bf16.mxu0 0
    %604 = vmatpush1.bf16.xpose.msra.mxu0 0
    %605 = vmatprep.subr.bf16.mxu0 0
    %606 = vmatpush1.bf16.xpose.msra.mxu0 0
    %607 = vmatprep.subr.bf16.mxu0 0
    %608 = vmatpush1.bf16.xpose.msra.mxu0 0
    %609 = vmatprep.subr.bf16.mxu0 0
    %610 = vmatpush1.bf16.xpose.msra.mxu0 %v595
    %611 = vmatprep.subr.bf16.mxu0 0
    %612 = vmatpush1.bf16.xpose.msra.mxu0 %v592
    %613 = vmatprep.subr.bf16.mxu0 0
    %614 = vmatpush2.bf16.xpose.msra.mxu0 0
    %615 = vmatprep.subr.bf16.mxu0 0
    %616 = vmatpush2.bf16.xpose.msra.mxu0 0
    %617 = vmatprep.subr.bf16.mxu0 0
    %618 = vmatpush2.bf16.xpose.msra.mxu0 0
    %619 = vmatprep.subr.bf16.mxu0 0
    %620 = vmatpush2.bf16.xpose.msra.mxu0 0
    %621 = vmatprep.subr.bf16.mxu0 0
    %622 = vmatpush2.bf16.xpose.msra.mxu0 0
    %623 = vmatprep.subr.bf16.mxu0 0
    %624 = vmatpush2.bf16.xpose.msra.mxu0 0
    %625 = vmatprep.subr.bf16.mxu0 0
    %626 = vmatpush2.bf16.xpose.msra.mxu0 0
    %627 = vmatprep.subr.bf16.mxu0 0
    %628 = vmatpush2.bf16.xpose.msra.mxu0 0
    %629 = vmatprep.mubr.bf16.mxu0 0
    %630 = vmatmul.mubr.bf16.gmra.mxu0 %v586
    %v631 = vpop.f32.mrf.mxu0
    %v632 = vadd.f32 0.0, %v631
    %v633 = vpop.f32.mrf.mxu0
    %v634 = vpop.f32.mrf.mxu0
    %v635 = vadd.f32 0.0, %v634
    %v636 = vpop.f32.mrf.mxu0
    %637 = vmatprep.mubr.bf16.mxu0 0
    %638 = vmatmul.mubr.bf16.gmra.mxu0 %v589
    %v639 = vpop.f32.mrf.mxu0
    %v640 = vadd.f32 0.0, %v639
    %v641 = vpop.f32.mrf.mxu0
    %v642 = vpop.f32.mrf.mxu0
    %v643 = vpop.f32.mrf.mxu0
    %644 = vdwg.mxu0
    %v645 = vmul.f32 %v632, 0.125
    %v646 = vmul.f32 %v635, 0.125
    %v647 = vmul.f32 %v640, 0.125
    %vm648 = vcmp.eq.s32.totalorder %v203, 1
    %v649 = vsel %vm648, %v645, -1e+30
    %v650 = vsel %vm648, %v646, -1e+30
    %v651 = vsel %vm648, %v647, -1e+30
    %vm652 = vcmask 195584
    %v653 = vsel %vm652, %v649, -inf
    %654 = vmax.xlane.f32.xlu0 %v653
    %v655 = vpop.xlane.xlu0 %654
    %v656 = vsel %vm652, %v650, -inf
    %657 = vmax.xlane.f32.xlu0 %v656
    %v658 = vpop.xlane.xlu0 %657
    %v659 = vsel %vm652, %v651, -inf
    %660 = vmax.xlane.f32.xlu0 %v659
    %v661 = vpop.xlane.xlu0 %660
    %v662 = vsub.f32 %v649, %v655
    %v663 = vsub.f32 %v650, %v658
    %v664 = vsub.f32 %v651, %v661
    %v665 = vmul.f32 %v662, 1.442695
    %v666 = vpow.pop %v665
    %v667 = vmul.f32 %v663, 1.442695
    %v668 = vpow.pop %v667
    %v669 = vmul.f32 %v664, 1.442695
    %v670 = vpow.pop %v669
    %v671 = vsel %vm652, %v666, 0.0
    %672 = vadd.xlane.f32.xlu0 %v671
    %v673 = vpop.xlane.xlu0 %672
    %v674 = vsel %vm652, %v668, 0.0
    %675 = vadd.xlane.f32.xlu0 %v674
    %v676 = vpop.xlane.xlu0 %675
    %v677 = vsel %vm652, %v670, 0.0
    %678 = vadd.xlane.f32.xlu0 %v677
    %v679 = vpop.xlane.xlu0 %678
    %v680 = vrcp.pop %v673
    %v681 = vmul.f32 %v666, %v680
    %v682 = vrcp.pop %v676
    %v683 = vmul.f32 %v668, %v682
    %v684 = vrcp.pop %v679
    %v685 = vmul.f32 %v670, %v684
    %688 = vrot.lane.b32.xlu0 %v580, 64
    %v689 = vpop.permute.xlu0 %688
    %690 = vrot.lane.b32.xlu0 %v581, 64
    %v691 = vpop.permute.xlu0 %690
    %694 = vrot.lane.b32.xlu0 %v582, 64
    %v695 = vpop.permute.xlu0 %694
    %696 = vrot.lane.b32.xlu0 %v583, 64
    %v697 = vpop.permute.xlu0 %696
    %v699 = vsel %vm584, %v689, 0
    %v702 = vsel %vm584, %v691, 0
    %v705 = vsel %vm584, %v695, 0
    %v708 = vsel %vm584, %v697, 0
    %710 = vmatprep.subr.bf16.mxu0 0
    %711 = vmatpush1.bf16.xpose.msra.mxu0 0
    %712 = vmatprep.subr.bf16.mxu0 0
    %713 = vmatpush1.bf16.xpose.msra.mxu0 0
    %714 = vmatprep.subr.bf16.mxu0 0
    %715 = vmatpush1.bf16.xpose.msra.mxu0 0
    %716 = vmatprep.subr.bf16.mxu0 0
    %717 = vmatpush1.bf16.xpose.msra.mxu0 0
    %718 = vmatprep.subr.bf16.mxu0 0
    %719 = vmatpush1.bf16.xpose.msra.mxu0 0
    %720 = vmatprep.subr.bf16.mxu0 0
    %721 = vmatpush1.bf16.xpose.msra.mxu0 0
    %722 = vmatprep.subr.bf16.mxu0 0
    %723 = vmatpush1.bf16.xpose.msra.mxu0 %v708
    %724 = vmatprep.subr.bf16.mxu0 0
    %725 = vmatpush1.bf16.xpose.msra.mxu0 %v705
    %726 = vmatprep.subr.bf16.mxu0 0
    %727 = vmatpush2.bf16.xpose.msra.mxu0 0
    %728 = vmatprep.subr.bf16.mxu0 0
    %729 = vmatpush2.bf16.xpose.msra.mxu0 0
    %730 = vmatprep.subr.bf16.mxu0 0
    %731 = vmatpush2.bf16.xpose.msra.mxu0 0
    %732 = vmatprep.subr.bf16.mxu0 0
    %733 = vmatpush2.bf16.xpose.msra.mxu0 0
    %734 = vmatprep.subr.bf16.mxu0 0
    %735 = vmatpush2.bf16.xpose.msra.mxu0 0
    %736 = vmatprep.subr.bf16.mxu0 0
    %737 = vmatpush2.bf16.xpose.msra.mxu0 0
    %738 = vmatprep.subr.bf16.mxu0 0
    %739 = vmatpush2.bf16.xpose.msra.mxu0 0
    %740 = vmatprep.subr.bf16.mxu0 0
    %741 = vmatpush2.bf16.xpose.msra.mxu0 0
    %742 = vmatprep.mubr.bf16.mxu0 0
    %743 = vmatmul.mubr.bf16.gmra.mxu0 %v699
    %v744 = vpop.f32.mrf.mxu0
    %v745 = vadd.f32 0.0, %v744
    %v746 = vpop.f32.mrf.mxu0
    %v747 = vpop.f32.mrf.mxu0
    %v748 = vadd.f32 0.0, %v747
    %v749 = vpop.f32.mrf.mxu0
    %750 = vmatprep.mubr.bf16.mxu0 0
    %751 = vmatmul.mubr.bf16.gmra.mxu0 %v702
    %v752 = vpop.f32.mrf.mxu0
    %v753 = vadd.f32 0.0, %v752
    %v754 = vpop.f32.mrf.mxu0
    %v755 = vpop.f32.mrf.mxu0
    %v756 = vpop.f32.mrf.mxu0
    %757 = vdwg.mxu0
    %v758 = vmul.f32 %v745, 0.125
    %v759 = vmul.f32 %v748, 0.125
    %v760 = vmul.f32 %v753, 0.125
    %v761 = vsel %vm648, %v758, -1e+30
    %v762 = vsel %vm648, %v759, -1e+30
    %v763 = vsel %vm648, %v760, -1e+30
    %v764 = vsel %vm652, %v761, -inf
    %765 = vmax.xlane.f32.xlu0 %v764
    %v766 = vpop.xlane.xlu0 %765
    %v767 = vsel %vm652, %v762, -inf
    %768 = vmax.xlane.f32.xlu0 %v767
    %v769 = vpop.xlane.xlu0 %768
    %v770 = vsel %vm652, %v763, -inf
    %771 = vmax.xlane.f32.xlu0 %v770
    %v772 = vpop.xlane.xlu0 %771
    %v773 = vsub.f32 %v761, %v766
    %v774 = vsub.f32 %v762, %v769
    %v775 = vsub.f32 %v763, %v772
    %v776 = vmul.f32 %v773, 1.442695
    %v777 = vpow.pop %v776
    %v778 = vmul.f32 %v774, 1.442695
    %v779 = vpow.pop %v778
    %v780 = vmul.f32 %v775, 1.442695
    %v781 = vpow.pop %v780
    %v782 = vsel %vm652, %v777, 0.0
    %783 = vadd.xlane.f32.xlu0 %v782
    %v784 = vpop.xlane.xlu0 %783
    %v785 = vsel %vm652, %v779, 0.0
    %786 = vadd.xlane.f32.xlu0 %v785
    %v787 = vpop.xlane.xlu0 %786
    %v788 = vsel %vm652, %v781, 0.0
    %789 = vadd.xlane.f32.xlu0 %v788
    %v790 = vpop.xlane.xlu0 %789
    %v791 = vrcp.pop %v784
    %v792 = vmul.f32 %v777, %v791
    %v793 = vrcp.pop %v787
    %v794 = vmul.f32 %v779, %v793
    %v795 = vrcp.pop %v790
    %v796 = vmul.f32 %v781, %v795
    %v797 = vpack.c.bf16 %v432, %v428
    %v798 = vpack.c.bf16 %v438, %v438
    %v799 = vpack.c.bf16 %v495, %v491
    %v800 = vpack.c.bf16 %v501, %v501
    %v802 = vsel %vm584, %v797, 0
    %v805 = vsel %vm584, %v798, 0
    %v808 = vsel %vm584, %v799, 0
    %v811 = vsel %vm584, %v800, 0
    %813 = vmatprep.subr.bf16.mxu0 0
    %814 = vmatpush1.bf16.xpose.msra.mxu0 0
    %815 = vmatprep.subr.bf16.mxu0 0
    %816 = vmatpush1.bf16.xpose.msra.mxu0 0
    %817 = vmatprep.subr.bf16.mxu0 0
    %818 = vmatpush1.bf16.xpose.msra.mxu0 0
    %819 = vmatprep.subr.bf16.mxu0 0
    %820 = vmatpush1.bf16.xpose.msra.mxu0 0
    %821 = vmatprep.subr.bf16.mxu0 0
    %822 = vmatpush1.bf16.xpose.msra.mxu0 0
    %823 = vmatprep.subr.bf16.mxu0 0
    %824 = vmatpush1.bf16.xpose.msra.mxu0 0
    %825 = vmatprep.subr.bf16.mxu0 0
    %826 = vmatpush1.bf16.xpose.msra.mxu0 %v811
    %827 = vmatprep.subr.bf16.mxu0 0
    %828 = vmatpush1.bf16.xpose.msra.mxu0 %v808
    %829 = vmatprep.subr.bf16.mxu0 0
    %830 = vmatpush2.bf16.xpose.msra.mxu0 0
    %831 = vmatprep.subr.bf16.mxu0 0
    %832 = vmatpush2.bf16.xpose.msra.mxu0 0
    %833 = vmatprep.subr.bf16.mxu0 0
    %834 = vmatpush2.bf16.xpose.msra.mxu0 0
    %835 = vmatprep.subr.bf16.mxu0 0
    %836 = vmatpush2.bf16.xpose.msra.mxu0 0
    %837 = vmatprep.subr.bf16.mxu0 0
    %838 = vmatpush2.bf16.xpose.msra.mxu0 0
    %839 = vmatprep.subr.bf16.mxu0 0
    %840 = vmatpush2.bf16.xpose.msra.mxu0 0
    %841 = vmatprep.subr.bf16.mxu0 0
    %842 = vmatpush2.bf16.xpose.msra.mxu0 0
    %843 = vmatprep.subr.bf16.mxu0 0
    %844 = vmatpush2.bf16.xpose.msra.mxu0 0
    %845 = vmatprep.mubr.bf16.mxu0 0
    %846 = vmatmul.mubr.bf16.gmra.mxu0 %v802
    %v847 = vpop.f32.mrf.mxu0
    %v848 = vadd.f32 0.0, %v847
    %v849 = vpop.f32.mrf.mxu0
    %v850 = vpop.f32.mrf.mxu0
    %v851 = vadd.f32 0.0, %v850
    %v852 = vpop.f32.mrf.mxu0
    %853 = vmatprep.mubr.bf16.mxu0 0
    %854 = vmatmul.mubr.bf16.gmra.mxu0 %v805
    %v855 = vpop.f32.mrf.mxu0
    %v856 = vadd.f32 0.0, %v855
    %v857 = vpop.f32.mrf.mxu0
    %v858 = vpop.f32.mrf.mxu0
    %v859 = vpop.f32.mrf.mxu0
    %860 = vdwg.mxu0
    %v861 = vmul.f32 %v848, 0.125
    %v862 = vmul.f32 %v851, 0.125
    %v863 = vmul.f32 %v856, 0.125
    %v864 = vsel %vm648, %v861, -1e+30
    %v865 = vsel %vm648, %v862, -1e+30
    %v866 = vsel %vm648, %v863, -1e+30
    %v867 = vsel %vm652, %v864, -inf
    %868 = vmax.xlane.f32.xlu0 %v867
    %v869 = vpop.xlane.xlu0 %868
    %v870 = vsel %vm652, %v865, -inf
    %871 = vmax.xlane.f32.xlu0 %v870
    %v872 = vpop.xlane.xlu0 %871
    %v873 = vsel %vm652, %v866, -inf
    %874 = vmax.xlane.f32.xlu0 %v873
    %v875 = vpop.xlane.xlu0 %874
    %v876 = vsub.f32 %v864, %v869
    %v877 = vsub.f32 %v865, %v872
    %v878 = vsub.f32 %v866, %v875
    %v879 = vmul.f32 %v876, 1.442695
    %v880 = vpow.pop %v879
    %v881 = vmul.f32 %v877, 1.442695
    %v882 = vpow.pop %v881
    %v883 = vmul.f32 %v878, 1.442695
    %v884 = vpow.pop %v883
    %v885 = vsel %vm652, %v880, 0.0
    %886 = vadd.xlane.f32.xlu0 %v885
    %v887 = vpop.xlane.xlu0 %886
    %v888 = vsel %vm652, %v882, 0.0
    %889 = vadd.xlane.f32.xlu0 %v888
    %v890 = vpop.xlane.xlu0 %889
    %v891 = vsel %vm652, %v884, 0.0
    %892 = vadd.xlane.f32.xlu0 %v891
    %v893 = vpop.xlane.xlu0 %892
    %v894 = vrcp.pop %v887
    %v895 = vmul.f32 %v880, %v894
    %v896 = vrcp.pop %v890
    %v897 = vmul.f32 %v882, %v896
    %v898 = vrcp.pop %v893
    %v899 = vmul.f32 %v884, %v898
    %902 = vrot.lane.b32.xlu0 %v797, 64
    %v903 = vpop.permute.xlu0 %902
    %904 = vrot.lane.b32.xlu0 %v798, 64
    %v905 = vpop.permute.xlu0 %904
    %908 = vrot.lane.b32.xlu0 %v799, 64
    %v909 = vpop.permute.xlu0 %908
    %910 = vrot.lane.b32.xlu0 %v800, 64
    %v911 = vpop.permute.xlu0 %910
    %v913 = vsel %vm584, %v903, 0
    %v916 = vsel %vm584, %v905, 0
    %v919 = vsel %vm584, %v909, 0
    %v922 = vsel %vm584, %v911, 0
    %924 = vmatprep.subr.bf16.mxu0 0
    %925 = vmatpush1.bf16.xpose.msra.mxu0 0
    %926 = vmatprep.subr.bf16.mxu0 0
    %927 = vmatpush1.bf16.xpose.msra.mxu0 0
    %928 = vmatprep.subr.bf16.mxu0 0
    %929 = vmatpush1.bf16.xpose.msra.mxu0 0
    %930 = vmatprep.subr.bf16.mxu0 0
    %931 = vmatpush1.bf16.xpose.msra.mxu0 0
    %932 = vmatprep.subr.bf16.mxu0 0
    %933 = vmatpush1.bf16.xpose.msra.mxu0 0
    %934 = vmatprep.subr.bf16.mxu0 0
    %935 = vmatpush1.bf16.xpose.msra.mxu0 0
    %936 = vmatprep.subr.bf16.mxu0 0
    %937 = vmatpush1.bf16.xpose.msra.mxu0 %v922
    %938 = vmatprep.subr.bf16.mxu0 0
    %939 = vmatpush1.bf16.xpose.msra.mxu0 %v919
    %940 = vmatprep.subr.bf16.mxu0 0
    %941 = vmatpush2.bf16.xpose.msra.mxu0 0
    %942 = vmatprep.subr.bf16.mxu0 0
    %943 = vmatpush2.bf16.xpose.msra.mxu0 0
    %944 = vmatprep.subr.bf16.mxu0 0
    %945 = vmatpush2.bf16.xpose.msra.mxu0 0
    %946 = vmatprep.subr.bf16.mxu0 0
    %947 = vmatpush2.bf16.xpose.msra.mxu0 0
    %948 = vmatprep.subr.bf16.mxu0 0
    %949 = vmatpush2.bf16.xpose.msra.mxu0 0
    %950 = vmatprep.subr.bf16.mxu0 0
    %951 = vmatpush2.bf16.xpose.msra.mxu0 0
    %952 = vmatprep.subr.bf16.mxu0 0
    %953 = vmatpush2.bf16.xpose.msra.mxu0 0
    %954 = vmatprep.subr.bf16.mxu0 0
    %955 = vmatpush2.bf16.xpose.msra.mxu0 0
    %956 = vmatprep.mubr.bf16.mxu0 0
    %957 = vmatmul.mubr.bf16.gmra.mxu0 %v913
    %v958 = vpop.f32.mrf.mxu0
    %v959 = vadd.f32 0.0, %v958
    %v960 = vpop.f32.mrf.mxu0
    %v961 = vpop.f32.mrf.mxu0
    %v962 = vadd.f32 0.0, %v961
    %v963 = vpop.f32.mrf.mxu0
    %964 = vmatprep.mubr.bf16.mxu0 0
    %965 = vmatmul.mubr.bf16.gmra.mxu0 %v916
    %v966 = vpop.f32.mrf.mxu0
    %v967 = vadd.f32 0.0, %v966
    %v968 = vpop.f32.mrf.mxu0
    %v969 = vpop.f32.mrf.mxu0
    %v970 = vpop.f32.mrf.mxu0
    %971 = vdwg.mxu0
    %v972 = vmul.f32 %v959, 0.125
    %v973 = vmul.f32 %v962, 0.125
    %v974 = vmul.f32 %v967, 0.125
    %v975 = vsel %vm648, %v972, -1e+30
    %v976 = vsel %vm648, %v973, -1e+30
    %v977 = vsel %vm648, %v974, -1e+30
    %v978 = vsel %vm652, %v975, -inf
    %979 = vmax.xlane.f32.xlu0 %v978
    %v980 = vpop.xlane.xlu0 %979
    %v981 = vsel %vm652, %v976, -inf
    %982 = vmax.xlane.f32.xlu0 %v981
    %v983 = vpop.xlane.xlu0 %982
    %v984 = vsel %vm652, %v977, -inf
    %985 = vmax.xlane.f32.xlu0 %v984
    %v986 = vpop.xlane.xlu0 %985
    %v987 = vsub.f32 %v975, %v980
    %v988 = vsub.f32 %v976, %v983
    %v989 = vsub.f32 %v977, %v986
    %v990 = vmul.f32 %v987, 1.442695
    %v991 = vpow.pop %v990
    %v992 = vmul.f32 %v988, 1.442695
    %v993 = vpow.pop %v992
    %v994 = vmul.f32 %v989, 1.442695
    %v995 = vpow.pop %v994
    %v996 = vsel %vm652, %v991, 0.0
    %997 = vadd.xlane.f32.xlu0 %v996
    %v998 = vpop.xlane.xlu0 %997
    %v999 = vsel %vm652, %v993, 0.0
    %1000 = vadd.xlane.f32.xlu0 %v999
    %v1001 = vpop.xlane.xlu0 %1000
    %v1002 = vsel %vm652, %v995, 0.0
    %1003 = vadd.xlane.f32.xlu0 %v1002
    %v1004 = vpop.xlane.xlu0 %1003
    %v1005 = vrcp.pop %v998
    %v1006 = vmul.f32 %v991, %v1005
    %v1007 = vrcp.pop %v1001
    %v1008 = vmul.f32 %v993, %v1007
    %v1009 = vrcp.pop %v1004
    %v1010 = vmul.f32 %v995, %v1009
    %s1011 = sld [smem:[#allocation3]]
    %v1012 = vstv %s1011
    %v1013 = vmul.f32 %v681, %v1012
    %v1014 = vmul.f32 %v683, %v1012
    %v1015 = vmul.f32 %v685, %v1012
    %s1016 = sld [smem:[#allocation3 + $0x4]]
    %v1017 = vstv %s1016
    %v1018 = vmul.f32 %v792, %v1017
    %v1019 = vmul.f32 %v794, %v1017
    %v1020 = vmul.f32 %v796, %v1017
    %v1021 = vadd.f32 %v1013, %v1018
    %v1022 = vadd.f32 %v1014, %v1019
    %v1023 = vadd.f32 %v1015, %v1020
    %s1024 = sld [smem:[#allocation3 + $0x8]]
    %v1025 = vstv %s1024
    %v1026 = vmul.f32 %v895, %v1025
    %v1027 = vmul.f32 %v897, %v1025
    %v1028 = vmul.f32 %v899, %v1025
    %v1029 = vadd.f32 %v1021, %v1026
    %v1030 = vadd.f32 %v1022, %v1027
    %v1031 = vadd.f32 %v1023, %v1028
    %s1032 = sld [smem:[#allocation3 + $0xc]]
    %v1033 = vstv %s1032
    %v1034 = vmul.f32 %v1006, %v1033
    %v1035 = vmul.f32 %v1008, %v1033
    %v1036 = vmul.f32 %v1010, %v1033
    %v1037 = vadd.f32 %v1029, %v1034
    %v1038 = vadd.f32 %v1030, %v1035
    %v1039 = vadd.f32 %v1031, %v1036
    %s1040 = sld [smem:[#allocation3 + $0x1]]
    %v1041 = vstv %s1040
    %v1042 = vmul.f32 %v681, %v1041
    %v1043 = vmul.f32 %v683, %v1041
    %v1044 = vmul.f32 %v685, %v1041
    %s1045 = sld [smem:[#allocation3 + $0x5]]
    %v1046 = vstv %s1045
    %v1047 = vmul.f32 %v792, %v1046
    %v1048 = vmul.f32 %v794, %v1046
    %v1049 = vmul.f32 %v796, %v1046
    %v1050 = vadd.f32 %v1042, %v1047
    %v1051 = vadd.f32 %v1043, %v1048
    %v1052 = vadd.f32 %v1044, %v1049
    %s1053 = sld [smem:[#allocation3 + $0x9]]
    %v1054 = vstv %s1053
    %v1055 = vmul.f32 %v895, %v1054
    %v1056 = vmul.f32 %v897, %v1054
    %v1057 = vmul.f32 %v899, %v1054
    %v1058 = vadd.f32 %v1050, %v1055
    %v1059 = vadd.f32 %v1051, %v1056
    %v1060 = vadd.f32 %v1052, %v1057
    %s1061 = sld [smem:[#allocation3 + $0xd]]
    %v1062 = vstv %s1061
    %v1063 = vmul.f32 %v1006, %v1062
    %v1064 = vmul.f32 %v1008, %v1062
    %v1065 = vmul.f32 %v1010, %v1062
    %v1066 = vadd.f32 %v1058, %v1063
    %v1067 = vadd.f32 %v1059, %v1064
    %v1068 = vadd.f32 %v1060, %v1065
    %s1069 = sld [smem:[#allocation3 + $0x2]]
    %v1070 = vstv %s1069
    %v1071 = vmul.f32 %v681, %v1070
    %v1072 = vmul.f32 %v683, %v1070
    %v1073 = vmul.f32 %v685, %v1070
    %s1074 = sld [smem:[#allocation3 + $0x6]]
    %v1075 = vstv %s1074
    %v1076 = vmul.f32 %v792, %v1075
    %v1077 = vmul.f32 %v794, %v1075
    %v1078 = vmul.f32 %v796, %v1075
    %v1079 = vadd.f32 %v1071, %v1076
    %v1080 = vadd.f32 %v1072, %v1077
    %v1081 = vadd.f32 %v1073, %v1078
    %s1082 = sld [smem:[#allocation3 + $0xa]]
    %v1083 = vstv %s1082
    %v1084 = vmul.f32 %v895, %v1083
    %v1085 = vmul.f32 %v897, %v1083
    %v1086 = vmul.f32 %v899, %v1083
    %v1087 = vadd.f32 %v1079, %v1084
    %v1088 = vadd.f32 %v1080, %v1085
    %v1089 = vadd.f32 %v1081, %v1086
    %s1090 = sld [smem:[#allocation3 + $0xe]]
    %v1091 = vstv %s1090
    %v1092 = vmul.f32 %v1006, %v1091
    %v1093 = vmul.f32 %v1008, %v1091
    %v1094 = vmul.f32 %v1010, %v1091
    %v1095 = vadd.f32 %v1087, %v1092
    %v1096 = vadd.f32 %v1088, %v1093
    %v1097 = vadd.f32 %v1089, %v1094
    %s1098 = sld [smem:[#allocation3 + $0x3]]
    %v1099 = vstv %s1098
    %v1100 = vmul.f32 %v681, %v1099
    %v1101 = vmul.f32 %v683, %v1099
    %v1102 = vmul.f32 %v685, %v1099
    %s1103 = sld [smem:[#allocation3 + $0x7]]
    %v1104 = vstv %s1103
    %v1105 = vmul.f32 %v792, %v1104
    %v1106 = vmul.f32 %v794, %v1104
    %v1107 = vmul.f32 %v796, %v1104
    %v1108 = vadd.f32 %v1100, %v1105
    %v1109 = vadd.f32 %v1101, %v1106
    %v1110 = vadd.f32 %v1102, %v1107
    %s1111 = sld [smem:[#allocation3 + $0xb]]
    %v1112 = vstv %s1111
    %v1113 = vmul.f32 %v895, %v1112
    %v1114 = vmul.f32 %v897, %v1112
    %v1115 = vmul.f32 %v899, %v1112
    %v1116 = vadd.f32 %v1108, %v1113
    %v1117 = vadd.f32 %v1109, %v1114
    %v1118 = vadd.f32 %v1110, %v1115
    %s1119 = sld [smem:[#allocation3 + $0xf]]
    %v1120 = vstv %s1119
    %v1121 = vmul.f32 %v1006, %v1120
    %v1122 = vmul.f32 %v1008, %v1120
    %v1123 = vmul.f32 %v1010, %v1120
    %v1124 = vadd.f32 %v1116, %v1121
    %v1125 = vadd.f32 %v1117, %v1122
    %v1126 = vadd.f32 %v1118, %v1123
    %v1127 = vadd.f32 %v1037, %v1066
    %v1128 = vadd.f32 %v1038, %v1067
    %v1129 = vadd.f32 %v1039, %v1068
    %v1130 = vadd.f32 %v1127, %v1095
    %v1131 = vadd.f32 %v1128, %v1096
    %v1132 = vadd.f32 %v1129, %v1097
    %v1133 = vadd.f32 %v1130, %v1124
    %v1134 = vadd.f32 %v1131, %v1125
    %v1135 = vadd.f32 %v1132, %v1126
    %v1136 = vmul.f32 %v1133, 0.25
    %v1137 = vmul.f32 %v1134, 0.25
    %v1138 = vmul.f32 %v1135, 0.25
    %v1139 = vsub.f32 %v1037, %v1136
    %v1140 = vsub.f32 %v1038, %v1137
    %v1141 = vsub.f32 %v1039, %v1138
    %v1142 = vmul.f32 %v1139, %v1139
    %v1143 = vmul.f32 %v1140, %v1140
    %v1144 = vmul.f32 %v1141, %v1141
    %v1145 = vsub.f32 %v1066, %v1136
    %v1146 = vsub.f32 %v1067, %v1137
    %v1147 = vsub.f32 %v1068, %v1138
    %v1148 = vmul.f32 %v1145, %v1145
    %v1149 = vmul.f32 %v1146, %v1146
    %v1150 = vmul.f32 %v1147, %v1147
    %v1151 = vadd.f32 %v1142, %v1148
    %v1152 = vadd.f32 %v1143, %v1149
    %v1153 = vadd.f32 %v1144, %v1150
    %v1154 = vsub.f32 %v1095, %v1136
    %v1155 = vsub.f32 %v1096, %v1137
    %v1156 = vsub.f32 %v1097, %v1138
    %v1157 = vmul.f32 %v1154, %v1154
    %v1158 = vmul.f32 %v1155, %v1155
    %v1159 = vmul.f32 %v1156, %v1156
    %v1160 = vadd.f32 %v1151, %v1157
    %v1161 = vadd.f32 %v1152, %v1158
    %v1162 = vadd.f32 %v1153, %v1159
    %v1163 = vsub.f32 %v1124, %v1136
    %v1164 = vsub.f32 %v1125, %v1137
    %v1165 = vsub.f32 %v1126, %v1138
    %v1166 = vmul.f32 %v1163, %v1163
    %v1167 = vmul.f32 %v1164, %v1164
    %v1168 = vmul.f32 %v1165, %v1165
    %v1169 = vadd.f32 %v1160, %v1166
    %v1170 = vadd.f32 %v1161, %v1167
    %v1171 = vadd.f32 %v1162, %v1168
    %v1172 = vmul.f32 %v1169, 0.25
    %v1173 = vmul.f32 %v1170, 0.25
    %v1174 = vmul.f32 %v1171, 0.25
    %v1175 = vadd.f32 %v1172, 1e-05
    %v1176 = vadd.f32 %v1173, 1e-05
    %v1177 = vadd.f32 %v1174, 1e-05
    %v1178 = vrsqrt.pop %v1175
    %v1179 = vrsqrt.pop %v1176
    %v1180 = vrsqrt.pop %v1177
    %v1181 = vmul.f32 %v1139, %v1178
    %v1182 = vmul.f32 %v1140, %v1179
    %v1183 = vmul.f32 %v1141, %v1180
    %s1184 = sld [smem:[#allocation3 + $0x20]]
    %v1185 = vstv %s1184
    %v1186 = vmul.f32 %v1181, %v1185
    %v1187 = vmul.f32 %v1182, %v1185
    %v1188 = vmul.f32 %v1183, %v1185
    %s1189 = sld [smem:[#allocation3 + $0x28]]
    %v1190 = vstv %s1189
    %v1191 = vadd.f32 %v1186, %v1190
    %v1192 = vadd.f32 %v1187, %v1190
    %v1193 = vadd.f32 %v1188, %v1190
    %v1194 = vmul.f32 %v1191, %v204
    %v1195 = vmul.f32 %v1192, %v204
    %v1196 = vmul.f32 %v1193, %v204
    %v1197 = vpack.c.bf16 %v1195, %v1194
    %v1198 = vpack.c.bf16 %v1196, %v1196
    %v1199 = vpack.c.bf16 %v556, %v552
    %v1200 = vpack.c.bf16 %v562, %v562
    %v1202 = vsel %vm652, %v1197, 0
    %v1205 = vsel %vm652, %v1198, 0
    %vm1207 = vcmask 1043456
    %v1209 = vsel %vm1207, %v1200, 0
    %1211 = vmatprep.subr.bf16.mxu0 0
    %1212 = vmatpush1.bf16.msra.mxu0 0
    %1213 = vmatprep.subr.bf16.mxu0 0
    %1214 = vmatpush1.bf16.msra.mxu0 0
    %1215 = vmatprep.subr.bf16.mxu0 0
    %1216 = vmatpush1.bf16.msra.mxu0 0
    %1217 = vmatprep.subr.bf16.mxu0 0
    %1218 = vmatpush1.bf16.msra.mxu0 0
    %1219 = vmatprep.subr.bf16.mxu0 0
    %1220 = vmatpush1.bf16.msra.mxu0 0
    %1221 = vmatprep.subr.bf16.mxu0 0
    %1222 = vmatpush1.bf16.msra.mxu0 0
    %1223 = vmatprep.subr.bf16.mxu0 0
    %1224 = vmatpush1.bf16.msra.mxu0 %v1209
    %1225 = vmatprep.subr.bf16.mxu0 0
    %1226 = vmatpush1.bf16.msra.mxu0 %v1199
    %1227 = vmatprep.subr.bf16.mxu0 0
    %1228 = vmatpush2.bf16.msra.mxu0 0
    %1229 = vmatprep.subr.bf16.mxu0 0
    %1230 = vmatpush2.bf16.msra.mxu0 0
    %1231 = vmatprep.subr.bf16.mxu0 0
    %1232 = vmatpush2.bf16.msra.mxu0 0
    %1233 = vmatprep.subr.bf16.mxu0 0
    %1234 = vmatpush2.bf16.msra.mxu0 0
    %1235 = vmatprep.subr.bf16.mxu0 0
    %1236 = vmatpush2.bf16.msra.mxu0 0
    %1237 = vmatprep.subr.bf16.mxu0 0
    %1238 = vmatpush2.bf16.msra.mxu0 0
    %1239 = vmatprep.subr.bf16.mxu0 0
    %1240 = vmatpush2.bf16.msra.mxu0 0
    %1241 = vmatprep.subr.bf16.mxu0 0
    %1242 = vmatpush2.bf16.msra.mxu0 0
    %1243 = vmatprep.mubr.bf16.mxu0 0
    %1244 = vmatmul.mubr.bf16.gmra.mxu0 %v1202
    %v1245 = vpop.f32.mrf.mxu0
    %v1246 = vadd.f32 0.0, %v1245
    %v1247 = vpop.f32.mrf.mxu0
    %v1248 = vpop.f32.mrf.mxu0
    %v1249 = vadd.f32 0.0, %v1248
    %v1250 = vpop.f32.mrf.mxu0
    %1251 = vmatprep.mubr.bf16.mxu0 0
    %1252 = vmatmul.mubr.bf16.gmra.mxu0 %v1205
    %v1253 = vpop.f32.mrf.mxu0
    %v1254 = vadd.f32 0.0, %v1253
    %v1255 = vpop.f32.mrf.mxu0
    %v1256 = vpop.f32.mrf.mxu0
    %v1257 = vpop.f32.mrf.mxu0
    %1258 = vdwg.mxu0
    %1259 = vst.msk [vmem:[#allocation2] sm:$0xff] %vm584, %v1246
    %1260 = vst.msk [vmem:[#allocation2 + $0x20] sm:$0xff] %vm584, %v1249
    %1261 = vst.msk [vmem:[#allocation2 + $0x40] sm:$0xff] %vm584, %v1254
    %v1262 = vmul.f32 %v1145, %v1178
    %v1263 = vmul.f32 %v1146, %v1179
    %v1264 = vmul.f32 %v1147, %v1180
    %s1265 = sld [smem:[#allocation3 + $0x21]]
    %v1266 = vstv %s1265
    %v1267 = vmul.f32 %v1262, %v1266
    %v1268 = vmul.f32 %v1263, %v1266
    %v1269 = vmul.f32 %v1264, %v1266
    %s1270 = sld [smem:[#allocation3 + $0x29]]
    %v1271 = vstv %s1270
    %v1272 = vadd.f32 %v1267, %v1271
    %v1273 = vadd.f32 %v1268, %v1271
    %v1274 = vadd.f32 %v1269, %v1271
    %v1275 = vmul.f32 %v1272, %v204
    %v1276 = vmul.f32 %v1273, %v204
    %v1277 = vmul.f32 %v1274, %v204
    %v1278 = vpack.c.bf16 %v1276, %v1275
    %v1279 = vpack.c.bf16 %v1277, %v1277
    %1282 = vrot.lane.b32.xlu0 %v1199, 64
    %v1283 = vpop.permute.xlu0 %1282
    %1284 = vrot.lane.b32.xlu0 %v1200, 64
    %v1285 = vpop.permute.xlu0 %1284
    %v1288 = vsel %vm652, %v1278, 0
    %v1291 = vsel %vm652, %v1279, 0
    %v1294 = vsel %vm1207, %v1285, 0
    %1296 = vmatprep.subr.bf16.mxu0 0
    %1297 = vmatpush1.bf16.msra.mxu0 0
    %1298 = vmatprep.subr.bf16.mxu0 0
    %1299 = vmatpush1.bf16.msra.mxu0 0
    %1300 = vmatprep.subr.bf16.mxu0 0
    %1301 = vmatpush1.bf16.msra.mxu0 0
    %1302 = vmatprep.subr.bf16.mxu0 0
    %1303 = vmatpush1.bf16.msra.mxu0 0
    %1304 = vmatprep.subr.bf16.mxu0 0
    %1305 = vmatpush1.bf16.msra.mxu0 0
    %1306 = vmatprep.subr.bf16.mxu0 0
    %1307 = vmatpush1.bf16.msra.mxu0 0
    %1308 = vmatprep.subr.bf16.mxu0 0
    %1309 = vmatpush1.bf16.msra.mxu0 %v1294
    %1310 = vmatprep.subr.bf16.mxu0 0
    %1311 = vmatpush1.bf16.msra.mxu0 %v1283
    %1312 = vmatprep.subr.bf16.mxu0 0
    %1313 = vmatpush2.bf16.msra.mxu0 0
    %1314 = vmatprep.subr.bf16.mxu0 0
    %1315 = vmatpush2.bf16.msra.mxu0 0
    %1316 = vmatprep.subr.bf16.mxu0 0
    %1317 = vmatpush2.bf16.msra.mxu0 0
    %1318 = vmatprep.subr.bf16.mxu0 0
    %1319 = vmatpush2.bf16.msra.mxu0 0
    %1320 = vmatprep.subr.bf16.mxu0 0
    %1321 = vmatpush2.bf16.msra.mxu0 0
    %1322 = vmatprep.subr.bf16.mxu0 0
    %1323 = vmatpush2.bf16.msra.mxu0 0
    %1324 = vmatprep.subr.bf16.mxu0 0
    %1325 = vmatpush2.bf16.msra.mxu0 0
    %1326 = vmatprep.subr.bf16.mxu0 0
    %1327 = vmatpush2.bf16.msra.mxu0 0
    %1328 = vmatprep.mubr.bf16.mxu0 0
    %1329 = vmatmul.mubr.bf16.gmra.mxu0 %v1288
    %v1330 = vpop.f32.mrf.mxu0
    %v1331 = vadd.f32 0.0, %v1330
    %v1332 = vpop.f32.mrf.mxu0
    %v1333 = vpop.f32.mrf.mxu0
    %v1334 = vadd.f32 0.0, %v1333
    %v1335 = vpop.f32.mrf.mxu0
    %1336 = vmatprep.mubr.bf16.mxu0 0
    %1337 = vmatmul.mubr.bf16.gmra.mxu0 %v1291
    %v1338 = vpop.f32.mrf.mxu0
    %v1339 = vadd.f32 0.0, %v1338
    %v1340 = vpop.f32.mrf.mxu0
    %v1341 = vpop.f32.mrf.mxu0
    %v1342 = vpop.f32.mrf.mxu0
    %1343 = vdwg.mxu0
    %1344 = vst.msk [vmem:[#allocation2 + $0x8] sm:$0xff] %vm584, %v1331
    %1345 = vst.msk [vmem:[#allocation2 + $0x28] sm:$0xff] %vm584, %v1334
    %1346 = vst.msk [vmem:[#allocation2 + $0x48] sm:$0xff] %vm584, %v1339
    %v1347 = vmul.f32 %v1154, %v1178
    %v1348 = vmul.f32 %v1155, %v1179
    %v1349 = vmul.f32 %v1156, %v1180
    %s1350 = sld [smem:[#allocation3 + $0x22]]
    %v1351 = vstv %s1350
    %v1352 = vmul.f32 %v1347, %v1351
    %v1353 = vmul.f32 %v1348, %v1351
    %v1354 = vmul.f32 %v1349, %v1351
    %s1355 = sld [smem:[#allocation3 + $0x2a]]
    %v1356 = vstv %s1355
    %v1357 = vadd.f32 %v1352, %v1356
    %v1358 = vadd.f32 %v1353, %v1356
    %v1359 = vadd.f32 %v1354, %v1356
    %v1360 = vmul.f32 %v1357, %v204
    %v1361 = vmul.f32 %v1358, %v204
    %v1362 = vmul.f32 %v1359, %v204
    %v1363 = vpack.c.bf16 %v1361, %v1360
    %v1364 = vpack.c.bf16 %v1362, %v1362
    %v1365 = vpack.c.bf16 %v558, %v554
    %v1366 = vpack.c.bf16 %v564, %v564
    %v1368 = vsel %vm652, %v1363, 0
    %v1371 = vsel %vm652, %v1364, 0
    %v1374 = vsel %vm1207, %v1366, 0
    %1376 = vmatprep.subr.bf16.mxu0 0
    %1377 = vmatpush1.bf16.msra.mxu0 0
    %1378 = vmatprep.subr.bf16.mxu0 0
    %1379 = vmatpush1.bf16.msra.mxu0 0
    %1380 = vmatprep.subr.bf16.mxu0 0
    %1381 = vmatpush1.bf16.msra.mxu0 0
    %1382 = vmatprep.subr.bf16.mxu0 0
    %1383 = vmatpush1.bf16.msra.mxu0 0
    %1384 = vmatprep.subr.bf16.mxu0 0
    %1385 = vmatpush1.bf16.msra.mxu0 0
    %1386 = vmatprep.subr.bf16.mxu0 0
    %1387 = vmatpush1.bf16.msra.mxu0 0
    %1388 = vmatprep.subr.bf16.mxu0 0
    %1389 = vmatpush1.bf16.msra.mxu0 %v1374
    %1390 = vmatprep.subr.bf16.mxu0 0
    %1391 = vmatpush1.bf16.msra.mxu0 %v1365
    %1392 = vmatprep.subr.bf16.mxu0 0
    %1393 = vmatpush2.bf16.msra.mxu0 0
    %1394 = vmatprep.subr.bf16.mxu0 0
    %1395 = vmatpush2.bf16.msra.mxu0 0
    %1396 = vmatprep.subr.bf16.mxu0 0
    %1397 = vmatpush2.bf16.msra.mxu0 0
    %1398 = vmatprep.subr.bf16.mxu0 0
    %1399 = vmatpush2.bf16.msra.mxu0 0
    %1400 = vmatprep.subr.bf16.mxu0 0
    %1401 = vmatpush2.bf16.msra.mxu0 0
    %1402 = vmatprep.subr.bf16.mxu0 0
    %1403 = vmatpush2.bf16.msra.mxu0 0
    %1404 = vmatprep.subr.bf16.mxu0 0
    %1405 = vmatpush2.bf16.msra.mxu0 0
    %1406 = vmatprep.subr.bf16.mxu0 0
    %1407 = vmatpush2.bf16.msra.mxu0 0
    %1408 = vmatprep.mubr.bf16.mxu0 0
    %1409 = vmatmul.mubr.bf16.gmra.mxu0 %v1368
    %v1410 = vpop.f32.mrf.mxu0
    %v1411 = vadd.f32 0.0, %v1410
    %v1412 = vpop.f32.mrf.mxu0
    %v1413 = vpop.f32.mrf.mxu0
    %v1414 = vadd.f32 0.0, %v1413
    %v1415 = vpop.f32.mrf.mxu0
    %1416 = vmatprep.mubr.bf16.mxu0 0
    %1417 = vmatmul.mubr.bf16.gmra.mxu0 %v1371
    %v1418 = vpop.f32.mrf.mxu0
    %v1419 = vadd.f32 0.0, %v1418
    %v1420 = vpop.f32.mrf.mxu0
    %v1421 = vpop.f32.mrf.mxu0
    %v1422 = vpop.f32.mrf.mxu0
    %1423 = vdwg.mxu0
    %1424 = vst.msk [vmem:[#allocation2 + $0x10] sm:$0xff] %vm584, %v1411
    %1425 = vst.msk [vmem:[#allocation2 + $0x30] sm:$0xff] %vm584, %v1414
    %1426 = vst.msk [vmem:[#allocation2 + $0x50] sm:$0xff] %vm584, %v1419
    %v1427 = vmul.f32 %v1163, %v1178
    %v1428 = vmul.f32 %v1164, %v1179
    %v1429 = vmul.f32 %v1165, %v1180
    %s1430 = sld [smem:[#allocation3 + $0x23]]
    %v1431 = vstv %s1430
    %v1432 = vmul.f32 %v1427, %v1431
    %v1433 = vmul.f32 %v1428, %v1431
    %v1434 = vmul.f32 %v1429, %v1431
    %s1435 = sld [smem:[#allocation3 + $0x2b]]
    %v1436 = vstv %s1435
    %v1437 = vadd.f32 %v1432, %v1436
    %v1438 = vadd.f32 %v1433, %v1436
    %v1439 = vadd.f32 %v1434, %v1436
    %v1440 = vmul.f32 %v1437, %v204
    %v1441 = vmul.f32 %v1438, %v204
    %v1442 = vmul.f32 %v1439, %v204
    %v1443 = vpack.c.bf16 %v1441, %v1440
    %v1444 = vpack.c.bf16 %v1442, %v1442
    %1447 = vrot.lane.b32.xlu0 %v1365, 64
    %v1448 = vpop.permute.xlu0 %1447
    %1449 = vrot.lane.b32.xlu0 %v1366, 64
    %v1450 = vpop.permute.xlu0 %1449
    %v1453 = vsel %vm652, %v1443, 0
    %v1456 = vsel %vm652, %v1444, 0
    %v1459 = vsel %vm1207, %v1450, 0
    %1461 = vmatprep.subr.bf16.mxu0 0
    %1462 = vmatpush1.bf16.msra.mxu0 0
    %1463 = vmatprep.subr.bf16.mxu0 0
    %1464 = vmatpush1.bf16.msra.mxu0 0
    %1465 = vmatprep.subr.bf16.mxu0 0
    %1466 = vmatpush1.bf16.msra.mxu0 0
    %1467 = vmatprep.subr.bf16.mxu0 0
    %1468 = vmatpush1.bf16.msra.mxu0 0
    %1469 = vmatprep.subr.bf16.mxu0 0
    %1470 = vmatpush1.bf16.msra.mxu0 0
    %1471 = vmatprep.subr.bf16.mxu0 0
    %1472 = vmatpush1.bf16.msra.mxu0 0
    %1473 = vmatprep.subr.bf16.mxu0 0
    %1474 = vmatpush1.bf16.msra.mxu0 %v1459
    %1475 = vmatprep.subr.bf16.mxu0 0
    %1476 = vmatpush1.bf16.msra.mxu0 %v1448
    %1477 = vmatprep.subr.bf16.mxu0 0
    %1478 = vmatpush2.bf16.msra.mxu0 0
    %1479 = vmatprep.subr.bf16.mxu0 0
    %1480 = vmatpush2.bf16.msra.mxu0 0
    %1481 = vmatprep.subr.bf16.mxu0 0
    %1482 = vmatpush2.bf16.msra.mxu0 0
    %1483 = vmatprep.subr.bf16.mxu0 0
    %1484 = vmatpush2.bf16.msra.mxu0 0
    %1485 = vmatprep.subr.bf16.mxu0 0
    %1486 = vmatpush2.bf16.msra.mxu0 0
    %1487 = vmatprep.subr.bf16.mxu0 0
    %1488 = vmatpush2.bf16.msra.mxu0 0
    %1489 = vmatprep.subr.bf16.mxu0 0
    %1490 = vmatpush2.bf16.msra.mxu0 0
    %1491 = vmatprep.subr.bf16.mxu0 0
    %1492 = vmatpush2.bf16.msra.mxu0 0
    %1493 = vmatprep.mubr.bf16.mxu0 0
    %1494 = vmatmul.mubr.bf16.gmra.mxu0 %v1453
    %v1495 = vpop.f32.mrf.mxu0
    %v1496 = vadd.f32 0.0, %v1495
    %v1497 = vpop.f32.mrf.mxu0
    %v1498 = vpop.f32.mrf.mxu0
    %v1499 = vadd.f32 0.0, %v1498
    %v1500 = vpop.f32.mrf.mxu0
    %1501 = vmatprep.mubr.bf16.mxu0 0
    %1502 = vmatmul.mubr.bf16.gmra.mxu0 %v1456
    %v1503 = vpop.f32.mrf.mxu0
    %v1504 = vadd.f32 0.0, %v1503
    %v1505 = vpop.f32.mrf.mxu0
    %v1506 = vpop.f32.mrf.mxu0
    %v1507 = vpop.f32.mrf.mxu0
    %1508 = vdwg.mxu0
    %1509 = vst.msk [vmem:[#allocation2 + $0x18] sm:$0xff] %vm584, %v1496
    %1510 = vst.msk [vmem:[#allocation2 + $0x38] sm:$0xff] %vm584, %v1499
    %1511 = vst.msk [vmem:[#allocation2 + $0x58] sm:$0xff] %vm584, %v1504
    %v1512 = vpack.c.bf16 %v446, %v440
    %v1513 = vpack.c.bf16 %v450, %v450
    %v1514 = vpack.c.bf16 %v509, %v503
    %v1515 = vpack.c.bf16 %v513, %v513
    %v1517 = vsel %vm584, %v1512, 0
    %v1520 = vsel %vm584, %v1513, 0
    %v1523 = vsel %vm584, %v1514, 0
    %v1526 = vsel %vm584, %v1515, 0
    %1528 = vmatprep.subr.bf16.mxu0 0
    %1529 = vmatpush1.bf16.xpose.msra.mxu0 0
    %1530 = vmatprep.subr.bf16.mxu0 0
    %1531 = vmatpush1.bf16.xpose.msra.mxu0 0
    %1532 = vmatprep.subr.bf16.mxu0 0
    %1533 = vmatpush1.bf16.xpose.msra.mxu0 0
    %1534 = vmatprep.subr.bf16.mxu0 0
    %1535 = vmatpush1.bf16.xpose.msra.mxu0 0
    %1536 = vmatprep.subr.bf16.mxu0 0
    %1537 = vmatpush1.bf16.xpose.msra.mxu0 0
    %1538 = vmatprep.subr.bf16.mxu0 0
    %1539 = vmatpush1.bf16.xpose.msra.mxu0 0
    %1540 = vmatprep.subr.bf16.mxu0 0
    %1541 = vmatpush1.bf16.xpose.msra.mxu0 %v1526
    %1542 = vmatprep.subr.bf16.mxu0 0
    %1543 = vmatpush1.bf16.xpose.msra.mxu0 %v1523
    %1544 = vmatprep.subr.bf16.mxu0 0
    %1545 = vmatpush2.bf16.xpose.msra.mxu0 0
    %1546 = vmatprep.subr.bf16.mxu0 0
    %1547 = vmatpush2.bf16.xpose.msra.mxu0 0
    %1548 = vmatprep.subr.bf16.mxu0 0
    %1549 = vmatpush2.bf16.xpose.msra.mxu0 0
    %1550 = vmatprep.subr.bf16.mxu0 0
    %1551 = vmatpush2.bf16.xpose.msra.mxu0 0
    %1552 = vmatprep.subr.bf16.mxu0 0
    %1553 = vmatpush2.bf16.xpose.msra.mxu0 0
    %1554 = vmatprep.subr.bf16.mxu0 0
    %1555 = vmatpush2.bf16.xpose.msra.mxu0 0
    %1556 = vmatprep.subr.bf16.mxu0 0
    %1557 = vmatpush2.bf16.xpose.msra.mxu0 0
    %1558 = vmatprep.subr.bf16.mxu0 0
    %1559 = vmatpush2.bf16.xpose.msra.mxu0 0
    %1560 = vmatprep.mubr.bf16.mxu0 0
    %1561 = vmatmul.mubr.bf16.gmra.mxu0 %v1517
    %v1562 = vpop.f32.mrf.mxu0
    %v1563 = vadd.f32 0.0, %v1562
    %v1564 = vpop.f32.mrf.mxu0
    %v1565 = vpop.f32.mrf.mxu0
    %v1566 = vadd.f32 0.0, %v1565
    %v1567 = vpop.f32.mrf.mxu0
    %1568 = vmatprep.mubr.bf16.mxu0 0
    %1569 = vmatmul.mubr.bf16.gmra.mxu0 %v1520
    %v1570 = vpop.f32.mrf.mxu0
    %v1571 = vadd.f32 0.0, %v1570
    %v1572 = vpop.f32.mrf.mxu0
    %v1573 = vpop.f32.mrf.mxu0
    %v1574 = vpop.f32.mrf.mxu0
    %1575 = vdwg.mxu0
    %v1576 = vmul.f32 %v1563, 0.125
    %v1577 = vmul.f32 %v1566, 0.125
    %v1578 = vmul.f32 %v1571, 0.125
    %v1579 = vsel %vm648, %v1576, -1e+30
    %v1580 = vsel %vm648, %v1577, -1e+30
    %v1581 = vsel %vm648, %v1578, -1e+30
    %v1582 = vsel %vm652, %v1579, -inf
    %1583 = vmax.xlane.f32.xlu0 %v1582
    %v1584 = vpop.xlane.xlu0 %1583
    %v1585 = vsel %vm652, %v1580, -inf
    %1586 = vmax.xlane.f32.xlu0 %v1585
    %v1587 = vpop.xlane.xlu0 %1586
    %v1588 = vsel %vm652, %v1581, -inf
    %1589 = vmax.xlane.f32.xlu0 %v1588
    %v1590 = vpop.xlane.xlu0 %1589
    %v1591 = vsub.f32 %v1579, %v1584
    %v1592 = vsub.f32 %v1580, %v1587
    %v1593 = vsub.f32 %v1581, %v1590
    %v1594 = vmul.f32 %v1591, 1.442695
    %v1595 = vpow.pop %v1594
    %v1596 = vmul.f32 %v1592, 1.442695
    %v1597 = vpow.pop %v1596
    %v1598 = vmul.f32 %v1593, 1.442695
    %v1599 = vpow.pop %v1598
    %v1600 = vsel %vm652, %v1595, 0.0
    %1601 = vadd.xlane.f32.xlu0 %v1600
    %v1602 = vpop.xlane.xlu0 %1601
    %v1603 = vsel %vm652, %v1597, 0.0
    %1604 = vadd.xlane.f32.xlu0 %v1603
    %v1605 = vpop.xlane.xlu0 %1604
    %v1606 = vsel %vm652, %v1599, 0.0
    %1607 = vadd.xlane.f32.xlu0 %v1606
    %v1608 = vpop.xlane.xlu0 %1607
    %v1609 = vrcp.pop %v1602
    %v1610 = vmul.f32 %v1595, %v1609
    %v1611 = vrcp.pop %v1605
    %v1612 = vmul.f32 %v1597, %v1611
    %v1613 = vrcp.pop %v1608
    %v1614 = vmul.f32 %v1599, %v1613
    %1617 = vrot.lane.b32.xlu0 %v1512, 64
    %v1618 = vpop.permute.xlu0 %1617
    %1619 = vrot.lane.b32.xlu0 %v1513, 64
    %v1620 = vpop.permute.xlu0 %1619
    %1623 = vrot.lane.b32.xlu0 %v1514, 64
    %v1624 = vpop.permute.xlu0 %1623
    %1625 = vrot.lane.b32.xlu0 %v1515, 64
    %v1626 = vpop.permute.xlu0 %1625
    %v1628 = vsel %vm584, %v1618, 0
    %v1631 = vsel %vm584, %v1620, 0
    %v1634 = vsel %vm584, %v1624, 0
    %v1637 = vsel %vm584, %v1626, 0
    %1639 = vmatprep.subr.bf16.mxu0 0
    %1640 = vmatpush1.bf16.xpose.msra.mxu0 0
    %1641 = vmatprep.subr.bf16.mxu0 0
    %1642 = vmatpush1.bf16.xpose.msra.mxu0 0
    %1643 = vmatprep.subr.bf16.mxu0 0
    %1644 = vmatpush1.bf16.xpose.msra.mxu0 0
    %1645 = vmatprep.subr.bf16.mxu0 0
    %1646 = vmatpush1.bf16.xpose.msra.mxu0 0
    %1647 = vmatprep.subr.bf16.mxu0 0
    %1648 = vmatpush1.bf16.xpose.msra.mxu0 0
    %1649 = vmatprep.subr.bf16.mxu0 0
    %1650 = vmatpush1.bf16.xpose.msra.mxu0 0
    %1651 = vmatprep.subr.bf16.mxu0 0
    %1652 = vmatpush1.bf16.xpose.msra.mxu0 %v1637
    %1653 = vmatprep.subr.bf16.mxu0 0
    %1654 = vmatpush1.bf16.xpose.msra.mxu0 %v1634
    %1655 = vmatprep.subr.bf16.mxu0 0
    %1656 = vmatpush2.bf16.xpose.msra.mxu0 0
    %1657 = vmatprep.subr.bf16.mxu0 0
    %1658 = vmatpush2.bf16.xpose.msra.mxu0 0
    %1659 = vmatprep.subr.bf16.mxu0 0
    %1660 = vmatpush2.bf16.xpose.msra.mxu0 0
    %1661 = vmatprep.subr.bf16.mxu0 0
    %1662 = vmatpush2.bf16.xpose.msra.mxu0 0
    %1663 = vmatprep.subr.bf16.mxu0 0
    %1664 = vmatpush2.bf16.xpose.msra.mxu0 0
    %1665 = vmatprep.subr.bf16.mxu0 0
    %1666 = vmatpush2.bf16.xpose.msra.mxu0 0
    %1667 = vmatprep.subr.bf16.mxu0 0
    %1668 = vmatpush2.bf16.xpose.msra.mxu0 0
    %1669 = vmatprep.subr.bf16.mxu0 0
    %1670 = vmatpush2.bf16.xpose.msra.mxu0 0
    %1671 = vmatprep.mubr.bf16.mxu0 0
    %1672 = vmatmul.mubr.bf16.gmra.mxu0 %v1628
    %v1673 = vpop.f32.mrf.mxu0
    %v1674 = vadd.f32 0.0, %v1673
    %v1675 = vpop.f32.mrf.mxu0
    %v1676 = vpop.f32.mrf.mxu0
    %v1677 = vadd.f32 0.0, %v1676
    %v1678 = vpop.f32.mrf.mxu0
    %1679 = vmatprep.mubr.bf16.mxu0 0
    %1680 = vmatmul.mubr.bf16.gmra.mxu0 %v1631
    %v1681 = vpop.f32.mrf.mxu0
    %v1682 = vadd.f32 0.0, %v1681
    %v1683 = vpop.f32.mrf.mxu0
    %v1684 = vpop.f32.mrf.mxu0
    %v1685 = vpop.f32.mrf.mxu0
    %1686 = vdwg.mxu0
    %v1687 = vmul.f32 %v1674, 0.125
    %v1688 = vmul.f32 %v1677, 0.125
    %v1689 = vmul.f32 %v1682, 0.125
    %v1690 = vsel %vm648, %v1687, -1e+30
    %v1691 = vsel %vm648, %v1688, -1e+30
    %v1692 = vsel %vm648, %v1689, -1e+30
    %v1693 = vsel %vm652, %v1690, -inf
    %1694 = vmax.xlane.f32.xlu0 %v1693
    %v1695 = vpop.xlane.xlu0 %1694
    %v1696 = vsel %vm652, %v1691, -inf
    %1697 = vmax.xlane.f32.xlu0 %v1696
    %v1698 = vpop.xlane.xlu0 %1697
    %v1699 = vsel %vm652, %v1692, -inf
    %1700 = vmax.xlane.f32.xlu0 %v1699
    %v1701 = vpop.xlane.xlu0 %1700
    %v1702 = vsub.f32 %v1690, %v1695
    %v1703 = vsub.f32 %v1691, %v1698
    %v1704 = vsub.f32 %v1692, %v1701
    %v1705 = vmul.f32 %v1702, 1.442695
    %v1706 = vpow.pop %v1705
    %v1707 = vmul.f32 %v1703, 1.442695
    %v1708 = vpow.pop %v1707
    %v1709 = vmul.f32 %v1704, 1.442695
    %v1710 = vpow.pop %v1709
    %v1711 = vsel %vm652, %v1706, 0.0
    %1712 = vadd.xlane.f32.xlu0 %v1711
    %v1713 = vpop.xlane.xlu0 %1712
    %v1714 = vsel %vm652, %v1708, 0.0
    %1715 = vadd.xlane.f32.xlu0 %v1714
    %v1716 = vpop.xlane.xlu0 %1715
    %v1717 = vsel %vm652, %v1710, 0.0
    %1718 = vadd.xlane.f32.xlu0 %v1717
    %v1719 = vpop.xlane.xlu0 %1718
    %v1720 = vrcp.pop %v1713
    %v1721 = vmul.f32 %v1706, %v1720
    %v1722 = vrcp.pop %v1716
    %v1723 = vmul.f32 %v1708, %v1722
    %v1724 = vrcp.pop %v1719
    %v1725 = vmul.f32 %v1710, %v1724
    %v1726 = vpack.c.bf16 %v448, %v442
    %v1727 = vpack.c.bf16 %v452, %v452
    %v1728 = vpack.c.bf16 %v511, %v505
    %v1729 = vpack.c.bf16 %v515, %v515
    %v1731 = vsel %vm584, %v1726, 0
    %v1734 = vsel %vm584, %v1727, 0
    %v1737 = vsel %vm584, %v1728, 0
    %v1740 = vsel %vm584, %v1729, 0
    %1742 = vmatprep.subr.bf16.mxu0 0
    %1743 = vmatpush1.bf16.xpose.msra.mxu0 0
    %1744 = vmatprep.subr.bf16.mxu0 0
    %1745 = vmatpush1.bf16.xpose.msra.mxu0 0
    %1746 = vmatprep.subr.bf16.mxu0 0
    %1747 = vmatpush1.bf16.xpose.msra.mxu0 0
    %1748 = vmatprep.subr.bf16.mxu0 0
    %1749 = vmatpush1.bf16.xpose.msra.mxu0 0
    %1750 = vmatprep.subr.bf16.mxu0 0
    %1751 = vmatpush1.bf16.xpose.msra.mxu0 0
    %1752 = vmatprep.subr.bf16.mxu0 0
    %1753 = vmatpush1.bf16.xpose.msra.mxu0 0
    %1754 = vmatprep.subr.bf16.mxu0 0
    %1755 = vmatpush1.bf16.xpose.msra.mxu0 %v1740
    %1756 = vmatprep.subr.bf16.mxu0 0
    %1757 = vmatpush1.bf16.xpose.msra.mxu0 %v1737
    %1758 = vmatprep.subr.bf16.mxu0 0
    %1759 = vmatpush2.bf16.xpose.msra.mxu0 0
    %1760 = vmatprep.subr.bf16.mxu0 0
    %1761 = vmatpush2.bf16.xpose.msra.mxu0 0
    %1762 = vmatprep.subr.bf16.mxu0 0
    %1763 = vmatpush2.bf16.xpose.msra.mxu0 0
    %1764 = vmatprep.subr.bf16.mxu0 0
    %1765 = vmatpush2.bf16.xpose.msra.mxu0 0
    %1766 = vmatprep.subr.bf16.mxu0 0
    %1767 = vmatpush2.bf16.xpose.msra.mxu0 0
    %1768 = vmatprep.subr.bf16.mxu0 0
    %1769 = vmatpush2.bf16.xpose.msra.mxu0 0
    %1770 = vmatprep.subr.bf16.mxu0 0
    %1771 = vmatpush2.bf16.xpose.msra.mxu0 0
    %1772 = vmatprep.subr.bf16.mxu0 0
    %1773 = vmatpush2.bf16.xpose.msra.mxu0 0
    %1774 = vmatprep.mubr.bf16.mxu0 0
    %1775 = vmatmul.mubr.bf16.gmra.mxu0 %v1731
    %v1776 = vpop.f32.mrf.mxu0
    %v1777 = vadd.f32 0.0, %v1776
    %v1778 = vpop.f32.mrf.mxu0
    %v1779 = vpop.f32.mrf.mxu0
    %v1780 = vadd.f32 0.0, %v1779
    %v1781 = vpop.f32.mrf.mxu0
    %1782 = vmatprep.mubr.bf16.mxu0 0
    %1783 = vmatmul.mubr.bf16.gmra.mxu0 %v1734
    %v1784 = vpop.f32.mrf.mxu0
    %v1785 = vadd.f32 0.0, %v1784
    %v1786 = vpop.f32.mrf.mxu0
    %v1787 = vpop.f32.mrf.mxu0
    %v1788 = vpop.f32.mrf.mxu0
    %1789 = vdwg.mxu0
    %v1790 = vmul.f32 %v1777, 0.125
    %v1791 = vmul.f32 %v1780, 0.125
    %v1792 = vmul.f32 %v1785, 0.125
    %v1793 = vsel %vm648, %v1790, -1e+30
    %v1794 = vsel %vm648, %v1791, -1e+30
    %v1795 = vsel %vm648, %v1792, -1e+30
    %v1796 = vsel %vm652, %v1793, -inf
    %1797 = vmax.xlane.f32.xlu0 %v1796
    %v1798 = vpop.xlane.xlu0 %1797
    %v1799 = vsel %vm652, %v1794, -inf
    %1800 = vmax.xlane.f32.xlu0 %v1799
    %v1801 = vpop.xlane.xlu0 %1800
    %v1802 = vsel %vm652, %v1795, -inf
    %1803 = vmax.xlane.f32.xlu0 %v1802
    %v1804 = vpop.xlane.xlu0 %1803
    %v1805 = vsub.f32 %v1793, %v1798
    %v1806 = vsub.f32 %v1794, %v1801
    %v1807 = vsub.f32 %v1795, %v1804
    %v1808 = vmul.f32 %v1805, 1.442695
    %v1809 = vpow.pop %v1808
    %v1810 = vmul.f32 %v1806, 1.442695
    %v1811 = vpow.pop %v1810
    %v1812 = vmul.f32 %v1807, 1.442695
    %v1813 = vpow.pop %v1812
    %v1814 = vsel %vm652, %v1809, 0.0
    %1815 = vadd.xlane.f32.xlu0 %v1814
    %v1816 = vpop.xlane.xlu0 %1815
    %v1817 = vsel %vm652, %v1811, 0.0
    %1818 = vadd.xlane.f32.xlu0 %v1817
    %v1819 = vpop.xlane.xlu0 %1818
    %v1820 = vsel %vm652, %v1813, 0.0
    %1821 = vadd.xlane.f32.xlu0 %v1820
    %v1822 = vpop.xlane.xlu0 %1821
    %v1823 = vrcp.pop %v1816
    %v1824 = vmul.f32 %v1809, %v1823
    %v1825 = vrcp.pop %v1819
    %v1826 = vmul.f32 %v1811, %v1825
    %v1827 = vrcp.pop %v1822
    %v1828 = vmul.f32 %v1813, %v1827
    %1831 = vrot.lane.b32.xlu0 %v1726, 64
    %v1832 = vpop.permute.xlu0 %1831
    %1833 = vrot.lane.b32.xlu0 %v1727, 64
    %v1834 = vpop.permute.xlu0 %1833
    %1837 = vrot.lane.b32.xlu0 %v1728, 64
    %v1838 = vpop.permute.xlu0 %1837
    %1839 = vrot.lane.b32.xlu0 %v1729, 64
    %v1840 = vpop.permute.xlu0 %1839
    %v1842 = vsel %vm584, %v1832, 0
    %v1845 = vsel %vm584, %v1834, 0
    %v1848 = vsel %vm584, %v1838, 0
    %v1851 = vsel %vm584, %v1840, 0
    %1853 = vmatprep.subr.bf16.mxu0 0
    %1854 = vmatpush1.bf16.xpose.msra.mxu0 0
    %1855 = vmatprep.subr.bf16.mxu0 0
    %1856 = vmatpush1.bf16.xpose.msra.mxu0 0
    %1857 = vmatprep.subr.bf16.mxu0 0
    %1858 = vmatpush1.bf16.xpose.msra.mxu0 0
    %1859 = vmatprep.subr.bf16.mxu0 0
    %1860 = vmatpush1.bf16.xpose.msra.mxu0 0
    %1861 = vmatprep.subr.bf16.mxu0 0
    %1862 = vmatpush1.bf16.xpose.msra.mxu0 0
    %1863 = vmatprep.subr.bf16.mxu0 0
    %1864 = vmatpush1.bf16.xpose.msra.mxu0 0
    %1865 = vmatprep.subr.bf16.mxu0 0
    %1866 = vmatpush1.bf16.xpose.msra.mxu0 %v1851
    %1867 = vmatprep.subr.bf16.mxu0 0
    %1868 = vmatpush1.bf16.xpose.msra.mxu0 %v1848
    %1869 = vmatprep.subr.bf16.mxu0 0
    %1870 = vmatpush2.bf16.xpose.msra.mxu0 0
    %1871 = vmatprep.subr.bf16.mxu0 0
    %1872 = vmatpush2.bf16.xpose.msra.mxu0 0
    %1873 = vmatprep.subr.bf16.mxu0 0
    %1874 = vmatpush2.bf16.xpose.msra.mxu0 0
    %1875 = vmatprep.subr.bf16.mxu0 0
    %1876 = vmatpush2.bf16.xpose.msra.mxu0 0
    %1877 = vmatprep.subr.bf16.mxu0 0
    %1878 = vmatpush2.bf16.xpose.msra.mxu0 0
    %1879 = vmatprep.subr.bf16.mxu0 0
    %1880 = vmatpush2.bf16.xpose.msra.mxu0 0
    %1881 = vmatprep.subr.bf16.mxu0 0
    %1882 = vmatpush2.bf16.xpose.msra.mxu0 0
    %1883 = vmatprep.subr.bf16.mxu0 0
    %1884 = vmatpush2.bf16.xpose.msra.mxu0 0
    %1885 = vmatprep.mubr.bf16.mxu0 0
    %1886 = vmatmul.mubr.bf16.gmra.mxu0 %v1842
    %v1887 = vpop.f32.mrf.mxu0
    %v1888 = vadd.f32 0.0, %v1887
    %v1889 = vpop.f32.mrf.mxu0
    %v1890 = vpop.f32.mrf.mxu0
    %v1891 = vadd.f32 0.0, %v1890
    %v1892 = vpop.f32.mrf.mxu0
    %1893 = vmatprep.mubr.bf16.mxu0 0
    %1894 = vmatmul.mubr.bf16.gmra.mxu0 %v1845
    %v1895 = vpop.f32.mrf.mxu0
    %v1896 = vadd.f32 0.0, %v1895
    %v1897 = vpop.f32.mrf.mxu0
    %v1898 = vpop.f32.mrf.mxu0
    %v1899 = vpop.f32.mrf.mxu0
    %1900 = vdwg.mxu0
    %v1901 = vmul.f32 %v1888, 0.125
    %v1902 = vmul.f32 %v1891, 0.125
    %v1903 = vmul.f32 %v1896, 0.125
    %v1904 = vsel %vm648, %v1901, -1e+30
    %v1905 = vsel %vm648, %v1902, -1e+30
    %v1906 = vsel %vm648, %v1903, -1e+30
    %v1907 = vsel %vm652, %v1904, -inf
    %1908 = vmax.xlane.f32.xlu0 %v1907
    %v1909 = vpop.xlane.xlu0 %1908
    %v1910 = vsel %vm652, %v1905, -inf
    %1911 = vmax.xlane.f32.xlu0 %v1910
    %v1912 = vpop.xlane.xlu0 %1911
    %v1913 = vsel %vm652, %v1906, -inf
    %1914 = vmax.xlane.f32.xlu0 %v1913
    %v1915 = vpop.xlane.xlu0 %1914
    %v1916 = vsub.f32 %v1904, %v1909
    %v1917 = vsub.f32 %v1905, %v1912
    %v1918 = vsub.f32 %v1906, %v1915
    %v1919 = vmul.f32 %v1916, 1.442695
    %v1920 = vpow.pop %v1919
    %v1921 = vmul.f32 %v1917, 1.442695
    %v1922 = vpow.pop %v1921
    %v1923 = vmul.f32 %v1918, 1.442695
    %v1924 = vpow.pop %v1923
    %v1925 = vsel %vm652, %v1920, 0.0
    %1926 = vadd.xlane.f32.xlu0 %v1925
    %v1927 = vpop.xlane.xlu0 %1926
    %v1928 = vsel %vm652, %v1922, 0.0
    %1929 = vadd.xlane.f32.xlu0 %v1928
    %v1930 = vpop.xlane.xlu0 %1929
    %v1931 = vsel %vm652, %v1924, 0.0
    %1932 = vadd.xlane.f32.xlu0 %v1931
    %v1933 = vpop.xlane.xlu0 %1932
    %v1934 = vrcp.pop %v1927
    %v1935 = vmul.f32 %v1920, %v1934
    %v1936 = vrcp.pop %v1930
    %v1937 = vmul.f32 %v1922, %v1936
    %v1938 = vrcp.pop %v1933
    %v1939 = vmul.f32 %v1924, %v1938
    %s1940 = sld [smem:[#allocation3]]
    %v1941 = vstv %s1940
    %v1942 = vmul.f32 %v1610, %v1941
    %v1943 = vmul.f32 %v1612, %v1941
    %v1944 = vmul.f32 %v1614, %v1941
    %s1945 = sld [smem:[#allocation3 + $0x4]]
    %v1946 = vstv %s1945
    %v1947 = vmul.f32 %v1721, %v1946
    %v1948 = vmul.f32 %v1723, %v1946
    %v1949 = vmul.f32 %v1725, %v1946
    %v1950 = vadd.f32 %v1942, %v1947
    %v1951 = vadd.f32 %v1943, %v1948
    %v1952 = vadd.f32 %v1944, %v1949
    %s1953 = sld [smem:[#allocation3 + $0x8]]
    %v1954 = vstv %s1953
    %v1955 = vmul.f32 %v1824, %v1954
    %v1956 = vmul.f32 %v1826, %v1954
    %v1957 = vmul.f32 %v1828, %v1954
    %v1958 = vadd.f32 %v1950, %v1955
    %v1959 = vadd.f32 %v1951, %v1956
    %v1960 = vadd.f32 %v1952, %v1957
    %s1961 = sld [smem:[#allocation3 + $0xc]]
    %v1962 = vstv %s1961
    %v1963 = vmul.f32 %v1935, %v1962
    %v1964 = vmul.f32 %v1937, %v1962
    %v1965 = vmul.f32 %v1939, %v1962
    %v1966 = vadd.f32 %v1958, %v1963
    %v1967 = vadd.f32 %v1959, %v1964
    %v1968 = vadd.f32 %v1960, %v1965
    %s1969 = sld [smem:[#allocation3 + $0x1]]
    %v1970 = vstv %s1969
    %v1971 = vmul.f32 %v1610, %v1970
    %v1972 = vmul.f32 %v1612, %v1970
    %v1973 = vmul.f32 %v1614, %v1970
    %s1974 = sld [smem:[#allocation3 + $0x5]]
    %v1975 = vstv %s1974
    %v1976 = vmul.f32 %v1721, %v1975
    %v1977 = vmul.f32 %v1723, %v1975
    %v1978 = vmul.f32 %v1725, %v1975
    %v1979 = vadd.f32 %v1971, %v1976
    %v1980 = vadd.f32 %v1972, %v1977
    %v1981 = vadd.f32 %v1973, %v1978
    %s1982 = sld [smem:[#allocation3 + $0x9]]
    %v1983 = vstv %s1982
    %v1984 = vmul.f32 %v1824, %v1983
    %v1985 = vmul.f32 %v1826, %v1983
    %v1986 = vmul.f32 %v1828, %v1983
    %v1987 = vadd.f32 %v1979, %v1984
    %v1988 = vadd.f32 %v1980, %v1985
    %v1989 = vadd.f32 %v1981, %v1986
    %s1990 = sld [smem:[#allocation3 + $0xd]]
    %v1991 = vstv %s1990
    %v1992 = vmul.f32 %v1935, %v1991
    %v1993 = vmul.f32 %v1937, %v1991
    %v1994 = vmul.f32 %v1939, %v1991
    %v1995 = vadd.f32 %v1987, %v1992
    %v1996 = vadd.f32 %v1988, %v1993
    %v1997 = vadd.f32 %v1989, %v1994
    %s1998 = sld [smem:[#allocation3 + $0x2]]
    %v1999 = vstv %s1998
    %v2000 = vmul.f32 %v1610, %v1999
    %v2001 = vmul.f32 %v1612, %v1999
    %v2002 = vmul.f32 %v1614, %v1999
    %s2003 = sld [smem:[#allocation3 + $0x6]]
    %v2004 = vstv %s2003
    %v2005 = vmul.f32 %v1721, %v2004
    %v2006 = vmul.f32 %v1723, %v2004
    %v2007 = vmul.f32 %v1725, %v2004
    %v2008 = vadd.f32 %v2000, %v2005
    %v2009 = vadd.f32 %v2001, %v2006
    %v2010 = vadd.f32 %v2002, %v2007
    %s2011 = sld [smem:[#allocation3 + $0xa]]
    %v2012 = vstv %s2011
    %v2013 = vmul.f32 %v1824, %v2012
    %v2014 = vmul.f32 %v1826, %v2012
    %v2015 = vmul.f32 %v1828, %v2012
    %v2016 = vadd.f32 %v2008, %v2013
    %v2017 = vadd.f32 %v2009, %v2014
    %v2018 = vadd.f32 %v2010, %v2015
    %s2019 = sld [smem:[#allocation3 + $0xe]]
    %v2020 = vstv %s2019
    %v2021 = vmul.f32 %v1935, %v2020
    %v2022 = vmul.f32 %v1937, %v2020
    %v2023 = vmul.f32 %v1939, %v2020
    %v2024 = vadd.f32 %v2016, %v2021
    %v2025 = vadd.f32 %v2017, %v2022
    %v2026 = vadd.f32 %v2018, %v2023
    %s2027 = sld [smem:[#allocation3 + $0x3]]
    %v2028 = vstv %s2027
    %v2029 = vmul.f32 %v1610, %v2028
    %v2030 = vmul.f32 %v1612, %v2028
    %v2031 = vmul.f32 %v1614, %v2028
    %s2032 = sld [smem:[#allocation3 + $0x7]]
    %v2033 = vstv %s2032
    %v2034 = vmul.f32 %v1721, %v2033
    %v2035 = vmul.f32 %v1723, %v2033
    %v2036 = vmul.f32 %v1725, %v2033
    %v2037 = vadd.f32 %v2029, %v2034
    %v2038 = vadd.f32 %v2030, %v2035
    %v2039 = vadd.f32 %v2031, %v2036
    %s2040 = sld [smem:[#allocation3 + $0xb]]
    %v2041 = vstv %s2040
    %v2042 = vmul.f32 %v1824, %v2041
    %v2043 = vmul.f32 %v1826, %v2041
    %v2044 = vmul.f32 %v1828, %v2041
    %v2045 = vadd.f32 %v2037, %v2042
    %v2046 = vadd.f32 %v2038, %v2043
    %v2047 = vadd.f32 %v2039, %v2044
    %s2048 = sld [smem:[#allocation3 + $0xf]]
    %v2049 = vstv %s2048
    %v2050 = vmul.f32 %v1935, %v2049
    %v2051 = vmul.f32 %v1937, %v2049
    %v2052 = vmul.f32 %v1939, %v2049
    %v2053 = vadd.f32 %v2045, %v2050
    %v2054 = vadd.f32 %v2046, %v2051
    %v2055 = vadd.f32 %v2047, %v2052
    %v2056 = vadd.f32 %v1966, %v1995
    %v2057 = vadd.f32 %v1967, %v1996
    %v2058 = vadd.f32 %v1968, %v1997
    %v2059 = vadd.f32 %v2056, %v2024
    %v2060 = vadd.f32 %v2057, %v2025
    %v2061 = vadd.f32 %v2058, %v2026
    %v2062 = vadd.f32 %v2059, %v2053
    %v2063 = vadd.f32 %v2060, %v2054
    %v2064 = vadd.f32 %v2061, %v2055
    %v2065 = vmul.f32 %v2062, 0.25
    %v2066 = vmul.f32 %v2063, 0.25
    %v2067 = vmul.f32 %v2064, 0.25
    %v2068 = vsub.f32 %v1966, %v2065
    %v2069 = vsub.f32 %v1967, %v2066
    %v2070 = vsub.f32 %v1968, %v2067
    %v2071 = vmul.f32 %v2068, %v2068
    %v2072 = vmul.f32 %v2069, %v2069
    %v2073 = vmul.f32 %v2070, %v2070
    %v2074 = vsub.f32 %v1995, %v2065
    %v2075 = vsub.f32 %v1996, %v2066
    %v2076 = vsub.f32 %v1997, %v2067
    %v2077 = vmul.f32 %v2074, %v2074
    %v2078 = vmul.f32 %v2075, %v2075
    %v2079 = vmul.f32 %v2076, %v2076
    %v2080 = vadd.f32 %v2071, %v2077
    %v2081 = vadd.f32 %v2072, %v2078
    %v2082 = vadd.f32 %v2073, %v2079
    %v2083 = vsub.f32 %v2024, %v2065
    %v2084 = vsub.f32 %v2025, %v2066
    %v2085 = vsub.f32 %v2026, %v2067
    %v2086 = vmul.f32 %v2083, %v2083
    %v2087 = vmul.f32 %v2084, %v2084
    %v2088 = vmul.f32 %v2085, %v2085
    %v2089 = vadd.f32 %v2080, %v2086
    %v2090 = vadd.f32 %v2081, %v2087
    %v2091 = vadd.f32 %v2082, %v2088
    %v2092 = vsub.f32 %v2053, %v2065
    %v2093 = vsub.f32 %v2054, %v2066
    %v2094 = vsub.f32 %v2055, %v2067
    %v2095 = vmul.f32 %v2092, %v2092
    %v2096 = vmul.f32 %v2093, %v2093
    %v2097 = vmul.f32 %v2094, %v2094
    %v2098 = vadd.f32 %v2089, %v2095
    %v2099 = vadd.f32 %v2090, %v2096
    %v2100 = vadd.f32 %v2091, %v2097
    %v2101 = vmul.f32 %v2098, 0.25
    %v2102 = vmul.f32 %v2099, 0.25
    %v2103 = vmul.f32 %v2100, 0.25
    %v2104 = vadd.f32 %v2101, 1e-05
    %v2105 = vadd.f32 %v2102, 1e-05
    %v2106 = vadd.f32 %v2103, 1e-05
    %v2107 = vrsqrt.pop %v2104
    %v2108 = vrsqrt.pop %v2105
    %v2109 = vrsqrt.pop %v2106
    %v2110 = vmul.f32 %v2068, %v2107
    %v2111 = vmul.f32 %v2069, %v2108
    %v2112 = vmul.f32 %v2070, %v2109
    %s2113 = sld [smem:[#allocation3 + $0x20]]
    %v2114 = vstv %s2113
    %v2115 = vmul.f32 %v2110, %v2114
    %v2116 = vmul.f32 %v2111, %v2114
    %v2117 = vmul.f32 %v2112, %v2114
    %s2118 = sld [smem:[#allocation3 + $0x28]]
    %v2119 = vstv %s2118
    %v2120 = vadd.f32 %v2115, %v2119
    %v2121 = vadd.f32 %v2116, %v2119
    %v2122 = vadd.f32 %v2117, %v2119
    %v2123 = vmul.f32 %v2120, %v204
    %v2124 = vmul.f32 %v2121, %v204
    %v2125 = vmul.f32 %v2122, %v204
    %v2126 = vpack.c.bf16 %v2124, %v2123
    %v2127 = vpack.c.bf16 %v2125, %v2125
    %v2128 = vpack.c.bf16 %v572, %v566
    %v2129 = vpack.c.bf16 %v576, %v576
    %v2131 = vsel %vm652, %v2126, 0
    %v2134 = vsel %vm652, %v2127, 0
    %v2137 = vsel %vm1207, %v2129, 0
    %2139 = vmatprep.subr.bf16.mxu0 0
    %2140 = vmatpush1.bf16.msra.mxu0 0
    %2141 = vmatprep.subr.bf16.mxu0 0
    %2142 = vmatpush1.bf16.msra.mxu0 0
    %2143 = vmatprep.subr.bf16.mxu0 0
    %2144 = vmatpush1.bf16.msra.mxu0 0
    %2145 = vmatprep.subr.bf16.mxu0 0
    %2146 = vmatpush1.bf16.msra.mxu0 0
    %2147 = vmatprep.subr.bf16.mxu0 0
    %2148 = vmatpush1.bf16.msra.mxu0 0
    %2149 = vmatprep.subr.bf16.mxu0 0
    %2150 = vmatpush1.bf16.msra.mxu0 0
    %2151 = vmatprep.subr.bf16.mxu0 0
    %2152 = vmatpush1.bf16.msra.mxu0 %v2137
    %2153 = vmatprep.subr.bf16.mxu0 0
    %2154 = vmatpush1.bf16.msra.mxu0 %v2128
    %2155 = vmatprep.subr.bf16.mxu0 0
    %2156 = vmatpush2.bf16.msra.mxu0 0
    %2157 = vmatprep.subr.bf16.mxu0 0
    %2158 = vmatpush2.bf16.msra.mxu0 0
    %2159 = vmatprep.subr.bf16.mxu0 0
    %2160 = vmatpush2.bf16.msra.mxu0 0
    %2161 = vmatprep.subr.bf16.mxu0 0
    %2162 = vmatpush2.bf16.msra.mxu0 0
    %2163 = vmatprep.subr.bf16.mxu0 0
    %2164 = vmatpush2.bf16.msra.mxu0 0
    %2165 = vmatprep.subr.bf16.mxu0 0
    %2166 = vmatpush2.bf16.msra.mxu0 0
    %2167 = vmatprep.subr.bf16.mxu0 0
    %2168 = vmatpush2.bf16.msra.mxu0 0
    %2169 = vmatprep.subr.bf16.mxu0 0
    %2170 = vmatpush2.bf16.msra.mxu0 0
    %2171 = vmatprep.mubr.bf16.mxu0 0
    %2172 = vmatmul.mubr.bf16.gmra.mxu0 %v2131
    %v2173 = vpop.f32.mrf.mxu0
    %v2174 = vadd.f32 0.0, %v2173
    %v2175 = vpop.f32.mrf.mxu0
    %v2176 = vpop.f32.mrf.mxu0
    %v2177 = vadd.f32 0.0, %v2176
    %v2178 = vpop.f32.mrf.mxu0
    %2179 = vmatprep.mubr.bf16.mxu0 0
    %2180 = vmatmul.mubr.bf16.gmra.mxu0 %v2134
    %v2181 = vpop.f32.mrf.mxu0
    %v2182 = vadd.f32 0.0, %v2181
    %v2183 = vpop.f32.mrf.mxu0
    %v2184 = vpop.f32.mrf.mxu0
    %v2185 = vpop.f32.mrf.mxu0
    %2186 = vdwg.mxu0
    %2187 = vst.msk [vmem:[#allocation2 + $0x60] sm:$0xff] %vm584, %v2174
    %2188 = vst.msk [vmem:[#allocation2 + $0x80] sm:$0xff] %vm584, %v2177
    %2189 = vst.msk [vmem:[#allocation2 + $0xa0] sm:$0xff] %vm584, %v2182
    %v2190 = vmul.f32 %v2074, %v2107
    %v2191 = vmul.f32 %v2075, %v2108
    %v2192 = vmul.f32 %v2076, %v2109
    %s2193 = sld [smem:[#allocation3 + $0x21]]
    %v2194 = vstv %s2193
    %v2195 = vmul.f32 %v2190, %v2194
    %v2196 = vmul.f32 %v2191, %v2194
    %v2197 = vmul.f32 %v2192, %v2194
    %s2198 = sld [smem:[#allocation3 + $0x29]]
    %v2199 = vstv %s2198
    %v2200 = vadd.f32 %v2195, %v2199
    %v2201 = vadd.f32 %v2196, %v2199
    %v2202 = vadd.f32 %v2197, %v2199
    %v2203 = vmul.f32 %v2200, %v204
    %v2204 = vmul.f32 %v2201, %v204
    %v2205 = vmul.f32 %v2202, %v204
    %v2206 = vpack.c.bf16 %v2204, %v2203
    %v2207 = vpack.c.bf16 %v2205, %v2205
    %2210 = vrot.lane.b32.xlu0 %v2128, 64
    %v2211 = vpop.permute.xlu0 %2210
    %2212 = vrot.lane.b32.xlu0 %v2129, 64
    %v2213 = vpop.permute.xlu0 %2212
    %v2216 = vsel %vm652, %v2206, 0
    %v2219 = vsel %vm652, %v2207, 0
    %v2222 = vsel %vm1207, %v2213, 0
    %2224 = vmatprep.subr.bf16.mxu0 0
    %2225 = vmatpush1.bf16.msra.mxu0 0
    %2226 = vmatprep.subr.bf16.mxu0 0
    %2227 = vmatpush1.bf16.msra.mxu0 0
    %2228 = vmatprep.subr.bf16.mxu0 0
    %2229 = vmatpush1.bf16.msra.mxu0 0
    %2230 = vmatprep.subr.bf16.mxu0 0
    %2231 = vmatpush1.bf16.msra.mxu0 0
    %2232 = vmatprep.subr.bf16.mxu0 0
    %2233 = vmatpush1.bf16.msra.mxu0 0
    %2234 = vmatprep.subr.bf16.mxu0 0
    %2235 = vmatpush1.bf16.msra.mxu0 0
    %2236 = vmatprep.subr.bf16.mxu0 0
    %2237 = vmatpush1.bf16.msra.mxu0 %v2222
    %2238 = vmatprep.subr.bf16.mxu0 0
    %2239 = vmatpush1.bf16.msra.mxu0 %v2211
    %2240 = vmatprep.subr.bf16.mxu0 0
    %2241 = vmatpush2.bf16.msra.mxu0 0
    %2242 = vmatprep.subr.bf16.mxu0 0
    %2243 = vmatpush2.bf16.msra.mxu0 0
    %2244 = vmatprep.subr.bf16.mxu0 0
    %2245 = vmatpush2.bf16.msra.mxu0 0
    %2246 = vmatprep.subr.bf16.mxu0 0
    %2247 = vmatpush2.bf16.msra.mxu0 0
    %2248 = vmatprep.subr.bf16.mxu0 0
    %2249 = vmatpush2.bf16.msra.mxu0 0
    %2250 = vmatprep.subr.bf16.mxu0 0
    %2251 = vmatpush2.bf16.msra.mxu0 0
    %2252 = vmatprep.subr.bf16.mxu0 0
    %2253 = vmatpush2.bf16.msra.mxu0 0
    %2254 = vmatprep.subr.bf16.mxu0 0
    %2255 = vmatpush2.bf16.msra.mxu0 0
    %2256 = vmatprep.mubr.bf16.mxu0 0
    %2257 = vmatmul.mubr.bf16.gmra.mxu0 %v2216
    %v2258 = vpop.f32.mrf.mxu0
    %v2259 = vadd.f32 0.0, %v2258
    %v2260 = vpop.f32.mrf.mxu0
    %v2261 = vpop.f32.mrf.mxu0
    %v2262 = vadd.f32 0.0, %v2261
    %v2263 = vpop.f32.mrf.mxu0
    %2264 = vmatprep.mubr.bf16.mxu0 0
    %2265 = vmatmul.mubr.bf16.gmra.mxu0 %v2219
    %v2266 = vpop.f32.mrf.mxu0
    %v2267 = vadd.f32 0.0, %v2266
    %v2268 = vpop.f32.mrf.mxu0
    %v2269 = vpop.f32.mrf.mxu0
    %v2270 = vpop.f32.mrf.mxu0
    %2271 = vdwg.mxu0
    %2272 = vst.msk [vmem:[#allocation2 + $0x68] sm:$0xff] %vm584, %v2259
    %2273 = vst.msk [vmem:[#allocation2 + $0x88] sm:$0xff] %vm584, %v2262
    %2274 = vst.msk [vmem:[#allocation2 + $0xa8] sm:$0xff] %vm584, %v2267
    %v2275 = vmul.f32 %v2083, %v2107
    %v2276 = vmul.f32 %v2084, %v2108
    %v2277 = vmul.f32 %v2085, %v2109
    %s2278 = sld [smem:[#allocation3 + $0x22]]
    %v2279 = vstv %s2278
    %v2280 = vmul.f32 %v2275, %v2279
    %v2281 = vmul.f32 %v2276, %v2279
    %v2282 = vmul.f32 %v2277, %v2279
    %s2283 = sld [smem:[#allocation3 + $0x2a]]
    %v2284 = vstv %s2283
    %v2285 = vadd.f32 %v2280, %v2284
    %v2286 = vadd.f32 %v2281, %v2284
    %v2287 = vadd.f32 %v2282, %v2284
    %v2288 = vmul.f32 %v2285, %v204
    %v2289 = vmul.f32 %v2286, %v204
    %v2290 = vmul.f32 %v2287, %v204
    %v2291 = vpack.c.bf16 %v2289, %v2288
    %v2292 = vpack.c.bf16 %v2290, %v2290
    %v2293 = vpack.c.bf16 %v574, %v568
    %v2294 = vpack.c.bf16 %v578, %v578
    %v2296 = vsel %vm652, %v2291, 0
    %v2299 = vsel %vm652, %v2292, 0
    %v2302 = vsel %vm1207, %v2294, 0
    %2304 = vmatprep.subr.bf16.mxu0 0
    %2305 = vmatpush1.bf16.msra.mxu0 0
    %2306 = vmatprep.subr.bf16.mxu0 0
    %2307 = vmatpush1.bf16.msra.mxu0 0
    %2308 = vmatprep.subr.bf16.mxu0 0
    %2309 = vmatpush1.bf16.msra.mxu0 0
    %2310 = vmatprep.subr.bf16.mxu0 0
    %2311 = vmatpush1.bf16.msra.mxu0 0
    %2312 = vmatprep.subr.bf16.mxu0 0
    %2313 = vmatpush1.bf16.msra.mxu0 0
    %2314 = vmatprep.subr.bf16.mxu0 0
    %2315 = vmatpush1.bf16.msra.mxu0 0
    %2316 = vmatprep.subr.bf16.mxu0 0
    %2317 = vmatpush1.bf16.msra.mxu0 %v2302
    %2318 = vmatprep.subr.bf16.mxu0 0
    %2319 = vmatpush1.bf16.msra.mxu0 %v2293
    %2320 = vmatprep.subr.bf16.mxu0 0
    %2321 = vmatpush2.bf16.msra.mxu0 0
    %2322 = vmatprep.subr.bf16.mxu0 0
    %2323 = vmatpush2.bf16.msra.mxu0 0
    %2324 = vmatprep.subr.bf16.mxu0 0
    %2325 = vmatpush2.bf16.msra.mxu0 0
    %2326 = vmatprep.subr.bf16.mxu0 0
    %2327 = vmatpush2.bf16.msra.mxu0 0
    %2328 = vmatprep.subr.bf16.mxu0 0
    %2329 = vmatpush2.bf16.msra.mxu0 0
    %2330 = vmatprep.subr.bf16.mxu0 0
    %2331 = vmatpush2.bf16.msra.mxu0 0
    %2332 = vmatprep.subr.bf16.mxu0 0
    %2333 = vmatpush2.bf16.msra.mxu0 0
    %2334 = vmatprep.subr.bf16.mxu0 0
    %2335 = vmatpush2.bf16.msra.mxu0 0
    %2336 = vmatprep.mubr.bf16.mxu0 0
    %2337 = vmatmul.mubr.bf16.gmra.mxu0 %v2296
    %v2338 = vpop.f32.mrf.mxu0
    %v2339 = vadd.f32 0.0, %v2338
    %v2340 = vpop.f32.mrf.mxu0
    %v2341 = vpop.f32.mrf.mxu0
    %v2342 = vadd.f32 0.0, %v2341
    %v2343 = vpop.f32.mrf.mxu0
    %2344 = vmatprep.mubr.bf16.mxu0 0
    %2345 = vmatmul.mubr.bf16.gmra.mxu0 %v2299
    %v2346 = vpop.f32.mrf.mxu0
    %v2347 = vadd.f32 0.0, %v2346
    %v2348 = vpop.f32.mrf.mxu0
    %v2349 = vpop.f32.mrf.mxu0
    %v2350 = vpop.f32.mrf.mxu0
    %2351 = vdwg.mxu0
    %2352 = vst.msk [vmem:[#allocation2 + $0x70] sm:$0xff] %vm584, %v2339
    %2353 = vst.msk [vmem:[#allocation2 + $0x90] sm:$0xff] %vm584, %v2342
    %2354 = vst.msk [vmem:[#allocation2 + $0xb0] sm:$0xff] %vm584, %v2347
    %v2355 = vmul.f32 %v2092, %v2107
    %v2356 = vmul.f32 %v2093, %v2108
    %v2357 = vmul.f32 %v2094, %v2109
    %s2358 = sld [smem:[#allocation3 + $0x23]]
    %v2359 = vstv %s2358
    %v2360 = vmul.f32 %v2355, %v2359
    %v2361 = vmul.f32 %v2356, %v2359
    %v2362 = vmul.f32 %v2357, %v2359
    %s2363 = sld [smem:[#allocation3 + $0x2b]]
    %v2364 = vstv %s2363
    %v2365 = vadd.f32 %v2360, %v2364
    %v2366 = vadd.f32 %v2361, %v2364
    %v2367 = vadd.f32 %v2362, %v2364
    %v2368 = vmul.f32 %v2365, %v204
    %v2369 = vmul.f32 %v2366, %v204
    %v2370 = vmul.f32 %v2367, %v204
    %v2371 = vpack.c.bf16 %v2369, %v2368
    %v2372 = vpack.c.bf16 %v2370, %v2370
    %2375 = vrot.lane.b32.xlu0 %v2293, 64
    %v2376 = vpop.permute.xlu0 %2375
    %2377 = vrot.lane.b32.xlu0 %v2294, 64
    %v2378 = vpop.permute.xlu0 %2377
    %v2381 = vsel %vm652, %v2371, 0
    %v2384 = vsel %vm652, %v2372, 0
    %v2387 = vsel %vm1207, %v2378, 0
    %2389 = vmatprep.subr.bf16.mxu0 0
    %2390 = vmatpush1.bf16.msra.mxu0 0
    %2391 = vmatprep.subr.bf16.mxu0 0
    %2392 = vmatpush1.bf16.msra.mxu0 0
    %2393 = vmatprep.subr.bf16.mxu0 0
    %2394 = vmatpush1.bf16.msra.mxu0 0
    %2395 = vmatprep.subr.bf16.mxu0 0
    %2396 = vmatpush1.bf16.msra.mxu0 0
    %2397 = vmatprep.subr.bf16.mxu0 0
    %2398 = vmatpush1.bf16.msra.mxu0 0
    %2399 = vmatprep.subr.bf16.mxu0 0
    %2400 = vmatpush1.bf16.msra.mxu0 0
    %2401 = vmatprep.subr.bf16.mxu0 0
    %2402 = vmatpush1.bf16.msra.mxu0 %v2387
    %2403 = vmatprep.subr.bf16.mxu0 0
    %2404 = vmatpush1.bf16.msra.mxu0 %v2376
    %2405 = vmatprep.subr.bf16.mxu0 0
    %2406 = vmatpush2.bf16.msra.mxu0 0
    %2407 = vmatprep.subr.bf16.mxu0 0
    %2408 = vmatpush2.bf16.msra.mxu0 0
    %2409 = vmatprep.subr.bf16.mxu0 0
    %2410 = vmatpush2.bf16.msra.mxu0 0
    %2411 = vmatprep.subr.bf16.mxu0 0
    %2412 = vmatpush2.bf16.msra.mxu0 0
    %2413 = vmatprep.subr.bf16.mxu0 0
    %2414 = vmatpush2.bf16.msra.mxu0 0
    %2415 = vmatprep.subr.bf16.mxu0 0
    %2416 = vmatpush2.bf16.msra.mxu0 0
    %2417 = vmatprep.subr.bf16.mxu0 0
    %2418 = vmatpush2.bf16.msra.mxu0 0
    %2419 = vmatprep.subr.bf16.mxu0 0
    %2420 = vmatpush2.bf16.msra.mxu0 0
    %2421 = vmatprep.mubr.bf16.mxu0 0
    %2422 = vmatmul.mubr.bf16.gmra.mxu0 %v2381
    %v2423 = vpop.f32.mrf.mxu0
    %v2424 = vadd.f32 0.0, %v2423
    %v2425 = vpop.f32.mrf.mxu0
    %v2426 = vpop.f32.mrf.mxu0
    %v2427 = vadd.f32 0.0, %v2426
    %v2428 = vpop.f32.mrf.mxu0
    %2429 = vmatprep.mubr.bf16.mxu0 0
    %2430 = vmatmul.mubr.bf16.gmra.mxu0 %v2384
    %v2431 = vpop.f32.mrf.mxu0
    %v2432 = vadd.f32 0.0, %v2431
    %v2433 = vpop.f32.mrf.mxu0
    %v2434 = vpop.f32.mrf.mxu0
    %v2435 = vpop.f32.mrf.mxu0
    %2436 = vdwg.mxu0
    %2437 = vst.msk [vmem:[#allocation2 + $0x78] sm:$0xff] %vm584, %v2424
    %2438 = vst.msk [vmem:[#allocation2 + $0x98] sm:$0xff] %vm584, %v2427
    %2439 = vst.msk [vmem:[#allocation2 + $0xb8] sm:$0xff] %vm584, %v2432
    %v2440 = vld [vmem:[#allocation2] sm:$0xff]
    %v2441 = vld [vmem:[#allocation2 + $0x8] sm:$0xff]
    %v2442 = vld [vmem:[#allocation2 + $0x10] sm:$0xff]
    %v2443 = vld [vmem:[#allocation2 + $0x18] sm:$0xff]
    %v2444 = vld [vmem:[#allocation2 + $0x20] sm:$0xff]
    %v2445 = vld [vmem:[#allocation2 + $0x28] sm:$0xff]
    %v2446 = vld [vmem:[#allocation2 + $0x30] sm:$0xff]
    %v2447 = vld [vmem:[#allocation2 + $0x38] sm:$0xff]
    %v2448 = vld [vmem:[#allocation2 + $0x40] sm:$0xff]
    %v2449 = vld [vmem:[#allocation2 + $0x48] sm:$0xff]
    %v2450 = vld [vmem:[#allocation2 + $0x50] sm:$0xff]
    %v2451 = vld [vmem:[#allocation2 + $0x58] sm:$0xff]
    %v2452 = vld [vmem:[#allocation2 + $0x60] sm:$0xff]
    %v2453 = vld [vmem:[#allocation2 + $0x68] sm:$0xff]
    %v2454 = vld [vmem:[#allocation2 + $0x70] sm:$0xff]
    %v2455 = vld [vmem:[#allocation2 + $0x78] sm:$0xff]
    %v2456 = vld [vmem:[#allocation2 + $0x80] sm:$0xff]
    %v2457 = vld [vmem:[#allocation2 + $0x88] sm:$0xff]
    %v2458 = vld [vmem:[#allocation2 + $0x90] sm:$0xff]
    %v2459 = vld [vmem:[#allocation2 + $0x98] sm:$0xff]
    %v2460 = vld [vmem:[#allocation2 + $0xa0] sm:$0xff]
    %v2461 = vld [vmem:[#allocation2 + $0xa8] sm:$0xff]
    %v2462 = vld [vmem:[#allocation2 + $0xb0] sm:$0xff]
    %v2463 = vld [vmem:[#allocation2 + $0xb8] sm:$0xff]
    %v2464 = vpack.c.bf16 %v2444, %v2440
    %v2465 = vpack.c.bf16 %v2445, %v2441
    %v2466 = vpack.c.bf16 %v2446, %v2442
    %v2467 = vpack.c.bf16 %v2447, %v2443
    %v2468 = vpack.c.bf16 %v2452, %v2448
    %v2469 = vpack.c.bf16 %v2453, %v2449
    %v2470 = vpack.c.bf16 %v2454, %v2450
    %v2471 = vpack.c.bf16 %v2455, %v2451
    %v2472 = vpack.c.bf16 %v2460, %v2456
    %v2473 = vpack.c.bf16 %v2461, %v2457
    %v2474 = vpack.c.bf16 %v2462, %v2458
    %v2475 = vpack.c.bf16 %v2463, %v2459
    %v2476 = vld [vmem:[%s3] sm:$0xf]
    %v2477 = vld [vmem:[%s3 + $0x4] sm:$0xf]
    %v2478 = vld [vmem:[%s3 + $0x8] sm:$0xf]
    %v2479 = vld [vmem:[%s3 + $0xc] sm:$0xf]
    %v2480 = vld [vmem:[%s3 + $0x10] sm:$0xf]
    %v2481 = vld [vmem:[%s3 + $0x14] sm:$0xf]
    %v2482 = vld [vmem:[%s3 + $0x18] sm:$0xf]
    %v2483 = vld [vmem:[%s3 + $0x1c] sm:$0xf]
    %v2484 = vld [vmem:[%s3 + $0x20] sm:$0xf]
    %v2485 = vld [vmem:[%s3 + $0x24] sm:$0xf]
    %v2486 = vld [vmem:[%s3 + $0x28] sm:$0xf]
    %v2487 = vld [vmem:[%s3 + $0x2c] sm:$0xf]
    %v2488 = vld [vmem:[%s3 + $0x30] sm:$0xf]
    %v2489 = vld [vmem:[%s3 + $0x34] sm:$0xf]
    %v2490 = vld [vmem:[%s3 + $0x38] sm:$0xf]
    %v2491 = vld [vmem:[%s3 + $0x3c] sm:$0xf]
    %v2492 = vld [vmem:[%s3 + $0x40] sm:$0xf]
    %v2493 = vld [vmem:[%s3 + $0x44] sm:$0xf]
    %v2494 = vld [vmem:[%s3 + $0x48] sm:$0xf]
    %v2495 = vld [vmem:[%s3 + $0x4c] sm:$0xf]
    %v2496 = vld [vmem:[%s3 + $0x50] sm:$0xf]
    %v2497 = vld [vmem:[%s3 + $0x54] sm:$0xf]
    %v2498 = vld [vmem:[%s3 + $0x58] sm:$0xf]
    %v2499 = vld [vmem:[%s3 + $0x5c] sm:$0xf]
    %v2500 = vld [vmem:[%s3 + $0x60] sm:$0xf]
    %v2501 = vld [vmem:[%s3 + $0x64] sm:$0xf]
    %v2502 = vld [vmem:[%s3 + $0x68] sm:$0xf]
    %v2503 = vld [vmem:[%s3 + $0x6c] sm:$0xf]
    %v2504 = vld [vmem:[%s3 + $0x70] sm:$0xf]
    %v2505 = vld [vmem:[%s3 + $0x74] sm:$0xf]
    %v2506 = vld [vmem:[%s3 + $0x78] sm:$0xf]
    %v2507 = vld [vmem:[%s3 + $0x7c] sm:$0xf]
    %v2508 = vld [vmem:[%s3 + $0x80] sm:$0xf]
    %v2509 = vld [vmem:[%s3 + $0x84] sm:$0xf]
    %v2510 = vld [vmem:[%s3 + $0x88] sm:$0xf]
    %v2511 = vld [vmem:[%s3 + $0x8c] sm:$0xf]
    %v2512 = vld [vmem:[%s3 + $0x90] sm:$0xf]
    %v2513 = vld [vmem:[%s3 + $0x94] sm:$0xf]
    %v2514 = vld [vmem:[%s3 + $0x98] sm:$0xf]
    %v2515 = vld [vmem:[%s3 + $0x9c] sm:$0xf]
    %v2516 = vld [vmem:[%s3 + $0xa0] sm:$0xf]
    %v2517 = vld [vmem:[%s3 + $0xa4] sm:$0xf]
    %v2518 = vld [vmem:[%s3 + $0xa8] sm:$0xf]
    %v2519 = vld [vmem:[%s3 + $0xac] sm:$0xf]
    %v2520 = vld [vmem:[%s3 + $0xb0] sm:$0xf]
    %v2521 = vld [vmem:[%s3 + $0xb4] sm:$0xf]
    %v2522 = vld [vmem:[%s3 + $0xb8] sm:$0xf]
    %v2523 = vld [vmem:[%s3 + $0xbc] sm:$0xf]
    %v2524 = vld [vmem:[%s3 + $0xc0] sm:$0xf]
    %v2525 = vld [vmem:[%s3 + $0xc4] sm:$0xf]
    %v2526 = vld [vmem:[%s3 + $0xc8] sm:$0xf]
    %v2527 = vld [vmem:[%s3 + $0xcc] sm:$0xf]
    %v2528 = vld [vmem:[%s3 + $0xd0] sm:$0xf]
    %v2529 = vld [vmem:[%s3 + $0xd4] sm:$0xf]
    %v2530 = vld [vmem:[%s3 + $0xd8] sm:$0xf]
    %v2531 = vld [vmem:[%s3 + $0xdc] sm:$0xf]
    %v2532 = vld [vmem:[%s3 + $0xe0] sm:$0xf]
    %v2533 = vld [vmem:[%s3 + $0xe4] sm:$0xf]
    %v2534 = vld [vmem:[%s3 + $0xe8] sm:$0xf]
    %v2535 = vld [vmem:[%s3 + $0xec] sm:$0xf]
    %v2536 = vld [vmem:[%s3 + $0xf0] sm:$0xf]
    %v2537 = vld [vmem:[%s3 + $0xf4] sm:$0xf]
    %v2538 = vld [vmem:[%s3 + $0xf8] sm:$0xf]
    %v2539 = vld [vmem:[%s3 + $0xfc] sm:$0xf]
    %v2540 = vld [vmem:[%s7 + $0x20] sm:$0x1]
    %v2541 = vlaneseq
    %v2542 = vshrl.u32 %v2541, 7
    %v2543 = vsub.s32 0, %v2542
    %v2544 = vrot.slane %v2540, %v2543
    %v2609 = vunpack.c.l.b16 %v2476
    %v2610 = vunpack.c.l.b16 %v2477
    %v2611 = vunpack.c.l.b16 %v2478
    %v2612 = vunpack.c.l.b16 %v2479
    %v2613 = vunpack.c.l.b16 %v2480
    %v2614 = vunpack.c.l.b16 %v2481
    %v2615 = vunpack.c.l.b16 %v2482
    %v2616 = vunpack.c.l.b16 %v2483
    %v2617 = vunpack.c.l.b16 %v2484
    %v2618 = vunpack.c.l.b16 %v2485
    %v2619 = vunpack.c.l.b16 %v2486
    %v2620 = vunpack.c.l.b16 %v2487
    %v2621 = vunpack.c.l.b16 %v2488
    %v2622 = vunpack.c.l.b16 %v2489
    %v2623 = vunpack.c.l.b16 %v2490
    %v2624 = vunpack.c.l.b16 %v2491
    %v2625 = vunpack.c.l.b16 %v2492
    %v2626 = vunpack.c.l.b16 %v2493
    %v2627 = vunpack.c.l.b16 %v2494
    %v2628 = vunpack.c.l.b16 %v2495
    %v2629 = vunpack.c.l.b16 %v2496
    %v2630 = vunpack.c.l.b16 %v2497
    %v2631 = vunpack.c.l.b16 %v2498
    %v2632 = vunpack.c.l.b16 %v2499
    %v2633 = vunpack.c.l.b16 %v2500
    %v2634 = vunpack.c.l.b16 %v2501
    %v2635 = vunpack.c.l.b16 %v2502
    %v2636 = vunpack.c.l.b16 %v2503
    %v2637 = vunpack.c.l.b16 %v2504
    %v2638 = vunpack.c.l.b16 %v2505
    %v2639 = vunpack.c.l.b16 %v2506
    %v2640 = vunpack.c.l.b16 %v2507
    %v2641 = vunpack.c.l.b16 %v2508
    %v2642 = vunpack.c.l.b16 %v2509
    %v2643 = vunpack.c.l.b16 %v2510
    %v2644 = vunpack.c.l.b16 %v2511
    %v2645 = vunpack.c.l.b16 %v2512
    %v2646 = vunpack.c.l.b16 %v2513
    %v2647 = vunpack.c.l.b16 %v2514
    %v2648 = vunpack.c.l.b16 %v2515
    %v2649 = vunpack.c.l.b16 %v2516
    %v2650 = vunpack.c.l.b16 %v2517
    %v2651 = vunpack.c.l.b16 %v2518
    %v2652 = vunpack.c.l.b16 %v2519
    %v2653 = vunpack.c.l.b16 %v2520
    %v2654 = vunpack.c.l.b16 %v2521
    %v2655 = vunpack.c.l.b16 %v2522
    %v2656 = vunpack.c.l.b16 %v2523
    %v2657 = vunpack.c.l.b16 %v2524
    %v2658 = vunpack.c.l.b16 %v2525
    %v2659 = vunpack.c.l.b16 %v2526
    %v2660 = vunpack.c.l.b16 %v2527
    %v2661 = vunpack.c.l.b16 %v2528
    %v2662 = vunpack.c.l.b16 %v2529
    %v2663 = vunpack.c.l.b16 %v2530
    %v2664 = vunpack.c.l.b16 %v2531
    %v2665 = vunpack.c.l.b16 %v2532
    %v2666 = vunpack.c.l.b16 %v2533
    %v2667 = vunpack.c.l.b16 %v2534
    %v2668 = vunpack.c.l.b16 %v2535
    %v2669 = vunpack.c.l.b16 %v2536
    %v2670 = vunpack.c.l.b16 %v2537
    %v2671 = vunpack.c.l.b16 %v2538
    %v2672 = vunpack.c.l.b16 %v2539
    %v2673 = vpack.c.b16 %v2610, %v2609
    %v2674 = vpack.c.b16 %v2612, %v2611
    %v2675 = vpack.c.b16 %v2614, %v2613
    %v2676 = vpack.c.b16 %v2616, %v2615
    %v2677 = vpack.c.b16 %v2618, %v2617
    %v2678 = vpack.c.b16 %v2620, %v2619
    %v2679 = vpack.c.b16 %v2622, %v2621
    %v2680 = vpack.c.b16 %v2624, %v2623
    %v2681 = vpack.c.b16 %v2626, %v2625
    %v2682 = vpack.c.b16 %v2628, %v2627
    %v2683 = vpack.c.b16 %v2630, %v2629
    %v2684 = vpack.c.b16 %v2632, %v2631
    %v2685 = vpack.c.b16 %v2634, %v2633
    %v2686 = vpack.c.b16 %v2636, %v2635
    %v2687 = vpack.c.b16 %v2638, %v2637
    %v2688 = vpack.c.b16 %v2640, %v2639
    %v2689 = vpack.c.b16 %v2642, %v2641
    %v2690 = vpack.c.b16 %v2644, %v2643
    %v2691 = vpack.c.b16 %v2646, %v2645
    %v2692 = vpack.c.b16 %v2648, %v2647
    %v2693 = vpack.c.b16 %v2650, %v2649
    %v2694 = vpack.c.b16 %v2652, %v2651
    %v2695 = vpack.c.b16 %v2654, %v2653
    %v2696 = vpack.c.b16 %v2656, %v2655
    %v2697 = vpack.c.b16 %v2658, %v2657
    %v2698 = vpack.c.b16 %v2660, %v2659
    %v2699 = vpack.c.b16 %v2662, %v2661
    %v2700 = vpack.c.b16 %v2664, %v2663
    %v2701 = vpack.c.b16 %v2666, %v2665
    %v2702 = vpack.c.b16 %v2668, %v2667
    %v2703 = vpack.c.b16 %v2670, %v2669
    %v2704 = vpack.c.b16 %v2672, %v2671
    %2737 = vmatprep.subr.bf16.mxu0 0
    %2738 = vmatpush1.bf16.msra.mxu0 %v2680
    %2739 = vmatprep.subr.bf16.mxu0 0
    %2740 = vmatpush1.bf16.msra.mxu0 %v2679
    %2741 = vmatprep.subr.bf16.mxu0 0
    %2742 = vmatpush1.bf16.msra.mxu0 %v2678
    %2743 = vmatprep.subr.bf16.mxu0 0
    %2744 = vmatpush1.bf16.msra.mxu0 %v2677
    %2745 = vmatprep.subr.bf16.mxu0 0
    %2746 = vmatpush1.bf16.msra.mxu0 %v2676
    %2747 = vmatprep.subr.bf16.mxu0 0
    %2748 = vmatpush1.bf16.msra.mxu0 %v2675
    %2749 = vmatprep.subr.bf16.mxu0 0
    %2750 = vmatpush1.bf16.msra.mxu0 %v2674
    %2751 = vmatprep.subr.bf16.mxu0 0
    %2752 = vmatpush1.bf16.msra.mxu0 %v2673
    %2753 = vmatprep.subr.bf16.mxu0 0
    %2754 = vmatpush2.bf16.msra.mxu0 %v2688
    %2755 = vmatprep.subr.bf16.mxu0 0
    %2756 = vmatpush2.bf16.msra.mxu0 %v2687
    %2757 = vmatprep.subr.bf16.mxu0 0
    %2758 = vmatpush2.bf16.msra.mxu0 %v2686
    %2759 = vmatprep.subr.bf16.mxu0 0
    %2760 = vmatpush2.bf16.msra.mxu0 %v2685
    %2761 = vmatprep.subr.bf16.mxu0 0
    %2762 = vmatpush2.bf16.msra.mxu0 %v2684
    %2763 = vmatprep.subr.bf16.mxu0 0
    %2764 = vmatpush2.bf16.msra.mxu0 %v2683
    %2765 = vmatprep.subr.bf16.mxu0 0
    %2766 = vmatpush2.bf16.msra.mxu0 %v2682
    %2767 = vmatprep.subr.bf16.mxu0 0
    %2768 = vmatpush2.bf16.msra.mxu0 %v2681
    %2769 = vmatprep.mubr.bf16.mxu0 %v2465
    %2770 = vmatmul.mubr.bf16.gmra.mxu0 %v2464
    %v2771 = vpop.f32.mrf.mxu0
    %v2772 = vadd.f32 %v2544, %v2771
    %v2773 = vpop.f32.mrf.mxu0
    %v2774 = vpop.f32.mrf.mxu0
    %v2775 = vadd.f32 %v2544, %v2774
    %v2776 = vpop.f32.mrf.mxu0
    %2777 = vmatprep.mubr.bf16.mxu0 %v2469
    %2778 = vmatmul.mubr.bf16.gmra.mxu0 %v2468
    %v2779 = vpop.f32.mrf.mxu0
    %v2780 = vadd.f32 %v2544, %v2779
    %v2781 = vpop.f32.mrf.mxu0
    %v2782 = vpop.f32.mrf.mxu0
    %v2783 = vadd.f32 %v2544, %v2782
    %v2784 = vpop.f32.mrf.mxu0
    %2785 = vmatprep.mubr.bf16.mxu0 %v2473
    %2786 = vmatmul.mubr.bf16.gmra.mxu0 %v2472
    %v2787 = vpop.f32.mrf.mxu0
    %v2788 = vadd.f32 %v2544, %v2787
    %v2789 = vpop.f32.mrf.mxu0
    %v2790 = vpop.f32.mrf.mxu0
    %v2791 = vadd.f32 %v2544, %v2790
    %v2792 = vpop.f32.mrf.mxu0
    %2793 = vdwg.mxu0
    %2794 = vmatprep.subr.bf16.mxu0 0
    %2795 = vmatpush1.bf16.msra.mxu0 %v2696
    %2796 = vmatprep.subr.bf16.mxu0 0
    %2797 = vmatpush1.bf16.msra.mxu0 %v2695
    %2798 = vmatprep.subr.bf16.mxu0 0
    %2799 = vmatpush1.bf16.msra.mxu0 %v2694
    %2800 = vmatprep.subr.bf16.mxu0 0
    %2801 = vmatpush1.bf16.msra.mxu0 %v2693
    %2802 = vmatprep.subr.bf16.mxu0 0
    %2803 = vmatpush1.bf16.msra.mxu0 %v2692
    %2804 = vmatprep.subr.bf16.mxu0 0
    %2805 = vmatpush1.bf16.msra.mxu0 %v2691
    %2806 = vmatprep.subr.bf16.mxu0 0
    %2807 = vmatpush1.bf16.msra.mxu0 %v2690
    %2808 = vmatprep.subr.bf16.mxu0 0
    %2809 = vmatpush1.bf16.msra.mxu0 %v2689
    %2810 = vmatprep.subr.bf16.mxu0 0
    %2811 = vmatpush2.bf16.msra.mxu0 %v2704
    %2812 = vmatprep.subr.bf16.mxu0 0
    %2813 = vmatpush2.bf16.msra.mxu0 %v2703
    %2814 = vmatprep.subr.bf16.mxu0 0
    %2815 = vmatpush2.bf16.msra.mxu0 %v2702
    %2816 = vmatprep.subr.bf16.mxu0 0
    %2817 = vmatpush2.bf16.msra.mxu0 %v2701
    %2818 = vmatprep.subr.bf16.mxu0 0
    %2819 = vmatpush2.bf16.msra.mxu0 %v2700
    %2820 = vmatprep.subr.bf16.mxu0 0
    %2821 = vmatpush2.bf16.msra.mxu0 %v2699
    %2822 = vmatprep.subr.bf16.mxu0 0
    %2823 = vmatpush2.bf16.msra.mxu0 %v2698
    %2824 = vmatprep.subr.bf16.mxu0 0
    %2825 = vmatpush2.bf16.msra.mxu0 %v2697
    %2826 = vmatprep.mubr.bf16.mxu0 %v2467
    %2827 = vmatmul.mubr.bf16.gmra.mxu0 %v2466
    %v2828 = vpop.f32.mrf.mxu0
    %v2829 = vadd.f32 %v2772, %v2828
    %v2830 = vpop.f32.mrf.mxu0
    %v2831 = vpop.f32.mrf.mxu0
    %v2832 = vadd.f32 %v2775, %v2831
    %v2833 = vpop.f32.mrf.mxu0
    %2834 = vmatprep.mubr.bf16.mxu0 %v2471
    %2835 = vmatmul.mubr.bf16.gmra.mxu0 %v2470
    %v2836 = vpop.f32.mrf.mxu0
    %v2837 = vadd.f32 %v2780, %v2836
    %v2838 = vpop.f32.mrf.mxu0
    %v2839 = vpop.f32.mrf.mxu0
    %v2840 = vadd.f32 %v2783, %v2839
    %v2841 = vpop.f32.mrf.mxu0
    %2842 = vmatprep.mubr.bf16.mxu0 %v2475
    %2843 = vmatmul.mubr.bf16.gmra.mxu0 %v2474
    %v2844 = vpop.f32.mrf.mxu0
    %v2845 = vadd.f32 %v2788, %v2844
    %v2846 = vpop.f32.mrf.mxu0
    %v2847 = vpop.f32.mrf.mxu0
    %v2848 = vadd.f32 %v2791, %v2847
    %v2849 = vpop.f32.mrf.mxu0
    %2850 = vdwg.mxu0
    %v2851 = vadd.f32 %v172, %v2829
    %v2852 = vadd.f32 %v177, %v2832
    %v2853 = vadd.f32 %v182, %v2837
    %v2854 = vadd.f32 %v187, %v2840
    %v2855 = vadd.f32 %v192, %v2845
    %v2856 = vadd.f32 %v197, %v2848
    %v2857 = vld [vmem:[%s7 + $0x1c] sm:$0x1]
    %v2858 = vld [vmem:[%s7 + $0x1e] sm:$0x1]
    %v2859 = vsel %vm207, %v2851, 0.0
    %2860 = vadd.xlane.f32.xlu0 %v2859
    %v2861 = vpop.xlane.xlu0 %2860
    %v2862 = vsel %vm207, %v2852, 0.0
    %2863 = vadd.xlane.f32.xlu0 %v2862
    %v2864 = vpop.xlane.xlu0 %2863
    %v2865 = vsel %vm207, %v2853, 0.0
    %2866 = vadd.xlane.f32.xlu0 %v2865
    %v2867 = vpop.xlane.xlu0 %2866
    %v2868 = vsel %vm207, %v2854, 0.0
    %2869 = vadd.xlane.f32.xlu0 %v2868
    %v2870 = vpop.xlane.xlu0 %2869
    %v2871 = vsel %vm207, %v2855, 0.0
    %2872 = vadd.xlane.f32.xlu0 %v2871
    %v2873 = vpop.xlane.xlu0 %2872
    %v2874 = vsel %vm207, %v2856, 0.0
    %2875 = vadd.xlane.f32.xlu0 %v2874
    %v2876 = vpop.xlane.xlu0 %2875
    %v2877 = vmul.f32 %v2861, %v226
    %v2878 = vmul.f32 %v2864, %v226
    %v2879 = vmul.f32 %v2867, %v226
    %v2880 = vmul.f32 %v2870, %v226
    %v2881 = vmul.f32 %v2873, %v226
    %v2882 = vmul.f32 %v2876, %v226
    %v2883 = vsub.f32 %v2851, %v2877
    %v2884 = vsub.f32 %v2852, %v2878
    %v2885 = vsub.f32 %v2853, %v2879
    %v2886 = vsub.f32 %v2854, %v2880
    %v2887 = vsub.f32 %v2855, %v2881
    %v2888 = vsub.f32 %v2856, %v2882
    %v2889 = vmul.f32 %v2883, %v2883
    %v2890 = vmul.f32 %v2884, %v2884
    %v2891 = vmul.f32 %v2885, %v2885
    %v2892 = vmul.f32 %v2886, %v2886
    %v2893 = vmul.f32 %v2887, %v2887
    %v2894 = vmul.f32 %v2888, %v2888
    %v2895 = vsel %vm207, %v2889, 0.0
    %2896 = vadd.xlane.f32.xlu0 %v2895
    %v2897 = vpop.xlane.xlu0 %2896
    %v2898 = vsel %vm207, %v2890, 0.0
    %2899 = vadd.xlane.f32.xlu0 %v2898
    %v2900 = vpop.xlane.xlu0 %2899
    %v2901 = vsel %vm207, %v2891, 0.0
    %2902 = vadd.xlane.f32.xlu0 %v2901
    %v2903 = vpop.xlane.xlu0 %2902
    %v2904 = vsel %vm207, %v2892, 0.0
    %2905 = vadd.xlane.f32.xlu0 %v2904
    %v2906 = vpop.xlane.xlu0 %2905
    %v2907 = vsel %vm207, %v2893, 0.0
    %2908 = vadd.xlane.f32.xlu0 %v2907
    %v2909 = vpop.xlane.xlu0 %2908
    %v2910 = vsel %vm207, %v2894, 0.0
    %2911 = vadd.xlane.f32.xlu0 %v2910
    %v2912 = vpop.xlane.xlu0 %2911
    %v2913 = vmul.f32 %v2897, %v226
    %v2914 = vmul.f32 %v2900, %v226
    %v2915 = vmul.f32 %v2903, %v226
    %v2916 = vmul.f32 %v2906, %v226
    %v2917 = vmul.f32 %v2909, %v226
    %v2918 = vmul.f32 %v2912, %v226
    %v2919 = vadd.f32 %v2913, 1e-05
    %v2920 = vadd.f32 %v2914, 1e-05
    %v2921 = vadd.f32 %v2915, 1e-05
    %v2922 = vadd.f32 %v2916, 1e-05
    %v2923 = vadd.f32 %v2917, 1e-05
    %v2924 = vadd.f32 %v2918, 1e-05
    %v2925 = vrsqrt.pop %v2919
    %v2926 = vrsqrt.pop %v2920
    %v2927 = vrsqrt.pop %v2921
    %v2928 = vrsqrt.pop %v2922
    %v2929 = vrsqrt.pop %v2923
    %v2930 = vrsqrt.pop %v2924
    %v2931 = vmul.f32 %v2883, %v2925
    %v2932 = vmul.f32 %v2884, %v2926
    %v2933 = vmul.f32 %v2885, %v2927
    %v2934 = vmul.f32 %v2886, %v2928
    %v2935 = vmul.f32 %v2887, %v2929
    %v2936 = vmul.f32 %v2888, %v2930
    %v2937 = vlaneseq
    %v2938 = vshrl.u32 %v2937, 7
    %v2939 = vsub.s32 0, %v2938
    %v2940 = vrot.slane %v2857, %v2939
    %v2941 = vmul.f32 %v2931, %v2940
    %v2942 = vmul.f32 %v2932, %v2940
    %v2943 = vmul.f32 %v2933, %v2940
    %v2944 = vmul.f32 %v2934, %v2940
    %v2945 = vmul.f32 %v2935, %v2940
    %v2946 = vmul.f32 %v2936, %v2940
    %v2947 = vlaneseq
    %v2948 = vshrl.u32 %v2947, 7
    %v2949 = vsub.s32 0, %v2948
    %v2950 = vrot.slane %v2858, %v2949
    %v2951 = vadd.f32 %v2941, %v2950
    %v2952 = vadd.f32 %v2942, %v2950
    %v2953 = vadd.f32 %v2943, %v2950
    %v2954 = vadd.f32 %v2944, %v2950
    %v2955 = vadd.f32 %v2945, %v2950
    %v2956 = vadd.f32 %v2946, %v2950
    %v2957 = vpack.c.bf16 %v2952, %v2951
    %v2958 = vpack.c.bf16 %v2954, %v2953
    %v2959 = vpack.c.bf16 %v2956, %v2955
    %v2960 = vld [vmem:[%s4] sm:$0xf]
    %v2961 = vld [vmem:[%s4 + $0x4] sm:$0xf]
    %v2962 = vld [vmem:[%s4 + $0x8] sm:$0xf]
    %v2963 = vld [vmem:[%s4 + $0xc] sm:$0xf]
    %v2964 = vld [vmem:[%s7 + $0x22] sm:$0x1]
    %v2965 = vlaneseq
    %v2966 = vshrl.u32 %v2965, 7
    %v2967 = vsub.s32 0, %v2966
    %v2968 = vrot.slane %v2964, %v2967
    %v2973 = vunpack.c.l.b16 %v2960
    %v2974 = vunpack.c.l.b16 %v2961
    %v2975 = vunpack.c.l.b16 %v2962
    %v2976 = vunpack.c.l.b16 %v2963
    %v2977 = vpack.c.b16 %v2974, %v2973
    %v2978 = vpack.c.b16 %v2976, %v2975
    %v2982 = vsel %vm207, %v2957, 0
    %v2985 = vsel %vm207, %v2958, 0
    %v2988 = vsel %vm207, %v2959, 0
    %2990 = vmatprep.subr.bf16.mxu0 0
    %2991 = vmatpush1.bf16.msra.mxu0 0
    %2992 = vmatprep.subr.bf16.mxu0 0
    %2993 = vmatpush1.bf16.msra.mxu0 0
    %2994 = vmatprep.subr.bf16.mxu0 0
    %2995 = vmatpush1.bf16.msra.mxu0 0
    %2996 = vmatprep.subr.bf16.mxu0 0
    %2997 = vmatpush1.bf16.msra.mxu0 0
    %2998 = vmatprep.subr.bf16.mxu0 0
    %2999 = vmatpush1.bf16.msra.mxu0 0
    %3000 = vmatprep.subr.bf16.mxu0 0
    %3001 = vmatpush1.bf16.msra.mxu0 0
    %3002 = vmatprep.subr.bf16.mxu0 0
    %3003 = vmatpush1.bf16.msra.mxu0 %v2978
    %3004 = vmatprep.subr.bf16.mxu0 0
    %3005 = vmatpush1.bf16.msra.mxu0 %v2977
    %3006 = vmatprep.subr.bf16.mxu0 0
    %3007 = vmatpush2.bf16.msra.mxu0 0
    %3008 = vmatprep.subr.bf16.mxu0 0
    %3009 = vmatpush2.bf16.msra.mxu0 0
    %3010 = vmatprep.subr.bf16.mxu0 0
    %3011 = vmatpush2.bf16.msra.mxu0 0
    %3012 = vmatprep.subr.bf16.mxu0 0
    %3013 = vmatpush2.bf16.msra.mxu0 0
    %3014 = vmatprep.subr.bf16.mxu0 0
    %3015 = vmatpush2.bf16.msra.mxu0 0
    %3016 = vmatprep.subr.bf16.mxu0 0
    %3017 = vmatpush2.bf16.msra.mxu0 0
    %3018 = vmatprep.subr.bf16.mxu0 0
    %3019 = vmatpush2.bf16.msra.mxu0 0
    %3020 = vmatprep.subr.bf16.mxu0 0
    %3021 = vmatpush2.bf16.msra.mxu0 0
    %3022 = vmatprep.mubr.bf16.mxu0 0
    %3023 = vmatmul.mubr.bf16.gmra.mxu0 %v2982
    %v3024 = vpop.f32.mrf.mxu0
    %v3025 = vadd.f32 %v2968, %v3024
    %v3026 = vpop.f32.mrf.mxu0
    %v3027 = vpop.f32.mrf.mxu0
    %v3028 = vadd.f32 %v2968, %v3027
    %v3029 = vpop.f32.mrf.mxu0
    %3030 = vmatprep.mubr.bf16.mxu0 0
    %3031 = vmatmul.mubr.bf16.gmra.mxu0 %v2985
    %v3032 = vpop.f32.mrf.mxu0
    %v3033 = vadd.f32 %v2968, %v3032
    %v3034 = vpop.f32.mrf.mxu0
    %v3035 = vpop.f32.mrf.mxu0
    %v3036 = vadd.f32 %v2968, %v3035
    %v3037 = vpop.f32.mrf.mxu0
    %3038 = vmatprep.mubr.bf16.mxu0 0
    %3039 = vmatmul.mubr.bf16.gmra.mxu0 %v2988
    %v3040 = vpop.f32.mrf.mxu0
    %v3041 = vadd.f32 %v2968, %v3040
    %v3042 = vpop.f32.mrf.mxu0
    %v3043 = vpop.f32.mrf.mxu0
    %v3044 = vadd.f32 %v2968, %v3043
    %v3045 = vpop.f32.mrf.mxu0
    %3046 = vdwg.mxu0
    %v3047 = vmul.f32 %v3025, 0.5
    %v3048 = vmul.f32 %v3028, 0.5
    %v3049 = vmul.f32 %v3033, 0.5
    %v3050 = vmul.f32 %v3036, 0.5
    %v3051 = vmul.f32 %v3041, 0.5
    %v3052 = vmul.f32 %v3044, 0.5
    %v3053 = vmul.f32 %v3025, 0.70710677
    %v3054 = vmul.f32 %v3028, 0.70710677
    %v3055 = vmul.f32 %v3033, 0.70710677
    %v3056 = vmul.f32 %v3036, 0.70710677
    %v3057 = vmul.f32 %v3041, 0.70710677
    %v3058 = vmul.f32 %v3044, 0.70710677
    %v3059 = vand.u32 2147483647, %v3053
    %v3060 = vand.u32 2147483647, %v3054
    %v3061 = vand.u32 2147483647, %v3055
    %v3062 = vand.u32 2147483647, %v3056
    %v3063 = vand.u32 2147483647, %v3057
    %v3064 = vand.u32 2147483647, %v3058
    %v3065 = vmul.f32 %v3059, 0.3275911
    %v3066 = vmul.f32 %v3060, 0.3275911
    %v3067 = vmul.f32 %v3061, 0.3275911
    %v3068 = vmul.f32 %v3062, 0.3275911
    %v3069 = vmul.f32 %v3063, 0.3275911
    %v3070 = vmul.f32 %v3064, 0.3275911
    %v3071 = vadd.f32 %v3065, 1.0
    %v3072 = vadd.f32 %v3066, 1.0
    %v3073 = vadd.f32 %v3067, 1.0
    %v3074 = vadd.f32 %v3068, 1.0
    %v3075 = vadd.f32 %v3069, 1.0
    %v3076 = vadd.f32 %v3070, 1.0
    %v3077 = vrcp.pop %v3071
    %v3078 = vmul.f32 1.0, %v3077
    %v3079 = vrcp.pop %v3072
    %v3080 = vmul.f32 1.0, %v3079
    %v3081 = vrcp.pop %v3073
    %v3082 = vmul.f32 1.0, %v3081
    %v3083 = vrcp.pop %v3074
    %v3084 = vmul.f32 1.0, %v3083
    %v3085 = vrcp.pop %v3075
    %v3086 = vmul.f32 1.0, %v3085
    %v3087 = vrcp.pop %v3076
    %v3088 = vmul.f32 1.0, %v3087
    %v3089 = vmul.f32 %v3078, 1.0614054
    %v3090 = vmul.f32 %v3080, 1.0614054
    %v3091 = vmul.f32 %v3082, 1.0614054
    %v3092 = vmul.f32 %v3084, 1.0614054
    %v3093 = vmul.f32 %v3086, 1.0614054
    %v3094 = vmul.f32 %v3088, 1.0614054
    %v3095 = vsub.f32 %v3089, 1.4531521
    %v3096 = vsub.f32 %v3090, 1.4531521
    %v3097 = vsub.f32 %v3091, 1.4531521
    %v3098 = vsub.f32 %v3092, 1.4531521
    %v3099 = vsub.f32 %v3093, 1.4531521
    %v3100 = vsub.f32 %v3094, 1.4531521
    %v3101 = vmul.f32 %v3095, %v3078
    %v3102 = vmul.f32 %v3096, %v3080
    %v3103 = vmul.f32 %v3097, %v3082
    %v3104 = vmul.f32 %v3098, %v3084
    %v3105 = vmul.f32 %v3099, %v3086
    %v3106 = vmul.f32 %v3100, %v3088
    %v3107 = vadd.f32 %v3101, 1.4214138
    %v3108 = vadd.f32 %v3102, 1.4214138
    %v3109 = vadd.f32 %v3103, 1.4214138
    %v3110 = vadd.f32 %v3104, 1.4214138
    %v3111 = vadd.f32 %v3105, 1.4214138
    %v3112 = vadd.f32 %v3106, 1.4214138
    %v3113 = vmul.f32 %v3107, %v3078
    %v3114 = vmul.f32 %v3108, %v3080
    %v3115 = vmul.f32 %v3109, %v3082
    %v3116 = vmul.f32 %v3110, %v3084
    %v3117 = vmul.f32 %v3111, %v3086
    %v3118 = vmul.f32 %v3112, %v3088
    %v3119 = vsub.f32 %v3113, 0.28449672
    %v3120 = vsub.f32 %v3114, 0.28449672
    %v3121 = vsub.f32 %v3115, 0.28449672
    %v3122 = vsub.f32 %v3116, 0.28449672
    %v3123 = vsub.f32 %v3117, 0.28449672
    %v3124 = vsub.f32 %v3118, 0.28449672
    %v3125 = vmul.f32 %v3119, %v3078
    %v3126 = vmul.f32 %v3120, %v3080
    %v3127 = vmul.f32 %v3121, %v3082
    %v3128 = vmul.f32 %v3122, %v3084
    %v3129 = vmul.f32 %v3123, %v3086
    %v3130 = vmul.f32 %v3124, %v3088
    %v3131 = vadd.f32 %v3125, 0.2548296
    %v3132 = vadd.f32 %v3126, 0.2548296
    %v3133 = vadd.f32 %v3127, 0.2548296
    %v3134 = vadd.f32 %v3128, 0.2548296
    %v3135 = vadd.f32 %v3129, 0.2548296
    %v3136 = vadd.f32 %v3130, 0.2548296
    %v3137 = vmul.f32 %v3131, %v3078
    %v3138 = vmul.f32 %v3132, %v3080
    %v3139 = vmul.f32 %v3133, %v3082
    %v3140 = vmul.f32 %v3134, %v3084
    %v3141 = vmul.f32 %v3135, %v3086
    %v3142 = vmul.f32 %v3136, %v3088
    %v3143 = vsub.f32 0.0, %v3053
    %v3144 = vsub.f32 0.0, %v3054
    %v3145 = vsub.f32 0.0, %v3055
    %v3146 = vsub.f32 0.0, %v3056
    %v3147 = vsub.f32 0.0, %v3057
    %v3148 = vsub.f32 0.0, %v3058
    %v3149 = vmul.f32 %v3143, %v3053
    %v3150 = vmul.f32 %v3144, %v3054
    %v3151 = vmul.f32 %v3145, %v3055
    %v3152 = vmul.f32 %v3146, %v3056
    %v3153 = vmul.f32 %v3147, %v3057
    %v3154 = vmul.f32 %v3148, %v3058
    %v3155 = vmul.f32 %v3149, 1.442695
    %v3156 = vpow.pop %v3155
    %v3157 = vmul.f32 %v3150, 1.442695
    %v3158 = vpow.pop %v3157
    %v3159 = vmul.f32 %v3151, 1.442695
    %v3160 = vpow.pop %v3159
    %v3161 = vmul.f32 %v3152, 1.442695
    %v3162 = vpow.pop %v3161
    %v3163 = vmul.f32 %v3153, 1.442695
    %v3164 = vpow.pop %v3163
    %v3165 = vmul.f32 %v3154, 1.442695
    %v3166 = vpow.pop %v3165
    %v3167 = vmul.f32 %v3137, %v3156
    %v3168 = vmul.f32 %v3138, %v3158
    %v3169 = vmul.f32 %v3139, %v3160
    %v3170 = vmul.f32 %v3140, %v3162
    %v3171 = vmul.f32 %v3141, %v3164
    %v3172 = vmul.f32 %v3142, %v3166
    %v3173 = vsub.f32 1.0, %v3167
    %v3174 = vsub.f32 1.0, %v3168
    %v3175 = vsub.f32 1.0, %v3169
    %v3176 = vsub.f32 1.0, %v3170
    %v3177 = vsub.f32 1.0, %v3171
    %v3178 = vsub.f32 1.0, %v3172
    %vm3179 = vcmp.ge.f32.partialorder %v3053, 0.0
    %vm3180 = vcmp.ge.f32.partialorder %v3054, 0.0
    %vm3181 = vcmp.ge.f32.partialorder %v3055, 0.0
    %vm3182 = vcmp.ge.f32.partialorder %v3056, 0.0
    %vm3183 = vcmp.ge.f32.partialorder %v3057, 0.0
    %vm3184 = vcmp.ge.f32.partialorder %v3058, 0.0
    %v3185 = vsub.f32 0.0, %v3173
    %v3186 = vsub.f32 0.0, %v3174
    %v3187 = vsub.f32 0.0, %v3175
    %v3188 = vsub.f32 0.0, %v3176
    %v3189 = vsub.f32 0.0, %v3177
    %v3190 = vsub.f32 0.0, %v3178
    %v3191 = vsel %vm3179, %v3173, %v3185
    %v3192 = vsel %vm3180, %v3174, %v3186
    %v3193 = vsel %vm3181, %v3175, %v3187
    %v3194 = vsel %vm3182, %v3176, %v3188
    %v3195 = vsel %vm3183, %v3177, %v3189
    %v3196 = vsel %vm3184, %v3178, %v3190
    %v3197 = vadd.f32 %v3191, 1.0
    %v3198 = vadd.f32 %v3192, 1.0
    %v3199 = vadd.f32 %v3193, 1.0
    %v3200 = vadd.f32 %v3194, 1.0
    %v3201 = vadd.f32 %v3195, 1.0
    %v3202 = vadd.f32 %v3196, 1.0
    %v3203 = vmul.f32 %v3047, %v3197
    %v3204 = vmul.f32 %v3048, %v3198
    %v3205 = vmul.f32 %v3049, %v3199
    %v3206 = vmul.f32 %v3050, %v3200
    %v3207 = vmul.f32 %v3051, %v3201
    %v3208 = vmul.f32 %v3052, %v3202
    %v3209 = vpack.c.bf16 %v3204, %v3203
    %v3210 = vpack.c.bf16 %v3206, %v3205
    %v3211 = vpack.c.bf16 %v3208, %v3207
    %v3212 = vld [vmem:[%s5] sm:$0xf]
    %v3213 = vld [vmem:[%s5 + $0x4] sm:$0xf]
    %v3214 = vld [vmem:[%s5 + $0x8] sm:$0xf]
    %v3215 = vld [vmem:[%s5 + $0xc] sm:$0xf]
    %v3216 = vld [vmem:[%s5 + $0x10] sm:$0xf]
    %v3217 = vld [vmem:[%s5 + $0x14] sm:$0xf]
    %v3218 = vld [vmem:[%s5 + $0x18] sm:$0xf]
    %v3219 = vld [vmem:[%s5 + $0x1c] sm:$0xf]
    %v3220 = vld [vmem:[%s7 + $0x24] sm:$0x1]
    %v3221 = vlaneseq
    %v3222 = vshrl.u32 %v3221, 7
    %v3223 = vsub.s32 0, %v3222
    %v3224 = vrot.slane %v3220, %v3223
    %v3233 = vunpack.c.l.b16 %v3212
    %v3234 = vunpack.c.l.b16 %v3213
    %v3235 = vunpack.c.l.b16 %v3214
    %v3236 = vunpack.c.l.b16 %v3215
    %v3237 = vunpack.c.l.b16 %v3216
    %v3238 = vunpack.c.l.b16 %v3217
    %v3239 = vunpack.c.l.b16 %v3218
    %v3240 = vunpack.c.l.b16 %v3219
    %v3241 = vpack.c.b16 %v3234, %v3233
    %v3242 = vpack.c.b16 %v3236, %v3235
    %v3243 = vpack.c.b16 %v3238, %v3237
    %v3244 = vpack.c.b16 %v3240, %v3239
    %v3250 = vsel %vm584, %v3209, 0
    %v3253 = vsel %vm584, %v3210, 0
    %v3256 = vsel %vm584, %v3211, 0
    %3258 = vmatprep.subr.bf16.mxu0 0
    %3259 = vmatpush1.bf16.msra.mxu0 0
    %3260 = vmatprep.subr.bf16.mxu0 0
    %3261 = vmatpush1.bf16.msra.mxu0 0
    %3262 = vmatprep.subr.bf16.mxu0 0
    %3263 = vmatpush1.bf16.msra.mxu0 0
    %3264 = vmatprep.subr.bf16.mxu0 0
    %3265 = vmatpush1.bf16.msra.mxu0 0
    %3266 = vmatprep.subr.bf16.mxu0 0
    %3267 = vmatpush1.bf16.msra.mxu0 %v3244
    %3268 = vmatprep.subr.bf16.mxu0 0
    %3269 = vmatpush1.bf16.msra.mxu0 %v3243
    %3270 = vmatprep.subr.bf16.mxu0 0
    %3271 = vmatpush1.bf16.msra.mxu0 %v3242
    %3272 = vmatprep.subr.bf16.mxu0 0
    %3273 = vmatpush1.bf16.msra.mxu0 %v3241
    %3274 = vmatprep.subr.bf16.mxu0 0
    %3275 = vmatpush2.bf16.msra.mxu0 0
    %3276 = vmatprep.subr.bf16.mxu0 0
    %3277 = vmatpush2.bf16.msra.mxu0 0
    %3278 = vmatprep.subr.bf16.mxu0 0
    %3279 = vmatpush2.bf16.msra.mxu0 0
    %3280 = vmatprep.subr.bf16.mxu0 0
    %3281 = vmatpush2.bf16.msra.mxu0 0
    %3282 = vmatprep.subr.bf16.mxu0 0
    %3283 = vmatpush2.bf16.msra.mxu0 0
    %3284 = vmatprep.subr.bf16.mxu0 0
    %3285 = vmatpush2.bf16.msra.mxu0 0
    %3286 = vmatprep.subr.bf16.mxu0 0
    %3287 = vmatpush2.bf16.msra.mxu0 0
    %3288 = vmatprep.subr.bf16.mxu0 0
    %3289 = vmatpush2.bf16.msra.mxu0 0
    %3290 = vmatprep.mubr.bf16.mxu0 0
    %3291 = vmatmul.mubr.bf16.gmra.mxu0 %v3250
    %v3292 = vpop.f32.mrf.mxu0
    %v3293 = vadd.f32 %v3224, %v3292
    %v3294 = vpop.f32.mrf.mxu0
    %v3295 = vpop.f32.mrf.mxu0
    %v3296 = vadd.f32 %v3224, %v3295
    %v3297 = vpop.f32.mrf.mxu0
    %3298 = vmatprep.mubr.bf16.mxu0 0
    %3299 = vmatmul.mubr.bf16.gmra.mxu0 %v3253
    %v3300 = vpop.f32.mrf.mxu0
    %v3301 = vadd.f32 %v3224, %v3300
    %v3302 = vpop.f32.mrf.mxu0
    %v3303 = vpop.f32.mrf.mxu0
    %v3304 = vadd.f32 %v3224, %v3303
    %v3305 = vpop.f32.mrf.mxu0
    %3306 = vmatprep.mubr.bf16.mxu0 0
    %3307 = vmatmul.mubr.bf16.gmra.mxu0 %v3256
    %v3308 = vpop.f32.mrf.mxu0
    %v3309 = vadd.f32 %v3224, %v3308
    %v3310 = vpop.f32.mrf.mxu0
    %v3311 = vpop.f32.mrf.mxu0
    %v3312 = vadd.f32 %v3224, %v3311
    %v3313 = vpop.f32.mrf.mxu0
    %3314 = vdwg.mxu0
    %v3315 = vadd.f32 %v2851, %v3293
    %v3316 = vadd.f32 %v2852, %v3296
    %v3317 = vadd.f32 %v2853, %v3301
    %v3318 = vadd.f32 %v2854, %v3304
    %v3319 = vadd.f32 %v2855, %v3309
    %v3320 = vadd.f32 %v2856, %v3312
    %v3321 = vld [vmem:[%s7 + $0x19] sm:$0x1]
    %v3322 = vld [vmem:[%s7 + $0x1b] sm:$0x1]
    %v3323 = vsel %vm207, %v3315, 0.0
    %3324 = vadd.xlane.f32.xlu0 %v3323
    %v3325 = vpop.xlane.xlu0 %3324
    %v3326 = vsel %vm207, %v3316, 0.0
    %3327 = vadd.xlane.f32.xlu0 %v3326
    %v3328 = vpop.xlane.xlu0 %3327
    %v3329 = vsel %vm207, %v3317, 0.0
    %3330 = vadd.xlane.f32.xlu0 %v3329
    %v3331 = vpop.xlane.xlu0 %3330
    %v3332 = vsel %vm207, %v3318, 0.0
    %3333 = vadd.xlane.f32.xlu0 %v3332
    %v3334 = vpop.xlane.xlu0 %3333
    %v3335 = vsel %vm207, %v3319, 0.0
    %3336 = vadd.xlane.f32.xlu0 %v3335
    %v3337 = vpop.xlane.xlu0 %3336
    %v3338 = vsel %vm207, %v3320, 0.0
    %3339 = vadd.xlane.f32.xlu0 %v3338
    %v3340 = vpop.xlane.xlu0 %3339
    %v3341 = vmul.f32 %v3325, %v226
    %v3342 = vmul.f32 %v3328, %v226
    %v3343 = vmul.f32 %v3331, %v226
    %v3344 = vmul.f32 %v3334, %v226
    %v3345 = vmul.f32 %v3337, %v226
    %v3346 = vmul.f32 %v3340, %v226
    %v3347 = vsub.f32 %v3315, %v3341
    %v3348 = vsub.f32 %v3316, %v3342
    %v3349 = vsub.f32 %v3317, %v3343
    %v3350 = vsub.f32 %v3318, %v3344
    %v3351 = vsub.f32 %v3319, %v3345
    %v3352 = vsub.f32 %v3320, %v3346
    %v3353 = vmul.f32 %v3347, %v3347
    %v3354 = vmul.f32 %v3348, %v3348
    %v3355 = vmul.f32 %v3349, %v3349
    %v3356 = vmul.f32 %v3350, %v3350
    %v3357 = vmul.f32 %v3351, %v3351
    %v3358 = vmul.f32 %v3352, %v3352
    %v3359 = vsel %vm207, %v3353, 0.0
    %3360 = vadd.xlane.f32.xlu0 %v3359
    %v3361 = vpop.xlane.xlu0 %3360
    %v3362 = vsel %vm207, %v3354, 0.0
    %3363 = vadd.xlane.f32.xlu0 %v3362
    %v3364 = vpop.xlane.xlu0 %3363
    %v3365 = vsel %vm207, %v3355, 0.0
    %3366 = vadd.xlane.f32.xlu0 %v3365
    %v3367 = vpop.xlane.xlu0 %3366
    %v3368 = vsel %vm207, %v3356, 0.0
    %3369 = vadd.xlane.f32.xlu0 %v3368
    %v3370 = vpop.xlane.xlu0 %3369
    %v3371 = vsel %vm207, %v3357, 0.0
    %3372 = vadd.xlane.f32.xlu0 %v3371
    %v3373 = vpop.xlane.xlu0 %3372
    %v3374 = vsel %vm207, %v3358, 0.0
    %3375 = vadd.xlane.f32.xlu0 %v3374
    %v3376 = vpop.xlane.xlu0 %3375
    %v3377 = vmul.f32 %v3361, %v226
    %v3378 = vmul.f32 %v3364, %v226
    %v3379 = vmul.f32 %v3367, %v226
    %v3380 = vmul.f32 %v3370, %v226
    %v3381 = vmul.f32 %v3373, %v226
    %v3382 = vmul.f32 %v3376, %v226
    %v3383 = vadd.f32 %v3377, 1e-05
    %v3384 = vadd.f32 %v3378, 1e-05
    %v3385 = vadd.f32 %v3379, 1e-05
    %v3386 = vadd.f32 %v3380, 1e-05
    %v3387 = vadd.f32 %v3381, 1e-05
    %v3388 = vadd.f32 %v3382, 1e-05
    %v3389 = vrsqrt.pop %v3383
    %v3390 = vrsqrt.pop %v3384
    %v3391 = vrsqrt.pop %v3385
    %v3392 = vrsqrt.pop %v3386
    %v3393 = vrsqrt.pop %v3387
    %v3394 = vrsqrt.pop %v3388
    %v3395 = vmul.f32 %v3347, %v3389
    %v3396 = vmul.f32 %v3348, %v3390
    %v3397 = vmul.f32 %v3349, %v3391
    %v3398 = vmul.f32 %v3350, %v3392
    %v3399 = vmul.f32 %v3351, %v3393
    %v3400 = vmul.f32 %v3352, %v3394
    %v3401 = vlaneseq
    %v3402 = vshrl.u32 %v3401, 7
    %v3403 = vsub.s32 0, %v3402
    %v3404 = vrot.slane %v3321, %v3403
    %v3405 = vmul.f32 %v3395, %v3404
    %v3406 = vmul.f32 %v3396, %v3404
    %v3407 = vmul.f32 %v3397, %v3404
    %v3408 = vmul.f32 %v3398, %v3404
    %v3409 = vmul.f32 %v3399, %v3404
    %v3410 = vmul.f32 %v3400, %v3404
    %v3411 = vlaneseq
    %v3412 = vshrl.u32 %v3411, 7
    %v3413 = vsub.s32 0, %v3412
    %v3414 = vrot.slane %v3322, %v3413
    %v3415 = vadd.f32 %v3405, %v3414
    %v3416 = vadd.f32 %v3406, %v3414
    %v3417 = vadd.f32 %v3407, %v3414
    %v3418 = vadd.f32 %v3408, %v3414
    %v3419 = vadd.f32 %v3409, %v3414
    %v3420 = vadd.f32 %v3410, %v3414
    %v3421 = vpack.c.bf16 %v3416, %v3415
    %v3422 = vpack.c.bf16 %v3418, %v3417
    %v3423 = vpack.c.bf16 %v3420, %v3419
    %s3424 = scalar_lea.vmem %s2, 96
    %v3425 = vld [vmem:[%s3424] sm:$0xff]
    %v3426 = vld [vmem:[%s3424 + $0x8] sm:$0xff]
    %v3427 = vld [vmem:[%s3424 + $0x10] sm:$0xff]
    %v3428 = vld [vmem:[%s3424 + $0x18] sm:$0xff]
    %v3429 = vld [vmem:[%s3424 + $0x20] sm:$0xff]
    %v3430 = vld [vmem:[%s3424 + $0x28] sm:$0xff]
    %v3431 = vld [vmem:[%s3424 + $0x30] sm:$0xff]
    %v3432 = vld [vmem:[%s3424 + $0x38] sm:$0xff]
    %v3433 = vld [vmem:[%s3424 + $0x40] sm:$0xff]
    %v3434 = vld [vmem:[%s3424 + $0x48] sm:$0xff]
    %v3435 = vld [vmem:[%s3424 + $0x50] sm:$0xff]
    %v3436 = vld [vmem:[%s3424 + $0x58] sm:$0xff]
    %v3449 = vunpack.c.l.b16 %v3425
    %v3450 = vunpack.c.h.b16 %v3425
    %v3451 = vunpack.c.l.b16 %v3426
    %v3452 = vunpack.c.h.b16 %v3426
    %v3453 = vunpack.c.l.b16 %v3427
    %v3454 = vunpack.c.h.b16 %v3427
    %v3455 = vunpack.c.l.b16 %v3428
    %v3456 = vunpack.c.h.b16 %v3428
    %v3457 = vunpack.c.l.b16 %v3429
    %v3458 = vunpack.c.h.b16 %v3429
    %v3459 = vunpack.c.l.b16 %v3430
    %v3460 = vunpack.c.h.b16 %v3430
    %v3461 = vunpack.c.l.b16 %v3431
    %v3462 = vunpack.c.h.b16 %v3431
    %v3463 = vunpack.c.l.b16 %v3432
    %v3464 = vunpack.c.h.b16 %v3432
    %v3465 = vunpack.c.l.b16 %v3433
    %v3466 = vunpack.c.h.b16 %v3433
    %v3467 = vunpack.c.l.b16 %v3434
    %v3468 = vunpack.c.h.b16 %v3434
    %v3469 = vunpack.c.l.b16 %v3435
    %v3470 = vunpack.c.h.b16 %v3435
    %v3471 = vunpack.c.l.b16 %v3436
    %v3472 = vunpack.c.h.b16 %v3436
    %v3473 = vpack.c.b16 %v3455, %v3449
    %v3474 = vpack.c.b16 %v3456, %v3450
    %v3475 = vpack.c.b16 %v3457, %v3451
    %v3476 = vpack.c.b16 %v3458, %v3452
    %v3477 = vpack.c.b16 %v3459, %v3453
    %v3478 = vpack.c.b16 %v3460, %v3454
    %v3479 = vpack.c.b16 %v3467, %v3461
    %v3480 = vpack.c.b16 %v3468, %v3462
    %v3481 = vpack.c.b16 %v3469, %v3463
    %v3482 = vpack.c.b16 %v3470, %v3464
    %v3483 = vpack.c.b16 %v3471, %v3465
    %v3484 = vpack.c.b16 %v3472, %v3466
    %v3498 = vsel %vm207, %v3421, 0
    %v3501 = vsel %vm207, %v3422, 0
    %v3504 = vsel %vm207, %v3423, 0
    %3506 = vmatprep.subr.bf16.mxu0 0
    %3507 = vmatpush1.bf16.msra.mxu0 0
    %3508 = vmatprep.subr.bf16.mxu0 0
    %3509 = vmatpush1.bf16.msra.mxu0 0
    %3510 = vmatprep.subr.bf16.mxu0 0
    %3511 = vmatpush1.bf16.msra.mxu0 0
    %3512 = vmatprep.subr.bf16.mxu0 0
    %3513 = vmatpush1.bf16.msra.mxu0 0
    %3514 = vmatprep.subr.bf16.mxu0 0
    %3515 = vmatpush1.bf16.msra.mxu0 0
    %3516 = vmatprep.subr.bf16.mxu0 0
    %3517 = vmatpush1.bf16.msra.mxu0 0
    %3518 = vmatprep.subr.bf16.mxu0 %v3480
    %3519 = vmatpush1.bf16.msra.mxu0 %v3479
    %3520 = vmatprep.subr.bf16.mxu0 %v3474
    %3521 = vmatpush1.bf16.msra.mxu0 %v3473
    %3522 = vmatprep.subr.bf16.mxu0 0
    %3523 = vmatpush2.bf16.msra.mxu0 0
    %3524 = vmatprep.subr.bf16.mxu0 0
    %3525 = vmatpush2.bf16.msra.mxu0 0
    %3526 = vmatprep.subr.bf16.mxu0 0
    %3527 = vmatpush2.bf16.msra.mxu0 0
    %3528 = vmatprep.subr.bf16.mxu0 0
    %3529 = vmatpush2.bf16.msra.mxu0 0
    %3530 = vmatprep.subr.bf16.mxu0 0
    %3531 = vmatpush2.bf16.msra.mxu0 0
    %3532 = vmatprep.subr.bf16.mxu0 0
    %3533 = vmatpush2.bf16.msra.mxu0 0
    %3534 = vmatprep.subr.bf16.mxu0 0
    %3535 = vmatpush2.bf16.msra.mxu0 0
    %3536 = vmatprep.subr.bf16.mxu0 0
    %3537 = vmatpush2.bf16.msra.mxu0 0
    %3538 = vmatprep.mubr.bf16.mxu0 0
    %3539 = vmatmul.mubr.bf16.gmra.mxu0 %v3498
    %v3540 = vpop.f32.mrf.mxu0
    %v3541 = vadd.f32 0.0, %v3540
    %v3542 = vpop.f32.mrf.mxu0
    %v3543 = vadd.f32 0.0, %v3542
    %v3544 = vpop.f32.mrf.mxu0
    %v3545 = vadd.f32 0.0, %v3544
    %v3546 = vpop.f32.mrf.mxu0
    %v3547 = vadd.f32 0.0, %v3546
    %3548 = vmatprep.mubr.bf16.mxu0 0
    %3549 = vmatmul.mubr.bf16.gmra.mxu0 %v3501
    %v3550 = vpop.f32.mrf.mxu0
    %v3551 = vadd.f32 0.0, %v3550
    %v3552 = vpop.f32.mrf.mxu0
    %v3553 = vadd.f32 0.0, %v3552
    %v3554 = vpop.f32.mrf.mxu0
    %v3555 = vadd.f32 0.0, %v3554
    %v3556 = vpop.f32.mrf.mxu0
    %v3557 = vadd.f32 0.0, %v3556
    %3558 = vmatprep.mubr.bf16.mxu0 0
    %3559 = vmatmul.mubr.bf16.gmra.mxu0 %v3504
    %v3560 = vpop.f32.mrf.mxu0
    %v3561 = vadd.f32 0.0, %v3560
    %v3562 = vpop.f32.mrf.mxu0
    %v3563 = vadd.f32 0.0, %v3562
    %v3564 = vpop.f32.mrf.mxu0
    %v3565 = vadd.f32 0.0, %v3564
    %v3566 = vpop.f32.mrf.mxu0
    %v3567 = vadd.f32 0.0, %v3566
    %3568 = vdwg.mxu0
    %3569 = vmatprep.subr.bf16.mxu0 0
    %3570 = vmatpush1.bf16.msra.mxu0 0
    %3571 = vmatprep.subr.bf16.mxu0 0
    %3572 = vmatpush1.bf16.msra.mxu0 0
    %3573 = vmatprep.subr.bf16.mxu0 0
    %3574 = vmatpush1.bf16.msra.mxu0 0
    %3575 = vmatprep.subr.bf16.mxu0 0
    %3576 = vmatpush1.bf16.msra.mxu0 0
    %3577 = vmatprep.subr.bf16.mxu0 0
    %3578 = vmatpush1.bf16.msra.mxu0 0
    %3579 = vmatprep.subr.bf16.mxu0 0
    %3580 = vmatpush1.bf16.msra.mxu0 0
    %3581 = vmatprep.subr.bf16.mxu0 %v3482
    %3582 = vmatpush1.bf16.msra.mxu0 %v3481
    %3583 = vmatprep.subr.bf16.mxu0 %v3476
    %3584 = vmatpush1.bf16.msra.mxu0 %v3475
    %3585 = vmatprep.subr.bf16.mxu0 0
    %3586 = vmatpush2.bf16.msra.mxu0 0
    %3587 = vmatprep.subr.bf16.mxu0 0
    %3588 = vmatpush2.bf16.msra.mxu0 0
    %3589 = vmatprep.subr.bf16.mxu0 0
    %3590 = vmatpush2.bf16.msra.mxu0 0
    %3591 = vmatprep.subr.bf16.mxu0 0
    %3592 = vmatpush2.bf16.msra.mxu0 0
    %3593 = vmatprep.subr.bf16.mxu0 0
    %3594 = vmatpush2.bf16.msra.mxu0 0
    %3595 = vmatprep.subr.bf16.mxu0 0
    %3596 = vmatpush2.bf16.msra.mxu0 0
    %3597 = vmatprep.subr.bf16.mxu0 0
    %3598 = vmatpush2.bf16.msra.mxu0 0
    %3599 = vmatprep.subr.bf16.mxu0 0
    %3600 = vmatpush2.bf16.msra.mxu0 0
    %3601 = vmatprep.mubr.bf16.mxu0 0
    %3602 = vmatmul.mubr.bf16.gmra.mxu0 %v3498
    %v3603 = vpop.f32.mrf.mxu0
    %v3604 = vadd.f32 0.0, %v3603
    %v3605 = vpop.f32.mrf.mxu0
    %v3606 = vadd.f32 0.0, %v3605
    %v3607 = vpop.f32.mrf.mxu0
    %v3608 = vadd.f32 0.0, %v3607
    %v3609 = vpop.f32.mrf.mxu0
    %v3610 = vadd.f32 0.0, %v3609
    %3611 = vmatprep.mubr.bf16.mxu0 0
    %3612 = vmatmul.mubr.bf16.gmra.mxu0 %v3501
    %v3613 = vpop.f32.mrf.mxu0
    %v3614 = vadd.f32 0.0, %v3613
    %v3615 = vpop.f32.mrf.mxu0
    %v3616 = vadd.f32 0.0, %v3615
    %v3617 = vpop.f32.mrf.mxu0
    %v3618 = vadd.f32 0.0, %v3617
    %v3619 = vpop.f32.mrf.mxu0
    %v3620 = vadd.f32 0.0, %v3619
    %3621 = vmatprep.mubr.bf16.mxu0 0
    %3622 = vmatmul.mubr.bf16.gmra.mxu0 %v3504
    %v3623 = vpop.f32.mrf.mxu0
    %v3624 = vadd.f32 0.0, %v3623
    %v3625 = vpop.f32.mrf.mxu0
    %v3626 = vadd.f32 0.0, %v3625
    %v3627 = vpop.f32.mrf.mxu0
    %v3628 = vadd.f32 0.0, %v3627
    %v3629 = vpop.f32.mrf.mxu0
    %v3630 = vadd.f32 0.0, %v3629
    %3631 = vdwg.mxu0
    %3632 = vmatprep.subr.bf16.mxu0 0
    %3633 = vmatpush1.bf16.msra.mxu0 0
    %3634 = vmatprep.subr.bf16.mxu0 0
    %3635 = vmatpush1.bf16.msra.mxu0 0
    %3636 = vmatprep.subr.bf16.mxu0 0
    %3637 = vmatpush1.bf16.msra.mxu0 0
    %3638 = vmatprep.subr.bf16.mxu0 0
    %3639 = vmatpush1.bf16.msra.mxu0 0
    %3640 = vmatprep.subr.bf16.mxu0 0
    %3641 = vmatpush1.bf16.msra.mxu0 0
    %3642 = vmatprep.subr.bf16.mxu0 0
    %3643 = vmatpush1.bf16.msra.mxu0 0
    %3644 = vmatprep.subr.bf16.mxu0 %v3484
    %3645 = vmatpush1.bf16.msra.mxu0 %v3483
    %3646 = vmatprep.subr.bf16.mxu0 %v3478
    %3647 = vmatpush1.bf16.msra.mxu0 %v3477
    %3648 = vmatprep.subr.bf16.mxu0 0
    %3649 = vmatpush2.bf16.msra.mxu0 0
    %3650 = vmatprep.subr.bf16.mxu0 0
    %3651 = vmatpush2.bf16.msra.mxu0 0
    %3652 = vmatprep.subr.bf16.mxu0 0
    %3653 = vmatpush2.bf16.msra.mxu0 0
    %3654 = vmatprep.subr.bf16.mxu0 0
    %3655 = vmatpush2.bf16.msra.mxu0 0
    %3656 = vmatprep.subr.bf16.mxu0 0
    %3657 = vmatpush2.bf16.msra.mxu0 0
    %3658 = vmatprep.subr.bf16.mxu0 0
    %3659 = vmatpush2.bf16.msra.mxu0 0
    %3660 = vmatprep.subr.bf16.mxu0 0
    %3661 = vmatpush2.bf16.msra.mxu0 0
    %3662 = vmatprep.subr.bf16.mxu0 0
    %3663 = vmatpush2.bf16.msra.mxu0 0
    %3664 = vmatprep.mubr.bf16.mxu0 0
    %3665 = vmatmul.mubr.bf16.gmra.mxu0 %v3498
    %v3666 = vpop.f32.mrf.mxu0
    %v3667 = vadd.f32 0.0, %v3666
    %v3668 = vpop.f32.mrf.mxu0
    %v3669 = vadd.f32 0.0, %v3668
    %v3670 = vpop.f32.mrf.mxu0
    %v3671 = vadd.f32 0.0, %v3670
    %v3672 = vpop.f32.mrf.mxu0
    %v3673 = vadd.f32 0.0, %v3672
    %3674 = vmatprep.mubr.bf16.mxu0 0
    %3675 = vmatmul.mubr.bf16.gmra.mxu0 %v3501
    %v3676 = vpop.f32.mrf.mxu0
    %v3677 = vadd.f32 0.0, %v3676
    %v3678 = vpop.f32.mrf.mxu0
    %v3679 = vadd.f32 0.0, %v3678
    %v3680 = vpop.f32.mrf.mxu0
    %v3681 = vadd.f32 0.0, %v3680
    %v3682 = vpop.f32.mrf.mxu0
    %v3683 = vadd.f32 0.0, %v3682
    %3684 = vmatprep.mubr.bf16.mxu0 0
    %3685 = vmatmul.mubr.bf16.gmra.mxu0 %v3504
    %v3686 = vpop.f32.mrf.mxu0
    %v3687 = vadd.f32 0.0, %v3686
    %v3688 = vpop.f32.mrf.mxu0
    %v3689 = vadd.f32 0.0, %v3688
    %v3690 = vpop.f32.mrf.mxu0
    %v3691 = vadd.f32 0.0, %v3690
    %v3692 = vpop.f32.mrf.mxu0
    %v3693 = vadd.f32 0.0, %v3692
    %3694 = vdwg.mxu0
    %v3695 = vpack.c.bf16 %v3545, %v3541
    %v3696 = vpack.c.bf16 %v3551, %v3551
    %v3697 = vpack.c.bf16 %v3608, %v3604
    %v3698 = vpack.c.bf16 %v3614, %v3614
    %v3700 = vsel %vm584, %v3695, 0
    %v3703 = vsel %vm584, %v3696, 0
    %v3706 = vsel %vm584, %v3697, 0
    %v3709 = vsel %vm584, %v3698, 0
    %3711 = vmatprep.subr.bf16.mxu0 0
    %3712 = vmatpush1.bf16.xpose.msra.mxu0 0
    %3713 = vmatprep.subr.bf16.mxu0 0
    %3714 = vmatpush1.bf16.xpose.msra.mxu0 0
    %3715 = vmatprep.subr.bf16.mxu0 0
    %3716 = vmatpush1.bf16.xpose.msra.mxu0 0
    %3717 = vmatprep.subr.bf16.mxu0 0
    %3718 = vmatpush1.bf16.xpose.msra.mxu0 0
    %3719 = vmatprep.subr.bf16.mxu0 0
    %3720 = vmatpush1.bf16.xpose.msra.mxu0 0
    %3721 = vmatprep.subr.bf16.mxu0 0
    %3722 = vmatpush1.bf16.xpose.msra.mxu0 0
    %3723 = vmatprep.subr.bf16.mxu0 0
    %3724 = vmatpush1.bf16.xpose.msra.mxu0 %v3709
    %3725 = vmatprep.subr.bf16.mxu0 0
    %3726 = vmatpush1.bf16.xpose.msra.mxu0 %v3706
    %3727 = vmatprep.subr.bf16.mxu0 0
    %3728 = vmatpush2.bf16.xpose.msra.mxu0 0
    %3729 = vmatprep.subr.bf16.mxu0 0
    %3730 = vmatpush2.bf16.xpose.msra.mxu0 0
    %3731 = vmatprep.subr.bf16.mxu0 0
    %3732 = vmatpush2.bf16.xpose.msra.mxu0 0
    %3733 = vmatprep.subr.bf16.mxu0 0
    %3734 = vmatpush2.bf16.xpose.msra.mxu0 0
    %3735 = vmatprep.subr.bf16.mxu0 0
    %3736 = vmatpush2.bf16.xpose.msra.mxu0 0
    %3737 = vmatprep.subr.bf16.mxu0 0
    %3738 = vmatpush2.bf16.xpose.msra.mxu0 0
    %3739 = vmatprep.subr.bf16.mxu0 0
    %3740 = vmatpush2.bf16.xpose.msra.mxu0 0
    %3741 = vmatprep.subr.bf16.mxu0 0
    %3742 = vmatpush2.bf16.xpose.msra.mxu0 0
    %3743 = vmatprep.mubr.bf16.mxu0 0
    %3744 = vmatmul.mubr.bf16.gmra.mxu0 %v3700
    %v3745 = vpop.f32.mrf.mxu0
    %v3746 = vadd.f32 0.0, %v3745
    %v3747 = vpop.f32.mrf.mxu0
    %v3748 = vpop.f32.mrf.mxu0
    %v3749 = vadd.f32 0.0, %v3748
    %v3750 = vpop.f32.mrf.mxu0
    %3751 = vmatprep.mubr.bf16.mxu0 0
    %3752 = vmatmul.mubr.bf16.gmra.mxu0 %v3703
    %v3753 = vpop.f32.mrf.mxu0
    %v3754 = vadd.f32 0.0, %v3753
    %v3755 = vpop.f32.mrf.mxu0
    %v3756 = vpop.f32.mrf.mxu0
    %v3757 = vpop.f32.mrf.mxu0
    %3758 = vdwg.mxu0
    %v3759 = vmul.f32 %v3746, 0.125
    %v3760 = vmul.f32 %v3749, 0.125
    %v3761 = vmul.f32 %v3754, 0.125
    %v3762 = vsel %vm648, %v3759, -1e+30
    %v3763 = vsel %vm648, %v3760, -1e+30
    %v3764 = vsel %vm648, %v3761, -1e+30
    %v3765 = vsel %vm652, %v3762, -inf
    %3766 = vmax.xlane.f32.xlu0 %v3765
    %v3767 = vpop.xlane.xlu0 %3766
    %v3768 = vsel %vm652, %v3763, -inf
    %3769 = vmax.xlane.f32.xlu0 %v3768
    %v3770 = vpop.xlane.xlu0 %3769
    %v3771 = vsel %vm652, %v3764, -inf
    %3772 = vmax.xlane.f32.xlu0 %v3771
    %v3773 = vpop.xlane.xlu0 %3772
    %v3774 = vsub.f32 %v3762, %v3767
    %v3775 = vsub.f32 %v3763, %v3770
    %v3776 = vsub.f32 %v3764, %v3773
    %v3777 = vmul.f32 %v3774, 1.442695
    %v3778 = vpow.pop %v3777
    %v3779 = vmul.f32 %v3775, 1.442695
    %v3780 = vpow.pop %v3779
    %v3781 = vmul.f32 %v3776, 1.442695
    %v3782 = vpow.pop %v3781
    %v3783 = vsel %vm652, %v3778, 0.0
    %3784 = vadd.xlane.f32.xlu0 %v3783
    %v3785 = vpop.xlane.xlu0 %3784
    %v3786 = vsel %vm652, %v3780, 0.0
    %3787 = vadd.xlane.f32.xlu0 %v3786
    %v3788 = vpop.xlane.xlu0 %3787
    %v3789 = vsel %vm652, %v3782, 0.0
    %3790 = vadd.xlane.f32.xlu0 %v3789
    %v3791 = vpop.xlane.xlu0 %3790
    %v3792 = vrcp.pop %v3785
    %v3793 = vmul.f32 %v3778, %v3792
    %v3794 = vrcp.pop %v3788
    %v3795 = vmul.f32 %v3780, %v3794
    %v3796 = vrcp.pop %v3791
    %v3797 = vmul.f32 %v3782, %v3796
    %3800 = vrot.lane.b32.xlu0 %v3695, 64
    %v3801 = vpop.permute.xlu0 %3800
    %3802 = vrot.lane.b32.xlu0 %v3696, 64
    %v3803 = vpop.permute.xlu0 %3802
    %3806 = vrot.lane.b32.xlu0 %v3697, 64
    %v3807 = vpop.permute.xlu0 %3806
    %3808 = vrot.lane.b32.xlu0 %v3698, 64
    %v3809 = vpop.permute.xlu0 %3808
    %v3811 = vsel %vm584, %v3801, 0
    %v3814 = vsel %vm584, %v3803, 0
    %v3817 = vsel %vm584, %v3807, 0
    %v3820 = vsel %vm584, %v3809, 0
    %3822 = vmatprep.subr.bf16.mxu0 0
    %3823 = vmatpush1.bf16.xpose.msra.mxu0 0
    %3824 = vmatprep.subr.bf16.mxu0 0
    %3825 = vmatpush1.bf16.xpose.msra.mxu0 0
    %3826 = vmatprep.subr.bf16.mxu0 0
    %3827 = vmatpush1.bf16.xpose.msra.mxu0 0
    %3828 = vmatprep.subr.bf16.mxu0 0
    %3829 = vmatpush1.bf16.xpose.msra.mxu0 0
    %3830 = vmatprep.subr.bf16.mxu0 0
    %3831 = vmatpush1.bf16.xpose.msra.mxu0 0
    %3832 = vmatprep.subr.bf16.mxu0 0
    %3833 = vmatpush1.bf16.xpose.msra.mxu0 0
    %3834 = vmatprep.subr.bf16.mxu0 0
    %3835 = vmatpush1.bf16.xpose.msra.mxu0 %v3820
    %3836 = vmatprep.subr.bf16.mxu0 0
    %3837 = vmatpush1.bf16.xpose.msra.mxu0 %v3817
    %3838 = vmatprep.subr.bf16.mxu0 0
    %3839 = vmatpush2.bf16.xpose.msra.mxu0 0
    %3840 = vmatprep.subr.bf16.mxu0 0
    %3841 = vmatpush2.bf16.xpose.msra.mxu0 0
    %3842 = vmatprep.subr.bf16.mxu0 0
    %3843 = vmatpush2.bf16.xpose.msra.mxu0 0
    %3844 = vmatprep.subr.bf16.mxu0 0
    %3845 = vmatpush2.bf16.xpose.msra.mxu0 0
    %3846 = vmatprep.subr.bf16.mxu0 0
    %3847 = vmatpush2.bf16.xpose.msra.mxu0 0
    %3848 = vmatprep.subr.bf16.mxu0 0
    %3849 = vmatpush2.bf16.xpose.msra.mxu0 0
    %3850 = vmatprep.subr.bf16.mxu0 0
    %3851 = vmatpush2.bf16.xpose.msra.mxu0 0
    %3852 = vmatprep.subr.bf16.mxu0 0
    %3853 = vmatpush2.bf16.xpose.msra.mxu0 0
    %3854 = vmatprep.mubr.bf16.mxu0 0
    %3855 = vmatmul.mubr.bf16.gmra.mxu0 %v3811
    %v3856 = vpop.f32.mrf.mxu0
    %v3857 = vadd.f32 0.0, %v3856
    %v3858 = vpop.f32.mrf.mxu0
    %v3859 = vpop.f32.mrf.mxu0
    %v3860 = vadd.f32 0.0, %v3859
    %v3861 = vpop.f32.mrf.mxu0
    %3862 = vmatprep.mubr.bf16.mxu0 0
    %3863 = vmatmul.mubr.bf16.gmra.mxu0 %v3814
    %v3864 = vpop.f32.mrf.mxu0
    %v3865 = vadd.f32 0.0, %v3864
    %v3866 = vpop.f32.mrf.mxu0
    %v3867 = vpop.f32.mrf.mxu0
    %v3868 = vpop.f32.mrf.mxu0
    %3869 = vdwg.mxu0
    %v3870 = vmul.f32 %v3857, 0.125
    %v3871 = vmul.f32 %v3860, 0.125
    %v3872 = vmul.f32 %v3865, 0.125
    %v3873 = vsel %vm648, %v3870, -1e+30
    %v3874 = vsel %vm648, %v3871, -1e+30
    %v3875 = vsel %vm648, %v3872, -1e+30
    %v3876 = vsel %vm652, %v3873, -inf
    %3877 = vmax.xlane.f32.xlu0 %v3876
    %v3878 = vpop.xlane.xlu0 %3877
    %v3879 = vsel %vm652, %v3874, -inf
    %3880 = vmax.xlane.f32.xlu0 %v3879
    %v3881 = vpop.xlane.xlu0 %3880
    %v3882 = vsel %vm652, %v3875, -inf
    %3883 = vmax.xlane.f32.xlu0 %v3882
    %v3884 = vpop.xlane.xlu0 %3883
    %v3885 = vsub.f32 %v3873, %v3878
    %v3886 = vsub.f32 %v3874, %v3881
    %v3887 = vsub.f32 %v3875, %v3884
    %v3888 = vmul.f32 %v3885, 1.442695
    %v3889 = vpow.pop %v3888
    %v3890 = vmul.f32 %v3886, 1.442695
    %v3891 = vpow.pop %v3890
    %v3892 = vmul.f32 %v3887, 1.442695
    %v3893 = vpow.pop %v3892
    %v3894 = vsel %vm652, %v3889, 0.0
    %3895 = vadd.xlane.f32.xlu0 %v3894
    %v3896 = vpop.xlane.xlu0 %3895
    %v3897 = vsel %vm652, %v3891, 0.0
    %3898 = vadd.xlane.f32.xlu0 %v3897
    %v3899 = vpop.xlane.xlu0 %3898
    %v3900 = vsel %vm652, %v3893, 0.0
    %3901 = vadd.xlane.f32.xlu0 %v3900
    %v3902 = vpop.xlane.xlu0 %3901
    %v3903 = vrcp.pop %v3896
    %v3904 = vmul.f32 %v3889, %v3903
    %v3905 = vrcp.pop %v3899
    %v3906 = vmul.f32 %v3891, %v3905
    %v3907 = vrcp.pop %v3902
    %v3908 = vmul.f32 %v3893, %v3907
    %v3909 = vpack.c.bf16 %v3547, %v3543
    %v3910 = vpack.c.bf16 %v3553, %v3553
    %v3911 = vpack.c.bf16 %v3610, %v3606
    %v3912 = vpack.c.bf16 %v3616, %v3616
    %v3914 = vsel %vm584, %v3909, 0
    %v3917 = vsel %vm584, %v3910, 0
    %v3920 = vsel %vm584, %v3911, 0
    %v3923 = vsel %vm584, %v3912, 0
    %3925 = vmatprep.subr.bf16.mxu0 0
    %3926 = vmatpush1.bf16.xpose.msra.mxu0 0
    %3927 = vmatprep.subr.bf16.mxu0 0
    %3928 = vmatpush1.bf16.xpose.msra.mxu0 0
    %3929 = vmatprep.subr.bf16.mxu0 0
    %3930 = vmatpush1.bf16.xpose.msra.mxu0 0
    %3931 = vmatprep.subr.bf16.mxu0 0
    %3932 = vmatpush1.bf16.xpose.msra.mxu0 0
    %3933 = vmatprep.subr.bf16.mxu0 0
    %3934 = vmatpush1.bf16.xpose.msra.mxu0 0
    %3935 = vmatprep.subr.bf16.mxu0 0
    %3936 = vmatpush1.bf16.xpose.msra.mxu0 0
    %3937 = vmatprep.subr.bf16.mxu0 0
    %3938 = vmatpush1.bf16.xpose.msra.mxu0 %v3923
    %3939 = vmatprep.subr.bf16.mxu0 0
    %3940 = vmatpush1.bf16.xpose.msra.mxu0 %v3920
    %3941 = vmatprep.subr.bf16.mxu0 0
    %3942 = vmatpush2.bf16.xpose.msra.mxu0 0
    %3943 = vmatprep.subr.bf16.mxu0 0
    %3944 = vmatpush2.bf16.xpose.msra.mxu0 0
    %3945 = vmatprep.subr.bf16.mxu0 0
    %3946 = vmatpush2.bf16.xpose.msra.mxu0 0
    %3947 = vmatprep.subr.bf16.mxu0 0
    %3948 = vmatpush2.bf16.xpose.msra.mxu0 0
    %3949 = vmatprep.subr.bf16.mxu0 0
    %3950 = vmatpush2.bf16.xpose.msra.mxu0 0
    %3951 = vmatprep.subr.bf16.mxu0 0
    %3952 = vmatpush2.bf16.xpose.msra.mxu0 0
    %3953 = vmatprep.subr.bf16.mxu0 0
    %3954 = vmatpush2.bf16.xpose.msra.mxu0 0
    %3955 = vmatprep.subr.bf16.mxu0 0
    %3956 = vmatpush2.bf16.xpose.msra.mxu0 0
    %3957 = vmatprep.mubr.bf16.mxu0 0
    %3958 = vmatmul.mubr.bf16.gmra.mxu0 %v3914
    %v3959 = vpop.f32.mrf.mxu0
    %v3960 = vadd.f32 0.0, %v3959
    %v3961 = vpop.f32.mrf.mxu0
    %v3962 = vpop.f32.mrf.mxu0
    %v3963 = vadd.f32 0.0, %v3962
    %v3964 = vpop.f32.mrf.mxu0
    %3965 = vmatprep.mubr.bf16.mxu0 0
    %3966 = vmatmul.mubr.bf16.gmra.mxu0 %v3917
    %v3967 = vpop.f32.mrf.mxu0
    %v3968 = vadd.f32 0.0, %v3967
    %v3969 = vpop.f32.mrf.mxu0
    %v3970 = vpop.f32.mrf.mxu0
    %v3971 = vpop.f32.mrf.mxu0
    %3972 = vdwg.mxu0
    %v3973 = vmul.f32 %v3960, 0.125
    %v3974 = vmul.f32 %v3963, 0.125
    %v3975 = vmul.f32 %v3968, 0.125
    %v3976 = vsel %vm648, %v3973, -1e+30
    %v3977 = vsel %vm648, %v3974, -1e+30
    %v3978 = vsel %vm648, %v3975, -1e+30
    %v3979 = vsel %vm652, %v3976, -inf
    %3980 = vmax.xlane.f32.xlu0 %v3979
    %v3981 = vpop.xlane.xlu0 %3980
    %v3982 = vsel %vm652, %v3977, -inf
    %3983 = vmax.xlane.f32.xlu0 %v3982
    %v3984 = vpop.xlane.xlu0 %3983
    %v3985 = vsel %vm652, %v3978, -inf
    %3986 = vmax.xlane.f32.xlu0 %v3985
    %v3987 = vpop.xlane.xlu0 %3986
    %v3988 = vsub.f32 %v3976, %v3981
    %v3989 = vsub.f32 %v3977, %v3984
    %v3990 = vsub.f32 %v3978, %v3987
    %v3991 = vmul.f32 %v3988, 1.442695
    %v3992 = vpow.pop %v3991
    %v3993 = vmul.f32 %v3989, 1.442695
    %v3994 = vpow.pop %v3993
    %v3995 = vmul.f32 %v3990, 1.442695
    %v3996 = vpow.pop %v3995
    %v3997 = vsel %vm652, %v3992, 0.0
    %3998 = vadd.xlane.f32.xlu0 %v3997
    %v3999 = vpop.xlane.xlu0 %3998
    %v4000 = vsel %vm652, %v3994, 0.0
    %4001 = vadd.xlane.f32.xlu0 %v4000
    %v4002 = vpop.xlane.xlu0 %4001
    %v4003 = vsel %vm652, %v3996, 0.0
    %4004 = vadd.xlane.f32.xlu0 %v4003
    %v4005 = vpop.xlane.xlu0 %4004
    %v4006 = vrcp.pop %v3999
    %v4007 = vmul.f32 %v3992, %v4006
    %v4008 = vrcp.pop %v4002
    %v4009 = vmul.f32 %v3994, %v4008
    %v4010 = vrcp.pop %v4005
    %v4011 = vmul.f32 %v3996, %v4010
    %4014 = vrot.lane.b32.xlu0 %v3909, 64
    %v4015 = vpop.permute.xlu0 %4014
    %4016 = vrot.lane.b32.xlu0 %v3910, 64
    %v4017 = vpop.permute.xlu0 %4016
    %4020 = vrot.lane.b32.xlu0 %v3911, 64
    %v4021 = vpop.permute.xlu0 %4020
    %4022 = vrot.lane.b32.xlu0 %v3912, 64
    %v4023 = vpop.permute.xlu0 %4022
    %v4025 = vsel %vm584, %v4015, 0
    %v4028 = vsel %vm584, %v4017, 0
    %v4031 = vsel %vm584, %v4021, 0
    %v4034 = vsel %vm584, %v4023, 0
    %4036 = vmatprep.subr.bf16.mxu0 0
    %4037 = vmatpush1.bf16.xpose.msra.mxu0 0
    %4038 = vmatprep.subr.bf16.mxu0 0
    %4039 = vmatpush1.bf16.xpose.msra.mxu0 0
    %4040 = vmatprep.subr.bf16.mxu0 0
    %4041 = vmatpush1.bf16.xpose.msra.mxu0 0
    %4042 = vmatprep.subr.bf16.mxu0 0
    %4043 = vmatpush1.bf16.xpose.msra.mxu0 0
    %4044 = vmatprep.subr.bf16.mxu0 0
    %4045 = vmatpush1.bf16.xpose.msra.mxu0 0
    %4046 = vmatprep.subr.bf16.mxu0 0
    %4047 = vmatpush1.bf16.xpose.msra.mxu0 0
    %4048 = vmatprep.subr.bf16.mxu0 0
    %4049 = vmatpush1.bf16.xpose.msra.mxu0 %v4034
    %4050 = vmatprep.subr.bf16.mxu0 0
    %4051 = vmatpush1.bf16.xpose.msra.mxu0 %v4031
    %4052 = vmatprep.subr.bf16.mxu0 0
    %4053 = vmatpush2.bf16.xpose.msra.mxu0 0
    %4054 = vmatprep.subr.bf16.mxu0 0
    %4055 = vmatpush2.bf16.xpose.msra.mxu0 0
    %4056 = vmatprep.subr.bf16.mxu0 0
    %4057 = vmatpush2.bf16.xpose.msra.mxu0 0
    %4058 = vmatprep.subr.bf16.mxu0 0
    %4059 = vmatpush2.bf16.xpose.msra.mxu0 0
    %4060 = vmatprep.subr.bf16.mxu0 0
    %4061 = vmatpush2.bf16.xpose.msra.mxu0 0
    %4062 = vmatprep.subr.bf16.mxu0 0
    %4063 = vmatpush2.bf16.xpose.msra.mxu0 0
    %4064 = vmatprep.subr.bf16.mxu0 0
    %4065 = vmatpush2.bf16.xpose.msra.mxu0 0
    %4066 = vmatprep.subr.bf16.mxu0 0
    %4067 = vmatpush2.bf16.xpose.msra.mxu0 0
    %4068 = vmatprep.mubr.bf16.mxu0 0
    %4069 = vmatmul.mubr.bf16.gmra.mxu0 %v4025
    %v4070 = vpop.f32.mrf.mxu0
    %v4071 = vadd.f32 0.0, %v4070
    %v4072 = vpop.f32.mrf.mxu0
    %v4073 = vpop.f32.mrf.mxu0
    %v4074 = vadd.f32 0.0, %v4073
    %v4075 = vpop.f32.mrf.mxu0
    %4076 = vmatprep.mubr.bf16.mxu0 0
    %4077 = vmatmul.mubr.bf16.gmra.mxu0 %v4028
    %v4078 = vpop.f32.mrf.mxu0
    %v4079 = vadd.f32 0.0, %v4078
    %v4080 = vpop.f32.mrf.mxu0
    %v4081 = vpop.f32.mrf.mxu0
    %v4082 = vpop.f32.mrf.mxu0
    %4083 = vdwg.mxu0
    %v4084 = vmul.f32 %v4071, 0.125
    %v4085 = vmul.f32 %v4074, 0.125
    %v4086 = vmul.f32 %v4079, 0.125
    %v4087 = vsel %vm648, %v4084, -1e+30
    %v4088 = vsel %vm648, %v4085, -1e+30
    %v4089 = vsel %vm648, %v4086, -1e+30
    %v4090 = vsel %vm652, %v4087, -inf
    %4091 = vmax.xlane.f32.xlu0 %v4090
    %v4092 = vpop.xlane.xlu0 %4091
    %v4093 = vsel %vm652, %v4088, -inf
    %4094 = vmax.xlane.f32.xlu0 %v4093
    %v4095 = vpop.xlane.xlu0 %4094
    %v4096 = vsel %vm652, %v4089, -inf
    %4097 = vmax.xlane.f32.xlu0 %v4096
    %v4098 = vpop.xlane.xlu0 %4097
    %v4099 = vsub.f32 %v4087, %v4092
    %v4100 = vsub.f32 %v4088, %v4095
    %v4101 = vsub.f32 %v4089, %v4098
    %v4102 = vmul.f32 %v4099, 1.442695
    %v4103 = vpow.pop %v4102
    %v4104 = vmul.f32 %v4100, 1.442695
    %v4105 = vpow.pop %v4104
    %v4106 = vmul.f32 %v4101, 1.442695
    %v4107 = vpow.pop %v4106
    %v4108 = vsel %vm652, %v4103, 0.0
    %4109 = vadd.xlane.f32.xlu0 %v4108
    %v4110 = vpop.xlane.xlu0 %4109
    %v4111 = vsel %vm652, %v4105, 0.0
    %4112 = vadd.xlane.f32.xlu0 %v4111
    %v4113 = vpop.xlane.xlu0 %4112
    %v4114 = vsel %vm652, %v4107, 0.0
    %4115 = vadd.xlane.f32.xlu0 %v4114
    %v4116 = vpop.xlane.xlu0 %4115
    %v4117 = vrcp.pop %v4110
    %v4118 = vmul.f32 %v4103, %v4117
    %v4119 = vrcp.pop %v4113
    %v4120 = vmul.f32 %v4105, %v4119
    %v4121 = vrcp.pop %v4116
    %v4122 = vmul.f32 %v4107, %v4121
    %s4123 = sld [smem:[#allocation3 + $0x10]]
    %v4124 = vstv %s4123
    %v4125 = vmul.f32 %v3793, %v4124
    %v4126 = vmul.f32 %v3795, %v4124
    %v4127 = vmul.f32 %v3797, %v4124
    %s4128 = sld [smem:[#allocation3 + $0x14]]
    %v4129 = vstv %s4128
    %v4130 = vmul.f32 %v3904, %v4129
    %v4131 = vmul.f32 %v3906, %v4129
    %v4132 = vmul.f32 %v3908, %v4129
    %v4133 = vadd.f32 %v4125, %v4130
    %v4134 = vadd.f32 %v4126, %v4131
    %v4135 = vadd.f32 %v4127, %v4132
    %s4136 = sld [smem:[#allocation3 + $0x18]]
    %v4137 = vstv %s4136
    %v4138 = vmul.f32 %v4007, %v4137
    %v4139 = vmul.f32 %v4009, %v4137
    %v4140 = vmul.f32 %v4011, %v4137
    %v4141 = vadd.f32 %v4133, %v4138
    %v4142 = vadd.f32 %v4134, %v4139
    %v4143 = vadd.f32 %v4135, %v4140
    %s4144 = sld [smem:[#allocation3 + $0x1c]]
    %v4145 = vstv %s4144
    %v4146 = vmul.f32 %v4118, %v4145
    %v4147 = vmul.f32 %v4120, %v4145
    %v4148 = vmul.f32 %v4122, %v4145
    %v4149 = vadd.f32 %v4141, %v4146
    %v4150 = vadd.f32 %v4142, %v4147
    %v4151 = vadd.f32 %v4143, %v4148
    %s4152 = sld [smem:[#allocation3 + $0x11]]
    %v4153 = vstv %s4152
    %v4154 = vmul.f32 %v3793, %v4153
    %v4155 = vmul.f32 %v3795, %v4153
    %v4156 = vmul.f32 %v3797, %v4153
    %s4157 = sld [smem:[#allocation3 + $0x15]]
    %v4158 = vstv %s4157
    %v4159 = vmul.f32 %v3904, %v4158
    %v4160 = vmul.f32 %v3906, %v4158
    %v4161 = vmul.f32 %v3908, %v4158
    %v4162 = vadd.f32 %v4154, %v4159
    %v4163 = vadd.f32 %v4155, %v4160
    %v4164 = vadd.f32 %v4156, %v4161
    %s4165 = sld [smem:[#allocation3 + $0x19]]
    %v4166 = vstv %s4165
    %v4167 = vmul.f32 %v4007, %v4166
    %v4168 = vmul.f32 %v4009, %v4166
    %v4169 = vmul.f32 %v4011, %v4166
    %v4170 = vadd.f32 %v4162, %v4167
    %v4171 = vadd.f32 %v4163, %v4168
    %v4172 = vadd.f32 %v4164, %v4169
    %s4173 = sld [smem:[#allocation3 + $0x1d]]
    %v4174 = vstv %s4173
    %v4175 = vmul.f32 %v4118, %v4174
    %v4176 = vmul.f32 %v4120, %v4174
    %v4177 = vmul.f32 %v4122, %v4174
    %v4178 = vadd.f32 %v4170, %v4175
    %v4179 = vadd.f32 %v4171, %v4176
    %v4180 = vadd.f32 %v4172, %v4177
    %s4181 = sld [smem:[#allocation3 + $0x12]]
    %v4182 = vstv %s4181
    %v4183 = vmul.f32 %v3793, %v4182
    %v4184 = vmul.f32 %v3795, %v4182
    %v4185 = vmul.f32 %v3797, %v4182
    %s4186 = sld [smem:[#allocation3 + $0x16]]
    %v4187 = vstv %s4186
    %v4188 = vmul.f32 %v3904, %v4187
    %v4189 = vmul.f32 %v3906, %v4187
    %v4190 = vmul.f32 %v3908, %v4187
    %v4191 = vadd.f32 %v4183, %v4188
    %v4192 = vadd.f32 %v4184, %v4189
    %v4193 = vadd.f32 %v4185, %v4190
    %s4194 = sld [smem:[#allocation3 + $0x1a]]
    %v4195 = vstv %s4194
    %v4196 = vmul.f32 %v4007, %v4195
    %v4197 = vmul.f32 %v4009, %v4195
    %v4198 = vmul.f32 %v4011, %v4195
    %v4199 = vadd.f32 %v4191, %v4196
    %v4200 = vadd.f32 %v4192, %v4197
    %v4201 = vadd.f32 %v4193, %v4198
    %s4202 = sld [smem:[#allocation3 + $0x1e]]
    %v4203 = vstv %s4202
    %v4204 = vmul.f32 %v4118, %v4203
    %v4205 = vmul.f32 %v4120, %v4203
    %v4206 = vmul.f32 %v4122, %v4203
    %v4207 = vadd.f32 %v4199, %v4204
    %v4208 = vadd.f32 %v4200, %v4205
    %v4209 = vadd.f32 %v4201, %v4206
    %s4210 = sld [smem:[#allocation3 + $0x13]]
    %v4211 = vstv %s4210
    %v4212 = vmul.f32 %v3793, %v4211
    %v4213 = vmul.f32 %v3795, %v4211
    %v4214 = vmul.f32 %v3797, %v4211
    %s4215 = sld [smem:[#allocation3 + $0x17]]
    %v4216 = vstv %s4215
    %v4217 = vmul.f32 %v3904, %v4216
    %v4218 = vmul.f32 %v3906, %v4216
    %v4219 = vmul.f32 %v3908, %v4216
    %v4220 = vadd.f32 %v4212, %v4217
    %v4221 = vadd.f32 %v4213, %v4218
    %v4222 = vadd.f32 %v4214, %v4219
    %s4223 = sld [smem:[#allocation3 + $0x1b]]
    %v4224 = vstv %s4223
    %v4225 = vmul.f32 %v4007, %v4224
    %v4226 = vmul.f32 %v4009, %v4224
    %v4227 = vmul.f32 %v4011, %v4224
    %v4228 = vadd.f32 %v4220, %v4225
    %v4229 = vadd.f32 %v4221, %v4226
    %v4230 = vadd.f32 %v4222, %v4227
    %s4231 = sld [smem:[#allocation3 + $0x1f]]
    %v4232 = vstv %s4231
    %v4233 = vmul.f32 %v4118, %v4232
    %v4234 = vmul.f32 %v4120, %v4232
    %v4235 = vmul.f32 %v4122, %v4232
    %v4236 = vadd.f32 %v4228, %v4233
    %v4237 = vadd.f32 %v4229, %v4234
    %v4238 = vadd.f32 %v4230, %v4235
    %v4239 = vadd.f32 %v4149, %v4178
    %v4240 = vadd.f32 %v4150, %v4179
    %v4241 = vadd.f32 %v4151, %v4180
    %v4242 = vadd.f32 %v4239, %v4207
    %v4243 = vadd.f32 %v4240, %v4208
    %v4244 = vadd.f32 %v4241, %v4209
    %v4245 = vadd.f32 %v4242, %v4236
    %v4246 = vadd.f32 %v4243, %v4237
    %v4247 = vadd.f32 %v4244, %v4238
    %v4248 = vmul.f32 %v4245, 0.25
    %v4249 = vmul.f32 %v4246, 0.25
    %v4250 = vmul.f32 %v4247, 0.25
    %v4251 = vsub.f32 %v4149, %v4248
    %v4252 = vsub.f32 %v4150, %v4249
    %v4253 = vsub.f32 %v4151, %v4250
    %v4254 = vmul.f32 %v4251, %v4251
    %v4255 = vmul.f32 %v4252, %v4252
    %v4256 = vmul.f32 %v4253, %v4253
    %v4257 = vsub.f32 %v4178, %v4248
    %v4258 = vsub.f32 %v4179, %v4249
    %v4259 = vsub.f32 %v4180, %v4250
    %v4260 = vmul.f32 %v4257, %v4257
    %v4261 = vmul.f32 %v4258, %v4258
    %v4262 = vmul.f32 %v4259, %v4259
    %v4263 = vadd.f32 %v4254, %v4260
    %v4264 = vadd.f32 %v4255, %v4261
    %v4265 = vadd.f32 %v4256, %v4262
    %v4266 = vsub.f32 %v4207, %v4248
    %v4267 = vsub.f32 %v4208, %v4249
    %v4268 = vsub.f32 %v4209, %v4250
    %v4269 = vmul.f32 %v4266, %v4266
    %v4270 = vmul.f32 %v4267, %v4267
    %v4271 = vmul.f32 %v4268, %v4268
    %v4272 = vadd.f32 %v4263, %v4269
    %v4273 = vadd.f32 %v4264, %v4270
    %v4274 = vadd.f32 %v4265, %v4271
    %v4275 = vsub.f32 %v4236, %v4248
    %v4276 = vsub.f32 %v4237, %v4249
    %v4277 = vsub.f32 %v4238, %v4250
    %v4278 = vmul.f32 %v4275, %v4275
    %v4279 = vmul.f32 %v4276, %v4276
    %v4280 = vmul.f32 %v4277, %v4277
    %v4281 = vadd.f32 %v4272, %v4278
    %v4282 = vadd.f32 %v4273, %v4279
    %v4283 = vadd.f32 %v4274, %v4280
    %v4284 = vmul.f32 %v4281, 0.25
    %v4285 = vmul.f32 %v4282, 0.25
    %v4286 = vmul.f32 %v4283, 0.25
    %v4287 = vadd.f32 %v4284, 1e-05
    %v4288 = vadd.f32 %v4285, 1e-05
    %v4289 = vadd.f32 %v4286, 1e-05
    %v4290 = vrsqrt.pop %v4287
    %v4291 = vrsqrt.pop %v4288
    %v4292 = vrsqrt.pop %v4289
    %v4293 = vmul.f32 %v4251, %v4290
    %v4294 = vmul.f32 %v4252, %v4291
    %v4295 = vmul.f32 %v4253, %v4292
    %s4296 = sld [smem:[#allocation3 + $0x24]]
    %v4297 = vstv %s4296
    %v4298 = vmul.f32 %v4293, %v4297
    %v4299 = vmul.f32 %v4294, %v4297
    %v4300 = vmul.f32 %v4295, %v4297
    %s4301 = sld [smem:[#allocation3 + $0x2c]]
    %v4302 = vstv %s4301
    %v4303 = vadd.f32 %v4298, %v4302
    %v4304 = vadd.f32 %v4299, %v4302
    %v4305 = vadd.f32 %v4300, %v4302
    %v4306 = vmul.f32 %v4303, %v204
    %v4307 = vmul.f32 %v4304, %v204
    %v4308 = vmul.f32 %v4305, %v204
    %v4309 = vpack.c.bf16 %v4307, %v4306
    %v4310 = vpack.c.bf16 %v4308, %v4308
    %v4311 = vpack.c.bf16 %v3671, %v3667
    %v4312 = vpack.c.bf16 %v3677, %v3677
    %v4314 = vsel %vm652, %v4309, 0
    %v4317 = vsel %vm652, %v4310, 0
    %v4320 = vsel %vm1207, %v4312, 0
    %4322 = vmatprep.subr.bf16.mxu0 0
    %4323 = vmatpush1.bf16.msra.mxu0 0
    %4324 = vmatprep.subr.bf16.mxu0 0
    %4325 = vmatpush1.bf16.msra.mxu0 0
    %4326 = vmatprep.subr.bf16.mxu0 0
    %4327 = vmatpush1.bf16.msra.mxu0 0
    %4328 = vmatprep.subr.bf16.mxu0 0
    %4329 = vmatpush1.bf16.msra.mxu0 0
    %4330 = vmatprep.subr.bf16.mxu0 0
    %4331 = vmatpush1.bf16.msra.mxu0 0
    %4332 = vmatprep.subr.bf16.mxu0 0
    %4333 = vmatpush1.bf16.msra.mxu0 0
    %4334 = vmatprep.subr.bf16.mxu0 0
    %4335 = vmatpush1.bf16.msra.mxu0 %v4320
    %4336 = vmatprep.subr.bf16.mxu0 0
    %4337 = vmatpush1.bf16.msra.mxu0 %v4311
    %4338 = vmatprep.subr.bf16.mxu0 0
    %4339 = vmatpush2.bf16.msra.mxu0 0
    %4340 = vmatprep.subr.bf16.mxu0 0
    %4341 = vmatpush2.bf16.msra.mxu0 0
    %4342 = vmatprep.subr.bf16.mxu0 0
    %4343 = vmatpush2.bf16.msra.mxu0 0
    %4344 = vmatprep.subr.bf16.mxu0 0
    %4345 = vmatpush2.bf16.msra.mxu0 0
    %4346 = vmatprep.subr.bf16.mxu0 0
    %4347 = vmatpush2.bf16.msra.mxu0 0
    %4348 = vmatprep.subr.bf16.mxu0 0
    %4349 = vmatpush2.bf16.msra.mxu0 0
    %4350 = vmatprep.subr.bf16.mxu0 0
    %4351 = vmatpush2.bf16.msra.mxu0 0
    %4352 = vmatprep.subr.bf16.mxu0 0
    %4353 = vmatpush2.bf16.msra.mxu0 0
    %4354 = vmatprep.mubr.bf16.mxu0 0
    %4355 = vmatmul.mubr.bf16.gmra.mxu0 %v4314
    %v4356 = vpop.f32.mrf.mxu0
    %v4357 = vadd.f32 0.0, %v4356
    %v4358 = vpop.f32.mrf.mxu0
    %v4359 = vpop.f32.mrf.mxu0
    %v4360 = vadd.f32 0.0, %v4359
    %v4361 = vpop.f32.mrf.mxu0
    %4362 = vmatprep.mubr.bf16.mxu0 0
    %4363 = vmatmul.mubr.bf16.gmra.mxu0 %v4317
    %v4364 = vpop.f32.mrf.mxu0
    %v4365 = vadd.f32 0.0, %v4364
    %v4366 = vpop.f32.mrf.mxu0
    %v4367 = vpop.f32.mrf.mxu0
    %v4368 = vpop.f32.mrf.mxu0
    %4369 = vdwg.mxu0
    %4370 = vst.msk [vmem:[#allocation2] sm:$0xff] %vm584, %v4357
    %4371 = vst.msk [vmem:[#allocation2 + $0x20] sm:$0xff] %vm584, %v4360
    %4372 = vst.msk [vmem:[#allocation2 + $0x40] sm:$0xff] %vm584, %v4365
    %v4373 = vmul.f32 %v4257, %v4290
    %v4374 = vmul.f32 %v4258, %v4291
    %v4375 = vmul.f32 %v4259, %v4292
    %s4376 = sld [smem:[#allocation3 + $0x25]]
    %v4377 = vstv %s4376
    %v4378 = vmul.f32 %v4373, %v4377
    %v4379 = vmul.f32 %v4374, %v4377
    %v4380 = vmul.f32 %v4375, %v4377
    %s4381 = sld [smem:[#allocation3 + $0x2d]]
    %v4382 = vstv %s4381
    %v4383 = vadd.f32 %v4378, %v4382
    %v4384 = vadd.f32 %v4379, %v4382
    %v4385 = vadd.f32 %v4380, %v4382
    %v4386 = vmul.f32 %v4383, %v204
    %v4387 = vmul.f32 %v4384, %v204
    %v4388 = vmul.f32 %v4385, %v204
    %v4389 = vpack.c.bf16 %v4387, %v4386
    %v4390 = vpack.c.bf16 %v4388, %v4388
    %4393 = vrot.lane.b32.xlu0 %v4311, 64
    %v4394 = vpop.permute.xlu0 %4393
    %4395 = vrot.lane.b32.xlu0 %v4312, 64
    %v4396 = vpop.permute.xlu0 %4395
    %v4399 = vsel %vm652, %v4389, 0
    %v4402 = vsel %vm652, %v4390, 0
    %v4405 = vsel %vm1207, %v4396, 0
    %4407 = vmatprep.subr.bf16.mxu0 0
    %4408 = vmatpush1.bf16.msra.mxu0 0
    %4409 = vmatprep.subr.bf16.mxu0 0
    %4410 = vmatpush1.bf16.msra.mxu0 0
    %4411 = vmatprep.subr.bf16.mxu0 0
    %4412 = vmatpush1.bf16.msra.mxu0 0
    %4413 = vmatprep.subr.bf16.mxu0 0
    %4414 = vmatpush1.bf16.msra.mxu0 0
    %4415 = vmatprep.subr.bf16.mxu0 0
    %4416 = vmatpush1.bf16.msra.mxu0 0
    %4417 = vmatprep.subr.bf16.mxu0 0
    %4418 = vmatpush1.bf16.msra.mxu0 0
    %4419 = vmatprep.subr.bf16.mxu0 0
    %4420 = vmatpush1.bf16.msra.mxu0 %v4405
    %4421 = vmatprep.subr.bf16.mxu0 0
    %4422 = vmatpush1.bf16.msra.mxu0 %v4394
    %4423 = vmatprep.subr.bf16.mxu0 0
    %4424 = vmatpush2.bf16.msra.mxu0 0
    %4425 = vmatprep.subr.bf16.mxu0 0
    %4426 = vmatpush2.bf16.msra.mxu0 0
    %4427 = vmatprep.subr.bf16.mxu0 0
    %4428 = vmatpush2.bf16.msra.mxu0 0
    %4429 = vmatprep.subr.bf16.mxu0 0
    %4430 = vmatpush2.bf16.msra.mxu0 0
    %4431 = vmatprep.subr.bf16.mxu0 0
    %4432 = vmatpush2.bf16.msra.mxu0 0
    %4433 = vmatprep.subr.bf16.mxu0 0
    %4434 = vmatpush2.bf16.msra.mxu0 0
    %4435 = vmatprep.subr.bf16.mxu0 0
    %4436 = vmatpush2.bf16.msra.mxu0 0
    %4437 = vmatprep.subr.bf16.mxu0 0
    %4438 = vmatpush2.bf16.msra.mxu0 0
    %4439 = vmatprep.mubr.bf16.mxu0 0
    %4440 = vmatmul.mubr.bf16.gmra.mxu0 %v4399
    %v4441 = vpop.f32.mrf.mxu0
    %v4442 = vadd.f32 0.0, %v4441
    %v4443 = vpop.f32.mrf.mxu0
    %v4444 = vpop.f32.mrf.mxu0
    %v4445 = vadd.f32 0.0, %v4444
    %v4446 = vpop.f32.mrf.mxu0
    %4447 = vmatprep.mubr.bf16.mxu0 0
    %4448 = vmatmul.mubr.bf16.gmra.mxu0 %v4402
    %v4449 = vpop.f32.mrf.mxu0
    %v4450 = vadd.f32 0.0, %v4449
    %v4451 = vpop.f32.mrf.mxu0
    %v4452 = vpop.f32.mrf.mxu0
    %v4453 = vpop.f32.mrf.mxu0
    %4454 = vdwg.mxu0
    %4455 = vst.msk [vmem:[#allocation2 + $0x8] sm:$0xff] %vm584, %v4442
    %4456 = vst.msk [vmem:[#allocation2 + $0x28] sm:$0xff] %vm584, %v4445
    %4457 = vst.msk [vmem:[#allocation2 + $0x48] sm:$0xff] %vm584, %v4450
    %v4458 = vmul.f32 %v4266, %v4290
    %v4459 = vmul.f32 %v4267, %v4291
    %v4460 = vmul.f32 %v4268, %v4292
    %s4461 = sld [smem:[#allocation3 + $0x26]]
    %v4462 = vstv %s4461
    %v4463 = vmul.f32 %v4458, %v4462
    %v4464 = vmul.f32 %v4459, %v4462
    %v4465 = vmul.f32 %v4460, %v4462
    %s4466 = sld [smem:[#allocation3 + $0x2e]]
    %v4467 = vstv %s4466
    %v4468 = vadd.f32 %v4463, %v4467
    %v4469 = vadd.f32 %v4464, %v4467
    %v4470 = vadd.f32 %v4465, %v4467
    %v4471 = vmul.f32 %v4468, %v204
    %v4472 = vmul.f32 %v4469, %v204
    %v4473 = vmul.f32 %v4470, %v204
    %v4474 = vpack.c.bf16 %v4472, %v4471
    %v4475 = vpack.c.bf16 %v4473, %v4473
    %v4476 = vpack.c.bf16 %v3673, %v3669
    %v4477 = vpack.c.bf16 %v3679, %v3679
    %v4479 = vsel %vm652, %v4474, 0
    %v4482 = vsel %vm652, %v4475, 0
    %v4485 = vsel %vm1207, %v4477, 0
    %4487 = vmatprep.subr.bf16.mxu0 0
    %4488 = vmatpush1.bf16.msra.mxu0 0
    %4489 = vmatprep.subr.bf16.mxu0 0
    %4490 = vmatpush1.bf16.msra.mxu0 0
    %4491 = vmatprep.subr.bf16.mxu0 0
    %4492 = vmatpush1.bf16.msra.mxu0 0
    %4493 = vmatprep.subr.bf16.mxu0 0
    %4494 = vmatpush1.bf16.msra.mxu0 0
    %4495 = vmatprep.subr.bf16.mxu0 0
    %4496 = vmatpush1.bf16.msra.mxu0 0
    %4497 = vmatprep.subr.bf16.mxu0 0
    %4498 = vmatpush1.bf16.msra.mxu0 0
    %4499 = vmatprep.subr.bf16.mxu0 0
    %4500 = vmatpush1.bf16.msra.mxu0 %v4485
    %4501 = vmatprep.subr.bf16.mxu0 0
    %4502 = vmatpush1.bf16.msra.mxu0 %v4476
    %4503 = vmatprep.subr.bf16.mxu0 0
    %4504 = vmatpush2.bf16.msra.mxu0 0
    %4505 = vmatprep.subr.bf16.mxu0 0
    %4506 = vmatpush2.bf16.msra.mxu0 0
    %4507 = vmatprep.subr.bf16.mxu0 0
    %4508 = vmatpush2.bf16.msra.mxu0 0
    %4509 = vmatprep.subr.bf16.mxu0 0
    %4510 = vmatpush2.bf16.msra.mxu0 0
    %4511 = vmatprep.subr.bf16.mxu0 0
    %4512 = vmatpush2.bf16.msra.mxu0 0
    %4513 = vmatprep.subr.bf16.mxu0 0
    %4514 = vmatpush2.bf16.msra.mxu0 0
    %4515 = vmatprep.subr.bf16.mxu0 0
    %4516 = vmatpush2.bf16.msra.mxu0 0
    %4517 = vmatprep.subr.bf16.mxu0 0
    %4518 = vmatpush2.bf16.msra.mxu0 0
    %4519 = vmatprep.mubr.bf16.mxu0 0
    %4520 = vmatmul.mubr.bf16.gmra.mxu0 %v4479
    %v4521 = vpop.f32.mrf.mxu0
    %v4522 = vadd.f32 0.0, %v4521
    %v4523 = vpop.f32.mrf.mxu0
    %v4524 = vpop.f32.mrf.mxu0
    %v4525 = vadd.f32 0.0, %v4524
    %v4526 = vpop.f32.mrf.mxu0
    %4527 = vmatprep.mubr.bf16.mxu0 0
    %4528 = vmatmul.mubr.bf16.gmra.mxu0 %v4482
    %v4529 = vpop.f32.mrf.mxu0
    %v4530 = vadd.f32 0.0, %v4529
    %v4531 = vpop.f32.mrf.mxu0
    %v4532 = vpop.f32.mrf.mxu0
    %v4533 = vpop.f32.mrf.mxu0
    %4534 = vdwg.mxu0
    %4535 = vst.msk [vmem:[#allocation2 + $0x10] sm:$0xff] %vm584, %v4522
    %4536 = vst.msk [vmem:[#allocation2 + $0x30] sm:$0xff] %vm584, %v4525
    %4537 = vst.msk [vmem:[#allocation2 + $0x50] sm:$0xff] %vm584, %v4530
    %v4538 = vmul.f32 %v4275, %v4290
    %v4539 = vmul.f32 %v4276, %v4291
    %v4540 = vmul.f32 %v4277, %v4292
    %s4541 = sld [smem:[#allocation3 + $0x27]]
    %v4542 = vstv %s4541
    %v4543 = vmul.f32 %v4538, %v4542
    %v4544 = vmul.f32 %v4539, %v4542
    %v4545 = vmul.f32 %v4540, %v4542
    %s4546 = sld [smem:[#allocation3 + $0x2f]]
    %v4547 = vstv %s4546
    %v4548 = vadd.f32 %v4543, %v4547
    %v4549 = vadd.f32 %v4544, %v4547
    %v4550 = vadd.f32 %v4545, %v4547
    %v4551 = vmul.f32 %v4548, %v204
    %v4552 = vmul.f32 %v4549, %v204
    %v4553 = vmul.f32 %v4550, %v204
    %v4554 = vpack.c.bf16 %v4552, %v4551
    %v4555 = vpack.c.bf16 %v4553, %v4553
    %4558 = vrot.lane.b32.xlu0 %v4476, 64
    %v4559 = vpop.permute.xlu0 %4558
    %4560 = vrot.lane.b32.xlu0 %v4477, 64
    %v4561 = vpop.permute.xlu0 %4560
    %v4564 = vsel %vm652, %v4554, 0
    %v4567 = vsel %vm652, %v4555, 0
    %v4570 = vsel %vm1207, %v4561, 0
    %4572 = vmatprep.subr.bf16.mxu0 0
    %4573 = vmatpush1.bf16.msra.mxu0 0
    %4574 = vmatprep.subr.bf16.mxu0 0
    %4575 = vmatpush1.bf16.msra.mxu0 0
    %4576 = vmatprep.subr.bf16.mxu0 0
    %4577 = vmatpush1.bf16.msra.mxu0 0
    %4578 = vmatprep.subr.bf16.mxu0 0
    %4579 = vmatpush1.bf16.msra.mxu0 0
    %4580 = vmatprep.subr.bf16.mxu0 0
    %4581 = vmatpush1.bf16.msra.mxu0 0
    %4582 = vmatprep.subr.bf16.mxu0 0
    %4583 = vmatpush1.bf16.msra.mxu0 0
    %4584 = vmatprep.subr.bf16.mxu0 0
    %4585 = vmatpush1.bf16.msra.mxu0 %v4570
    %4586 = vmatprep.subr.bf16.mxu0 0
    %4587 = vmatpush1.bf16.msra.mxu0 %v4559
    %4588 = vmatprep.subr.bf16.mxu0 0
    %4589 = vmatpush2.bf16.msra.mxu0 0
    %4590 = vmatprep.subr.bf16.mxu0 0
    %4591 = vmatpush2.bf16.msra.mxu0 0
    %4592 = vmatprep.subr.bf16.mxu0 0
    %4593 = vmatpush2.bf16.msra.mxu0 0
    %4594 = vmatprep.subr.bf16.mxu0 0
    %4595 = vmatpush2.bf16.msra.mxu0 0
    %4596 = vmatprep.subr.bf16.mxu0 0
    %4597 = vmatpush2.bf16.msra.mxu0 0
    %4598 = vmatprep.subr.bf16.mxu0 0
    %4599 = vmatpush2.bf16.msra.mxu0 0
    %4600 = vmatprep.subr.bf16.mxu0 0
    %4601 = vmatpush2.bf16.msra.mxu0 0
    %4602 = vmatprep.subr.bf16.mxu0 0
    %4603 = vmatpush2.bf16.msra.mxu0 0
    %4604 = vmatprep.mubr.bf16.mxu0 0
    %4605 = vmatmul.mubr.bf16.gmra.mxu0 %v4564
    %v4606 = vpop.f32.mrf.mxu0
    %v4607 = vadd.f32 0.0, %v4606
    %v4608 = vpop.f32.mrf.mxu0
    %v4609 = vpop.f32.mrf.mxu0
    %v4610 = vadd.f32 0.0, %v4609
    %v4611 = vpop.f32.mrf.mxu0
    %4612 = vmatprep.mubr.bf16.mxu0 0
    %4613 = vmatmul.mubr.bf16.gmra.mxu0 %v4567
    %v4614 = vpop.f32.mrf.mxu0
    %v4615 = vadd.f32 0.0, %v4614
    %v4616 = vpop.f32.mrf.mxu0
    %v4617 = vpop.f32.mrf.mxu0
    %v4618 = vpop.f32.mrf.mxu0
    %4619 = vdwg.mxu0
    %4620 = vst.msk [vmem:[#allocation2 + $0x18] sm:$0xff] %vm584, %v4607
    %4621 = vst.msk [vmem:[#allocation2 + $0x38] sm:$0xff] %vm584, %v4610
    %4622 = vst.msk [vmem:[#allocation2 + $0x58] sm:$0xff] %vm584, %v4615
    %v4623 = vpack.c.bf16 %v3561, %v3555
    %v4624 = vpack.c.bf16 %v3565, %v3565
    %v4625 = vpack.c.bf16 %v3624, %v3618
    %v4626 = vpack.c.bf16 %v3628, %v3628
    %v4628 = vsel %vm584, %v4623, 0
    %v4631 = vsel %vm584, %v4624, 0
    %v4634 = vsel %vm584, %v4625, 0
    %v4637 = vsel %vm584, %v4626, 0
    %4639 = vmatprep.subr.bf16.mxu0 0
    %4640 = vmatpush1.bf16.xpose.msra.mxu0 0
    %4641 = vmatprep.subr.bf16.mxu0 0
    %4642 = vmatpush1.bf16.xpose.msra.mxu0 0
    %4643 = vmatprep.subr.bf16.mxu0 0
    %4644 = vmatpush1.bf16.xpose.msra.mxu0 0
    %4645 = vmatprep.subr.bf16.mxu0 0
    %4646 = vmatpush1.bf16.xpose.msra.mxu0 0
    %4647 = vmatprep.subr.bf16.mxu0 0
    %4648 = vmatpush1.bf16.xpose.msra.mxu0 0
    %4649 = vmatprep.subr.bf16.mxu0 0
    %4650 = vmatpush1.bf16.xpose.msra.mxu0 0
    %4651 = vmatprep.subr.bf16.mxu0 0
    %4652 = vmatpush1.bf16.xpose.msra.mxu0 %v4637
    %4653 = vmatprep.subr.bf16.mxu0 0
    %4654 = vmatpush1.bf16.xpose.msra.mxu0 %v4634
    %4655 = vmatprep.subr.bf16.mxu0 0
    %4656 = vmatpush2.bf16.xpose.msra.mxu0 0
    %4657 = vmatprep.subr.bf16.mxu0 0
    %4658 = vmatpush2.bf16.xpose.msra.mxu0 0
    %4659 = vmatprep.subr.bf16.mxu0 0
    %4660 = vmatpush2.bf16.xpose.msra.mxu0 0
    %4661 = vmatprep.subr.bf16.mxu0 0
    %4662 = vmatpush2.bf16.xpose.msra.mxu0 0
    %4663 = vmatprep.subr.bf16.mxu0 0
    %4664 = vmatpush2.bf16.xpose.msra.mxu0 0
    %4665 = vmatprep.subr.bf16.mxu0 0
    %4666 = vmatpush2.bf16.xpose.msra.mxu0 0
    %4667 = vmatprep.subr.bf16.mxu0 0
    %4668 = vmatpush2.bf16.xpose.msra.mxu0 0
    %4669 = vmatprep.subr.bf16.mxu0 0
    %4670 = vmatpush2.bf16.xpose.msra.mxu0 0
    %4671 = vmatprep.mubr.bf16.mxu0 0
    %4672 = vmatmul.mubr.bf16.gmra.mxu0 %v4628
    %v4673 = vpop.f32.mrf.mxu0
    %v4674 = vadd.f32 0.0, %v4673
    %v4675 = vpop.f32.mrf.mxu0
    %v4676 = vpop.f32.mrf.mxu0
    %v4677 = vadd.f32 0.0, %v4676
    %v4678 = vpop.f32.mrf.mxu0
    %4679 = vmatprep.mubr.bf16.mxu0 0
    %4680 = vmatmul.mubr.bf16.gmra.mxu0 %v4631
    %v4681 = vpop.f32.mrf.mxu0
    %v4682 = vadd.f32 0.0, %v4681
    %v4683 = vpop.f32.mrf.mxu0
    %v4684 = vpop.f32.mrf.mxu0
    %v4685 = vpop.f32.mrf.mxu0
    %4686 = vdwg.mxu0
    %v4687 = vmul.f32 %v4674, 0.125
    %v4688 = vmul.f32 %v4677, 0.125
    %v4689 = vmul.f32 %v4682, 0.125
    %v4690 = vsel %vm648, %v4687, -1e+30
    %v4691 = vsel %vm648, %v4688, -1e+30
    %v4692 = vsel %vm648, %v4689, -1e+30
    %v4693 = vsel %vm652, %v4690, -inf
    %4694 = vmax.xlane.f32.xlu0 %v4693
    %v4695 = vpop.xlane.xlu0 %4694
    %v4696 = vsel %vm652, %v4691, -inf
    %4697 = vmax.xlane.f32.xlu0 %v4696
    %v4698 = vpop.xlane.xlu0 %4697
    %v4699 = vsel %vm652, %v4692, -inf
    %4700 = vmax.xlane.f32.xlu0 %v4699
    %v4701 = vpop.xlane.xlu0 %4700
    %v4702 = vsub.f32 %v4690, %v4695
    %v4703 = vsub.f32 %v4691, %v4698
    %v4704 = vsub.f32 %v4692, %v4701
    %v4705 = vmul.f32 %v4702, 1.442695
    %v4706 = vpow.pop %v4705
    %v4707 = vmul.f32 %v4703, 1.442695
    %v4708 = vpow.pop %v4707
    %v4709 = vmul.f32 %v4704, 1.442695
    %v4710 = vpow.pop %v4709
    %v4711 = vsel %vm652, %v4706, 0.0
    %4712 = vadd.xlane.f32.xlu0 %v4711
    %v4713 = vpop.xlane.xlu0 %4712
    %v4714 = vsel %vm652, %v4708, 0.0
    %4715 = vadd.xlane.f32.xlu0 %v4714
    %v4716 = vpop.xlane.xlu0 %4715
    %v4717 = vsel %vm652, %v4710, 0.0
    %4718 = vadd.xlane.f32.xlu0 %v4717
    %v4719 = vpop.xlane.xlu0 %4718
    %v4720 = vrcp.pop %v4713
    %v4721 = vmul.f32 %v4706, %v4720
    %v4722 = vrcp.pop %v4716
    %v4723 = vmul.f32 %v4708, %v4722
    %v4724 = vrcp.pop %v4719
    %v4725 = vmul.f32 %v4710, %v4724
    %4728 = vrot.lane.b32.xlu0 %v4623, 64
    %v4729 = vpop.permute.xlu0 %4728
    %4730 = vrot.lane.b32.xlu0 %v4624, 64
    %v4731 = vpop.permute.xlu0 %4730
    %4734 = vrot.lane.b32.xlu0 %v4625, 64
    %v4735 = vpop.permute.xlu0 %4734
    %4736 = vrot.lane.b32.xlu0 %v4626, 64
    %v4737 = vpop.permute.xlu0 %4736
    %v4739 = vsel %vm584, %v4729, 0
    %v4742 = vsel %vm584, %v4731, 0
    %v4745 = vsel %vm584, %v4735, 0
    %v4748 = vsel %vm584, %v4737, 0
    %4750 = vmatprep.subr.bf16.mxu0 0
    %4751 = vmatpush1.bf16.xpose.msra.mxu0 0
    %4752 = vmatprep.subr.bf16.mxu0 0
    %4753 = vmatpush1.bf16.xpose.msra.mxu0 0
    %4754 = vmatprep.subr.bf16.mxu0 0
    %4755 = vmatpush1.bf16.xpose.msra.mxu0 0
    %4756 = vmatprep.subr.bf16.mxu0 0
    %4757 = vmatpush1.bf16.xpose.msra.mxu0 0
    %4758 = vmatprep.subr.bf16.mxu0 0
    %4759 = vmatpush1.bf16.xpose.msra.mxu0 0
    %4760 = vmatprep.subr.bf16.mxu0 0
    %4761 = vmatpush1.bf16.xpose.msra.mxu0 0
    %4762 = vmatprep.subr.bf16.mxu0 0
    %4763 = vmatpush1.bf16.xpose.msra.mxu0 %v4748
    %4764 = vmatprep.subr.bf16.mxu0 0
    %4765 = vmatpush1.bf16.xpose.msra.mxu0 %v4745
    %4766 = vmatprep.subr.bf16.mxu0 0
    %4767 = vmatpush2.bf16.xpose.msra.mxu0 0
    %4768 = vmatprep.subr.bf16.mxu0 0
    %4769 = vmatpush2.bf16.xpose.msra.mxu0 0
    %4770 = vmatprep.subr.bf16.mxu0 0
    %4771 = vmatpush2.bf16.xpose.msra.mxu0 0
    %4772 = vmatprep.subr.bf16.mxu0 0
    %4773 = vmatpush2.bf16.xpose.msra.mxu0 0
    %4774 = vmatprep.subr.bf16.mxu0 0
    %4775 = vmatpush2.bf16.xpose.msra.mxu0 0
    %4776 = vmatprep.subr.bf16.mxu0 0
    %4777 = vmatpush2.bf16.xpose.msra.mxu0 0
    %4778 = vmatprep.subr.bf16.mxu0 0
    %4779 = vmatpush2.bf16.xpose.msra.mxu0 0
    %4780 = vmatprep.subr.bf16.mxu0 0
    %4781 = vmatpush2.bf16.xpose.msra.mxu0 0
    %4782 = vmatprep.mubr.bf16.mxu0 0
    %4783 = vmatmul.mubr.bf16.gmra.mxu0 %v4739
    %v4784 = vpop.f32.mrf.mxu0
    %v4785 = vadd.f32 0.0, %v4784
    %v4786 = vpop.f32.mrf.mxu0
    %v4787 = vpop.f32.mrf.mxu0
    %v4788 = vadd.f32 0.0, %v4787
    %v4789 = vpop.f32.mrf.mxu0
    %4790 = vmatprep.mubr.bf16.mxu0 0
    %4791 = vmatmul.mubr.bf16.gmra.mxu0 %v4742
    %v4792 = vpop.f32.mrf.mxu0
    %v4793 = vadd.f32 0.0, %v4792
    %v4794 = vpop.f32.mrf.mxu0
    %v4795 = vpop.f32.mrf.mxu0
    %v4796 = vpop.f32.mrf.mxu0
    %4797 = vdwg.mxu0
    %v4798 = vmul.f32 %v4785, 0.125
    %v4799 = vmul.f32 %v4788, 0.125
    %v4800 = vmul.f32 %v4793, 0.125
    %v4801 = vsel %vm648, %v4798, -1e+30
    %v4802 = vsel %vm648, %v4799, -1e+30
    %v4803 = vsel %vm648, %v4800, -1e+30
    %v4804 = vsel %vm652, %v4801, -inf
    %4805 = vmax.xlane.f32.xlu0 %v4804
    %v4806 = vpop.xlane.xlu0 %4805
    %v4807 = vsel %vm652, %v4802, -inf
    %4808 = vmax.xlane.f32.xlu0 %v4807
    %v4809 = vpop.xlane.xlu0 %4808
    %v4810 = vsel %vm652, %v4803, -inf
    %4811 = vmax.xlane.f32.xlu0 %v4810
    %v4812 = vpop.xlane.xlu0 %4811
    %v4813 = vsub.f32 %v4801, %v4806
    %v4814 = vsub.f32 %v4802, %v4809
    %v4815 = vsub.f32 %v4803, %v4812
    %v4816 = vmul.f32 %v4813, 1.442695
    %v4817 = vpow.pop %v4816
    %v4818 = vmul.f32 %v4814, 1.442695
    %v4819 = vpow.pop %v4818
    %v4820 = vmul.f32 %v4815, 1.442695
    %v4821 = vpow.pop %v4820
    %v4822 = vsel %vm652, %v4817, 0.0
    %4823 = vadd.xlane.f32.xlu0 %v4822
    %v4824 = vpop.xlane.xlu0 %4823
    %v4825 = vsel %vm652, %v4819, 0.0
    %4826 = vadd.xlane.f32.xlu0 %v4825
    %v4827 = vpop.xlane.xlu0 %4826
    %v4828 = vsel %vm652, %v4821, 0.0
    %4829 = vadd.xlane.f32.xlu0 %v4828
    %v4830 = vpop.xlane.xlu0 %4829
    %v4831 = vrcp.pop %v4824
    %v4832 = vmul.f32 %v4817, %v4831
    %v4833 = vrcp.pop %v4827
    %v4834 = vmul.f32 %v4819, %v4833
    %v4835 = vrcp.pop %v4830
    %v4836 = vmul.f32 %v4821, %v4835
    %v4837 = vpack.c.bf16 %v3563, %v3557
    %v4838 = vpack.c.bf16 %v3567, %v3567
    %v4839 = vpack.c.bf16 %v3626, %v3620
    %v4840 = vpack.c.bf16 %v3630, %v3630
    %v4842 = vsel %vm584, %v4837, 0
    %v4845 = vsel %vm584, %v4838, 0
    %v4848 = vsel %vm584, %v4839, 0
    %v4851 = vsel %vm584, %v4840, 0
    %4853 = vmatprep.subr.bf16.mxu0 0
    %4854 = vmatpush1.bf16.xpose.msra.mxu0 0
    %4855 = vmatprep.subr.bf16.mxu0 0
    %4856 = vmatpush1.bf16.xpose.msra.mxu0 0
    %4857 = vmatprep.subr.bf16.mxu0 0
    %4858 = vmatpush1.bf16.xpose.msra.mxu0 0
    %4859 = vmatprep.subr.bf16.mxu0 0
    %4860 = vmatpush1.bf16.xpose.msra.mxu0 0
    %4861 = vmatprep.subr.bf16.mxu0 0
    %4862 = vmatpush1.bf16.xpose.msra.mxu0 0
    %4863 = vmatprep.subr.bf16.mxu0 0
    %4864 = vmatpush1.bf16.xpose.msra.mxu0 0
    %4865 = vmatprep.subr.bf16.mxu0 0
    %4866 = vmatpush1.bf16.xpose.msra.mxu0 %v4851
    %4867 = vmatprep.subr.bf16.mxu0 0
    %4868 = vmatpush1.bf16.xpose.msra.mxu0 %v4848
    %4869 = vmatprep.subr.bf16.mxu0 0
    %4870 = vmatpush2.bf16.xpose.msra.mxu0 0
    %4871 = vmatprep.subr.bf16.mxu0 0
    %4872 = vmatpush2.bf16.xpose.msra.mxu0 0
    %4873 = vmatprep.subr.bf16.mxu0 0
    %4874 = vmatpush2.bf16.xpose.msra.mxu0 0
    %4875 = vmatprep.subr.bf16.mxu0 0
    %4876 = vmatpush2.bf16.xpose.msra.mxu0 0
    %4877 = vmatprep.subr.bf16.mxu0 0
    %4878 = vmatpush2.bf16.xpose.msra.mxu0 0
    %4879 = vmatprep.subr.bf16.mxu0 0
    %4880 = vmatpush2.bf16.xpose.msra.mxu0 0
    %4881 = vmatprep.subr.bf16.mxu0 0
    %4882 = vmatpush2.bf16.xpose.msra.mxu0 0
    %4883 = vmatprep.subr.bf16.mxu0 0
    %4884 = vmatpush2.bf16.xpose.msra.mxu0 0
    %4885 = vmatprep.mubr.bf16.mxu0 0
    %4886 = vmatmul.mubr.bf16.gmra.mxu0 %v4842
    %v4887 = vpop.f32.mrf.mxu0
    %v4888 = vadd.f32 0.0, %v4887
    %v4889 = vpop.f32.mrf.mxu0
    %v4890 = vpop.f32.mrf.mxu0
    %v4891 = vadd.f32 0.0, %v4890
    %v4892 = vpop.f32.mrf.mxu0
    %4893 = vmatprep.mubr.bf16.mxu0 0
    %4894 = vmatmul.mubr.bf16.gmra.mxu0 %v4845
    %v4895 = vpop.f32.mrf.mxu0
    %v4896 = vadd.f32 0.0, %v4895
    %v4897 = vpop.f32.mrf.mxu0
    %v4898 = vpop.f32.mrf.mxu0
    %v4899 = vpop.f32.mrf.mxu0
    %4900 = vdwg.mxu0
    %v4901 = vmul.f32 %v4888, 0.125
    %v4902 = vmul.f32 %v4891, 0.125
    %v4903 = vmul.f32 %v4896, 0.125
    %v4904 = vsel %vm648, %v4901, -1e+30
    %v4905 = vsel %vm648, %v4902, -1e+30
    %v4906 = vsel %vm648, %v4903, -1e+30
    %v4907 = vsel %vm652, %v4904, -inf
    %4908 = vmax.xlane.f32.xlu0 %v4907
    %v4909 = vpop.xlane.xlu0 %4908
    %v4910 = vsel %vm652, %v4905, -inf
    %4911 = vmax.xlane.f32.xlu0 %v4910
    %v4912 = vpop.xlane.xlu0 %4911
    %v4913 = vsel %vm652, %v4906, -inf
    %4914 = vmax.xlane.f32.xlu0 %v4913
    %v4915 = vpop.xlane.xlu0 %4914
    %v4916 = vsub.f32 %v4904, %v4909
    %v4917 = vsub.f32 %v4905, %v4912
    %v4918 = vsub.f32 %v4906, %v4915
    %v4919 = vmul.f32 %v4916, 1.442695
    %v4920 = vpow.pop %v4919
    %v4921 = vmul.f32 %v4917, 1.442695
    %v4922 = vpow.pop %v4921
    %v4923 = vmul.f32 %v4918, 1.442695
    %v4924 = vpow.pop %v4923
    %v4925 = vsel %vm652, %v4920, 0.0
    %4926 = vadd.xlane.f32.xlu0 %v4925
    %v4927 = vpop.xlane.xlu0 %4926
    %v4928 = vsel %vm652, %v4922, 0.0
    %4929 = vadd.xlane.f32.xlu0 %v4928
    %v4930 = vpop.xlane.xlu0 %4929
    %v4931 = vsel %vm652, %v4924, 0.0
    %4932 = vadd.xlane.f32.xlu0 %v4931
    %v4933 = vpop.xlane.xlu0 %4932
    %v4934 = vrcp.pop %v4927
    %v4935 = vmul.f32 %v4920, %v4934
    %v4936 = vrcp.pop %v4930
    %v4937 = vmul.f32 %v4922, %v4936
    %v4938 = vrcp.pop %v4933
    %v4939 = vmul.f32 %v4924, %v4938
    %4942 = vrot.lane.b32.xlu0 %v4837, 64
    %v4943 = vpop.permute.xlu0 %4942
    %4944 = vrot.lane.b32.xlu0 %v4838, 64
    %v4945 = vpop.permute.xlu0 %4944
    %4948 = vrot.lane.b32.xlu0 %v4839, 64
    %v4949 = vpop.permute.xlu0 %4948
    %4950 = vrot.lane.b32.xlu0 %v4840, 64
    %v4951 = vpop.permute.xlu0 %4950
    %v4953 = vsel %vm584, %v4943, 0
    %v4956 = vsel %vm584, %v4945, 0
    %v4959 = vsel %vm584, %v4949, 0
    %v4962 = vsel %vm584, %v4951, 0
    %4964 = vmatprep.subr.bf16.mxu0 0
    %4965 = vmatpush1.bf16.xpose.msra.mxu0 0
    %4966 = vmatprep.subr.bf16.mxu0 0
    %4967 = vmatpush1.bf16.xpose.msra.mxu0 0
    %4968 = vmatprep.subr.bf16.mxu0 0
    %4969 = vmatpush1.bf16.xpose.msra.mxu0 0
    %4970 = vmatprep.subr.bf16.mxu0 0
    %4971 = vmatpush1.bf16.xpose.msra.mxu0 0
    %4972 = vmatprep.subr.bf16.mxu0 0
    %4973 = vmatpush1.bf16.xpose.msra.mxu0 0
    %4974 = vmatprep.subr.bf16.mxu0 0
    %4975 = vmatpush1.bf16.xpose.msra.mxu0 0
    %4976 = vmatprep.subr.bf16.mxu0 0
    %4977 = vmatpush1.bf16.xpose.msra.mxu0 %v4962
    %4978 = vmatprep.subr.bf16.mxu0 0
    %4979 = vmatpush1.bf16.xpose.msra.mxu0 %v4959
    %4980 = vmatprep.subr.bf16.mxu0 0
    %4981 = vmatpush2.bf16.xpose.msra.mxu0 0
    %4982 = vmatprep.subr.bf16.mxu0 0
    %4983 = vmatpush2.bf16.xpose.msra.mxu0 0
    %4984 = vmatprep.subr.bf16.mxu0 0
    %4985 = vmatpush2.bf16.xpose.msra.mxu0 0
    %4986 = vmatprep.subr.bf16.mxu0 0
    %4987 = vmatpush2.bf16.xpose.msra.mxu0 0
    %4988 = vmatprep.subr.bf16.mxu0 0
    %4989 = vmatpush2.bf16.xpose.msra.mxu0 0
    %4990 = vmatprep.subr.bf16.mxu0 0
    %4991 = vmatpush2.bf16.xpose.msra.mxu0 0
    %4992 = vmatprep.subr.bf16.mxu0 0
    %4993 = vmatpush2.bf16.xpose.msra.mxu0 0
    %4994 = vmatprep.subr.bf16.mxu0 0
    %4995 = vmatpush2.bf16.xpose.msra.mxu0 0
    %4996 = vmatprep.mubr.bf16.mxu0 0
    %4997 = vmatmul.mubr.bf16.gmra.mxu0 %v4953
    %v4998 = vpop.f32.mrf.mxu0
    %v4999 = vadd.f32 0.0, %v4998
    %v5000 = vpop.f32.mrf.mxu0
    %v5001 = vpop.f32.mrf.mxu0
    %v5002 = vadd.f32 0.0, %v5001
    %v5003 = vpop.f32.mrf.mxu0
    %5004 = vmatprep.mubr.bf16.mxu0 0
    %5005 = vmatmul.mubr.bf16.gmra.mxu0 %v4956
    %v5006 = vpop.f32.mrf.mxu0
    %v5007 = vadd.f32 0.0, %v5006
    %v5008 = vpop.f32.mrf.mxu0
    %v5009 = vpop.f32.mrf.mxu0
    %v5010 = vpop.f32.mrf.mxu0
    %5011 = vdwg.mxu0
    %v5012 = vmul.f32 %v4999, 0.125
    %v5013 = vmul.f32 %v5002, 0.125
    %v5014 = vmul.f32 %v5007, 0.125
    %v5015 = vsel %vm648, %v5012, -1e+30
    %v5016 = vsel %vm648, %v5013, -1e+30
    %v5017 = vsel %vm648, %v5014, -1e+30
    %v5018 = vsel %vm652, %v5015, -inf
    %5019 = vmax.xlane.f32.xlu0 %v5018
    %v5020 = vpop.xlane.xlu0 %5019
    %v5021 = vsel %vm652, %v5016, -inf
    %5022 = vmax.xlane.f32.xlu0 %v5021
    %v5023 = vpop.xlane.xlu0 %5022
    %v5024 = vsel %vm652, %v5017, -inf
    %5025 = vmax.xlane.f32.xlu0 %v5024
    %v5026 = vpop.xlane.xlu0 %5025
    %v5027 = vsub.f32 %v5015, %v5020
    %v5028 = vsub.f32 %v5016, %v5023
    %v5029 = vsub.f32 %v5017, %v5026
    %v5030 = vmul.f32 %v5027, 1.442695
    %v5031 = vpow.pop %v5030
    %v5032 = vmul.f32 %v5028, 1.442695
    %v5033 = vpow.pop %v5032
    %v5034 = vmul.f32 %v5029, 1.442695
    %v5035 = vpow.pop %v5034
    %v5036 = vsel %vm652, %v5031, 0.0
    %5037 = vadd.xlane.f32.xlu0 %v5036
    %v5038 = vpop.xlane.xlu0 %5037
    %v5039 = vsel %vm652, %v5033, 0.0
    %5040 = vadd.xlane.f32.xlu0 %v5039
    %v5041 = vpop.xlane.xlu0 %5040
    %v5042 = vsel %vm652, %v5035, 0.0
    %5043 = vadd.xlane.f32.xlu0 %v5042
    %v5044 = vpop.xlane.xlu0 %5043
    %v5045 = vrcp.pop %v5038
    %v5046 = vmul.f32 %v5031, %v5045
    %v5047 = vrcp.pop %v5041
    %v5048 = vmul.f32 %v5033, %v5047
    %v5049 = vrcp.pop %v5044
    %v5050 = vmul.f32 %v5035, %v5049
    %s5051 = sld [smem:[#allocation3 + $0x10]]
    %v5052 = vstv %s5051
    %v5053 = vmul.f32 %v4721, %v5052
    %v5054 = vmul.f32 %v4723, %v5052
    %v5055 = vmul.f32 %v4725, %v5052
    %s5056 = sld [smem:[#allocation3 + $0x14]]
    %v5057 = vstv %s5056
    %v5058 = vmul.f32 %v4832, %v5057
    %v5059 = vmul.f32 %v4834, %v5057
    %v5060 = vmul.f32 %v4836, %v5057
    %v5061 = vadd.f32 %v5053, %v5058
    %v5062 = vadd.f32 %v5054, %v5059
    %v5063 = vadd.f32 %v5055, %v5060
    %s5064 = sld [smem:[#allocation3 + $0x18]]
    %v5065 = vstv %s5064
    %v5066 = vmul.f32 %v4935, %v5065
    %v5067 = vmul.f32 %v4937, %v5065
    %v5068 = vmul.f32 %v4939, %v5065
    %v5069 = vadd.f32 %v5061, %v5066
    %v5070 = vadd.f32 %v5062, %v5067
    %v5071 = vadd.f32 %v5063, %v5068
    %s5072 = sld [smem:[#allocation3 + $0x1c]]
    %v5073 = vstv %s5072
    %v5074 = vmul.f32 %v5046, %v5073
    %v5075 = vmul.f32 %v5048, %v5073
    %v5076 = vmul.f32 %v5050, %v5073
    %v5077 = vadd.f32 %v5069, %v5074
    %v5078 = vadd.f32 %v5070, %v5075
    %v5079 = vadd.f32 %v5071, %v5076
    %s5080 = sld [smem:[#allocation3 + $0x11]]
    %v5081 = vstv %s5080
    %v5082 = vmul.f32 %v4721, %v5081
    %v5083 = vmul.f32 %v4723, %v5081
    %v5084 = vmul.f32 %v4725, %v5081
    %s5085 = sld [smem:[#allocation3 + $0x15]]
    %v5086 = vstv %s5085
    %v5087 = vmul.f32 %v4832, %v5086
    %v5088 = vmul.f32 %v4834, %v5086
    %v5089 = vmul.f32 %v4836, %v5086
    %v5090 = vadd.f32 %v5082, %v5087
    %v5091 = vadd.f32 %v5083, %v5088
    %v5092 = vadd.f32 %v5084, %v5089
    %s5093 = sld [smem:[#allocation3 + $0x19]]
    %v5094 = vstv %s5093
    %v5095 = vmul.f32 %v4935, %v5094
    %v5096 = vmul.f32 %v4937, %v5094
    %v5097 = vmul.f32 %v4939, %v5094
    %v5098 = vadd.f32 %v5090, %v5095
    %v5099 = vadd.f32 %v5091, %v5096
    %v5100 = vadd.f32 %v5092, %v5097
    %s5101 = sld [smem:[#allocation3 + $0x1d]]
    %v5102 = vstv %s5101
    %v5103 = vmul.f32 %v5046, %v5102
    %v5104 = vmul.f32 %v5048, %v5102
    %v5105 = vmul.f32 %v5050, %v5102
    %v5106 = vadd.f32 %v5098, %v5103
    %v5107 = vadd.f32 %v5099, %v5104
    %v5108 = vadd.f32 %v5100, %v5105
    %s5109 = sld [smem:[#allocation3 + $0x12]]
    %v5110 = vstv %s5109
    %v5111 = vmul.f32 %v4721, %v5110
    %v5112 = vmul.f32 %v4723, %v5110
    %v5113 = vmul.f32 %v4725, %v5110
    %s5114 = sld [smem:[#allocation3 + $0x16]]
    %v5115 = vstv %s5114
    %v5116 = vmul.f32 %v4832, %v5115
    %v5117 = vmul.f32 %v4834, %v5115
    %v5118 = vmul.f32 %v4836, %v5115
    %v5119 = vadd.f32 %v5111, %v5116
    %v5120 = vadd.f32 %v5112, %v5117
    %v5121 = vadd.f32 %v5113, %v5118
    %s5122 = sld [smem:[#allocation3 + $0x1a]]
    %v5123 = vstv %s5122
    %v5124 = vmul.f32 %v4935, %v5123
    %v5125 = vmul.f32 %v4937, %v5123
    %v5126 = vmul.f32 %v4939, %v5123
    %v5127 = vadd.f32 %v5119, %v5124
    %v5128 = vadd.f32 %v5120, %v5125
    %v5129 = vadd.f32 %v5121, %v5126
    %s5130 = sld [smem:[#allocation3 + $0x1e]]
    %v5131 = vstv %s5130
    %v5132 = vmul.f32 %v5046, %v5131
    %v5133 = vmul.f32 %v5048, %v5131
    %v5134 = vmul.f32 %v5050, %v5131
    %v5135 = vadd.f32 %v5127, %v5132
    %v5136 = vadd.f32 %v5128, %v5133
    %v5137 = vadd.f32 %v5129, %v5134
    %s5138 = sld [smem:[#allocation3 + $0x13]]
    %v5139 = vstv %s5138
    %v5140 = vmul.f32 %v4721, %v5139
    %v5141 = vmul.f32 %v4723, %v5139
    %v5142 = vmul.f32 %v4725, %v5139
    %s5143 = sld [smem:[#allocation3 + $0x17]]
    %v5144 = vstv %s5143
    %v5145 = vmul.f32 %v4832, %v5144
    %v5146 = vmul.f32 %v4834, %v5144
    %v5147 = vmul.f32 %v4836, %v5144
    %v5148 = vadd.f32 %v5140, %v5145
    %v5149 = vadd.f32 %v5141, %v5146
    %v5150 = vadd.f32 %v5142, %v5147
    %s5151 = sld [smem:[#allocation3 + $0x1b]]
    %v5152 = vstv %s5151
    %v5153 = vmul.f32 %v4935, %v5152
    %v5154 = vmul.f32 %v4937, %v5152
    %v5155 = vmul.f32 %v4939, %v5152
    %v5156 = vadd.f32 %v5148, %v5153
    %v5157 = vadd.f32 %v5149, %v5154
    %v5158 = vadd.f32 %v5150, %v5155
    %s5159 = sld [smem:[#allocation3 + $0x1f]]
    %v5160 = vstv %s5159
    %v5161 = vmul.f32 %v5046, %v5160
    %v5162 = vmul.f32 %v5048, %v5160
    %v5163 = vmul.f32 %v5050, %v5160
    %v5164 = vadd.f32 %v5156, %v5161
    %v5165 = vadd.f32 %v5157, %v5162
    %v5166 = vadd.f32 %v5158, %v5163
    %v5167 = vadd.f32 %v5077, %v5106
    %v5168 = vadd.f32 %v5078, %v5107
    %v5169 = vadd.f32 %v5079, %v5108
    %v5170 = vadd.f32 %v5167, %v5135
    %v5171 = vadd.f32 %v5168, %v5136
    %v5172 = vadd.f32 %v5169, %v5137
    %v5173 = vadd.f32 %v5170, %v5164
    %v5174 = vadd.f32 %v5171, %v5165
    %v5175 = vadd.f32 %v5172, %v5166
    %v5176 = vmul.f32 %v5173, 0.25
    %v5177 = vmul.f32 %v5174, 0.25
    %v5178 = vmul.f32 %v5175, 0.25
    %v5179 = vsub.f32 %v5077, %v5176
    %v5180 = vsub.f32 %v5078, %v5177
    %v5181 = vsub.f32 %v5079, %v5178
    %v5182 = vmul.f32 %v5179, %v5179
    %v5183 = vmul.f32 %v5180, %v5180
    %v5184 = vmul.f32 %v5181, %v5181
    %v5185 = vsub.f32 %v5106, %v5176
    %v5186 = vsub.f32 %v5107, %v5177
    %v5187 = vsub.f32 %v5108, %v5178
    %v5188 = vmul.f32 %v5185, %v5185
    %v5189 = vmul.f32 %v5186, %v5186
    %v5190 = vmul.f32 %v5187, %v5187
    %v5191 = vadd.f32 %v5182, %v5188
    %v5192 = vadd.f32 %v5183, %v5189
    %v5193 = vadd.f32 %v5184, %v5190
    %v5194 = vsub.f32 %v5135, %v5176
    %v5195 = vsub.f32 %v5136, %v5177
    %v5196 = vsub.f32 %v5137, %v5178
    %v5197 = vmul.f32 %v5194, %v5194
    %v5198 = vmul.f32 %v5195, %v5195
    %v5199 = vmul.f32 %v5196, %v5196
    %v5200 = vadd.f32 %v5191, %v5197
    %v5201 = vadd.f32 %v5192, %v5198
    %v5202 = vadd.f32 %v5193, %v5199
    %v5203 = vsub.f32 %v5164, %v5176
    %v5204 = vsub.f32 %v5165, %v5177
    %v5205 = vsub.f32 %v5166, %v5178
    %v5206 = vmul.f32 %v5203, %v5203
    %v5207 = vmul.f32 %v5204, %v5204
    %v5208 = vmul.f32 %v5205, %v5205
    %v5209 = vadd.f32 %v5200, %v5206
    %v5210 = vadd.f32 %v5201, %v5207
    %v5211 = vadd.f32 %v5202, %v5208
    %v5212 = vmul.f32 %v5209, 0.25
    %v5213 = vmul.f32 %v5210, 0.25
    %v5214 = vmul.f32 %v5211, 0.25
    %v5215 = vadd.f32 %v5212, 1e-05
    %v5216 = vadd.f32 %v5213, 1e-05
    %v5217 = vadd.f32 %v5214, 1e-05
    %v5218 = vrsqrt.pop %v5215
    %v5219 = vrsqrt.pop %v5216
    %v5220 = vrsqrt.pop %v5217
    %v5221 = vmul.f32 %v5179, %v5218
    %v5222 = vmul.f32 %v5180, %v5219
    %v5223 = vmul.f32 %v5181, %v5220
    %s5224 = sld [smem:[#allocation3 + $0x24]]
    %v5225 = vstv %s5224
    %v5226 = vmul.f32 %v5221, %v5225
    %v5227 = vmul.f32 %v5222, %v5225
    %v5228 = vmul.f32 %v5223, %v5225
    %s5229 = sld [smem:[#allocation3 + $0x2c]]
    %v5230 = vstv %s5229
    %v5231 = vadd.f32 %v5226, %v5230
    %v5232 = vadd.f32 %v5227, %v5230
    %v5233 = vadd.f32 %v5228, %v5230
    %v5234 = vmul.f32 %v5231, %v204
    %v5235 = vmul.f32 %v5232, %v204
    %v5236 = vmul.f32 %v5233, %v204
    %v5237 = vpack.c.bf16 %v5235, %v5234
    %v5238 = vpack.c.bf16 %v5236, %v5236
    %v5239 = vpack.c.bf16 %v3687, %v3681
    %v5240 = vpack.c.bf16 %v3691, %v3691
    %v5242 = vsel %vm652, %v5237, 0
    %v5245 = vsel %vm652, %v5238, 0
    %v5248 = vsel %vm1207, %v5240, 0
    %5250 = vmatprep.subr.bf16.mxu0 0
    %5251 = vmatpush1.bf16.msra.mxu0 0
    %5252 = vmatprep.subr.bf16.mxu0 0
    %5253 = vmatpush1.bf16.msra.mxu0 0
    %5254 = vmatprep.subr.bf16.mxu0 0
    %5255 = vmatpush1.bf16.msra.mxu0 0
    %5256 = vmatprep.subr.bf16.mxu0 0
    %5257 = vmatpush1.bf16.msra.mxu0 0
    %5258 = vmatprep.subr.bf16.mxu0 0
    %5259 = vmatpush1.bf16.msra.mxu0 0
    %5260 = vmatprep.subr.bf16.mxu0 0
    %5261 = vmatpush1.bf16.msra.mxu0 0
    %5262 = vmatprep.subr.bf16.mxu0 0
    %5263 = vmatpush1.bf16.msra.mxu0 %v5248
    %5264 = vmatprep.subr.bf16.mxu0 0
    %5265 = vmatpush1.bf16.msra.mxu0 %v5239
    %5266 = vmatprep.subr.bf16.mxu0 0
    %5267 = vmatpush2.bf16.msra.mxu0 0
    %5268 = vmatprep.subr.bf16.mxu0 0
    %5269 = vmatpush2.bf16.msra.mxu0 0
    %5270 = vmatprep.subr.bf16.mxu0 0
    %5271 = vmatpush2.bf16.msra.mxu0 0
    %5272 = vmatprep.subr.bf16.mxu0 0
    %5273 = vmatpush2.bf16.msra.mxu0 0
    %5274 = vmatprep.subr.bf16.mxu0 0
    %5275 = vmatpush2.bf16.msra.mxu0 0
    %5276 = vmatprep.subr.bf16.mxu0 0
    %5277 = vmatpush2.bf16.msra.mxu0 0
    %5278 = vmatprep.subr.bf16.mxu0 0
    %5279 = vmatpush2.bf16.msra.mxu0 0
    %5280 = vmatprep.subr.bf16.mxu0 0
    %5281 = vmatpush2.bf16.msra.mxu0 0
    %5282 = vmatprep.mubr.bf16.mxu0 0
    %5283 = vmatmul.mubr.bf16.gmra.mxu0 %v5242
    %v5284 = vpop.f32.mrf.mxu0
    %v5285 = vadd.f32 0.0, %v5284
    %v5286 = vpop.f32.mrf.mxu0
    %v5287 = vpop.f32.mrf.mxu0
    %v5288 = vadd.f32 0.0, %v5287
    %v5289 = vpop.f32.mrf.mxu0
    %5290 = vmatprep.mubr.bf16.mxu0 0
    %5291 = vmatmul.mubr.bf16.gmra.mxu0 %v5245
    %v5292 = vpop.f32.mrf.mxu0
    %v5293 = vadd.f32 0.0, %v5292
    %v5294 = vpop.f32.mrf.mxu0
    %v5295 = vpop.f32.mrf.mxu0
    %v5296 = vpop.f32.mrf.mxu0
    %5297 = vdwg.mxu0
    %5298 = vst.msk [vmem:[#allocation2 + $0x60] sm:$0xff] %vm584, %v5285
    %5299 = vst.msk [vmem:[#allocation2 + $0x80] sm:$0xff] %vm584, %v5288
    %5300 = vst.msk [vmem:[#allocation2 + $0xa0] sm:$0xff] %vm584, %v5293
    %v5301 = vmul.f32 %v5185, %v5218
    %v5302 = vmul.f32 %v5186, %v5219
    %v5303 = vmul.f32 %v5187, %v5220
    %s5304 = sld [smem:[#allocation3 + $0x25]]
    %v5305 = vstv %s5304
    %v5306 = vmul.f32 %v5301, %v5305
    %v5307 = vmul.f32 %v5302, %v5305
    %v5308 = vmul.f32 %v5303, %v5305
    %s5309 = sld [smem:[#allocation3 + $0x2d]]
    %v5310 = vstv %s5309
    %v5311 = vadd.f32 %v5306, %v5310
    %v5312 = vadd.f32 %v5307, %v5310
    %v5313 = vadd.f32 %v5308, %v5310
    %v5314 = vmul.f32 %v5311, %v204
    %v5315 = vmul.f32 %v5312, %v204
    %v5316 = vmul.f32 %v5313, %v204
    %v5317 = vpack.c.bf16 %v5315, %v5314
    %v5318 = vpack.c.bf16 %v5316, %v5316
    %5321 = vrot.lane.b32.xlu0 %v5239, 64
    %v5322 = vpop.permute.xlu0 %5321
    %5323 = vrot.lane.b32.xlu0 %v5240, 64
    %v5324 = vpop.permute.xlu0 %5323
    %v5327 = vsel %vm652, %v5317, 0
    %v5330 = vsel %vm652, %v5318, 0
    %v5333 = vsel %vm1207, %v5324, 0
    %5335 = vmatprep.subr.bf16.mxu0 0
    %5336 = vmatpush1.bf16.msra.mxu0 0
    %5337 = vmatprep.subr.bf16.mxu0 0
    %5338 = vmatpush1.bf16.msra.mxu0 0
    %5339 = vmatprep.subr.bf16.mxu0 0
    %5340 = vmatpush1.bf16.msra.mxu0 0
    %5341 = vmatprep.subr.bf16.mxu0 0
    %5342 = vmatpush1.bf16.msra.mxu0 0
    %5343 = vmatprep.subr.bf16.mxu0 0
    %5344 = vmatpush1.bf16.msra.mxu0 0
    %5345 = vmatprep.subr.bf16.mxu0 0
    %5346 = vmatpush1.bf16.msra.mxu0 0
    %5347 = vmatprep.subr.bf16.mxu0 0
    %5348 = vmatpush1.bf16.msra.mxu0 %v5333
    %5349 = vmatprep.subr.bf16.mxu0 0
    %5350 = vmatpush1.bf16.msra.mxu0 %v5322
    %5351 = vmatprep.subr.bf16.mxu0 0
    %5352 = vmatpush2.bf16.msra.mxu0 0
    %5353 = vmatprep.subr.bf16.mxu0 0
    %5354 = vmatpush2.bf16.msra.mxu0 0
    %5355 = vmatprep.subr.bf16.mxu0 0
    %5356 = vmatpush2.bf16.msra.mxu0 0
    %5357 = vmatprep.subr.bf16.mxu0 0
    %5358 = vmatpush2.bf16.msra.mxu0 0
    %5359 = vmatprep.subr.bf16.mxu0 0
    %5360 = vmatpush2.bf16.msra.mxu0 0
    %5361 = vmatprep.subr.bf16.mxu0 0
    %5362 = vmatpush2.bf16.msra.mxu0 0
    %5363 = vmatprep.subr.bf16.mxu0 0
    %5364 = vmatpush2.bf16.msra.mxu0 0
    %5365 = vmatprep.subr.bf16.mxu0 0
    %5366 = vmatpush2.bf16.msra.mxu0 0
    %5367 = vmatprep.mubr.bf16.mxu0 0
    %5368 = vmatmul.mubr.bf16.gmra.mxu0 %v5327
    %v5369 = vpop.f32.mrf.mxu0
    %v5370 = vadd.f32 0.0, %v5369
    %v5371 = vpop.f32.mrf.mxu0
    %v5372 = vpop.f32.mrf.mxu0
    %v5373 = vadd.f32 0.0, %v5372
    %v5374 = vpop.f32.mrf.mxu0
    %5375 = vmatprep.mubr.bf16.mxu0 0
    %5376 = vmatmul.mubr.bf16.gmra.mxu0 %v5330
    %v5377 = vpop.f32.mrf.mxu0
    %v5378 = vadd.f32 0.0, %v5377
    %v5379 = vpop.f32.mrf.mxu0
    %v5380 = vpop.f32.mrf.mxu0
    %v5381 = vpop.f32.mrf.mxu0
    %5382 = vdwg.mxu0
    %5383 = vst.msk [vmem:[#allocation2 + $0x68] sm:$0xff] %vm584, %v5370
    %5384 = vst.msk [vmem:[#allocation2 + $0x88] sm:$0xff] %vm584, %v5373
    %5385 = vst.msk [vmem:[#allocation2 + $0xa8] sm:$0xff] %vm584, %v5378
    %v5386 = vmul.f32 %v5194, %v5218
    %v5387 = vmul.f32 %v5195, %v5219
    %v5388 = vmul.f32 %v5196, %v5220
    %s5389 = sld [smem:[#allocation3 + $0x26]]
    %v5390 = vstv %s5389
    %v5391 = vmul.f32 %v5386, %v5390
    %v5392 = vmul.f32 %v5387, %v5390
    %v5393 = vmul.f32 %v5388, %v5390
    %s5394 = sld [smem:[#allocation3 + $0x2e]]
    %v5395 = vstv %s5394
    %v5396 = vadd.f32 %v5391, %v5395
    %v5397 = vadd.f32 %v5392, %v5395
    %v5398 = vadd.f32 %v5393, %v5395
    %v5399 = vmul.f32 %v5396, %v204
    %v5400 = vmul.f32 %v5397, %v204
    %v5401 = vmul.f32 %v5398, %v204
    %v5402 = vpack.c.bf16 %v5400, %v5399
    %v5403 = vpack.c.bf16 %v5401, %v5401
    %v5404 = vpack.c.bf16 %v3689, %v3683
    %v5405 = vpack.c.bf16 %v3693, %v3693
    %v5407 = vsel %vm652, %v5402, 0
    %v5410 = vsel %vm652, %v5403, 0
    %v5413 = vsel %vm1207, %v5405, 0
    %5415 = vmatprep.subr.bf16.mxu0 0
    %5416 = vmatpush1.bf16.msra.mxu0 0
    %5417 = vmatprep.subr.bf16.mxu0 0
    %5418 = vmatpush1.bf16.msra.mxu0 0
    %5419 = vmatprep.subr.bf16.mxu0 0
    %5420 = vmatpush1.bf16.msra.mxu0 0
    %5421 = vmatprep.subr.bf16.mxu0 0
    %5422 = vmatpush1.bf16.msra.mxu0 0
    %5423 = vmatprep.subr.bf16.mxu0 0
    %5424 = vmatpush1.bf16.msra.mxu0 0
    %5425 = vmatprep.subr.bf16.mxu0 0
    %5426 = vmatpush1.bf16.msra.mxu0 0
    %5427 = vmatprep.subr.bf16.mxu0 0
    %5428 = vmatpush1.bf16.msra.mxu0 %v5413
    %5429 = vmatprep.subr.bf16.mxu0 0
    %5430 = vmatpush1.bf16.msra.mxu0 %v5404
    %5431 = vmatprep.subr.bf16.mxu0 0
    %5432 = vmatpush2.bf16.msra.mxu0 0
    %5433 = vmatprep.subr.bf16.mxu0 0
    %5434 = vmatpush2.bf16.msra.mxu0 0
    %5435 = vmatprep.subr.bf16.mxu0 0
    %5436 = vmatpush2.bf16.msra.mxu0 0
    %5437 = vmatprep.subr.bf16.mxu0 0
    %5438 = vmatpush2.bf16.msra.mxu0 0
    %5439 = vmatprep.subr.bf16.mxu0 0
    %5440 = vmatpush2.bf16.msra.mxu0 0
    %5441 = vmatprep.subr.bf16.mxu0 0
    %5442 = vmatpush2.bf16.msra.mxu0 0
    %5443 = vmatprep.subr.bf16.mxu0 0
    %5444 = vmatpush2.bf16.msra.mxu0 0
    %5445 = vmatprep.subr.bf16.mxu0 0
    %5446 = vmatpush2.bf16.msra.mxu0 0
    %5447 = vmatprep.mubr.bf16.mxu0 0
    %5448 = vmatmul.mubr.bf16.gmra.mxu0 %v5407
    %v5449 = vpop.f32.mrf.mxu0
    %v5450 = vadd.f32 0.0, %v5449
    %v5451 = vpop.f32.mrf.mxu0
    %v5452 = vpop.f32.mrf.mxu0
    %v5453 = vadd.f32 0.0, %v5452
    %v5454 = vpop.f32.mrf.mxu0
    %5455 = vmatprep.mubr.bf16.mxu0 0
    %5456 = vmatmul.mubr.bf16.gmra.mxu0 %v5410
    %v5457 = vpop.f32.mrf.mxu0
    %v5458 = vadd.f32 0.0, %v5457
    %v5459 = vpop.f32.mrf.mxu0
    %v5460 = vpop.f32.mrf.mxu0
    %v5461 = vpop.f32.mrf.mxu0
    %5462 = vdwg.mxu0
    %5463 = vst.msk [vmem:[#allocation2 + $0x70] sm:$0xff] %vm584, %v5450
    %5464 = vst.msk [vmem:[#allocation2 + $0x90] sm:$0xff] %vm584, %v5453
    %5465 = vst.msk [vmem:[#allocation2 + $0xb0] sm:$0xff] %vm584, %v5458
    %v5466 = vmul.f32 %v5203, %v5218
    %v5467 = vmul.f32 %v5204, %v5219
    %v5468 = vmul.f32 %v5205, %v5220
    %s5469 = sld [smem:[#allocation3 + $0x27]]
    %v5470 = vstv %s5469
    %v5471 = vmul.f32 %v5466, %v5470
    %v5472 = vmul.f32 %v5467, %v5470
    %v5473 = vmul.f32 %v5468, %v5470
    %s5474 = sld [smem:[#allocation3 + $0x2f]]
    %v5475 = vstv %s5474
    %v5476 = vadd.f32 %v5471, %v5475
    %v5477 = vadd.f32 %v5472, %v5475
    %v5478 = vadd.f32 %v5473, %v5475
    %v5479 = vmul.f32 %v5476, %v204
    %v5480 = vmul.f32 %v5477, %v204
    %v5481 = vmul.f32 %v5478, %v204
    %v5482 = vpack.c.bf16 %v5480, %v5479
    %v5483 = vpack.c.bf16 %v5481, %v5481
    %5486 = vrot.lane.b32.xlu0 %v5404, 64
    %v5487 = vpop.permute.xlu0 %5486
    %5488 = vrot.lane.b32.xlu0 %v5405, 64
    %v5489 = vpop.permute.xlu0 %5488
    %v5492 = vsel %vm652, %v5482, 0
    %v5495 = vsel %vm652, %v5483, 0
    %v5498 = vsel %vm1207, %v5489, 0
    %5500 = vmatprep.subr.bf16.mxu0 0
    %5501 = vmatpush1.bf16.msra.mxu0 0
    %5502 = vmatprep.subr.bf16.mxu0 0
    %5503 = vmatpush1.bf16.msra.mxu0 0
    %5504 = vmatprep.subr.bf16.mxu0 0
    %5505 = vmatpush1.bf16.msra.mxu0 0
    %5506 = vmatprep.subr.bf16.mxu0 0
    %5507 = vmatpush1.bf16.msra.mxu0 0
    %5508 = vmatprep.subr.bf16.mxu0 0
    %5509 = vmatpush1.bf16.msra.mxu0 0
    %5510 = vmatprep.subr.bf16.mxu0 0
    %5511 = vmatpush1.bf16.msra.mxu0 0
    %5512 = vmatprep.subr.bf16.mxu0 0
    %5513 = vmatpush1.bf16.msra.mxu0 %v5498
    %5514 = vmatprep.subr.bf16.mxu0 0
    %5515 = vmatpush1.bf16.msra.mxu0 %v5487
    %5516 = vmatprep.subr.bf16.mxu0 0
    %5517 = vmatpush2.bf16.msra.mxu0 0
    %5518 = vmatprep.subr.bf16.mxu0 0
    %5519 = vmatpush2.bf16.msra.mxu0 0
    %5520 = vmatprep.subr.bf16.mxu0 0
    %5521 = vmatpush2.bf16.msra.mxu0 0
    %5522 = vmatprep.subr.bf16.mxu0 0
    %5523 = vmatpush2.bf16.msra.mxu0 0
    %5524 = vmatprep.subr.bf16.mxu0 0
    %5525 = vmatpush2.bf16.msra.mxu0 0
    %5526 = vmatprep.subr.bf16.mxu0 0
    %5527 = vmatpush2.bf16.msra.mxu0 0
    %5528 = vmatprep.subr.bf16.mxu0 0
    %5529 = vmatpush2.bf16.msra.mxu0 0
    %5530 = vmatprep.subr.bf16.mxu0 0
    %5531 = vmatpush2.bf16.msra.mxu0 0
    %5532 = vmatprep.mubr.bf16.mxu0 0
    %5533 = vmatmul.mubr.bf16.gmra.mxu0 %v5492
    %v5534 = vpop.f32.mrf.mxu0
    %v5535 = vadd.f32 0.0, %v5534
    %v5536 = vpop.f32.mrf.mxu0
    %v5537 = vpop.f32.mrf.mxu0
    %v5538 = vadd.f32 0.0, %v5537
    %v5539 = vpop.f32.mrf.mxu0
    %5540 = vmatprep.mubr.bf16.mxu0 0
    %5541 = vmatmul.mubr.bf16.gmra.mxu0 %v5495
    %v5542 = vpop.f32.mrf.mxu0
    %v5543 = vadd.f32 0.0, %v5542
    %v5544 = vpop.f32.mrf.mxu0
    %v5545 = vpop.f32.mrf.mxu0
    %v5546 = vpop.f32.mrf.mxu0
    %5547 = vdwg.mxu0
    %5548 = vst.msk [vmem:[#allocation2 + $0x78] sm:$0xff] %vm584, %v5535
    %5549 = vst.msk [vmem:[#allocation2 + $0x98] sm:$0xff] %vm584, %v5538
    %5550 = vst.msk [vmem:[#allocation2 + $0xb8] sm:$0xff] %vm584, %v5543
    %v5551 = vld [vmem:[#allocation2] sm:$0xff]
    %v5552 = vld [vmem:[#allocation2 + $0x8] sm:$0xff]
    %v5553 = vld [vmem:[#allocation2 + $0x10] sm:$0xff]
    %v5554 = vld [vmem:[#allocation2 + $0x18] sm:$0xff]
    %v5555 = vld [vmem:[#allocation2 + $0x20] sm:$0xff]
    %v5556 = vld [vmem:[#allocation2 + $0x28] sm:$0xff]
    %v5557 = vld [vmem:[#allocation2 + $0x30] sm:$0xff]
    %v5558 = vld [vmem:[#allocation2 + $0x38] sm:$0xff]
    %v5559 = vld [vmem:[#allocation2 + $0x40] sm:$0xff]
    %v5560 = vld [vmem:[#allocation2 + $0x48] sm:$0xff]
    %v5561 = vld [vmem:[#allocation2 + $0x50] sm:$0xff]
    %v5562 = vld [vmem:[#allocation2 + $0x58] sm:$0xff]
    %v5563 = vld [vmem:[#allocation2 + $0x60] sm:$0xff]
    %v5564 = vld [vmem:[#allocation2 + $0x68] sm:$0xff]
    %v5565 = vld [vmem:[#allocation2 + $0x70] sm:$0xff]
    %v5566 = vld [vmem:[#allocation2 + $0x78] sm:$0xff]
    %v5567 = vld [vmem:[#allocation2 + $0x80] sm:$0xff]
    %v5568 = vld [vmem:[#allocation2 + $0x88] sm:$0xff]
    %v5569 = vld [vmem:[#allocation2 + $0x90] sm:$0xff]
    %v5570 = vld [vmem:[#allocation2 + $0x98] sm:$0xff]
    %v5571 = vld [vmem:[#allocation2 + $0xa0] sm:$0xff]
    %v5572 = vld [vmem:[#allocation2 + $0xa8] sm:$0xff]
    %v5573 = vld [vmem:[#allocation2 + $0xb0] sm:$0xff]
    %v5574 = vld [vmem:[#allocation2 + $0xb8] sm:$0xff]
    %v5575 = vpack.c.bf16 %v5555, %v5551
    %v5576 = vpack.c.bf16 %v5556, %v5552
    %v5577 = vpack.c.bf16 %v5557, %v5553
    %v5578 = vpack.c.bf16 %v5558, %v5554
    %v5579 = vpack.c.bf16 %v5563, %v5559
    %v5580 = vpack.c.bf16 %v5564, %v5560
    %v5581 = vpack.c.bf16 %v5565, %v5561
    %v5582 = vpack.c.bf16 %v5566, %v5562
    %v5583 = vpack.c.bf16 %v5571, %v5567
    %v5584 = vpack.c.bf16 %v5572, %v5568
    %v5585 = vpack.c.bf16 %v5573, %v5569
    %v5586 = vpack.c.bf16 %v5574, %v5570
    %s5587 = scalar_lea.vmem %s3, 256
    %v5588 = vld [vmem:[%s5587] sm:$0xf]
    %v5589 = vld [vmem:[%s5587 + $0x4] sm:$0xf]
    %v5590 = vld [vmem:[%s5587 + $0x8] sm:$0xf]
    %v5591 = vld [vmem:[%s5587 + $0xc] sm:$0xf]
    %v5592 = vld [vmem:[%s5587 + $0x10] sm:$0xf]
    %v5593 = vld [vmem:[%s5587 + $0x14] sm:$0xf]
    %v5594 = vld [vmem:[%s5587 + $0x18] sm:$0xf]
    %v5595 = vld [vmem:[%s5587 + $0x1c] sm:$0xf]
    %v5596 = vld [vmem:[%s5587 + $0x20] sm:$0xf]
    %v5597 = vld [vmem:[%s5587 + $0x24] sm:$0xf]
    %v5598 = vld [vmem:[%s5587 + $0x28] sm:$0xf]
    %v5599 = vld [vmem:[%s5587 + $0x2c] sm:$0xf]
    %v5600 = vld [vmem:[%s5587 + $0x30] sm:$0xf]
    %v5601 = vld [vmem:[%s5587 + $0x34] sm:$0xf]
    %v5602 = vld [vmem:[%s5587 + $0x38] sm:$0xf]
    %v5603 = vld [vmem:[%s5587 + $0x3c] sm:$0xf]
    %v5604 = vld [vmem:[%s5587 + $0x40] sm:$0xf]
    %v5605 = vld [vmem:[%s5587 + $0x44] sm:$0xf]
    %v5606 = vld [vmem:[%s5587 + $0x48] sm:$0xf]
    %v5607 = vld [vmem:[%s5587 + $0x4c] sm:$0xf]
    %v5608 = vld [vmem:[%s5587 + $0x50] sm:$0xf]
    %v5609 = vld [vmem:[%s5587 + $0x54] sm:$0xf]
    %v5610 = vld [vmem:[%s5587 + $0x58] sm:$0xf]
    %v5611 = vld [vmem:[%s5587 + $0x5c] sm:$0xf]
    %v5612 = vld [vmem:[%s5587 + $0x60] sm:$0xf]
    %v5613 = vld [vmem:[%s5587 + $0x64] sm:$0xf]
    %v5614 = vld [vmem:[%s5587 + $0x68] sm:$0xf]
    %v5615 = vld [vmem:[%s5587 + $0x6c] sm:$0xf]
    %v5616 = vld [vmem:[%s5587 + $0x70] sm:$0xf]
    %v5617 = vld [vmem:[%s5587 + $0x74] sm:$0xf]
    %v5618 = vld [vmem:[%s5587 + $0x78] sm:$0xf]
    %v5619 = vld [vmem:[%s5587 + $0x7c] sm:$0xf]
    %v5620 = vld [vmem:[%s5587 + $0x80] sm:$0xf]
    %v5621 = vld [vmem:[%s5587 + $0x84] sm:$0xf]
    %v5622 = vld [vmem:[%s5587 + $0x88] sm:$0xf]
    %v5623 = vld [vmem:[%s5587 + $0x8c] sm:$0xf]
    %v5624 = vld [vmem:[%s5587 + $0x90] sm:$0xf]
    %v5625 = vld [vmem:[%s5587 + $0x94] sm:$0xf]
    %v5626 = vld [vmem:[%s5587 + $0x98] sm:$0xf]
    %v5627 = vld [vmem:[%s5587 + $0x9c] sm:$0xf]
    %v5628 = vld [vmem:[%s5587 + $0xa0] sm:$0xf]
    %v5629 = vld [vmem:[%s5587 + $0xa4] sm:$0xf]
    %v5630 = vld [vmem:[%s5587 + $0xa8] sm:$0xf]
    %v5631 = vld [vmem:[%s5587 + $0xac] sm:$0xf]
    %v5632 = vld [vmem:[%s5587 + $0xb0] sm:$0xf]
    %v5633 = vld [vmem:[%s5587 + $0xb4] sm:$0xf]
    %v5634 = vld [vmem:[%s5587 + $0xb8] sm:$0xf]
    %v5635 = vld [vmem:[%s5587 + $0xbc] sm:$0xf]
    %v5636 = vld [vmem:[%s5587 + $0xc0] sm:$0xf]
    %v5637 = vld [vmem:[%s5587 + $0xc4] sm:$0xf]
    %v5638 = vld [vmem:[%s5587 + $0xc8] sm:$0xf]
    %v5639 = vld [vmem:[%s5587 + $0xcc] sm:$0xf]
    %v5640 = vld [vmem:[%s5587 + $0xd0] sm:$0xf]
    %v5641 = vld [vmem:[%s5587 + $0xd4] sm:$0xf]
    %v5642 = vld [vmem:[%s5587 + $0xd8] sm:$0xf]
    %v5643 = vld [vmem:[%s5587 + $0xdc] sm:$0xf]
    %v5644 = vld [vmem:[%s5587 + $0xe0] sm:$0xf]
    %v5645 = vld [vmem:[%s5587 + $0xe4] sm:$0xf]
    %v5646 = vld [vmem:[%s5587 + $0xe8] sm:$0xf]
    %v5647 = vld [vmem:[%s5587 + $0xec] sm:$0xf]
    %v5648 = vld [vmem:[%s5587 + $0xf0] sm:$0xf]
    %v5649 = vld [vmem:[%s5587 + $0xf4] sm:$0xf]
    %v5650 = vld [vmem:[%s5587 + $0xf8] sm:$0xf]
    %v5651 = vld [vmem:[%s5587 + $0xfc] sm:$0xf]
    %v5652 = vld [vmem:[%s7 + $0x21] sm:$0x1]
    %v5653 = vlaneseq
    %v5654 = vshrl.u32 %v5653, 7
    %v5655 = vsub.s32 0, %v5654
    %v5656 = vrot.slane %v5652, %v5655
    %v5721 = vunpack.c.l.b16 %v5588
    %v5722 = vunpack.c.l.b16 %v5589
    %v5723 = vunpack.c.l.b16 %v5590
    %v5724 = vunpack.c.l.b16 %v5591
    %v5725 = vunpack.c.l.b16 %v5592
    %v5726 = vunpack.c.l.b16 %v5593
    %v5727 = vunpack.c.l.b16 %v5594
    %v5728 = vunpack.c.l.b16 %v5595
    %v5729 = vunpack.c.l.b16 %v5596
    %v5730 = vunpack.c.l.b16 %v5597
    %v5731 = vunpack.c.l.b16 %v5598
    %v5732 = vunpack.c.l.b16 %v5599
    %v5733 = vunpack.c.l.b16 %v5600
    %v5734 = vunpack.c.l.b16 %v5601
    %v5735 = vunpack.c.l.b16 %v5602
    %v5736 = vunpack.c.l.b16 %v5603
    %v5737 = vunpack.c.l.b16 %v5604
    %v5738 = vunpack.c.l.b16 %v5605
    %v5739 = vunpack.c.l.b16 %v5606
    %v5740 = vunpack.c.l.b16 %v5607
    %v5741 = vunpack.c.l.b16 %v5608
    %v5742 = vunpack.c.l.b16 %v5609
    %v5743 = vunpack.c.l.b16 %v5610
    %v5744 = vunpack.c.l.b16 %v5611
    %v5745 = vunpack.c.l.b16 %v5612
    %v5746 = vunpack.c.l.b16 %v5613
    %v5747 = vunpack.c.l.b16 %v5614
    %v5748 = vunpack.c.l.b16 %v5615
    %v5749 = vunpack.c.l.b16 %v5616
    %v5750 = vunpack.c.l.b16 %v5617
    %v5751 = vunpack.c.l.b16 %v5618
    %v5752 = vunpack.c.l.b16 %v5619
    %v5753 = vunpack.c.l.b16 %v5620
    %v5754 = vunpack.c.l.b16 %v5621
    %v5755 = vunpack.c.l.b16 %v5622
    %v5756 = vunpack.c.l.b16 %v5623
    %v5757 = vunpack.c.l.b16 %v5624
    %v5758 = vunpack.c.l.b16 %v5625
    %v5759 = vunpack.c.l.b16 %v5626
    %v5760 = vunpack.c.l.b16 %v5627
    %v5761 = vunpack.c.l.b16 %v5628
    %v5762 = vunpack.c.l.b16 %v5629
    %v5763 = vunpack.c.l.b16 %v5630
    %v5764 = vunpack.c.l.b16 %v5631
    %v5765 = vunpack.c.l.b16 %v5632
    %v5766 = vunpack.c.l.b16 %v5633
    %v5767 = vunpack.c.l.b16 %v5634
    %v5768 = vunpack.c.l.b16 %v5635
    %v5769 = vunpack.c.l.b16 %v5636
    %v5770 = vunpack.c.l.b16 %v5637
    %v5771 = vunpack.c.l.b16 %v5638
    %v5772 = vunpack.c.l.b16 %v5639
    %v5773 = vunpack.c.l.b16 %v5640
    %v5774 = vunpack.c.l.b16 %v5641
    %v5775 = vunpack.c.l.b16 %v5642
    %v5776 = vunpack.c.l.b16 %v5643
    %v5777 = vunpack.c.l.b16 %v5644
    %v5778 = vunpack.c.l.b16 %v5645
    %v5779 = vunpack.c.l.b16 %v5646
    %v5780 = vunpack.c.l.b16 %v5647
    %v5781 = vunpack.c.l.b16 %v5648
    %v5782 = vunpack.c.l.b16 %v5649
    %v5783 = vunpack.c.l.b16 %v5650
    %v5784 = vunpack.c.l.b16 %v5651
    %v5785 = vpack.c.b16 %v5722, %v5721
    %v5786 = vpack.c.b16 %v5724, %v5723
    %v5787 = vpack.c.b16 %v5726, %v5725
    %v5788 = vpack.c.b16 %v5728, %v5727
    %v5789 = vpack.c.b16 %v5730, %v5729
    %v5790 = vpack.c.b16 %v5732, %v5731
    %v5791 = vpack.c.b16 %v5734, %v5733
    %v5792 = vpack.c.b16 %v5736, %v5735
    %v5793 = vpack.c.b16 %v5738, %v5737
    %v5794 = vpack.c.b16 %v5740, %v5739
    %v5795 = vpack.c.b16 %v5742, %v5741
    %v5796 = vpack.c.b16 %v5744, %v5743
    %v5797 = vpack.c.b16 %v5746, %v5745
    %v5798 = vpack.c.b16 %v5748, %v5747
    %v5799 = vpack.c.b16 %v5750, %v5749
    %v5800 = vpack.c.b16 %v5752, %v5751
    %v5801 = vpack.c.b16 %v5754, %v5753
    %v5802 = vpack.c.b16 %v5756, %v5755
    %v5803 = vpack.c.b16 %v5758, %v5757
    %v5804 = vpack.c.b16 %v5760, %v5759
    %v5805 = vpack.c.b16 %v5762, %v5761
    %v5806 = vpack.c.b16 %v5764, %v5763
    %v5807 = vpack.c.b16 %v5766, %v5765
    %v5808 = vpack.c.b16 %v5768, %v5767
    %v5809 = vpack.c.b16 %v5770, %v5769
    %v5810 = vpack.c.b16 %v5772, %v5771
    %v5811 = vpack.c.b16 %v5774, %v5773
    %v5812 = vpack.c.b16 %v5776, %v5775
    %v5813 = vpack.c.b16 %v5778, %v5777
    %v5814 = vpack.c.b16 %v5780, %v5779
    %v5815 = vpack.c.b16 %v5782, %v5781
    %v5816 = vpack.c.b16 %v5784, %v5783
    %5849 = vmatprep.subr.bf16.mxu0 0
    %5850 = vmatpush1.bf16.msra.mxu0 %v5792
    %5851 = vmatprep.subr.bf16.mxu0 0
    %5852 = vmatpush1.bf16.msra.mxu0 %v5791
    %5853 = vmatprep.subr.bf16.mxu0 0
    %5854 = vmatpush1.bf16.msra.mxu0 %v5790
    %5855 = vmatprep.subr.bf16.mxu0 0
    %5856 = vmatpush1.bf16.msra.mxu0 %v5789
    %5857 = vmatprep.subr.bf16.mxu0 0
    %5858 = vmatpush1.bf16.msra.mxu0 %v5788
    %5859 = vmatprep.subr.bf16.mxu0 0
    %5860 = vmatpush1.bf16.msra.mxu0 %v5787
    %5861 = vmatprep.subr.bf16.mxu0 0
    %5862 = vmatpush1.bf16.msra.mxu0 %v5786
    %5863 = vmatprep.subr.bf16.mxu0 0
    %5864 = vmatpush1.bf16.msra.mxu0 %v5785
    %5865 = vmatprep.subr.bf16.mxu0 0
    %5866 = vmatpush2.bf16.msra.mxu0 %v5800
    %5867 = vmatprep.subr.bf16.mxu0 0
    %5868 = vmatpush2.bf16.msra.mxu0 %v5799
    %5869 = vmatprep.subr.bf16.mxu0 0
    %5870 = vmatpush2.bf16.msra.mxu0 %v5798
    %5871 = vmatprep.subr.bf16.mxu0 0
    %5872 = vmatpush2.bf16.msra.mxu0 %v5797
    %5873 = vmatprep.subr.bf16.mxu0 0
    %5874 = vmatpush2.bf16.msra.mxu0 %v5796
    %5875 = vmatprep.subr.bf16.mxu0 0
    %5876 = vmatpush2.bf16.msra.mxu0 %v5795
    %5877 = vmatprep.subr.bf16.mxu0 0
    %5878 = vmatpush2.bf16.msra.mxu0 %v5794
    %5879 = vmatprep.subr.bf16.mxu0 0
    %5880 = vmatpush2.bf16.msra.mxu0 %v5793
    %5881 = vmatprep.mubr.bf16.mxu0 %v5576
    %5882 = vmatmul.mubr.bf16.gmra.mxu0 %v5575
    %v5883 = vpop.f32.mrf.mxu0
    %v5884 = vadd.f32 %v5656, %v5883
    %v5885 = vpop.f32.mrf.mxu0
    %v5886 = vpop.f32.mrf.mxu0
    %v5887 = vadd.f32 %v5656, %v5886
    %v5888 = vpop.f32.mrf.mxu0
    %5889 = vmatprep.mubr.bf16.mxu0 %v5580
    %5890 = vmatmul.mubr.bf16.gmra.mxu0 %v5579
    %v5891 = vpop.f32.mrf.mxu0
    %v5892 = vadd.f32 %v5656, %v5891
    %v5893 = vpop.f32.mrf.mxu0
    %v5894 = vpop.f32.mrf.mxu0
    %v5895 = vadd.f32 %v5656, %v5894
    %v5896 = vpop.f32.mrf.mxu0
    %5897 = vmatprep.mubr.bf16.mxu0 %v5584
    %5898 = vmatmul.mubr.bf16.gmra.mxu0 %v5583
    %v5899 = vpop.f32.mrf.mxu0
    %v5900 = vadd.f32 %v5656, %v5899
    %v5901 = vpop.f32.mrf.mxu0
    %v5902 = vpop.f32.mrf.mxu0
    %v5903 = vadd.f32 %v5656, %v5902
    %v5904 = vpop.f32.mrf.mxu0
    %5905 = vdwg.mxu0
    %5906 = vmatprep.subr.bf16.mxu0 0
    %5907 = vmatpush1.bf16.msra.mxu0 %v5808
    %5908 = vmatprep.subr.bf16.mxu0 0
    %5909 = vmatpush1.bf16.msra.mxu0 %v5807
    %5910 = vmatprep.subr.bf16.mxu0 0
    %5911 = vmatpush1.bf16.msra.mxu0 %v5806
    %5912 = vmatprep.subr.bf16.mxu0 0
    %5913 = vmatpush1.bf16.msra.mxu0 %v5805
    %5914 = vmatprep.subr.bf16.mxu0 0
    %5915 = vmatpush1.bf16.msra.mxu0 %v5804
    %5916 = vmatprep.subr.bf16.mxu0 0
    %5917 = vmatpush1.bf16.msra.mxu0 %v5803
    %5918 = vmatprep.subr.bf16.mxu0 0
    %5919 = vmatpush1.bf16.msra.mxu0 %v5802
    %5920 = vmatprep.subr.bf16.mxu0 0
    %5921 = vmatpush1.bf16.msra.mxu0 %v5801
    %5922 = vmatprep.subr.bf16.mxu0 0
    %5923 = vmatpush2.bf16.msra.mxu0 %v5816
    %5924 = vmatprep.subr.bf16.mxu0 0
    %5925 = vmatpush2.bf16.msra.mxu0 %v5815
    %5926 = vmatprep.subr.bf16.mxu0 0
    %5927 = vmatpush2.bf16.msra.mxu0 %v5814
    %5928 = vmatprep.subr.bf16.mxu0 0
    %5929 = vmatpush2.bf16.msra.mxu0 %v5813
    %5930 = vmatprep.subr.bf16.mxu0 0
    %5931 = vmatpush2.bf16.msra.mxu0 %v5812
    %5932 = vmatprep.subr.bf16.mxu0 0
    %5933 = vmatpush2.bf16.msra.mxu0 %v5811
    %5934 = vmatprep.subr.bf16.mxu0 0
    %5935 = vmatpush2.bf16.msra.mxu0 %v5810
    %5936 = vmatprep.subr.bf16.mxu0 0
    %5937 = vmatpush2.bf16.msra.mxu0 %v5809
    %5938 = vmatprep.mubr.bf16.mxu0 %v5578
    %5939 = vmatmul.mubr.bf16.gmra.mxu0 %v5577
    %v5940 = vpop.f32.mrf.mxu0
    %v5941 = vadd.f32 %v5884, %v5940
    %v5942 = vpop.f32.mrf.mxu0
    %v5943 = vpop.f32.mrf.mxu0
    %v5944 = vadd.f32 %v5887, %v5943
    %v5945 = vpop.f32.mrf.mxu0
    %5946 = vmatprep.mubr.bf16.mxu0 %v5582
    %5947 = vmatmul.mubr.bf16.gmra.mxu0 %v5581
    %v5948 = vpop.f32.mrf.mxu0
    %v5949 = vadd.f32 %v5892, %v5948
    %v5950 = vpop.f32.mrf.mxu0
    %v5951 = vpop.f32.mrf.mxu0
    %v5952 = vadd.f32 %v5895, %v5951
    %v5953 = vpop.f32.mrf.mxu0
    %5954 = vmatprep.mubr.bf16.mxu0 %v5586
    %5955 = vmatmul.mubr.bf16.gmra.mxu0 %v5585
    %v5956 = vpop.f32.mrf.mxu0
    %v5957 = vadd.f32 %v5900, %v5956
    %v5958 = vpop.f32.mrf.mxu0
    %v5959 = vpop.f32.mrf.mxu0
    %v5960 = vadd.f32 %v5903, %v5959
    %v5961 = vpop.f32.mrf.mxu0
    %5962 = vdwg.mxu0
    %v5963 = vadd.f32 %v3315, %v5941
    %v5964 = vadd.f32 %v3316, %v5944
    %v5965 = vadd.f32 %v3317, %v5949
    %v5966 = vadd.f32 %v3318, %v5952
    %v5967 = vadd.f32 %v3319, %v5957
    %v5968 = vadd.f32 %v3320, %v5960
    %v5969 = vld [vmem:[%s7 + $0x1d] sm:$0x1]
    %v5970 = vld [vmem:[%s7 + $0x1f] sm:$0x1]
    %v5971 = vsel %vm207, %v5963, 0.0
    %5972 = vadd.xlane.f32.xlu0 %v5971
    %v5973 = vpop.xlane.xlu0 %5972
    %v5974 = vsel %vm207, %v5964, 0.0
    %5975 = vadd.xlane.f32.xlu0 %v5974
    %v5976 = vpop.xlane.xlu0 %5975
    %v5977 = vsel %vm207, %v5965, 0.0
    %5978 = vadd.xlane.f32.xlu0 %v5977
    %v5979 = vpop.xlane.xlu0 %5978
    %v5980 = vsel %vm207, %v5966, 0.0
    %5981 = vadd.xlane.f32.xlu0 %v5980
    %v5982 = vpop.xlane.xlu0 %5981
    %v5983 = vsel %vm207, %v5967, 0.0
    %5984 = vadd.xlane.f32.xlu0 %v5983
    %v5985 = vpop.xlane.xlu0 %5984
    %v5986 = vsel %vm207, %v5968, 0.0
    %5987 = vadd.xlane.f32.xlu0 %v5986
    %v5988 = vpop.xlane.xlu0 %5987
    %v5989 = vmul.f32 %v5973, %v226
    %v5990 = vmul.f32 %v5976, %v226
    %v5991 = vmul.f32 %v5979, %v226
    %v5992 = vmul.f32 %v5982, %v226
    %v5993 = vmul.f32 %v5985, %v226
    %v5994 = vmul.f32 %v5988, %v226
    %v5995 = vsub.f32 %v5963, %v5989
    %v5996 = vsub.f32 %v5964, %v5990
    %v5997 = vsub.f32 %v5965, %v5991
    %v5998 = vsub.f32 %v5966, %v5992
    %v5999 = vsub.f32 %v5967, %v5993
    %v6000 = vsub.f32 %v5968, %v5994
    %v6001 = vmul.f32 %v5995, %v5995
    %v6002 = vmul.f32 %v5996, %v5996
    %v6003 = vmul.f32 %v5997, %v5997
    %v6004 = vmul.f32 %v5998, %v5998
    %v6005 = vmul.f32 %v5999, %v5999
    %v6006 = vmul.f32 %v6000, %v6000
    %v6007 = vsel %vm207, %v6001, 0.0
    %6008 = vadd.xlane.f32.xlu0 %v6007
    %v6009 = vpop.xlane.xlu0 %6008
    %v6010 = vsel %vm207, %v6002, 0.0
    %6011 = vadd.xlane.f32.xlu0 %v6010
    %v6012 = vpop.xlane.xlu0 %6011
    %v6013 = vsel %vm207, %v6003, 0.0
    %6014 = vadd.xlane.f32.xlu0 %v6013
    %v6015 = vpop.xlane.xlu0 %6014
    %v6016 = vsel %vm207, %v6004, 0.0
    %6017 = vadd.xlane.f32.xlu0 %v6016
    %v6018 = vpop.xlane.xlu0 %6017
    %v6019 = vsel %vm207, %v6005, 0.0
    %6020 = vadd.xlane.f32.xlu0 %v6019
    %v6021 = vpop.xlane.xlu0 %6020
    %v6022 = vsel %vm207, %v6006, 0.0
    %6023 = vadd.xlane.f32.xlu0 %v6022
    %v6024 = vpop.xlane.xlu0 %6023
    %v6025 = vmul.f32 %v6009, %v226
    %v6026 = vmul.f32 %v6012, %v226
    %v6027 = vmul.f32 %v6015, %v226
    %v6028 = vmul.f32 %v6018, %v226
    %v6029 = vmul.f32 %v6021, %v226
    %v6030 = vmul.f32 %v6024, %v226
    %v6031 = vadd.f32 %v6025, 1e-05
    %v6032 = vadd.f32 %v6026, 1e-05
    %v6033 = vadd.f32 %v6027, 1e-05
    %v6034 = vadd.f32 %v6028, 1e-05
    %v6035 = vadd.f32 %v6029, 1e-05
    %v6036 = vadd.f32 %v6030, 1e-05
    %v6037 = vrsqrt.pop %v6031
    %v6038 = vrsqrt.pop %v6032
    %v6039 = vrsqrt.pop %v6033
    %v6040 = vrsqrt.pop %v6034
    %v6041 = vrsqrt.pop %v6035
    %v6042 = vrsqrt.pop %v6036
    %v6043 = vmul.f32 %v5995, %v6037
    %v6044 = vmul.f32 %v5996, %v6038
    %v6045 = vmul.f32 %v5997, %v6039
    %v6046 = vmul.f32 %v5998, %v6040
    %v6047 = vmul.f32 %v5999, %v6041
    %v6048 = vmul.f32 %v6000, %v6042
    %v6049 = vlaneseq
    %v6050 = vshrl.u32 %v6049, 7
    %v6051 = vsub.s32 0, %v6050
    %v6052 = vrot.slane %v5969, %v6051
    %v6053 = vmul.f32 %v6043, %v6052
    %v6054 = vmul.f32 %v6044, %v6052
    %v6055 = vmul.f32 %v6045, %v6052
    %v6056 = vmul.f32 %v6046, %v6052
    %v6057 = vmul.f32 %v6047, %v6052
    %v6058 = vmul.f32 %v6048, %v6052
    %v6059 = vlaneseq
    %v6060 = vshrl.u32 %v6059, 7
    %v6061 = vsub.s32 0, %v6060
    %v6062 = vrot.slane %v5970, %v6061
    %v6063 = vadd.f32 %v6053, %v6062
    %v6064 = vadd.f32 %v6054, %v6062
    %v6065 = vadd.f32 %v6055, %v6062
    %v6066 = vadd.f32 %v6056, %v6062
    %v6067 = vadd.f32 %v6057, %v6062
    %v6068 = vadd.f32 %v6058, %v6062
    %v6069 = vpack.c.bf16 %v6064, %v6063
    %v6070 = vpack.c.bf16 %v6066, %v6065
    %v6071 = vpack.c.bf16 %v6068, %v6067
    %s6072 = scalar_lea.vmem %s4, 16
    %v6073 = vld [vmem:[%s6072] sm:$0xf]
    %v6074 = vld [vmem:[%s6072 + $0x4] sm:$0xf]
    %v6075 = vld [vmem:[%s6072 + $0x8] sm:$0xf]
    %v6076 = vld [vmem:[%s6072 + $0xc] sm:$0xf]
    %v6077 = vld [vmem:[%s7 + $0x23] sm:$0x1]
    %v6078 = vlaneseq
    %v6079 = vshrl.u32 %v6078, 7
    %v6080 = vsub.s32 0, %v6079
    %v6081 = vrot.slane %v6077, %v6080
    %v6086 = vunpack.c.l.b16 %v6073
    %v6087 = vunpack.c.l.b16 %v6074
    %v6088 = vunpack.c.l.b16 %v6075
    %v6089 = vunpack.c.l.b16 %v6076
    %v6090 = vpack.c.b16 %v6087, %v6086
    %v6091 = vpack.c.b16 %v6089, %v6088
    %v6095 = vsel %vm207, %v6069, 0
    %v6098 = vsel %vm207, %v6070, 0
    %v6101 = vsel %vm207, %v6071, 0
    %6103 = vmatprep.subr.bf16.mxu0 0
    %6104 = vmatpush1.bf16.msra.mxu0 0
    %6105 = vmatprep.subr.bf16.mxu0 0
    %6106 = vmatpush1.bf16.msra.mxu0 0
    %6107 = vmatprep.subr.bf16.mxu0 0
    %6108 = vmatpush1.bf16.msra.mxu0 0
    %6109 = vmatprep.subr.bf16.mxu0 0
    %6110 = vmatpush1.bf16.msra.mxu0 0
    %6111 = vmatprep.subr.bf16.mxu0 0
    %6112 = vmatpush1.bf16.msra.mxu0 0
    %6113 = vmatprep.subr.bf16.mxu0 0
    %6114 = vmatpush1.bf16.msra.mxu0 0
    %6115 = vmatprep.subr.bf16.mxu0 0
    %6116 = vmatpush1.bf16.msra.mxu0 %v6091
    %6117 = vmatprep.subr.bf16.mxu0 0
    %6118 = vmatpush1.bf16.msra.mxu0 %v6090
    %6119 = vmatprep.subr.bf16.mxu0 0
    %6120 = vmatpush2.bf16.msra.mxu0 0
    %6121 = vmatprep.subr.bf16.mxu0 0
    %6122 = vmatpush2.bf16.msra.mxu0 0
    %6123 = vmatprep.subr.bf16.mxu0 0
    %6124 = vmatpush2.bf16.msra.mxu0 0
    %6125 = vmatprep.subr.bf16.mxu0 0
    %6126 = vmatpush2.bf16.msra.mxu0 0
    %6127 = vmatprep.subr.bf16.mxu0 0
    %6128 = vmatpush2.bf16.msra.mxu0 0
    %6129 = vmatprep.subr.bf16.mxu0 0
    %6130 = vmatpush2.bf16.msra.mxu0 0
    %6131 = vmatprep.subr.bf16.mxu0 0
    %6132 = vmatpush2.bf16.msra.mxu0 0
    %6133 = vmatprep.subr.bf16.mxu0 0
    %6134 = vmatpush2.bf16.msra.mxu0 0
    %6135 = vmatprep.mubr.bf16.mxu0 0
    %6136 = vmatmul.mubr.bf16.gmra.mxu0 %v6095
    %v6137 = vpop.f32.mrf.mxu0
    %v6138 = vadd.f32 %v6081, %v6137
    %v6139 = vpop.f32.mrf.mxu0
    %v6140 = vpop.f32.mrf.mxu0
    %v6141 = vadd.f32 %v6081, %v6140
    %v6142 = vpop.f32.mrf.mxu0
    %6143 = vmatprep.mubr.bf16.mxu0 0
    %6144 = vmatmul.mubr.bf16.gmra.mxu0 %v6098
    %v6145 = vpop.f32.mrf.mxu0
    %v6146 = vadd.f32 %v6081, %v6145
    %v6147 = vpop.f32.mrf.mxu0
    %v6148 = vpop.f32.mrf.mxu0
    %v6149 = vadd.f32 %v6081, %v6148
    %v6150 = vpop.f32.mrf.mxu0
    %6151 = vmatprep.mubr.bf16.mxu0 0
    %6152 = vmatmul.mubr.bf16.gmra.mxu0 %v6101
    %v6153 = vpop.f32.mrf.mxu0
    %v6154 = vadd.f32 %v6081, %v6153
    %v6155 = vpop.f32.mrf.mxu0
    %v6156 = vpop.f32.mrf.mxu0
    %v6157 = vadd.f32 %v6081, %v6156
    %v6158 = vpop.f32.mrf.mxu0
    %6159 = vdwg.mxu0
    %v6160 = vmul.f32 %v6138, 0.5
    %v6161 = vmul.f32 %v6141, 0.5
    %v6162 = vmul.f32 %v6146, 0.5
    %v6163 = vmul.f32 %v6149, 0.5
    %v6164 = vmul.f32 %v6154, 0.5
    %v6165 = vmul.f32 %v6157, 0.5
    %v6166 = vmul.f32 %v6138, 0.70710677
    %v6167 = vmul.f32 %v6141, 0.70710677
    %v6168 = vmul.f32 %v6146, 0.70710677
    %v6169 = vmul.f32 %v6149, 0.70710677
    %v6170 = vmul.f32 %v6154, 0.70710677
    %v6171 = vmul.f32 %v6157, 0.70710677
    %v6172 = vand.u32 2147483647, %v6166
    %v6173 = vand.u32 2147483647, %v6167
    %v6174 = vand.u32 2147483647, %v6168
    %v6175 = vand.u32 2147483647, %v6169
    %v6176 = vand.u32 2147483647, %v6170
    %v6177 = vand.u32 2147483647, %v6171
    %v6178 = vmul.f32 %v6172, 0.3275911
    %v6179 = vmul.f32 %v6173, 0.3275911
    %v6180 = vmul.f32 %v6174, 0.3275911
    %v6181 = vmul.f32 %v6175, 0.3275911
    %v6182 = vmul.f32 %v6176, 0.3275911
    %v6183 = vmul.f32 %v6177, 0.3275911
    %v6184 = vadd.f32 %v6178, 1.0
    %v6185 = vadd.f32 %v6179, 1.0
    %v6186 = vadd.f32 %v6180, 1.0
    %v6187 = vadd.f32 %v6181, 1.0
    %v6188 = vadd.f32 %v6182, 1.0
    %v6189 = vadd.f32 %v6183, 1.0
    %v6190 = vrcp.pop %v6184
    %v6191 = vmul.f32 1.0, %v6190
    %v6192 = vrcp.pop %v6185
    %v6193 = vmul.f32 1.0, %v6192
    %v6194 = vrcp.pop %v6186
    %v6195 = vmul.f32 1.0, %v6194
    %v6196 = vrcp.pop %v6187
    %v6197 = vmul.f32 1.0, %v6196
    %v6198 = vrcp.pop %v6188
    %v6199 = vmul.f32 1.0, %v6198
    %v6200 = vrcp.pop %v6189
    %v6201 = vmul.f32 1.0, %v6200
    %v6202 = vmul.f32 %v6191, 1.0614054
    %v6203 = vmul.f32 %v6193, 1.0614054
    %v6204 = vmul.f32 %v6195, 1.0614054
    %v6205 = vmul.f32 %v6197, 1.0614054
    %v6206 = vmul.f32 %v6199, 1.0614054
    %v6207 = vmul.f32 %v6201, 1.0614054
    %v6208 = vsub.f32 %v6202, 1.4531521
    %v6209 = vsub.f32 %v6203, 1.4531521
    %v6210 = vsub.f32 %v6204, 1.4531521
    %v6211 = vsub.f32 %v6205, 1.4531521
    %v6212 = vsub.f32 %v6206, 1.4531521
    %v6213 = vsub.f32 %v6207, 1.4531521
    %v6214 = vmul.f32 %v6208, %v6191
    %v6215 = vmul.f32 %v6209, %v6193
    %v6216 = vmul.f32 %v6210, %v6195
    %v6217 = vmul.f32 %v6211, %v6197
    %v6218 = vmul.f32 %v6212, %v6199
    %v6219 = vmul.f32 %v6213, %v6201
    %v6220 = vadd.f32 %v6214, 1.4214138
    %v6221 = vadd.f32 %v6215, 1.4214138
    %v6222 = vadd.f32 %v6216, 1.4214138
    %v6223 = vadd.f32 %v6217, 1.4214138
    %v6224 = vadd.f32 %v6218, 1.4214138
    %v6225 = vadd.f32 %v6219, 1.4214138
    %v6226 = vmul.f32 %v6220, %v6191
    %v6227 = vmul.f32 %v6221, %v6193
    %v6228 = vmul.f32 %v6222, %v6195
    %v6229 = vmul.f32 %v6223, %v6197
    %v6230 = vmul.f32 %v6224, %v6199
    %v6231 = vmul.f32 %v6225, %v6201
    %v6232 = vsub.f32 %v6226, 0.28449672
    %v6233 = vsub.f32 %v6227, 0.28449672
    %v6234 = vsub.f32 %v6228, 0.28449672
    %v6235 = vsub.f32 %v6229, 0.28449672
    %v6236 = vsub.f32 %v6230, 0.28449672
    %v6237 = vsub.f32 %v6231, 0.28449672
    %v6238 = vmul.f32 %v6232, %v6191
    %v6239 = vmul.f32 %v6233, %v6193
    %v6240 = vmul.f32 %v6234, %v6195
    %v6241 = vmul.f32 %v6235, %v6197
    %v6242 = vmul.f32 %v6236, %v6199
    %v6243 = vmul.f32 %v6237, %v6201
    %v6244 = vadd.f32 %v6238, 0.2548296
    %v6245 = vadd.f32 %v6239, 0.2548296
    %v6246 = vadd.f32 %v6240, 0.2548296
    %v6247 = vadd.f32 %v6241, 0.2548296
    %v6248 = vadd.f32 %v6242, 0.2548296
    %v6249 = vadd.f32 %v6243, 0.2548296
    %v6250 = vmul.f32 %v6244, %v6191
    %v6251 = vmul.f32 %v6245, %v6193
    %v6252 = vmul.f32 %v6246, %v6195
    %v6253 = vmul.f32 %v6247, %v6197
    %v6254 = vmul.f32 %v6248, %v6199
    %v6255 = vmul.f32 %v6249, %v6201
    %v6256 = vsub.f32 0.0, %v6166
    %v6257 = vsub.f32 0.0, %v6167
    %v6258 = vsub.f32 0.0, %v6168
    %v6259 = vsub.f32 0.0, %v6169
    %v6260 = vsub.f32 0.0, %v6170
    %v6261 = vsub.f32 0.0, %v6171
    %v6262 = vmul.f32 %v6256, %v6166
    %v6263 = vmul.f32 %v6257, %v6167
    %v6264 = vmul.f32 %v6258, %v6168
    %v6265 = vmul.f32 %v6259, %v6169
    %v6266 = vmul.f32 %v6260, %v6170
    %v6267 = vmul.f32 %v6261, %v6171
    %v6268 = vmul.f32 %v6262, 1.442695
    %v6269 = vpow.pop %v6268
    %v6270 = vmul.f32 %v6263, 1.442695
    %v6271 = vpow.pop %v6270
    %v6272 = vmul.f32 %v6264, 1.442695
    %v6273 = vpow.pop %v6272
    %v6274 = vmul.f32 %v6265, 1.442695
    %v6275 = vpow.pop %v6274
    %v6276 = vmul.f32 %v6266, 1.442695
    %v6277 = vpow.pop %v6276
    %v6278 = vmul.f32 %v6267, 1.442695
    %v6279 = vpow.pop %v6278
    %v6280 = vmul.f32 %v6250, %v6269
    %v6281 = vmul.f32 %v6251, %v6271
    %v6282 = vmul.f32 %v6252, %v6273
    %v6283 = vmul.f32 %v6253, %v6275
    %v6284 = vmul.f32 %v6254, %v6277
    %v6285 = vmul.f32 %v6255, %v6279
    %v6286 = vsub.f32 1.0, %v6280
    %v6287 = vsub.f32 1.0, %v6281
    %v6288 = vsub.f32 1.0, %v6282
    %v6289 = vsub.f32 1.0, %v6283
    %v6290 = vsub.f32 1.0, %v6284
    %v6291 = vsub.f32 1.0, %v6285
    %vm6292 = vcmp.ge.f32.partialorder %v6166, 0.0
    %vm6293 = vcmp.ge.f32.partialorder %v6167, 0.0
    %vm6294 = vcmp.ge.f32.partialorder %v6168, 0.0
    %vm6295 = vcmp.ge.f32.partialorder %v6169, 0.0
    %vm6296 = vcmp.ge.f32.partialorder %v6170, 0.0
    %vm6297 = vcmp.ge.f32.partialorder %v6171, 0.0
    %v6298 = vsub.f32 0.0, %v6286
    %v6299 = vsub.f32 0.0, %v6287
    %v6300 = vsub.f32 0.0, %v6288
    %v6301 = vsub.f32 0.0, %v6289
    %v6302 = vsub.f32 0.0, %v6290
    %v6303 = vsub.f32 0.0, %v6291
    %v6304 = vsel %vm6292, %v6286, %v6298
    %v6305 = vsel %vm6293, %v6287, %v6299
    %v6306 = vsel %vm6294, %v6288, %v6300
    %v6307 = vsel %vm6295, %v6289, %v6301
    %v6308 = vsel %vm6296, %v6290, %v6302
    %v6309 = vsel %vm6297, %v6291, %v6303
    %v6310 = vadd.f32 %v6304, 1.0
    %v6311 = vadd.f32 %v6305, 1.0
    %v6312 = vadd.f32 %v6306, 1.0
    %v6313 = vadd.f32 %v6307, 1.0
    %v6314 = vadd.f32 %v6308, 1.0
    %v6315 = vadd.f32 %v6309, 1.0
    %v6316 = vmul.f32 %v6160, %v6310
    %v6317 = vmul.f32 %v6161, %v6311
    %v6318 = vmul.f32 %v6162, %v6312
    %v6319 = vmul.f32 %v6163, %v6313
    %v6320 = vmul.f32 %v6164, %v6314
    %v6321 = vmul.f32 %v6165, %v6315
    %v6322 = vpack.c.bf16 %v6317, %v6316
    %v6323 = vpack.c.bf16 %v6319, %v6318
    %v6324 = vpack.c.bf16 %v6321, %v6320
    %s6325 = scalar_lea.vmem %s5, 32
    %v6326 = vld [vmem:[%s6325] sm:$0xf]
    %v6327 = vld [vmem:[%s6325 + $0x4] sm:$0xf]
    %v6328 = vld [vmem:[%s6325 + $0x8] sm:$0xf]
    %v6329 = vld [vmem:[%s6325 + $0xc] sm:$0xf]
    %v6330 = vld [vmem:[%s6325 + $0x10] sm:$0xf]
    %v6331 = vld [vmem:[%s6325 + $0x14] sm:$0xf]
    %v6332 = vld [vmem:[%s6325 + $0x18] sm:$0xf]
    %v6333 = vld [vmem:[%s6325 + $0x1c] sm:$0xf]
    %v6334 = vld [vmem:[%s7 + $0x25] sm:$0x1]
    %v6335 = vlaneseq
    %v6336 = vshrl.u32 %v6335, 7
    %v6337 = vsub.s32 0, %v6336
    %v6338 = vrot.slane %v6334, %v6337
    %v6347 = vunpack.c.l.b16 %v6326
    %v6348 = vunpack.c.l.b16 %v6327
    %v6349 = vunpack.c.l.b16 %v6328
    %v6350 = vunpack.c.l.b16 %v6329
    %v6351 = vunpack.c.l.b16 %v6330
    %v6352 = vunpack.c.l.b16 %v6331
    %v6353 = vunpack.c.l.b16 %v6332
    %v6354 = vunpack.c.l.b16 %v6333
    %v6355 = vpack.c.b16 %v6348, %v6347
    %v6356 = vpack.c.b16 %v6350, %v6349
    %v6357 = vpack.c.b16 %v6352, %v6351
    %v6358 = vpack.c.b16 %v6354, %v6353
    %v6364 = vsel %vm584, %v6322, 0
    %v6367 = vsel %vm584, %v6323, 0
    %v6370 = vsel %vm584, %v6324, 0
    %6372 = vmatprep.subr.bf16.mxu0 0
    %6373 = vmatpush1.bf16.msra.mxu0 0
    %6374 = vmatprep.subr.bf16.mxu0 0
    %6375 = vmatpush1.bf16.msra.mxu0 0
    %6376 = vmatprep.subr.bf16.mxu0 0
    %6377 = vmatpush1.bf16.msra.mxu0 0
    %6378 = vmatprep.subr.bf16.mxu0 0
    %6379 = vmatpush1.bf16.msra.mxu0 0
    %6380 = vmatprep.subr.bf16.mxu0 0
    %6381 = vmatpush1.bf16.msra.mxu0 %v6358
    %6382 = vmatprep.subr.bf16.mxu0 0
    %6383 = vmatpush1.bf16.msra.mxu0 %v6357
    %6384 = vmatprep.subr.bf16.mxu0 0
    %6385 = vmatpush1.bf16.msra.mxu0 %v6356
    %6386 = vmatprep.subr.bf16.mxu0 0
    %6387 = vmatpush1.bf16.msra.mxu0 %v6355
    %6388 = vmatprep.subr.bf16.mxu0 0
    %6389 = vmatpush2.bf16.msra.mxu0 0
    %6390 = vmatprep.subr.bf16.mxu0 0
    %6391 = vmatpush2.bf16.msra.mxu0 0
    %6392 = vmatprep.subr.bf16.mxu0 0
    %6393 = vmatpush2.bf16.msra.mxu0 0
    %6394 = vmatprep.subr.bf16.mxu0 0
    %6395 = vmatpush2.bf16.msra.mxu0 0
    %6396 = vmatprep.subr.bf16.mxu0 0
    %6397 = vmatpush2.bf16.msra.mxu0 0
    %6398 = vmatprep.subr.bf16.mxu0 0
    %6399 = vmatpush2.bf16.msra.mxu0 0
    %6400 = vmatprep.subr.bf16.mxu0 0
    %6401 = vmatpush2.bf16.msra.mxu0 0
    %6402 = vmatprep.subr.bf16.mxu0 0
    %6403 = vmatpush2.bf16.msra.mxu0 0
    %6404 = vmatprep.mubr.bf16.mxu0 0
    %6405 = vmatmul.mubr.bf16.gmra.mxu0 %v6364
    %v6406 = vpop.f32.mrf.mxu0
    %v6407 = vadd.f32 %v6338, %v6406
    %v6408 = vpop.f32.mrf.mxu0
    %v6409 = vpop.f32.mrf.mxu0
    %v6410 = vpop.f32.mrf.mxu0
    %6411 = vmatprep.mubr.bf16.mxu0 0
    %6412 = vmatmul.mubr.bf16.gmra.mxu0 %v6367
    %v6413 = vpop.f32.mrf.mxu0
    %v6414 = vpop.f32.mrf.mxu0
    %v6415 = vpop.f32.mrf.mxu0
    %v6416 = vadd.f32 %v6338, %v6415
    %v6417 = vpop.f32.mrf.mxu0
    %6418 = vmatprep.mubr.bf16.mxu0 0
    %6419 = vmatmul.mubr.bf16.gmra.mxu0 %v6370
    %v6420 = vpop.f32.mrf.mxu0
    %v6421 = vpop.f32.mrf.mxu0
    %v6422 = vpop.f32.mrf.mxu0
    %v6423 = vpop.f32.mrf.mxu0
    %6424 = vdwg.mxu0
    %v6425 = vadd.f32 %v5963, %v6407
    %v6426 = vadd.f32 %v5966, %v6416
    %v6428 = vrot.slane %v6426, 7
    %vm6430 = vcmask 1040384
    %v6431 = vsel %vm6430, %v6425, %v6428
    %v6432 = vld [vmem:[%s7 + $0x26] sm:$0x1]
    %v6433 = vld [vmem:[%s7 + $0x27] sm:$0x1]
    %vm6434 = vcmask 254976
    %v6435 = vsel %vm6434, %v6431, 0.0
    %6436 = vadd.xlane.f32.xlu0 %v6435
    %v6437 = vpop.xlane.xlu0 %6436
    %v6438 = vmul.f32 %v6437, %v226
    %v6439 = vsub.f32 %v6431, %v6438
    %v6440 = vmul.f32 %v6439, %v6439
    %v6441 = vsel %vm6434, %v6440, 0.0
    %6442 = vadd.xlane.f32.xlu0 %v6441
    %v6443 = vpop.xlane.xlu0 %6442
    %v6444 = vmul.f32 %v6443, %v226
    %v6445 = vadd.f32 %v6444, 1e-05
    %v6446 = vrsqrt.pop %v6445
    %v6447 = vmul.f32 %v6439, %v6446
    %v6448 = vlaneseq
    %v6449 = vshrl.u32 %v6448, 7
    %v6450 = vsub.s32 0, %v6449
    %v6451 = vrot.slane %v6432, %v6450
    %v6452 = vmul.f32 %v6447, %v6451
    %v6453 = vlaneseq
    %v6454 = vshrl.u32 %v6453, 7
    %v6455 = vsub.s32 0, %v6454
    %v6456 = vrot.slane %v6433, %v6455
    %v6457 = vadd.f32 %v6452, %v6456
    %v6458 = vld [vmem:[%s6] sm:$0xff]
    %v6459 = vld [vmem:[%s6 + $0x8] sm:$0xff]
    %v6460 = vld [vmem:[%s6 + $0x10] sm:$0xff]
    %v6461 = vld [vmem:[%s6 + $0x18] sm:$0xff]
    %v6462 = vld [vmem:[%s7 + $0x28] sm:$0x1]
    %v6463 = vlaneseq
    %v6464 = vshrl.u32 %v6463, 7
    %v6465 = vsub.s32 0, %v6464
    %v6466 = vrot.slane %v6462, %v6465
    %v6468 = vsel %vm207, %v6457, 0
    %6470 = vmatprep.subr.mxu0 0.0
    %6471 = vmatpush1.msra.mxu0 0.0
    %6472 = vmatprep.subr.mxu0 0.0
    %6473 = vmatpush1.msra.mxu0 0.0
    %6474 = vmatprep.subr.mxu0 0.0
    %6475 = vmatpush1.msra.mxu0 0.0
    %6476 = vmatprep.subr.mxu0 0.0
    %6477 = vmatpush1.msra.mxu0 0.0
    %6478 = vmatprep.subr.mxu0 0.0
    %6479 = vmatpush1.msra.mxu0 0.0
    %6480 = vmatprep.subr.mxu0 0.0
    %6481 = vmatpush1.msra.mxu0 0.0
    %6482 = vmatprep.subr.mxu0 0.0
    %6483 = vmatpush1.msra.mxu0 0.0
    %6484 = vmatprep.subr.mxu0 0.0
    %6485 = vmatpush1.msra.mxu0 0.0
    %6486 = vmatprep.subr.mxu0 0.0
    %6487 = vmatpush1.msra.mxu0 0.0
    %6488 = vmatprep.subr.mxu0 0.0
    %6489 = vmatpush1.msra.mxu0 0.0
    %6490 = vmatprep.subr.mxu0 0.0
    %6491 = vmatpush1.msra.mxu0 0.0
    %6492 = vmatprep.subr.mxu0 0.0
    %6493 = vmatpush1.msra.mxu0 0.0
    %6494 = vmatprep.subr.mxu0 0.0
    %6495 = vmatpush1.msra.mxu0 %v6461
    %6496 = vmatprep.subr.mxu0 0.0
    %6497 = vmatpush1.msra.mxu0 %v6460
    %6498 = vmatprep.subr.mxu0 0.0
    %6499 = vmatpush1.msra.mxu0 %v6459
    %6500 = vmatprep.subr.mxu0 0.0
    %6501 = vmatpush1.msra.mxu0 %v6458
    %6502 = vmatprep.subr.mxu0 0.0
    %6503 = vmatpush2.msra.mxu0 0.0
    %6504 = vmatprep.subr.mxu0 0.0
    %6505 = vmatpush2.msra.mxu0 0.0
    %6506 = vmatprep.subr.mxu0 0.0
    %6507 = vmatpush2.msra.mxu0 0.0
    %6508 = vmatprep.subr.mxu0 0.0
    %6509 = vmatpush2.msra.mxu0 0.0
    %6510 = vmatprep.subr.mxu0 0.0
    %6511 = vmatpush2.msra.mxu0 0.0
    %6512 = vmatprep.subr.mxu0 0.0
    %6513 = vmatpush2.msra.mxu0 0.0
    %6514 = vmatprep.subr.mxu0 0.0
    %6515 = vmatpush2.msra.mxu0 0.0
    %6516 = vmatprep.subr.mxu0 0.0
    %6517 = vmatpush2.msra.mxu0 0.0
    %6518 = vmatprep.subr.mxu0 0.0
    %6519 = vmatpush2.msra.mxu0 0.0
    %6520 = vmatprep.subr.mxu0 0.0
    %6521 = vmatpush2.msra.mxu0 0.0
    %6522 = vmatprep.subr.mxu0 0.0
    %6523 = vmatpush2.msra.mxu0 0.0
    %6524 = vmatprep.subr.mxu0 0.0
    %6525 = vmatpush2.msra.mxu0 0.0
    %6526 = vmatprep.subr.mxu0 0.0
    %6527 = vmatpush2.msra.mxu0 0.0
    %6528 = vmatprep.subr.mxu0 0.0
    %6529 = vmatpush2.msra.mxu0 0.0
    %6530 = vmatprep.subr.mxu0 0.0
    %6531 = vmatpush2.msra.mxu0 0.0
    %6532 = vmatprep.subr.mxu0 0.0
    %6533 = vmatpush2.msra.mxu0 0.0
    %6534 = vmatprep.mubr.f32.mxu0 0.0
    %6535 = vmatmul.mubr.f32.gmra.mxu0 %v6468
    %v6536 = vpop.f32.mrf.mxu0
    %v6537 = vadd.f32 %v6466, %v6536
    %v6538 = vpop.f32.mrf.mxu0
    %6539 = vdwg.mxu0
    %vm6540 = vcmask 74752
    %6541 = vst.msk [vmem:[#allocation6] sm:$0x3] %vm6540, %v6537
    // Predicated region
    $region42: #{reference_transformer_forward.1} parent=1 // pred_check
      _
    $region43: #{reference_transformer_forward.1} parent=1 // pred_check_branch
      %6543 = sbr.rel (0) target = $region45
    $region44: #{reference_transformer_forward.1} parent=1 // pred_region
      %s6545 = ssub.s32 32, 32
      %6546 = vsyncadd [#allocation4], %s6545
      %s6548 = sshll.u32 [#allocation6], 4
      %s6549 = int_to_ptr.vmem [resolvable:$true] %s6548
      %6551 = dma.vmem_to_hbm [thread:$0]  %s6549, 32, %s9, [#allocation4]
    $region45: #{reference_transformer_forward.1} parent=1 // pred_fallthru
      _
    // Predicated region
    $region46: #{reference_transformer_forward.1} parent=1 // pred_check
      _
    $region47: #{reference_transformer_forward.1} parent=1 // pred_check_branch
      %6553 = sbr.rel (0) target = $region49
    $region48: #{reference_transformer_forward.1} parent=1 // pred_region
      %6554 = dma.done [#allocation4], 32
    $region49: #{reference_transformer_forward.1} parent=1 // pred_fallthru
      _
    %6555 = vsyncpa [#allocation4], 1
    %6556 = vsyncpa [#allocation5], 1

</llo_original>
